<compile_context>
chip_gen: v7x
topology: tpu7x:2x2x1
jax: 0.10.0
libtpu: 0.0.40
codegen_flags: <defaults>
</compile_context>

<pallas_src>
import functools

import jax
import jax.numpy as jnp
from jax.experimental import pallas as pl
from jax.experimental.pallas import tpu as pltpu

NEG_INF = -1e9


def _round_up(x, m):
    return ((x + m - 1) // m) * m


def full_model_kernel(emb_a_ref, emb_c_ref, mask_ref,
                      wenc_ref, benc_ref, wqkv_ref,
                      w1_ref, b1_ref, w2_ref, b2_ref,
                      out_ref, qa_s, ka_s, va_s, *, n_cards):
    """One grid step == BB batch elements, batch held in the lane dimension.

    emb_a_ref : (T, D, BB) bf16   summed action-field embeddings
    emb_c_ref : (C, D, BB) bf16   summed card-field embeddings (C = 7, no pad)
    mask_ref  : (T, BB)    f32    action validity mask {0,1}
    wenc_ref  : (2, D, D)  bf16   encoder weights (out, in): [actions, cards]
    benc_ref  : (2, D, 1)  f32    encoder biases
    wqkv_ref  : (2, 3D, D) bf16   fused [Wq/sqrt(D); Wk; Wv] per side (out, in)
    w1_ref    : (D, 2D)    bf16   MLP-1 weight for concat([pool_a, pool_c])
    b1_ref    : (D, 1)     f32
    w2_ref    : (1, D)     bf16
    b2_ref    : (1, 1)     f32
    out_ref   : (1, BB)    f32    lane-dense EV row
    qa_s/ka_s/va_s : (T, D, BB) f32 VMEM scratch for the action-side Q/K/V.
    """
    f32 = jnp.float32
    bf16 = jnp.bfloat16
    T, D, BB = emb_a_ref.shape
    C = n_cards

    w_enc_a, w_enc_c = wenc_ref[0], wenc_ref[1]
    b_enc_a, b_enc_c = benc_ref[0], benc_ref[1]
    w_qkv_a, w_qkv_c = wqkv_ref[0], wqkv_ref[1]

    # ---- per-position encoder + fused QKV (MXU, BB lanes of output) ---------
    for t in range(T):
        x = emb_a_ref[t]                                            # (D, BB) bf16
        h = jnp.dot(w_enc_a, x, preferred_element_type=f32) + b_enc_a
        h = jnp.maximum(h, 0.0).astype(bf16)                        # (D, BB)
        qkv = jnp.dot(w_qkv_a, h, preferred_element_type=f32)       # (3D, BB) f32
        qa_s[t] = qkv[0:D]                                          # sublane slices
        ka_s[t] = qkv[D:2 * D]
        va_s[t] = qkv[2 * D:3 * D]

    qc_l, kc_l, vc_l = [], [], []
    for c in range(C):
        x = emb_c_ref[c]                                            # (D, BB) bf16
        h = jnp.dot(w_enc_c, x, preferred_element_type=f32) + b_enc_c
        h = jnp.maximum(h, 0.0).astype(bf16)
        qkv = jnp.dot(w_qkv_c, h, preferred_element_type=f32)       # (3D, BB) f32
        qc_l.append(qkv[0:D])
        kc_l.append(qkv[D:2 * D])
        vc_l.append(qkv[2 * D:3 * D])

    qa = qa_s[...]                                                  # (T, D, BB) f32
    ka = ka_s[...]
    va = va_s[...]

    mask = mask_ref[...]                                            # (T, BB) f32
    abias = jnp.where(mask > 0.0, 0.0, NEG_INF)                     # action key bias

    # ---- actions attend to cards (softmax over the C per-card score maps) ---
    # s_ac[c] : (T, BB); VPU multiply + reduce over D (sublanes), lane-parallel.
    s_ac = [jnp.sum(qa * kc_l[c][None, :, :], axis=1) for c in range(C)]
    m_ac = s_ac[0]
    for c in range(1, C):
        m_ac = jnp.maximum(m_ac, s_ac[c])
    e_ac = [jnp.exp(s_ac[c] - m_ac) for c in range(C)]              # EUP
    den_ac = e_ac[0]
    for c in range(1, C):
        den_ac = den_ac + e_ac[c]
    inv_ac = pl.reciprocal(den_ac, approx=True)                     # (T, BB)

    # masked-mean pooling over actions folded into the PV contraction:
    #   pool_a[d,b] = (1/den[b]) * sum_c vc[c,d,b] * sum_t mask[t,b]*p_ac[t,c,b]
    denom = jnp.maximum(jnp.sum(mask, axis=0, keepdims=True), 1.0)  # (1, BB)
    inv_n = pl.reciprocal(denom, approx=True)
    mw = mask * inv_ac                                              # (T, BB)
    pool_a = jnp.zeros((D, BB), f32)
    for c in range(C):
        wsum = jnp.sum(mw * e_ac[c], axis=0, keepdims=True)         # (1, BB)
        pool_a = pool_a + wsum * vc_l[c]
    pool_a = pool_a * inv_n                                         # (D, BB)

    # ---- cards attend to actions (per-card softmax over T, action-masked) ---
    #   pool_c[d,b] = (1/C) * sum_t va[t,d,b] * sum_c p_ca[c,t,b]
    psum = jnp.zeros((T, BB), f32)
    for c in range(C):
        s = jnp.sum(ka * qc_l[c][None, :, :], axis=1) + abias       # (T, BB)
        m = jnp.max(s, axis=0, keepdims=True)                       # (1, BB)
        e = jnp.exp(s - m)
        p = e * pl.reciprocal(jnp.sum(e, axis=0, keepdims=True), approx=True)
        psum = psum + p
    pool_c = jnp.sum(psum[:, None, :] * va, axis=0) * (1.0 / C)     # (D, BB)

    # ---- output MLP (batch stays in lanes) -----------------------------------
    pooled = jnp.concatenate([pool_a, pool_c], axis=0).astype(bf16)  # (2D, BB)
    h = jnp.dot(w1_ref[...], pooled, preferred_element_type=f32) + b1_ref[...]
    h = jnp.maximum(h, 0.0).astype(bf16)                             # (D, BB)
    ev = jnp.dot(w2_ref[...], h, preferred_element_type=f32) + b2_ref[...]
    out_ref[...] = ev                                                # (1, BB)


def init_params(key, D=32, n_action_fields=5, n_card_fields=3,
                vocab_actions=32, vocab_cards=64):
    keys = jax.random.split(key, 16)

    def nrm(k, shape, scale=0.05):
        return jax.random.normal(k, shape, jnp.float32) * scale

    inv_sqrt_d = 1.0 / (D ** 0.5)
    # All linear weights stored in (out, in) orientation (kernel computes W @ x).
    wq_a, wk_a, wv_a = nrm(keys[2], (D, D)), nrm(keys[3], (D, D)), nrm(keys[4], (D, D))
    wq_c, wk_c, wv_c = nrm(keys[5], (D, D)), nrm(keys[6], (D, D)), nrm(keys[7], (D, D))
    return {
        "emb_actions": nrm(keys[0], (n_action_fields, vocab_actions, D)),
        "emb_cards":   nrm(keys[1], (n_card_fields, vocab_cards, D)),
        "w_enc": jnp.stack([nrm(keys[8], (D, D)),
                            nrm(keys[9], (D, D))]).astype(jnp.bfloat16),   # (2,D,D)
        "b_enc": nrm(keys[10], (2, D, 1)),
        # fused QKV, 1/sqrt(D) folded into Wq rows; [from-actions, from-cards]
        "w_qkv": jnp.stack([
            jnp.concatenate([wq_a * inv_sqrt_d, wk_a, wv_a], axis=0),
            jnp.concatenate([wq_c * inv_sqrt_d, wk_c, wv_c], axis=0),
        ]).astype(jnp.bfloat16),                                           # (2,3D,D)
        "w1": nrm(keys[11], (D, 2 * D)).astype(jnp.bfloat16),              # (D,2D)
        "b1": nrm(keys[12], (D, 1)),
        "w2": nrm(keys[13], (1, D)).astype(jnp.bfloat16),                  # (1,D)
        "b2": nrm(keys[14], (1, 1)),
    }


def _fused_embed(tables, idx):
    """tables: (F, V, D); idx: (B, S, F) int -> (B, S, D) summed over fields."""
    F, V, D = tables.shape
    flat = tables.reshape(F * V, D)
    off = jnp.arange(F, dtype=idx.dtype) * V
    return jnp.take(flat, idx + off, axis=0).sum(axis=2)


def _choose_block(b):
    """Batch block: multiple of 128 lanes, capped at 512, >=2 grid steps when possible."""
    b128 = _round_up(max(b, 1), 128)
    if b128 <= 128:
        return 128
    return min(512, _round_up(b128 // 2, 128))


def full_model_forward(params, x_actions, x_cards, x_actions_mask=None):
    """x_actions: (B,T,5) int32, x_cards: (B,7,3) int32, mask: (B,T) bool -> (B,) f32."""
    B, T, _ = x_actions.shape
    C = x_cards.shape[1]
    D = params["w_enc"].shape[-1]

    if x_actions_mask is None:
        x_actions_mask = jnp.ones((B, T), dtype=bool)

    # Embedding gather + field-sum (plain-JAX glue), laid out batch-in-lanes, bf16.
    # TODO(synk): fuse this gather into the kernel (scalar-prefetch ids + one-hot
    # matmul against VMEM-resident tables) to drop the HBM round trip entirely.
    emb_a = _fused_embed(params["emb_actions"], x_actions)           # (B, T, D) f32
    emb_c = _fused_embed(params["emb_cards"], x_cards)               # (B, C, D) f32
    emb_a = jnp.transpose(emb_a, (1, 2, 0)).astype(jnp.bfloat16)     # (T, D, B)
    emb_c = jnp.transpose(emb_c, (1, 2, 0)).astype(jnp.bfloat16)     # (C, D, B)
    mask = jnp.transpose(x_actions_mask.astype(jnp.float32))         # (T, B)

    BB = _choose_block(B)
    B_pad = _round_up(B, BB)
    if B_pad != B:
        pad = B_pad - B
        emb_a = jnp.pad(emb_a, ((0, 0), (0, 0), (0, pad)))
        emb_c = jnp.pad(emb_c, ((0, 0), (0, 0), (0, pad)))
        mask = jnp.pad(mask, ((0, 0), (0, pad)))                     # padded cols masked
    NB = B_pad // BB

    kernel = functools.partial(full_model_kernel, n_cards=C)

    def _full(a):
        zeros = (0,) * a.ndim
        return pl.BlockSpec(a.shape, lambda b, _z=zeros: _z)

    out = pl.pallas_call(
        kernel,
        out_shape=jax.ShapeDtypeStruct((1, B_pad), jnp.float32),
        grid=(NB,),
        in_specs=[
            pl.BlockSpec((T, D, BB), lambda b: (0, 0, b)),           # emb_a
            pl.BlockSpec((C, D, BB), lambda b: (0, 0, b)),           # emb_c
            pl.BlockSpec((T, BB), lambda b: (0, b)),                 # mask
            _full(params["w_enc"]),
            _full(params["b_enc"]),
            _full(params["w_qkv"]),
            _full(params["w1"]),
            _full(params["b1"]),
            _full(params["w2"]),
            _full(params["b2"]),
        ],
        out_specs=pl.BlockSpec((1, BB), lambda b: (0, b)),
        scratch_shapes=[pltpu.VMEM((T, D, BB), jnp.float32)] * 3,    # qa / ka / va
        compiler_params=pltpu.CompilerParams(
            dimension_semantics=("parallel",),
            vmem_limit_bytes=48 * 1024 * 1024),
    )(emb_a, emb_c, mask,
      params["w_enc"], params["b_enc"], params["w_qkv"],
      params["w1"], params["b1"], params["w2"], params["b2"])

    return out.reshape(B_pad)[:B]


if __name__ == "__main__":
    B, T, C, D = 2, 8, 7, 32
    key = jax.random.PRNGKey(0)
    pk, ak, ck = jax.random.split(key, 3)

    params = init_params(pk, D=D)
    x_actions = jax.random.randint(ak, (B, T, 5), 0, 32, dtype=jnp.int32)
    x_cards = jax.random.randint(ck, (B, C, 3), 0, 64, dtype=jnp.int32)
    lengths = jnp.array([T, 5], dtype=jnp.int32)
    x_actions_mask = jnp.arange(T)[None, :] < lengths[:, None]       # (B, T) bool

    predicted_ev = full_model_forward(params, x_actions, x_cards, x_actions_mask)
    predicted_ev = jax.block_until_ready(predicted_ev)

    assert predicted_ev.shape == (B,)
    assert bool(jnp.all(jnp.isfinite(predicted_ev)))
    print("KERNEL_OK")
</pallas_src>

<mosaic_0001>
module attributes {stable_mosaic.version = 11 : i64} {
  func.func @full_model_kernel(%arg0: i32, %arg1: memref<8x32x128xbf16, #tpu.memory_space<vmem>>, %arg2: memref<7x32x128xbf16, #tpu.memory_space<vmem>>, %arg3: memref<8x128xf32, #tpu.memory_space<vmem>>, %arg4: memref<2x32x32xbf16, #tpu.memory_space<vmem>>, %arg5: memref<2x32x1xf32, #tpu.memory_space<vmem>>, %arg6: memref<2x96x32xbf16, #tpu.memory_space<vmem>>, %arg7: memref<32x64xbf16, #tpu.memory_space<vmem>>, %arg8: memref<32x1xf32, #tpu.memory_space<vmem>>, %arg9: memref<1x32xbf16, #tpu.memory_space<vmem>>, %arg10: memref<1x1xf32, #tpu.memory_space<vmem>>, %arg11: memref<1x128xf32, #tpu.memory_space<vmem>>, %arg12: memref<8x32x128xf32, #tpu.memory_space<vmem>>, %arg13: memref<8x32x128xf32, #tpu.memory_space<vmem>>, %arg14: memref<8x32x128xf32, #tpu.memory_space<vmem>>) attributes {dimension_semantics = [#tpu.dimension_semantics<parallel>], iteration_bounds = array<i64: 1>, scalar_prefetch = 0 : i64, scratch_operands = 3 : i64, tpu.core_type = #tpu.core_type<tc>, window_params = [{transform_indices = @transform_0, window_bounds = array<i64: 8, 32, 128>}, {transform_indices = @transform_1, window_bounds = array<i64: 7, 32, 128>}, {transform_indices = @transform_2, window_bounds = array<i64: 8, 128>}, {pipeline_mode = #tpu.pipeline_mode<synchronous>, transform_indices = @transform_3, window_bounds = array<i64: 2, 32, 32>}, {pipeline_mode = #tpu.pipeline_mode<synchronous>, transform_indices = @transform_4, window_bounds = array<i64: 2, 32, 1>}, {pipeline_mode = #tpu.pipeline_mode<synchronous>, transform_indices = @transform_5, window_bounds = array<i64: 2, 96, 32>}, {pipeline_mode = #tpu.pipeline_mode<synchronous>, transform_indices = @transform_6, window_bounds = array<i64: 32, 64>}, {pipeline_mode = #tpu.pipeline_mode<synchronous>, transform_indices = @transform_7, window_bounds = array<i64: 32, 1>}, {pipeline_mode = #tpu.pipeline_mode<synchronous>, transform_indices = @transform_8, window_bounds = array<i64: 1, 32>}, {pipeline_mode = #tpu.pipeline_mode<synchronous>, transform_indices = @transform_9, window_bounds = array<i64: 1, 1>}, {transform_indices = @transform_10, window_bounds = array<i64: 1, 128>}]} {
    %c0 = arith.constant 0 : index
    %c0_0 = arith.constant 0 : index
    %c0_1 = arith.constant 0 : index
    %0 = vector.load %arg4[%c0, %c0_0, %c0_1] : memref<2x32x32xbf16, #tpu.memory_space<vmem>>, vector<1x32x32xbf16>
    %1 = vector.shape_cast %0 : vector<1x32x32xbf16> to vector<32x32xbf16>
    %c1 = arith.constant 1 : index
    %c0_2 = arith.constant 0 : index
    %c0_3 = arith.constant 0 : index
    %2 = vector.load %arg4[%c1, %c0_2, %c0_3] : memref<2x32x32xbf16, #tpu.memory_space<vmem>>, vector<1x32x32xbf16>
    %3 = vector.shape_cast %2 : vector<1x32x32xbf16> to vector<32x32xbf16>
    %c0_4 = arith.constant 0 : index
    %c0_5 = arith.constant 0 : index
    %c0_6 = arith.constant 0 : index
    %4 = vector.load %arg5[%c0_4, %c0_5, %c0_6] : memref<2x32x1xf32, #tpu.memory_space<vmem>>, vector<1x32x1xf32>
    %5 = vector.shape_cast %4 : vector<1x32x1xf32> to vector<32x1xf32>
    %c1_7 = arith.constant 1 : index
    %c0_8 = arith.constant 0 : index
    %c0_9 = arith.constant 0 : index
    %6 = vector.load %arg5[%c1_7, %c0_8, %c0_9] : memref<2x32x1xf32, #tpu.memory_space<vmem>>, vector<1x32x1xf32>
    %7 = vector.shape_cast %6 : vector<1x32x1xf32> to vector<32x1xf32>
    %c0_10 = arith.constant 0 : index
    %c0_11 = arith.constant 0 : index
    %c0_12 = arith.constant 0 : index
    %8 = vector.load %arg6[%c0_10, %c0_11, %c0_12] : memref<2x96x32xbf16, #tpu.memory_space<vmem>>, vector<1x96x32xbf16>
    %9 = vector.shape_cast %8 : vector<1x96x32xbf16> to vector<96x32xbf16>
    %c1_13 = arith.constant 1 : index
    %c0_14 = arith.constant 0 : index
    %c0_15 = arith.constant 0 : index
    %10 = vector.load %arg6[%c1_13, %c0_14, %c0_15] : memref<2x96x32xbf16, #tpu.memory_space<vmem>>, vector<1x96x32xbf16>
    %11 = vector.shape_cast %10 : vector<1x96x32xbf16> to vector<96x32xbf16>
    %c0_16 = arith.constant 0 : index
    %c0_17 = arith.constant 0 : index
    %c0_18 = arith.constant 0 : index
    %12 = vector.load %arg1[%c0_16, %c0_17, %c0_18] : memref<8x32x128xbf16, #tpu.memory_space<vmem>>, vector<1x32x128xbf16>
    %13 = vector.shape_cast %12 : vector<1x32x128xbf16> to vector<32x128xbf16>
    %cst = arith.constant dense<0.000000e+00> : vector<32x128xf32>
    %14 = tpu.matmul %1, %13, %cst {dimension_numbers = #tpu.dot_dimension_numbers<[1], [0], [0], [1], [0, 0, 1, 1], [], []>} : vector<32x32xbf16>, vector<32x128xbf16>, vector<32x128xf32> -> vector<32x128xf32>
    %15 = vector.broadcast %5 : vector<32x1xf32> to vector<32x128xf32>
    %16 = arith.addf %14, %15 : vector<32x128xf32>
    %cst_19 = arith.constant 0.000000e+00 : f32
    %17 = vector.broadcast %cst_19 : f32 to vector<32x128xf32>
    %18 = arith.maximumf %16, %17 : vector<32x128xf32>
    %19 = arith.truncf %18 : vector<32x128xf32> to vector<32x128xbf16>
    %cst_20 = arith.constant dense<0.000000e+00> : vector<96x128xf32>
    %20 = tpu.matmul %9, %19, %cst_20 {dimension_numbers = #tpu.dot_dimension_numbers<[1], [0], [0], [1], [0, 0, 1, 1], [], []>} : vector<96x32xbf16>, vector<32x128xbf16>, vector<96x128xf32> -> vector<96x128xf32>
    %21 = vector.extract_strided_slice %20 {offsets = [0, 0], sizes = [32, 128], strides = [1, 1]} : vector<96x128xf32> to vector<32x128xf32>
    %c0_21 = arith.constant 0 : index
    %c0_22 = arith.constant 0 : index
    %c0_23 = arith.constant 0 : index
    %22 = vector.load %arg12[%c0_21, %c0_22, %c0_23] : memref<8x32x128xf32, #tpu.memory_space<vmem>>, vector<1x32x128xf32>
    %23 = vector.shape_cast %22 : vector<1x32x128xf32> to vector<32x128xf32>
    %24 = vector.shape_cast %21 : vector<32x128xf32> to vector<1x32x128xf32>
    tpu.vector_store %arg12[%c0_21, %c0_22, %c0_23], %24 {strides = array<i32>} : memref<8x32x128xf32, #tpu.memory_space<vmem>>, vector<1x32x128xf32>,
    %25 = vector.extract_strided_slice %20 {offsets = [32, 0], sizes = [32, 128], strides = [1, 1]} : vector<96x128xf32> to vector<32x128xf32>
    %c0_24 = arith.constant 0 : index
    %c0_25 = arith.constant 0 : index
    %c0_26 = arith.constant 0 : index
    %26 = vector.load %arg13[%c0_24, %c0_25, %c0_26] : memref<8x32x128xf32, #tpu.memory_space<vmem>>, vector<1x32x128xf32>
    %27 = vector.shape_cast %26 : vector<1x32x128xf32> to vector<32x128xf32>
    %28 = vector.shape_cast %25 : vector<32x128xf32> to vector<1x32x128xf32>
    tpu.vector_store %arg13[%c0_24, %c0_25, %c0_26], %28 {strides = array<i32>} : memref<8x32x128xf32, #tpu.memory_space<vmem>>, vector<1x32x128xf32>,
    %29 = vector.extract_strided_slice %20 {offsets = [64, 0], sizes = [32, 128], strides = [1, 1]} : vector<96x128xf32> to vector<32x128xf32>
    %c0_27 = arith.constant 0 : index
    %c0_28 = arith.constant 0 : index
    %c0_29 = arith.constant 0 : index
    %30 = vector.load %arg14[%c0_27, %c0_28, %c0_29] : memref<8x32x128xf32, #tpu.memory_space<vmem>>, vector<1x32x128xf32>
    %31 = vector.shape_cast %30 : vector<1x32x128xf32> to vector<32x128xf32>
    %32 = vector.shape_cast %29 : vector<32x128xf32> to vector<1x32x128xf32>
    tpu.vector_store %arg14[%c0_27, %c0_28, %c0_29], %32 {strides = array<i32>} : memref<8x32x128xf32, #tpu.memory_space<vmem>>, vector<1x32x128xf32>,
    %c1_30 = arith.constant 1 : index
    %c0_31 = arith.constant 0 : index
    %c0_32 = arith.constant 0 : index
    %33 = vector.load %arg1[%c1_30, %c0_31, %c0_32] : memref<8x32x128xbf16, #tpu.memory_space<vmem>>, vector<1x32x128xbf16>
    %34 = vector.shape_cast %33 : vector<1x32x128xbf16> to vector<32x128xbf16>
    %cst_33 = arith.constant dense<0.000000e+00> : vector<32x128xf32>
    %35 = tpu.matmul %1, %34, %cst_33 {dimension_numbers = #tpu.dot_dimension_numbers<[1], [0], [0], [1], [0, 0, 1, 1], [], []>} : vector<32x32xbf16>, vector<32x128xbf16>, vector<32x128xf32> -> vector<32x128xf32>
    %36 = vector.broadcast %5 : vector<32x1xf32> to vector<32x128xf32>
    %37 = arith.addf %35, %36 : vector<32x128xf32>
    %cst_34 = arith.constant 0.000000e+00 : f32
    %38 = vector.broadcast %cst_34 : f32 to vector<32x128xf32>
    %39 = arith.maximumf %37, %38 : vector<32x128xf32>
    %40 = arith.truncf %39 : vector<32x128xf32> to vector<32x128xbf16>
    %cst_35 = arith.constant dense<0.000000e+00> : vector<96x128xf32>
    %41 = tpu.matmul %9, %40, %cst_35 {dimension_numbers = #tpu.dot_dimension_numbers<[1], [0], [0], [1], [0, 0, 1, 1], [], []>} : vector<96x32xbf16>, vector<32x128xbf16>, vector<96x128xf32> -> vector<96x128xf32>
    %42 = vector.extract_strided_slice %41 {offsets = [0, 0], sizes = [32, 128], strides = [1, 1]} : vector<96x128xf32> to vector<32x128xf32>
    %c1_36 = arith.constant 1 : index
    %c0_37 = arith.constant 0 : index
    %c0_38 = arith.constant 0 : index
    %43 = vector.load %arg12[%c1_36, %c0_37, %c0_38] : memref<8x32x128xf32, #tpu.memory_space<vmem>>, vector<1x32x128xf32>
    %44 = vector.shape_cast %43 : vector<1x32x128xf32> to vector<32x128xf32>
    %45 = vector.shape_cast %42 : vector<32x128xf32> to vector<1x32x128xf32>
    tpu.vector_store %arg12[%c1_36, %c0_37, %c0_38], %45 {strides = array<i32>} : memref<8x32x128xf32, #tpu.memory_space<vmem>>, vector<1x32x128xf32>,
    %46 = vector.extract_strided_slice %41 {offsets = [32, 0], sizes = [32, 128], strides = [1, 1]} : vector<96x128xf32> to vector<32x128xf32>
    %c1_39 = arith.constant 1 : index
    %c0_40 = arith.constant 0 : index
    %c0_41 = arith.constant 0 : index
    %47 = vector.load %arg13[%c1_39, %c0_40, %c0_41] : memref<8x32x128xf32, #tpu.memory_space<vmem>>, vector<1x32x128xf32>
    %48 = vector.shape_cast %47 : vector<1x32x128xf32> to vector<32x128xf32>
    %49 = vector.shape_cast %46 : vector<32x128xf32> to vector<1x32x128xf32>
    tpu.vector_store %arg13[%c1_39, %c0_40, %c0_41], %49 {strides = array<i32>} : memref<8x32x128xf32, #tpu.memory_space<vmem>>, vector<1x32x128xf32>,
    %50 = vector.extract_strided_slice %41 {offsets = [64, 0], sizes = [32, 128], strides = [1, 1]} : vector<96x128xf32> to vector<32x128xf32>
    %c1_42 = arith.constant 1 : index
    %c0_43 = arith.constant 0 : index
    %c0_44 = arith.constant 0 : index
    %51 = vector.load %arg14[%c1_42, %c0_43, %c0_44] : memref<8x32x128xf32, #tpu.memory_space<vmem>>, vector<1x32x128xf32>
    %52 = vector.shape_cast %51 : vector<1x32x128xf32> to vector<32x128xf32>
    %53 = vector.shape_cast %50 : vector<32x128xf32> to vector<1x32x128xf32>
    tpu.vector_store %arg14[%c1_42, %c0_43, %c0_44], %53 {strides = array<i32>} : memref<8x32x128xf32, #tpu.memory_space<vmem>>, vector<1x32x128xf32>,
    %c2 = arith.constant 2 : index
    %c0_45 = arith.constant 0 : index
    %c0_46 = arith.constant 0 : index
    %54 = vector.load %arg1[%c2, %c0_45, %c0_46] : memref<8x32x128xbf16, #tpu.memory_space<vmem>>, vector<1x32x128xbf16>
    %55 = vector.shape_cast %54 : vector<1x32x128xbf16> to vector<32x128xbf16>
    %cst_47 = arith.constant dense<0.000000e+00> : vector<32x128xf32>
    %56 = tpu.matmul %1, %55, %cst_47 {dimension_numbers = #tpu.dot_dimension_numbers<[1], [0], [0], [1], [0, 0, 1, 1], [], []>} : vector<32x32xbf16>, vector<32x128xbf16>, vector<32x128xf32> -> vector<32x128xf32>
    %57 = vector.broadcast %5 : vector<32x1xf32> to vector<32x128xf32>
    %58 = arith.addf %56, %57 : vector<32x128xf32>
    %cst_48 = arith.constant 0.000000e+00 : f32
    %59 = vector.broadcast %cst_48 : f32 to vector<32x128xf32>
    %60 = arith.maximumf %58, %59 : vector<32x128xf32>
    %61 = arith.truncf %60 : vector<32x128xf32> to vector<32x128xbf16>
    %cst_49 = arith.constant dense<0.000000e+00> : vector<96x128xf32>
    %62 = tpu.matmul %9, %61, %cst_49 {dimension_numbers = #tpu.dot_dimension_numbers<[1], [0], [0], [1], [0, 0, 1, 1], [], []>} : vector<96x32xbf16>, vector<32x128xbf16>, vector<96x128xf32> -> vector<96x128xf32>
    %63 = vector.extract_strided_slice %62 {offsets = [0, 0], sizes = [32, 128], strides = [1, 1]} : vector<96x128xf32> to vector<32x128xf32>
    %c2_50 = arith.constant 2 : index
    %c0_51 = arith.constant 0 : index
    %c0_52 = arith.constant 0 : index
    %64 = vector.load %arg12[%c2_50, %c0_51, %c0_52] : memref<8x32x128xf32, #tpu.memory_space<vmem>>, vector<1x32x128xf32>
    %65 = vector.shape_cast %64 : vector<1x32x128xf32> to vector<32x128xf32>
    %66 = vector.shape_cast %63 : vector<32x128xf32> to vector<1x32x128xf32>
    tpu.vector_store %arg12[%c2_50, %c0_51, %c0_52], %66 {strides = array<i32>} : memref<8x32x128xf32, #tpu.memory_space<vmem>>, vector<1x32x128xf32>,
    %67 = vector.extract_strided_slice %62 {offsets = [32, 0], sizes = [32, 128], strides = [1, 1]} : vector<96x128xf32> to vector<32x128xf32>
    %c2_53 = arith.constant 2 : index
    %c0_54 = arith.constant 0 : index
    %c0_55 = arith.constant 0 : index
    %68 = vector.load %arg13[%c2_53, %c0_54, %c0_55] : memref<8x32x128xf32, #tpu.memory_space<vmem>>, vector<1x32x128xf32>
    %69 = vector.shape_cast %68 : vector<1x32x128xf32> to vector<32x128xf32>
    %70 = vector.shape_cast %67 : vector<32x128xf32> to vector<1x32x128xf32>
    tpu.vector_store %arg13[%c2_53, %c0_54, %c0_55], %70 {strides = array<i32>} : memref<8x32x128xf32, #tpu.memory_space<vmem>>, vector<1x32x128xf32>,
    %71 = vector.extract_strided_slice %62 {offsets = [64, 0], sizes = [32, 128], strides = [1, 1]} : vector<96x128xf32> to vector<32x128xf32>
    %c2_56 = arith.constant 2 : index
    %c0_57 = arith.constant 0 : index
    %c0_58 = arith.constant 0 : index
    %72 = vector.load %arg14[%c2_56, %c0_57, %c0_58] : memref<8x32x128xf32, #tpu.memory_space<vmem>>, vector<1x32x128xf32>
    %73 = vector.shape_cast %72 : vector<1x32x128xf32> to vector<32x128xf32>
    %74 = vector.shape_cast %71 : vector<32x128xf32> to vector<1x32x128xf32>
    tpu.vector_store %arg14[%c2_56, %c0_57, %c0_58], %74 {strides = array<i32>} : memref<8x32x128xf32, #tpu.memory_space<vmem>>, vector<1x32x128xf32>,
    %c3 = arith.constant 3 : index
    %c0_59 = arith.constant 0 : index
    %c0_60 = arith.constant 0 : index
    %75 = vector.load %arg1[%c3, %c0_59, %c0_60] : memref<8x32x128xbf16, #tpu.memory_space<vmem>>, vector<1x32x128xbf16>
    %76 = vector.shape_cast %75 : vector<1x32x128xbf16> to vector<32x128xbf16>
    %cst_61 = arith.constant dense<0.000000e+00> : vector<32x128xf32>
    %77 = tpu.matmul %1, %76, %cst_61 {dimension_numbers = #tpu.dot_dimension_numbers<[1], [0], [0], [1], [0, 0, 1, 1], [], []>} : vector<32x32xbf16>, vector<32x128xbf16>, vector<32x128xf32> -> vector<32x128xf32>
    %78 = vector.broadcast %5 : vector<32x1xf32> to vector<32x128xf32>
    %79 = arith.addf %77, %78 : vector<32x128xf32>
    %cst_62 = arith.constant 0.000000e+00 : f32
    %80 = vector.broadcast %cst_62 : f32 to vector<32x128xf32>
    %81 = arith.maximumf %79, %80 : vector<32x128xf32>
    %82 = arith.truncf %81 : vector<32x128xf32> to vector<32x128xbf16>
    %cst_63 = arith.constant dense<0.000000e+00> : vector<96x128xf32>
    %83 = tpu.matmul %9, %82, %cst_63 {dimension_numbers = #tpu.dot_dimension_numbers<[1], [0], [0], [1], [0, 0, 1, 1], [], []>} : vector<96x32xbf16>, vector<32x128xbf16>, vector<96x128xf32> -> vector<96x128xf32>
    %84 = vector.extract_strided_slice %83 {offsets = [0, 0], sizes = [32, 128], strides = [1, 1]} : vector<96x128xf32> to vector<32x128xf32>
    %c3_64 = arith.constant 3 : index
    %c0_65 = arith.constant 0 : index
    %c0_66 = arith.constant 0 : index
    %85 = vector.load %arg12[%c3_64, %c0_65, %c0_66] : memref<8x32x128xf32, #tpu.memory_space<vmem>>, vector<1x32x128xf32>
    %86 = vector.shape_cast %85 : vector<1x32x128xf32> to vector<32x128xf32>
    %87 = vector.shape_cast %84 : vector<32x128xf32> to vector<1x32x128xf32>
    tpu.vector_store %arg12[%c3_64, %c0_65, %c0_66], %87 {strides = array<i32>} : memref<8x32x128xf32, #tpu.memory_space<vmem>>, vector<1x32x128xf32>,
    %88 = vector.extract_strided_slice %83 {offsets = [32, 0], sizes = [32, 128], strides = [1, 1]} : vector<96x128xf32> to vector<32x128xf32>
    %c3_67 = arith.constant 3 : index
    %c0_68 = arith.constant 0 : index
    %c0_69 = arith.constant 0 : index
    %89 = vector.load %arg13[%c3_67, %c0_68, %c0_69] : memref<8x32x128xf32, #tpu.memory_space<vmem>>, vector<1x32x128xf32>
    %90 = vector.shape_cast %89 : vector<1x32x128xf32> to vector<32x128xf32>
    %91 = vector.shape_cast %88 : vector<32x128xf32> to vector<1x32x128xf32>
    tpu.vector_store %arg13[%c3_67, %c0_68, %c0_69], %91 {strides = array<i32>} : memref<8x32x128xf32, #tpu.memory_space<vmem>>, vector<1x32x128xf32>,
    %92 = vector.extract_strided_slice %83 {offsets = [64, 0], sizes = [32, 128], strides = [1, 1]} : vector<96x128xf32> to vector<32x128xf32>
    %c3_70 = arith.constant 3 : index
    %c0_71 = arith.constant 0 : index
    %c0_72 = arith.constant 0 : index
    %93 = vector.load %arg14[%c3_70, %c0_71, %c0_72] : memref<8x32x128xf32, #tpu.memory_space<vmem>>, vector<1x32x128xf32>
    %94 = vector.shape_cast %93 : vector<1x32x128xf32> to vector<32x128xf32>
    %95 = vector.shape_cast %92 : vector<32x128xf32> to vector<1x32x128xf32>
    tpu.vector_store %arg14[%c3_70, %c0_71, %c0_72], %95 {strides = array<i32>} : memref<8x32x128xf32, #tpu.memory_space<vmem>>, vector<1x32x128xf32>,
    %c4 = arith.constant 4 : index
    %c0_73 = arith.constant 0 : index
    %c0_74 = arith.constant 0 : index
    %96 = vector.load %arg1[%c4, %c0_73, %c0_74] : memref<8x32x128xbf16, #tpu.memory_space<vmem>>, vector<1x32x128xbf16>
    %97 = vector.shape_cast %96 : vector<1x32x128xbf16> to vector<32x128xbf16>
    %cst_75 = arith.constant dense<0.000000e+00> : vector<32x128xf32>
    %98 = tpu.matmul %1, %97, %cst_75 {dimension_numbers = #tpu.dot_dimension_numbers<[1], [0], [0], [1], [0, 0, 1, 1], [], []>} : vector<32x32xbf16>, vector<32x128xbf16>, vector<32x128xf32> -> vector<32x128xf32>
    %99 = vector.broadcast %5 : vector<32x1xf32> to vector<32x128xf32>
    %100 = arith.addf %98, %99 : vector<32x128xf32>
    %cst_76 = arith.constant 0.000000e+00 : f32
    %101 = vector.broadcast %cst_76 : f32 to vector<32x128xf32>
    %102 = arith.maximumf %100, %101 : vector<32x128xf32>
    %103 = arith.truncf %102 : vector<32x128xf32> to vector<32x128xbf16>
    %cst_77 = arith.constant dense<0.000000e+00> : vector<96x128xf32>
    %104 = tpu.matmul %9, %103, %cst_77 {dimension_numbers = #tpu.dot_dimension_numbers<[1], [0], [0], [1], [0, 0, 1, 1], [], []>} : vector<96x32xbf16>, vector<32x128xbf16>, vector<96x128xf32> -> vector<96x128xf32>
    %105 = vector.extract_strided_slice %104 {offsets = [0, 0], sizes = [32, 128], strides = [1, 1]} : vector<96x128xf32> to vector<32x128xf32>
    %c4_78 = arith.constant 4 : index
    %c0_79 = arith.constant 0 : index
    %c0_80 = arith.constant 0 : index
    %106 = vector.load %arg12[%c4_78, %c0_79, %c0_80] : memref<8x32x128xf32, #tpu.memory_space<vmem>>, vector<1x32x128xf32>
    %107 = vector.shape_cast %106 : vector<1x32x128xf32> to vector<32x128xf32>
    %108 = vector.shape_cast %105 : vector<32x128xf32> to vector<1x32x128xf32>
    tpu.vector_store %arg12[%c4_78, %c0_79, %c0_80], %108 {strides = array<i32>} : memref<8x32x128xf32, #tpu.memory_space<vmem>>, vector<1x32x128xf32>,
    %109 = vector.extract_strided_slice %104 {offsets = [32, 0], sizes = [32, 128], strides = [1, 1]} : vector<96x128xf32> to vector<32x128xf32>
    %c4_81 = arith.constant 4 : index
    %c0_82 = arith.constant 0 : index
    %c0_83 = arith.constant 0 : index
    %110 = vector.load %arg13[%c4_81, %c0_82, %c0_83] : memref<8x32x128xf32, #tpu.memory_space<vmem>>, vector<1x32x128xf32>
    %111 = vector.shape_cast %110 : vector<1x32x128xf32> to vector<32x128xf32>
    %112 = vector.shape_cast %109 : vector<32x128xf32> to vector<1x32x128xf32>
    tpu.vector_store %arg13[%c4_81, %c0_82, %c0_83], %112 {strides = array<i32>} : memref<8x32x128xf32, #tpu.memory_space<vmem>>, vector<1x32x128xf32>,
    %113 = vector.extract_strided_slice %104 {offsets = [64, 0], sizes = [32, 128], strides = [1, 1]} : vector<96x128xf32> to vector<32x128xf32>
    %c4_84 = arith.constant 4 : index
    %c0_85 = arith.constant 0 : index
    %c0_86 = arith.constant 0 : index
    %114 = vector.load %arg14[%c4_84, %c0_85, %c0_86] : memref<8x32x128xf32, #tpu.memory_space<vmem>>, vector<1x32x128xf32>
    %115 = vector.shape_cast %114 : vector<1x32x128xf32> to vector<32x128xf32>
    %116 = vector.shape_cast %113 : vector<32x128xf32> to vector<1x32x128xf32>
    tpu.vector_store %arg14[%c4_84, %c0_85, %c0_86], %116 {strides = array<i32>} : memref<8x32x128xf32, #tpu.memory_space<vmem>>, vector<1x32x128xf32>,
    %c5 = arith.constant 5 : index
    %c0_87 = arith.constant 0 : index
    %c0_88 = arith.constant 0 : index
    %117 = vector.load %arg1[%c5, %c0_87, %c0_88] : memref<8x32x128xbf16, #tpu.memory_space<vmem>>, vector<1x32x128xbf16>
    %118 = vector.shape_cast %117 : vector<1x32x128xbf16> to vector<32x128xbf16>
    %cst_89 = arith.constant dense<0.000000e+00> : vector<32x128xf32>
    %119 = tpu.matmul %1, %118, %cst_89 {dimension_numbers = #tpu.dot_dimension_numbers<[1], [0], [0], [1], [0, 0, 1, 1], [], []>} : vector<32x32xbf16>, vector<32x128xbf16>, vector<32x128xf32> -> vector<32x128xf32>
    %120 = vector.broadcast %5 : vector<32x1xf32> to vector<32x128xf32>
    %121 = arith.addf %119, %120 : vector<32x128xf32>
    %cst_90 = arith.constant 0.000000e+00 : f32
    %122 = vector.broadcast %cst_90 : f32 to vector<32x128xf32>
    %123 = arith.maximumf %121, %122 : vector<32x128xf32>
    %124 = arith.truncf %123 : vector<32x128xf32> to vector<32x128xbf16>
    %cst_91 = arith.constant dense<0.000000e+00> : vector<96x128xf32>
    %125 = tpu.matmul %9, %124, %cst_91 {dimension_numbers = #tpu.dot_dimension_numbers<[1], [0], [0], [1], [0, 0, 1, 1], [], []>} : vector<96x32xbf16>, vector<32x128xbf16>, vector<96x128xf32> -> vector<96x128xf32>
    %126 = vector.extract_strided_slice %125 {offsets = [0, 0], sizes = [32, 128], strides = [1, 1]} : vector<96x128xf32> to vector<32x128xf32>
    %c5_92 = arith.constant 5 : index
    %c0_93 = arith.constant 0 : index
    %c0_94 = arith.constant 0 : index
    %127 = vector.load %arg12[%c5_92, %c0_93, %c0_94] : memref<8x32x128xf32, #tpu.memory_space<vmem>>, vector<1x32x128xf32>
    %128 = vector.shape_cast %127 : vector<1x32x128xf32> to vector<32x128xf32>
    %129 = vector.shape_cast %126 : vector<32x128xf32> to vector<1x32x128xf32>
    tpu.vector_store %arg12[%c5_92, %c0_93, %c0_94], %129 {strides = array<i32>} : memref<8x32x128xf32, #tpu.memory_space<vmem>>, vector<1x32x128xf32>,
    %130 = vector.extract_strided_slice %125 {offsets = [32, 0], sizes = [32, 128], strides = [1, 1]} : vector<96x128xf32> to vector<32x128xf32>
    %c5_95 = arith.constant 5 : index
    %c0_96 = arith.constant 0 : index
    %c0_97 = arith.constant 0 : index
    %131 = vector.load %arg13[%c5_95, %c0_96, %c0_97] : memref<8x32x128xf32, #tpu.memory_space<vmem>>, vector<1x32x128xf32>
    %132 = vector.shape_cast %131 : vector<1x32x128xf32> to vector<32x128xf32>
    %133 = vector.shape_cast %130 : vector<32x128xf32> to vector<1x32x128xf32>
    tpu.vector_store %arg13[%c5_95, %c0_96, %c0_97], %133 {strides = array<i32>} : memref<8x32x128xf32, #tpu.memory_space<vmem>>, vector<1x32x128xf32>,
    %134 = vector.extract_strided_slice %125 {offsets = [64, 0], sizes = [32, 128], strides = [1, 1]} : vector<96x128xf32> to vector<32x128xf32>
    %c5_98 = arith.constant 5 : index
    %c0_99 = arith.constant 0 : index
    %c0_100 = arith.constant 0 : index
    %135 = vector.load %arg14[%c5_98, %c0_99, %c0_100] : memref<8x32x128xf32, #tpu.memory_space<vmem>>, vector<1x32x128xf32>
    %136 = vector.shape_cast %135 : vector<1x32x128xf32> to vector<32x128xf32>
    %137 = vector.shape_cast %134 : vector<32x128xf32> to vector<1x32x128xf32>
    tpu.vector_store %arg14[%c5_98, %c0_99, %c0_100], %137 {strides = array<i32>} : memref<8x32x128xf32, #tpu.memory_space<vmem>>, vector<1x32x128xf32>,
    %c6 = arith.constant 6 : index
    %c0_101 = arith.constant 0 : index
    %c0_102 = arith.constant 0 : index
    %138 = vector.load %arg1[%c6, %c0_101, %c0_102] : memref<8x32x128xbf16, #tpu.memory_space<vmem>>, vector<1x32x128xbf16>
    %139 = vector.shape_cast %138 : vector<1x32x128xbf16> to vector<32x128xbf16>
    %cst_103 = arith.constant dense<0.000000e+00> : vector<32x128xf32>
    %140 = tpu.matmul %1, %139, %cst_103 {dimension_numbers = #tpu.dot_dimension_numbers<[1], [0], [0], [1], [0, 0, 1, 1], [], []>} : vector<32x32xbf16>, vector<32x128xbf16>, vector<32x128xf32> -> vector<32x128xf32>
    %141 = vector.broadcast %5 : vector<32x1xf32> to vector<32x128xf32>
    %142 = arith.addf %140, %141 : vector<32x128xf32>
    %cst_104 = arith.constant 0.000000e+00 : f32
    %143 = vector.broadcast %cst_104 : f32 to vector<32x128xf32>
    %144 = arith.maximumf %142, %143 : vector<32x128xf32>
    %145 = arith.truncf %144 : vector<32x128xf32> to vector<32x128xbf16>
    %cst_105 = arith.constant dense<0.000000e+00> : vector<96x128xf32>
    %146 = tpu.matmul %9, %145, %cst_105 {dimension_numbers = #tpu.dot_dimension_numbers<[1], [0], [0], [1], [0, 0, 1, 1], [], []>} : vector<96x32xbf16>, vector<32x128xbf16>, vector<96x128xf32> -> vector<96x128xf32>
    %147 = vector.extract_strided_slice %146 {offsets = [0, 0], sizes = [32, 128], strides = [1, 1]} : vector<96x128xf32> to vector<32x128xf32>
    %c6_106 = arith.constant 6 : index
    %c0_107 = arith.constant 0 : index
    %c0_108 = arith.constant 0 : index
    %148 = vector.load %arg12[%c6_106, %c0_107, %c0_108] : memref<8x32x128xf32, #tpu.memory_space<vmem>>, vector<1x32x128xf32>
    %149 = vector.shape_cast %148 : vector<1x32x128xf32> to vector<32x128xf32>
    %150 = vector.shape_cast %147 : vector<32x128xf32> to vector<1x32x128xf32>
    tpu.vector_store %arg12[%c6_106, %c0_107, %c0_108], %150 {strides = array<i32>} : memref<8x32x128xf32, #tpu.memory_space<vmem>>, vector<1x32x128xf32>,
    %151 = vector.extract_strided_slice %146 {offsets = [32, 0], sizes = [32, 128], strides = [1, 1]} : vector<96x128xf32> to vector<32x128xf32>
    %c6_109 = arith.constant 6 : index
    %c0_110 = arith.constant 0 : index
    %c0_111 = arith.constant 0 : index
    %152 = vector.load %arg13[%c6_109, %c0_110, %c0_111] : memref<8x32x128xf32, #tpu.memory_space<vmem>>, vector<1x32x128xf32>
    %153 = vector.shape_cast %152 : vector<1x32x128xf32> to vector<32x128xf32>
    %154 = vector.shape_cast %151 : vector<32x128xf32> to vector<1x32x128xf32>
    tpu.vector_store %arg13[%c6_109, %c0_110, %c0_111], %154 {strides = array<i32>} : memref<8x32x128xf32, #tpu.memory_space<vmem>>, vector<1x32x128xf32>,
    %155 = vector.extract_strided_slice %146 {offsets = [64, 0], sizes = [32, 128], strides = [1, 1]} : vector<96x128xf32> to vector<32x128xf32>
    %c6_112 = arith.constant 6 : index
    %c0_113 = arith.constant 0 : index
    %c0_114 = arith.constant 0 : index
    %156 = vector.load %arg14[%c6_112, %c0_113, %c0_114] : memref<8x32x128xf32, #tpu.memory_space<vmem>>, vector<1x32x128xf32>
    %157 = vector.shape_cast %156 : vector<1x32x128xf32> to vector<32x128xf32>
    %158 = vector.shape_cast %155 : vector<32x128xf32> to vector<1x32x128xf32>
    tpu.vector_store %arg14[%c6_112, %c0_113, %c0_114], %158 {strides = array<i32>} : memref<8x32x128xf32, #tpu.memory_space<vmem>>, vector<1x32x128xf32>,
    %c7 = arith.constant 7 : index
    %c0_115 = arith.constant 0 : index
    %c0_116 = arith.constant 0 : index
    %159 = vector.load %arg1[%c7, %c0_115, %c0_116] : memref<8x32x128xbf16, #tpu.memory_space<vmem>>, vector<1x32x128xbf16>
    %160 = vector.shape_cast %159 : vector<1x32x128xbf16> to vector<32x128xbf16>
    %cst_117 = arith.constant dense<0.000000e+00> : vector<32x128xf32>
    %161 = tpu.matmul %1, %160, %cst_117 {dimension_numbers = #tpu.dot_dimension_numbers<[1], [0], [0], [1], [0, 0, 1, 1], [], []>} : vector<32x32xbf16>, vector<32x128xbf16>, vector<32x128xf32> -> vector<32x128xf32>
    %162 = vector.broadcast %5 : vector<32x1xf32> to vector<32x128xf32>
    %163 = arith.addf %161, %162 : vector<32x128xf32>
    %cst_118 = arith.constant 0.000000e+00 : f32
    %164 = vector.broadcast %cst_118 : f32 to vector<32x128xf32>
    %165 = arith.maximumf %163, %164 : vector<32x128xf32>
    %166 = arith.truncf %165 : vector<32x128xf32> to vector<32x128xbf16>
    %cst_119 = arith.constant dense<0.000000e+00> : vector<96x128xf32>
    %167 = tpu.matmul %9, %166, %cst_119 {dimension_numbers = #tpu.dot_dimension_numbers<[1], [0], [0], [1], [0, 0, 1, 1], [], []>} : vector<96x32xbf16>, vector<32x128xbf16>, vector<96x128xf32> -> vector<96x128xf32>
    %168 = vector.extract_strided_slice %167 {offsets = [0, 0], sizes = [32, 128], strides = [1, 1]} : vector<96x128xf32> to vector<32x128xf32>
    %c7_120 = arith.constant 7 : index
    %c0_121 = arith.constant 0 : index
    %c0_122 = arith.constant 0 : index
    %169 = vector.load %arg12[%c7_120, %c0_121, %c0_122] : memref<8x32x128xf32, #tpu.memory_space<vmem>>, vector<1x32x128xf32>
    %170 = vector.shape_cast %169 : vector<1x32x128xf32> to vector<32x128xf32>
    %171 = vector.shape_cast %168 : vector<32x128xf32> to vector<1x32x128xf32>
    tpu.vector_store %arg12[%c7_120, %c0_121, %c0_122], %171 {strides = array<i32>} : memref<8x32x128xf32, #tpu.memory_space<vmem>>, vector<1x32x128xf32>,
    %172 = vector.extract_strided_slice %167 {offsets = [32, 0], sizes = [32, 128], strides = [1, 1]} : vector<96x128xf32> to vector<32x128xf32>
    %c7_123 = arith.constant 7 : index
    %c0_124 = arith.constant 0 : index
    %c0_125 = arith.constant 0 : index
    %173 = vector.load %arg13[%c7_123, %c0_124, %c0_125] : memref<8x32x128xf32, #tpu.memory_space<vmem>>, vector<1x32x128xf32>
    %174 = vector.shape_cast %173 : vector<1x32x128xf32> to vector<32x128xf32>
    %175 = vector.shape_cast %172 : vector<32x128xf32> to vector<1x32x128xf32>
    tpu.vector_store %arg13[%c7_123, %c0_124, %c0_125], %175 {strides = array<i32>} : memref<8x32x128xf32, #tpu.memory_space<vmem>>, vector<1x32x128xf32>,
    %176 = vector.extract_strided_slice %167 {offsets = [64, 0], sizes = [32, 128], strides = [1, 1]} : vector<96x128xf32> to vector<32x128xf32>
    %c7_126 = arith.constant 7 : index
    %c0_127 = arith.constant 0 : index
    %c0_128 = arith.constant 0 : index
    %177 = vector.load %arg14[%c7_126, %c0_127, %c0_128] : memref<8x32x128xf32, #tpu.memory_space<vmem>>, vector<1x32x128xf32>
    %178 = vector.shape_cast %177 : vector<1x32x128xf32> to vector<32x128xf32>
    %179 = vector.shape_cast %176 : vector<32x128xf32> to vector<1x32x128xf32>
    tpu.vector_store %arg14[%c7_126, %c0_127, %c0_128], %179 {strides = array<i32>} : memref<8x32x128xf32, #tpu.memory_space<vmem>>, vector<1x32x128xf32>,
    %c0_129 = arith.constant 0 : index
    %c0_130 = arith.constant 0 : index
    %c0_131 = arith.constant 0 : index
    %180 = vector.load %arg2[%c0_129, %c0_130, %c0_131] : memref<7x32x128xbf16, #tpu.memory_space<vmem>>, vector<1x32x128xbf16>
    %181 = vector.shape_cast %180 : vector<1x32x128xbf16> to vector<32x128xbf16>
    %cst_132 = arith.constant dense<0.000000e+00> : vector<32x128xf32>
    %182 = tpu.matmul %3, %181, %cst_132 {dimension_numbers = #tpu.dot_dimension_numbers<[1], [0], [0], [1], [0, 0, 1, 1], [], []>} : vector<32x32xbf16>, vector<32x128xbf16>, vector<32x128xf32> -> vector<32x128xf32>
    %183 = vector.broadcast %7 : vector<32x1xf32> to vector<32x128xf32>
    %184 = arith.addf %182, %183 : vector<32x128xf32>
    %cst_133 = arith.constant 0.000000e+00 : f32
    %185 = vector.broadcast %cst_133 : f32 to vector<32x128xf32>
    %186 = arith.maximumf %184, %185 : vector<32x128xf32>
    %187 = arith.truncf %186 : vector<32x128xf32> to vector<32x128xbf16>
    %cst_134 = arith.constant dense<0.000000e+00> : vector<96x128xf32>
    %188 = tpu.matmul %11, %187, %cst_134 {dimension_numbers = #tpu.dot_dimension_numbers<[1], [0], [0], [1], [0, 0, 1, 1], [], []>} : vector<96x32xbf16>, vector<32x128xbf16>, vector<96x128xf32> -> vector<96x128xf32>
    %189 = vector.extract_strided_slice %188 {offsets = [0, 0], sizes = [32, 128], strides = [1, 1]} : vector<96x128xf32> to vector<32x128xf32>
    %190 = vector.extract_strided_slice %188 {offsets = [32, 0], sizes = [32, 128], strides = [1, 1]} : vector<96x128xf32> to vector<32x128xf32>
    %191 = vector.extract_strided_slice %188 {offsets = [64, 0], sizes = [32, 128], strides = [1, 1]} : vector<96x128xf32> to vector<32x128xf32>
    %c1_135 = arith.constant 1 : index
    %c0_136 = arith.constant 0 : index
    %c0_137 = arith.constant 0 : index
    %192 = vector.load %arg2[%c1_135, %c0_136, %c0_137] : memref<7x32x128xbf16, #tpu.memory_space<vmem>>, vector<1x32x128xbf16>
    %193 = vector.shape_cast %192 : vector<1x32x128xbf16> to vector<32x128xbf16>
    %cst_138 = arith.constant dense<0.000000e+00> : vector<32x128xf32>
    %194 = tpu.matmul %3, %193, %cst_138 {dimension_numbers = #tpu.dot_dimension_numbers<[1], [0], [0], [1], [0, 0, 1, 1], [], []>} : vector<32x32xbf16>, vector<32x128xbf16>, vector<32x128xf32> -> vector<32x128xf32>
    %195 = vector.broadcast %7 : vector<32x1xf32> to vector<32x128xf32>
    %196 = arith.addf %194, %195 : vector<32x128xf32>
    %cst_139 = arith.constant 0.000000e+00 : f32
    %197 = vector.broadcast %cst_139 : f32 to vector<32x128xf32>
    %198 = arith.maximumf %196, %197 : vector<32x128xf32>
    %199 = arith.truncf %198 : vector<32x128xf32> to vector<32x128xbf16>
    %cst_140 = arith.constant dense<0.000000e+00> : vector<96x128xf32>
    %200 = tpu.matmul %11, %199, %cst_140 {dimension_numbers = #tpu.dot_dimension_numbers<[1], [0], [0], [1], [0, 0, 1, 1], [], []>} : vector<96x32xbf16>, vector<32x128xbf16>, vector<96x128xf32> -> vector<96x128xf32>
    %201 = vector.extract_strided_slice %200 {offsets = [0, 0], sizes = [32, 128], strides = [1, 1]} : vector<96x128xf32> to vector<32x128xf32>
    %202 = vector.extract_strided_slice %200 {offsets = [32, 0], sizes = [32, 128], strides = [1, 1]} : vector<96x128xf32> to vector<32x128xf32>
    %203 = vector.extract_strided_slice %200 {offsets = [64, 0], sizes = [32, 128], strides = [1, 1]} : vector<96x128xf32> to vector<32x128xf32>
    %c2_141 = arith.constant 2 : index
    %c0_142 = arith.constant 0 : index
    %c0_143 = arith.constant 0 : index
    %204 = vector.load %arg2[%c2_141, %c0_142, %c0_143] : memref<7x32x128xbf16, #tpu.memory_space<vmem>>, vector<1x32x128xbf16>
    %205 = vector.shape_cast %204 : vector<1x32x128xbf16> to vector<32x128xbf16>
    %cst_144 = arith.constant dense<0.000000e+00> : vector<32x128xf32>
    %206 = tpu.matmul %3, %205, %cst_144 {dimension_numbers = #tpu.dot_dimension_numbers<[1], [0], [0], [1], [0, 0, 1, 1], [], []>} : vector<32x32xbf16>, vector<32x128xbf16>, vector<32x128xf32> -> vector<32x128xf32>
    %207 = vector.broadcast %7 : vector<32x1xf32> to vector<32x128xf32>
    %208 = arith.addf %206, %207 : vector<32x128xf32>
    %cst_145 = arith.constant 0.000000e+00 : f32
    %209 = vector.broadcast %cst_145 : f32 to vector<32x128xf32>
    %210 = arith.maximumf %208, %209 : vector<32x128xf32>
    %211 = arith.truncf %210 : vector<32x128xf32> to vector<32x128xbf16>
    %cst_146 = arith.constant dense<0.000000e+00> : vector<96x128xf32>
    %212 = tpu.matmul %11, %211, %cst_146 {dimension_numbers = #tpu.dot_dimension_numbers<[1], [0], [0], [1], [0, 0, 1, 1], [], []>} : vector<96x32xbf16>, vector<32x128xbf16>, vector<96x128xf32> -> vector<96x128xf32>
    %213 = vector.extract_strided_slice %212 {offsets = [0, 0], sizes = [32, 128], strides = [1, 1]} : vector<96x128xf32> to vector<32x128xf32>
    %214 = vector.extract_strided_slice %212 {offsets = [32, 0], sizes = [32, 128], strides = [1, 1]} : vector<96x128xf32> to vector<32x128xf32>
    %215 = vector.extract_strided_slice %212 {offsets = [64, 0], sizes = [32, 128], strides = [1, 1]} : vector<96x128xf32> to vector<32x128xf32>
    %c3_147 = arith.constant 3 : index
    %c0_148 = arith.constant 0 : index
    %c0_149 = arith.constant 0 : index
    %216 = vector.load %arg2[%c3_147, %c0_148, %c0_149] : memref<7x32x128xbf16, #tpu.memory_space<vmem>>, vector<1x32x128xbf16>
    %217 = vector.shape_cast %216 : vector<1x32x128xbf16> to vector<32x128xbf16>
    %cst_150 = arith.constant dense<0.000000e+00> : vector<32x128xf32>
    %218 = tpu.matmul %3, %217, %cst_150 {dimension_numbers = #tpu.dot_dimension_numbers<[1], [0], [0], [1], [0, 0, 1, 1], [], []>} : vector<32x32xbf16>, vector<32x128xbf16>, vector<32x128xf32> -> vector<32x128xf32>
    %219 = vector.broadcast %7 : vector<32x1xf32> to vector<32x128xf32>
    %220 = arith.addf %218, %219 : vector<32x128xf32>
    %cst_151 = arith.constant 0.000000e+00 : f32
    %221 = vector.broadcast %cst_151 : f32 to vector<32x128xf32>
    %222 = arith.maximumf %220, %221 : vector<32x128xf32>
    %223 = arith.truncf %222 : vector<32x128xf32> to vector<32x128xbf16>
    %cst_152 = arith.constant dense<0.000000e+00> : vector<96x128xf32>
    %224 = tpu.matmul %11, %223, %cst_152 {dimension_numbers = #tpu.dot_dimension_numbers<[1], [0], [0], [1], [0, 0, 1, 1], [], []>} : vector<96x32xbf16>, vector<32x128xbf16>, vector<96x128xf32> -> vector<96x128xf32>
    %225 = vector.extract_strided_slice %224 {offsets = [0, 0], sizes = [32, 128], strides = [1, 1]} : vector<96x128xf32> to vector<32x128xf32>
    %226 = vector.extract_strided_slice %224 {offsets = [32, 0], sizes = [32, 128], strides = [1, 1]} : vector<96x128xf32> to vector<32x128xf32>
    %227 = vector.extract_strided_slice %224 {offsets = [64, 0], sizes = [32, 128], strides = [1, 1]} : vector<96x128xf32> to vector<32x128xf32>
    %c4_153 = arith.constant 4 : index
    %c0_154 = arith.constant 0 : index
    %c0_155 = arith.constant 0 : index
    %228 = vector.load %arg2[%c4_153, %c0_154, %c0_155] : memref<7x32x128xbf16, #tpu.memory_space<vmem>>, vector<1x32x128xbf16>
    %229 = vector.shape_cast %228 : vector<1x32x128xbf16> to vector<32x128xbf16>
    %cst_156 = arith.constant dense<0.000000e+00> : vector<32x128xf32>
    %230 = tpu.matmul %3, %229, %cst_156 {dimension_numbers = #tpu.dot_dimension_numbers<[1], [0], [0], [1], [0, 0, 1, 1], [], []>} : vector<32x32xbf16>, vector<32x128xbf16>, vector<32x128xf32> -> vector<32x128xf32>
    %231 = vector.broadcast %7 : vector<32x1xf32> to vector<32x128xf32>
    %232 = arith.addf %230, %231 : vector<32x128xf32>
    %cst_157 = arith.constant 0.000000e+00 : f32
    %233 = vector.broadcast %cst_157 : f32 to vector<32x128xf32>
    %234 = arith.maximumf %232, %233 : vector<32x128xf32>
    %235 = arith.truncf %234 : vector<32x128xf32> to vector<32x128xbf16>
    %cst_158 = arith.constant dense<0.000000e+00> : vector<96x128xf32>
    %236 = tpu.matmul %11, %235, %cst_158 {dimension_numbers = #tpu.dot_dimension_numbers<[1], [0], [0], [1], [0, 0, 1, 1], [], []>} : vector<96x32xbf16>, vector<32x128xbf16>, vector<96x128xf32> -> vector<96x128xf32>
    %237 = vector.extract_strided_slice %236 {offsets = [0, 0], sizes = [32, 128], strides = [1, 1]} : vector<96x128xf32> to vector<32x128xf32>
    %238 = vector.extract_strided_slice %236 {offsets = [32, 0], sizes = [32, 128], strides = [1, 1]} : vector<96x128xf32> to vector<32x128xf32>
    %239 = vector.extract_strided_slice %236 {offsets = [64, 0], sizes = [32, 128], strides = [1, 1]} : vector<96x128xf32> to vector<32x128xf32>
    %c5_159 = arith.constant 5 : index
    %c0_160 = arith.constant 0 : index
    %c0_161 = arith.constant 0 : index
    %240 = vector.load %arg2[%c5_159, %c0_160, %c0_161] : memref<7x32x128xbf16, #tpu.memory_space<vmem>>, vector<1x32x128xbf16>
    %241 = vector.shape_cast %240 : vector<1x32x128xbf16> to vector<32x128xbf16>
    %cst_162 = arith.constant dense<0.000000e+00> : vector<32x128xf32>
    %242 = tpu.matmul %3, %241, %cst_162 {dimension_numbers = #tpu.dot_dimension_numbers<[1], [0], [0], [1], [0, 0, 1, 1], [], []>} : vector<32x32xbf16>, vector<32x128xbf16>, vector<32x128xf32> -> vector<32x128xf32>
    %243 = vector.broadcast %7 : vector<32x1xf32> to vector<32x128xf32>
    %244 = arith.addf %242, %243 : vector<32x128xf32>
    %cst_163 = arith.constant 0.000000e+00 : f32
    %245 = vector.broadcast %cst_163 : f32 to vector<32x128xf32>
    %246 = arith.maximumf %244, %245 : vector<32x128xf32>
    %247 = arith.truncf %246 : vector<32x128xf32> to vector<32x128xbf16>
    %cst_164 = arith.constant dense<0.000000e+00> : vector<96x128xf32>
    %248 = tpu.matmul %11, %247, %cst_164 {dimension_numbers = #tpu.dot_dimension_numbers<[1], [0], [0], [1], [0, 0, 1, 1], [], []>} : vector<96x32xbf16>, vector<32x128xbf16>, vector<96x128xf32> -> vector<96x128xf32>
    %249 = vector.extract_strided_slice %248 {offsets = [0, 0], sizes = [32, 128], strides = [1, 1]} : vector<96x128xf32> to vector<32x128xf32>
    %250 = vector.extract_strided_slice %248 {offsets = [32, 0], sizes = [32, 128], strides = [1, 1]} : vector<96x128xf32> to vector<32x128xf32>
    %251 = vector.extract_strided_slice %248 {offsets = [64, 0], sizes = [32, 128], strides = [1, 1]} : vector<96x128xf32> to vector<32x128xf32>
    %c6_165 = arith.constant 6 : index
    %c0_166 = arith.constant 0 : index
    %c0_167 = arith.constant 0 : index
    %252 = vector.load %arg2[%c6_165, %c0_166, %c0_167] : memref<7x32x128xbf16, #tpu.memory_space<vmem>>, vector<1x32x128xbf16>
    %253 = vector.shape_cast %252 : vector<1x32x128xbf16> to vector<32x128xbf16>
    %cst_168 = arith.constant dense<0.000000e+00> : vector<32x128xf32>
    %254 = tpu.matmul %3, %253, %cst_168 {dimension_numbers = #tpu.dot_dimension_numbers<[1], [0], [0], [1], [0, 0, 1, 1], [], []>} : vector<32x32xbf16>, vector<32x128xbf16>, vector<32x128xf32> -> vector<32x128xf32>
    %255 = vector.broadcast %7 : vector<32x1xf32> to vector<32x128xf32>
    %256 = arith.addf %254, %255 : vector<32x128xf32>
    %cst_169 = arith.constant 0.000000e+00 : f32
    %257 = vector.broadcast %cst_169 : f32 to vector<32x128xf32>
    %258 = arith.maximumf %256, %257 : vector<32x128xf32>
    %259 = arith.truncf %258 : vector<32x128xf32> to vector<32x128xbf16>
    %cst_170 = arith.constant dense<0.000000e+00> : vector<96x128xf32>
    %260 = tpu.matmul %11, %259, %cst_170 {dimension_numbers = #tpu.dot_dimension_numbers<[1], [0], [0], [1], [0, 0, 1, 1], [], []>} : vector<96x32xbf16>, vector<32x128xbf16>, vector<96x128xf32> -> vector<96x128xf32>
    %261 = vector.extract_strided_slice %260 {offsets = [0, 0], sizes = [32, 128], strides = [1, 1]} : vector<96x128xf32> to vector<32x128xf32>
    %262 = vector.extract_strided_slice %260 {offsets = [32, 0], sizes = [32, 128], strides = [1, 1]} : vector<96x128xf32> to vector<32x128xf32>
    %263 = vector.extract_strided_slice %260 {offsets = [64, 0], sizes = [32, 128], strides = [1, 1]} : vector<96x128xf32> to vector<32x128xf32>
    %c0_171 = arith.constant 0 : index
    %c0_172 = arith.constant 0 : index
    %c0_173 = arith.constant 0 : index
    %264 = vector.load %arg12[%c0_171, %c0_172, %c0_173] : memref<8x32x128xf32, #tpu.memory_space<vmem>>, vector<8x32x128xf32>
    %c0_174 = arith.constant 0 : index
    %c0_175 = arith.constant 0 : index
    %c0_176 = arith.constant 0 : index
    %265 = vector.load %arg13[%c0_174, %c0_175, %c0_176] : memref<8x32x128xf32, #tpu.memory_space<vmem>>, vector<8x32x128xf32>
    %c0_177 = arith.constant 0 : index
    %c0_178 = arith.constant 0 : index
    %c0_179 = arith.constant 0 : index
    %266 = vector.load %arg14[%c0_177, %c0_178, %c0_179] : memref<8x32x128xf32, #tpu.memory_space<vmem>>, vector<8x32x128xf32>
    %c0_180 = arith.constant 0 : index
    %c0_181 = arith.constant 0 : index
    %267 = vector.load %arg3[%c0_180, %c0_181] : memref<8x128xf32, #tpu.memory_space<vmem>>, vector<8x128xf32>
    %cst_182 = arith.constant 0.000000e+00 : f32
    %268 = vector.broadcast %cst_182 : f32 to vector<8x128xf32>
    %269 = arith.cmpf ogt, %267, %268 : vector<8x128xf32>
    %cst_183 = arith.constant 0.000000e+00 : f32
    %cst_184 = arith.constant -1.000000e+09 : f32
    %270 = vector.broadcast %cst_183 : f32 to vector<8x128xf32>
    %271 = vector.broadcast %cst_184 : f32 to vector<8x128xf32>
    %272 = arith.select %269, %270, %271 : vector<8x128xi1>, vector<8x128xf32>
    %273 = vector.shape_cast %190 : vector<32x128xf32> to vector<1x32x128xf32>
    %274 = vector.broadcast %273 : vector<1x32x128xf32> to vector<8x32x128xf32>
    %275 = arith.mulf %264, %274 : vector<8x32x128xf32>
    %cst_185 = arith.constant dense<0.000000e+00> : vector<8x128xf32>
    %276 = vector.multi_reduction <add>, %275, %cst_185 [1] : vector<8x32x128xf32> to vector<8x128xf32>
    %277 = vector.shape_cast %202 : vector<32x128xf32> to vector<1x32x128xf32>
    %278 = vector.broadcast %277 : vector<1x32x128xf32> to vector<8x32x128xf32>
    %279 = arith.mulf %264, %278 : vector<8x32x128xf32>
    %cst_186 = arith.constant dense<0.000000e+00> : vector<8x128xf32>
    %280 = vector.multi_reduction <add>, %279, %cst_186 [1] : vector<8x32x128xf32> to vector<8x128xf32>
    %281 = vector.shape_cast %214 : vector<32x128xf32> to vector<1x32x128xf32>
    %282 = vector.broadcast %281 : vector<1x32x128xf32> to vector<8x32x128xf32>
    %283 = arith.mulf %264, %282 : vector<8x32x128xf32>
    %cst_187 = arith.constant dense<0.000000e+00> : vector<8x128xf32>
    %284 = vector.multi_reduction <add>, %283, %cst_187 [1] : vector<8x32x128xf32> to vector<8x128xf32>
    %285 = vector.shape_cast %226 : vector<32x128xf32> to vector<1x32x128xf32>
    %286 = vector.broadcast %285 : vector<1x32x128xf32> to vector<8x32x128xf32>
    %287 = arith.mulf %264, %286 : vector<8x32x128xf32>
    %cst_188 = arith.constant dense<0.000000e+00> : vector<8x128xf32>
    %288 = vector.multi_reduction <add>, %287, %cst_188 [1] : vector<8x32x128xf32> to vector<8x128xf32>
    %289 = vector.shape_cast %238 : vector<32x128xf32> to vector<1x32x128xf32>
    %290 = vector.broadcast %289 : vector<1x32x128xf32> to vector<8x32x128xf32>
    %291 = arith.mulf %264, %290 : vector<8x32x128xf32>
    %cst_189 = arith.constant dense<0.000000e+00> : vector<8x128xf32>
    %292 = vector.multi_reduction <add>, %291, %cst_189 [1] : vector<8x32x128xf32> to vector<8x128xf32>
    %293 = vector.shape_cast %250 : vector<32x128xf32> to vector<1x32x128xf32>
    %294 = vector.broadcast %293 : vector<1x32x128xf32> to vector<8x32x128xf32>
    %295 = arith.mulf %264, %294 : vector<8x32x128xf32>
    %cst_190 = arith.constant dense<0.000000e+00> : vector<8x128xf32>
    %296 = vector.multi_reduction <add>, %295, %cst_190 [1] : vector<8x32x128xf32> to vector<8x128xf32>
    %297 = vector.shape_cast %262 : vector<32x128xf32> to vector<1x32x128xf32>
    %298 = vector.broadcast %297 : vector<1x32x128xf32> to vector<8x32x128xf32>
    %299 = arith.mulf %264, %298 : vector<8x32x128xf32>
    %cst_191 = arith.constant dense<0.000000e+00> : vector<8x128xf32>
    %300 = vector.multi_reduction <add>, %299, %cst_191 [1] : vector<8x32x128xf32> to vector<8x128xf32>
    %301 = arith.maximumf %276, %280 : vector<8x128xf32>
    %302 = arith.maximumf %301, %284 : vector<8x128xf32>
    %303 = arith.maximumf %302, %288 : vector<8x128xf32>
    %304 = arith.maximumf %303, %292 : vector<8x128xf32>
    %305 = arith.maximumf %304, %296 : vector<8x128xf32>
    %306 = arith.maximumf %305, %300 : vector<8x128xf32>
    %307 = arith.subf %276, %306 : vector<8x128xf32>
    %308 = math.exp %307 : vector<8x128xf32>
    %309 = arith.subf %280, %306 : vector<8x128xf32>
    %310 = math.exp %309 : vector<8x128xf32>
    %311 = arith.subf %284, %306 : vector<8x128xf32>
    %312 = math.exp %311 : vector<8x128xf32>
    %313 = arith.subf %288, %306 : vector<8x128xf32>
    %314 = math.exp %313 : vector<8x128xf32>
    %315 = arith.subf %292, %306 : vector<8x128xf32>
    %316 = math.exp %315 : vector<8x128xf32>
    %317 = arith.subf %296, %306 : vector<8x128xf32>
    %318 = math.exp %317 : vector<8x128xf32>
    %319 = arith.subf %300, %306 : vector<8x128xf32>
    %320 = math.exp %319 : vector<8x128xf32>
    %321 = arith.addf %308, %310 : vector<8x128xf32>
    %322 = arith.addf %321, %312 : vector<8x128xf32>
    %323 = arith.addf %322, %314 : vector<8x128xf32>
    %324 = arith.addf %323, %316 : vector<8x128xf32>
    %325 = arith.addf %324, %318 : vector<8x128xf32>
    %326 = arith.addf %325, %320 : vector<8x128xf32>
    %327 = tpu.reciprocal %326 {approx = true} : vector<8x128xf32> -> vector<8x128xf32>
    %cst_192 = arith.constant dense<0.000000e+00> : vector<128xf32>
    %328 = vector.multi_reduction <add>, %267, %cst_192 [0] : vector<8x128xf32> to vector<128xf32>
    %329 = vector.shape_cast %328 : vector<128xf32> to vector<1x128xf32>
    %cst_193 = arith.constant 1.000000e+00 : f32
    %330 = vector.broadcast %cst_193 : f32 to vector<1x128xf32>
    %331 = arith.maximumf %329, %330 : vector<1x128xf32>
    %332 = tpu.reciprocal %331 {approx = true} : vector<1x128xf32> -> vector<1x128xf32>
    %333 = arith.mulf %267, %327 : vector<8x128xf32>
    %cst_194 = arith.constant 0.000000e+00 : f32
    %334 = vector.broadcast %cst_194 : f32 to vector<32x128xf32>
    %335 = arith.mulf %333, %308 : vector<8x128xf32>
    %cst_195 = arith.constant dense<0.000000e+00> : vector<128xf32>
    %336 = vector.multi_reduction <add>, %335, %cst_195 [0] : vector<8x128xf32> to vector<128xf32>
    %337 = vector.shape_cast %336 : vector<128xf32> to vector<1x128xf32>
    %338 = vector.broadcast %337 : vector<1x128xf32> to vector<32x128xf32>
    %339 = arith.mulf %338, %191 : vector<32x128xf32>
    %340 = arith.addf %334, %339 : vector<32x128xf32>
    %341 = arith.mulf %333, %310 : vector<8x128xf32>
    %cst_196 = arith.constant dense<0.000000e+00> : vector<128xf32>
    %342 = vector.multi_reduction <add>, %341, %cst_196 [0] : vector<8x128xf32> to vector<128xf32>
    %343 = vector.shape_cast %342 : vector<128xf32> to vector<1x128xf32>
    %344 = vector.broadcast %343 : vector<1x128xf32> to vector<32x128xf32>
    %345 = arith.mulf %344, %203 : vector<32x128xf32>
    %346 = arith.addf %340, %345 : vector<32x128xf32>
    %347 = arith.mulf %333, %312 : vector<8x128xf32>
    %cst_197 = arith.constant dense<0.000000e+00> : vector<128xf32>
    %348 = vector.multi_reduction <add>, %347, %cst_197 [0] : vector<8x128xf32> to vector<128xf32>
    %349 = vector.shape_cast %348 : vector<128xf32> to vector<1x128xf32>
    %350 = vector.broadcast %349 : vector<1x128xf32> to vector<32x128xf32>
    %351 = arith.mulf %350, %215 : vector<32x128xf32>
    %352 = arith.addf %346, %351 : vector<32x128xf32>
    %353 = arith.mulf %333, %314 : vector<8x128xf32>
    %cst_198 = arith.constant dense<0.000000e+00> : vector<128xf32>
    %354 = vector.multi_reduction <add>, %353, %cst_198 [0] : vector<8x128xf32> to vector<128xf32>
    %355 = vector.shape_cast %354 : vector<128xf32> to vector<1x128xf32>
    %356 = vector.broadcast %355 : vector<1x128xf32> to vector<32x128xf32>
    %357 = arith.mulf %356, %227 : vector<32x128xf32>
    %358 = arith.addf %352, %357 : vector<32x128xf32>
    %359 = arith.mulf %333, %316 : vector<8x128xf32>
    %cst_199 = arith.constant dense<0.000000e+00> : vector<128xf32>
    %360 = vector.multi_reduction <add>, %359, %cst_199 [0] : vector<8x128xf32> to vector<128xf32>
    %361 = vector.shape_cast %360 : vector<128xf32> to vector<1x128xf32>
    %362 = vector.broadcast %361 : vector<1x128xf32> to vector<32x128xf32>
    %363 = arith.mulf %362, %239 : vector<32x128xf32>
    %364 = arith.addf %358, %363 : vector<32x128xf32>
    %365 = arith.mulf %333, %318 : vector<8x128xf32>
    %cst_200 = arith.constant dense<0.000000e+00> : vector<128xf32>
    %366 = vector.multi_reduction <add>, %365, %cst_200 [0] : vector<8x128xf32> to vector<128xf32>
    %367 = vector.shape_cast %366 : vector<128xf32> to vector<1x128xf32>
    %368 = vector.broadcast %367 : vector<1x128xf32> to vector<32x128xf32>
    %369 = arith.mulf %368, %251 : vector<32x128xf32>
    %370 = arith.addf %364, %369 : vector<32x128xf32>
    %371 = arith.mulf %333, %320 : vector<8x128xf32>
    %cst_201 = arith.constant dense<0.000000e+00> : vector<128xf32>
    %372 = vector.multi_reduction <add>, %371, %cst_201 [0] : vector<8x128xf32> to vector<128xf32>
    %373 = vector.shape_cast %372 : vector<128xf32> to vector<1x128xf32>
    %374 = vector.broadcast %373 : vector<1x128xf32> to vector<32x128xf32>
    %375 = arith.mulf %374, %263 : vector<32x128xf32>
    %376 = arith.addf %370, %375 : vector<32x128xf32>
    %377 = vector.broadcast %332 : vector<1x128xf32> to vector<32x128xf32>
    %378 = arith.mulf %376, %377 : vector<32x128xf32>
    %cst_202 = arith.constant 0.000000e+00 : f32
    %379 = vector.broadcast %cst_202 : f32 to vector<8x128xf32>
    %380 = vector.shape_cast %189 : vector<32x128xf32> to vector<1x32x128xf32>
    %381 = vector.broadcast %380 : vector<1x32x128xf32> to vector<8x32x128xf32>
    %382 = arith.mulf %265, %381 : vector<8x32x128xf32>
    %cst_203 = arith.constant dense<0.000000e+00> : vector<8x128xf32>
    %383 = vector.multi_reduction <add>, %382, %cst_203 [1] : vector<8x32x128xf32> to vector<8x128xf32>
    %384 = arith.addf %383, %272 : vector<8x128xf32>
    %cst_204 = arith.constant dense<0xFF800000> : vector<128xf32>
    %385 = vector.multi_reduction <maximumf>, %384, %cst_204 [0] : vector<8x128xf32> to vector<128xf32>
    %386 = vector.shape_cast %385 : vector<128xf32> to vector<1x128xf32>
    %387 = vector.broadcast %386 : vector<1x128xf32> to vector<8x128xf32>
    %388 = arith.subf %384, %387 : vector<8x128xf32>
    %389 = math.exp %388 : vector<8x128xf32>
    %cst_205 = arith.constant dense<0.000000e+00> : vector<128xf32>
    %390 = vector.multi_reduction <add>, %389, %cst_205 [0] : vector<8x128xf32> to vector<128xf32>
    %391 = vector.shape_cast %390 : vector<128xf32> to vector<1x128xf32>
    %392 = tpu.reciprocal %391 {approx = true} : vector<1x128xf32> -> vector<1x128xf32>
    %393 = vector.broadcast %392 : vector<1x128xf32> to vector<8x128xf32>
    %394 = arith.mulf %389, %393 : vector<8x128xf32>
    %395 = arith.addf %379, %394 : vector<8x128xf32>
    %396 = vector.shape_cast %201 : vector<32x128xf32> to vector<1x32x128xf32>
    %397 = vector.broadcast %396 : vector<1x32x128xf32> to vector<8x32x128xf32>
    %398 = arith.mulf %265, %397 : vector<8x32x128xf32>
    %cst_206 = arith.constant dense<0.000000e+00> : vector<8x128xf32>
    %399 = vector.multi_reduction <add>, %398, %cst_206 [1] : vector<8x32x128xf32> to vector<8x128xf32>
    %400 = arith.addf %399, %272 : vector<8x128xf32>
    %cst_207 = arith.constant dense<0xFF800000> : vector<128xf32>
    %401 = vector.multi_reduction <maximumf>, %400, %cst_207 [0] : vector<8x128xf32> to vector<128xf32>
    %402 = vector.shape_cast %401 : vector<128xf32> to vector<1x128xf32>
    %403 = vector.broadcast %402 : vector<1x128xf32> to vector<8x128xf32>
    %404 = arith.subf %400, %403 : vector<8x128xf32>
    %405 = math.exp %404 : vector<8x128xf32>
    %cst_208 = arith.constant dense<0.000000e+00> : vector<128xf32>
    %406 = vector.multi_reduction <add>, %405, %cst_208 [0] : vector<8x128xf32> to vector<128xf32>
    %407 = vector.shape_cast %406 : vector<128xf32> to vector<1x128xf32>
    %408 = tpu.reciprocal %407 {approx = true} : vector<1x128xf32> -> vector<1x128xf32>
    %409 = vector.broadcast %408 : vector<1x128xf32> to vector<8x128xf32>
    %410 = arith.mulf %405, %409 : vector<8x128xf32>
    %411 = arith.addf %395, %410 : vector<8x128xf32>
    %412 = vector.shape_cast %213 : vector<32x128xf32> to vector<1x32x128xf32>
    %413 = vector.broadcast %412 : vector<1x32x128xf32> to vector<8x32x128xf32>
    %414 = arith.mulf %265, %413 : vector<8x32x128xf32>
    %cst_209 = arith.constant dense<0.000000e+00> : vector<8x128xf32>
    %415 = vector.multi_reduction <add>, %414, %cst_209 [1] : vector<8x32x128xf32> to vector<8x128xf32>
    %416 = arith.addf %415, %272 : vector<8x128xf32>
    %cst_210 = arith.constant dense<0xFF800000> : vector<128xf32>
    %417 = vector.multi_reduction <maximumf>, %416, %cst_210 [0] : vector<8x128xf32> to vector<128xf32>
    %418 = vector.shape_cast %417 : vector<128xf32> to vector<1x128xf32>
    %419 = vector.broadcast %418 : vector<1x128xf32> to vector<8x128xf32>
    %420 = arith.subf %416, %419 : vector<8x128xf32>
    %421 = math.exp %420 : vector<8x128xf32>
    %cst_211 = arith.constant dense<0.000000e+00> : vector<128xf32>
    %422 = vector.multi_reduction <add>, %421, %cst_211 [0] : vector<8x128xf32> to vector<128xf32>
    %423 = vector.shape_cast %422 : vector<128xf32> to vector<1x128xf32>
    %424 = tpu.reciprocal %423 {approx = true} : vector<1x128xf32> -> vector<1x128xf32>
    %425 = vector.broadcast %424 : vector<1x128xf32> to vector<8x128xf32>
    %426 = arith.mulf %421, %425 : vector<8x128xf32>
    %427 = arith.addf %411, %426 : vector<8x128xf32>
    %428 = vector.shape_cast %225 : vector<32x128xf32> to vector<1x32x128xf32>
    %429 = vector.broadcast %428 : vector<1x32x128xf32> to vector<8x32x128xf32>
    %430 = arith.mulf %265, %429 : vector<8x32x128xf32>
    %cst_212 = arith.constant dense<0.000000e+00> : vector<8x128xf32>
    %431 = vector.multi_reduction <add>, %430, %cst_212 [1] : vector<8x32x128xf32> to vector<8x128xf32>
    %432 = arith.addf %431, %272 : vector<8x128xf32>
    %cst_213 = arith.constant dense<0xFF800000> : vector<128xf32>
    %433 = vector.multi_reduction <maximumf>, %432, %cst_213 [0] : vector<8x128xf32> to vector<128xf32>
    %434 = vector.shape_cast %433 : vector<128xf32> to vector<1x128xf32>
    %435 = vector.broadcast %434 : vector<1x128xf32> to vector<8x128xf32>
    %436 = arith.subf %432, %435 : vector<8x128xf32>
    %437 = math.exp %436 : vector<8x128xf32>
    %cst_214 = arith.constant dense<0.000000e+00> : vector<128xf32>
    %438 = vector.multi_reduction <add>, %437, %cst_214 [0] : vector<8x128xf32> to vector<128xf32>
    %439 = vector.shape_cast %438 : vector<128xf32> to vector<1x128xf32>
    %440 = tpu.reciprocal %439 {approx = true} : vector<1x128xf32> -> vector<1x128xf32>
    %441 = vector.broadcast %440 : vector<1x128xf32> to vector<8x128xf32>
    %442 = arith.mulf %437, %441 : vector<8x128xf32>
    %443 = arith.addf %427, %442 : vector<8x128xf32>
    %444 = vector.shape_cast %237 : vector<32x128xf32> to vector<1x32x128xf32>
    %445 = vector.broadcast %444 : vector<1x32x128xf32> to vector<8x32x128xf32>
    %446 = arith.mulf %265, %445 : vector<8x32x128xf32>
    %cst_215 = arith.constant dense<0.000000e+00> : vector<8x128xf32>
    %447 = vector.multi_reduction <add>, %446, %cst_215 [1] : vector<8x32x128xf32> to vector<8x128xf32>
    %448 = arith.addf %447, %272 : vector<8x128xf32>
    %cst_216 = arith.constant dense<0xFF800000> : vector<128xf32>
    %449 = vector.multi_reduction <maximumf>, %448, %cst_216 [0] : vector<8x128xf32> to vector<128xf32>
    %450 = vector.shape_cast %449 : vector<128xf32> to vector<1x128xf32>
    %451 = vector.broadcast %450 : vector<1x128xf32> to vector<8x128xf32>
    %452 = arith.subf %448, %451 : vector<8x128xf32>
    %453 = math.exp %452 : vector<8x128xf32>
    %cst_217 = arith.constant dense<0.000000e+00> : vector<128xf32>
    %454 = vector.multi_reduction <add>, %453, %cst_217 [0] : vector<8x128xf32> to vector<128xf32>
    %455 = vector.shape_cast %454 : vector<128xf32> to vector<1x128xf32>
    %456 = tpu.reciprocal %455 {approx = true} : vector<1x128xf32> -> vector<1x128xf32>
    %457 = vector.broadcast %456 : vector<1x128xf32> to vector<8x128xf32>
    %458 = arith.mulf %453, %457 : vector<8x128xf32>
    %459 = arith.addf %443, %458 : vector<8x128xf32>
    %460 = vector.shape_cast %249 : vector<32x128xf32> to vector<1x32x128xf32>
    %461 = vector.broadcast %460 : vector<1x32x128xf32> to vector<8x32x128xf32>
    %462 = arith.mulf %265, %461 : vector<8x32x128xf32>
    %cst_218 = arith.constant dense<0.000000e+00> : vector<8x128xf32>
    %463 = vector.multi_reduction <add>, %462, %cst_218 [1] : vector<8x32x128xf32> to vector<8x128xf32>
    %464 = arith.addf %463, %272 : vector<8x128xf32>
    %cst_219 = arith.constant dense<0xFF800000> : vector<128xf32>
    %465 = vector.multi_reduction <maximumf>, %464, %cst_219 [0] : vector<8x128xf32> to vector<128xf32>
    %466 = vector.shape_cast %465 : vector<128xf32> to vector<1x128xf32>
    %467 = vector.broadcast %466 : vector<1x128xf32> to vector<8x128xf32>
    %468 = arith.subf %464, %467 : vector<8x128xf32>
    %469 = math.exp %468 : vector<8x128xf32>
    %cst_220 = arith.constant dense<0.000000e+00> : vector<128xf32>
    %470 = vector.multi_reduction <add>, %469, %cst_220 [0] : vector<8x128xf32> to vector<128xf32>
    %471 = vector.shape_cast %470 : vector<128xf32> to vector<1x128xf32>
    %472 = tpu.reciprocal %471 {approx = true} : vector<1x128xf32> -> vector<1x128xf32>
    %473 = vector.broadcast %472 : vector<1x128xf32> to vector<8x128xf32>
    %474 = arith.mulf %469, %473 : vector<8x128xf32>
    %475 = arith.addf %459, %474 : vector<8x128xf32>
    %476 = vector.shape_cast %261 : vector<32x128xf32> to vector<1x32x128xf32>
    %477 = vector.broadcast %476 : vector<1x32x128xf32> to vector<8x32x128xf32>
    %478 = arith.mulf %265, %477 : vector<8x32x128xf32>
    %cst_221 = arith.constant dense<0.000000e+00> : vector<8x128xf32>
    %479 = vector.multi_reduction <add>, %478, %cst_221 [1] : vector<8x32x128xf32> to vector<8x128xf32>
    %480 = arith.addf %479, %272 : vector<8x128xf32>
    %cst_222 = arith.constant dense<0xFF800000> : vector<128xf32>
    %481 = vector.multi_reduction <maximumf>, %480, %cst_222 [0] : vector<8x128xf32> to vector<128xf32>
    %482 = vector.shape_cast %481 : vector<128xf32> to vector<1x128xf32>
    %483 = vector.broadcast %482 : vector<1x128xf32> to vector<8x128xf32>
    %484 = arith.subf %480, %483 : vector<8x128xf32>
    %485 = math.exp %484 : vector<8x128xf32>
    %cst_223 = arith.constant dense<0.000000e+00> : vector<128xf32>
    %486 = vector.multi_reduction <add>, %485, %cst_223 [0] : vector<8x128xf32> to vector<128xf32>
    %487 = vector.shape_cast %486 : vector<128xf32> to vector<1x128xf32>
    %488 = tpu.reciprocal %487 {approx = true} : vector<1x128xf32> -> vector<1x128xf32>
    %489 = vector.broadcast %488 : vector<1x128xf32> to vector<8x128xf32>
    %490 = arith.mulf %485, %489 : vector<8x128xf32>
    %491 = arith.addf %475, %490 : vector<8x128xf32>
    %492 = vector.shape_cast %491 : vector<8x128xf32> to vector<8x1x128xf32>
    %493 = vector.broadcast %492 : vector<8x1x128xf32> to vector<8x32x128xf32>
    %494 = arith.mulf %493, %266 : vector<8x32x128xf32>
    %cst_224 = arith.constant dense<0.000000e+00> : vector<32x128xf32>
    %495 = vector.multi_reduction <add>, %494, %cst_224 [0] : vector<8x32x128xf32> to vector<32x128xf32>
    %cst_225 = arith.constant 0.142857149 : f32
    %496 = vector.broadcast %cst_225 : f32 to vector<32x128xf32>
    %497 = arith.mulf %495, %496 : vector<32x128xf32>
    %498 = tpu.concatenate %378, %497 in 0 : vector<32x128xf32>, vector<32x128xf32> -> vector<64x128xf32>
    %499 = arith.truncf %498 : vector<64x128xf32> to vector<64x128xbf16>
    %c0_226 = arith.constant 0 : index
    %c0_227 = arith.constant 0 : index
    %500 = vector.load %arg7[%c0_226, %c0_227] : memref<32x64xbf16, #tpu.memory_space<vmem>>, vector<32x64xbf16>
    %cst_228 = arith.constant dense<0.000000e+00> : vector<32x128xf32>
    %501 = tpu.matmul %500, %499, %cst_228 {dimension_numbers = #tpu.dot_dimension_numbers<[1], [0], [0], [1], [0, 0, 1, 1], [], []>} : vector<32x64xbf16>, vector<64x128xbf16>, vector<32x128xf32> -> vector<32x128xf32>
    %c0_229 = arith.constant 0 : index
    %c0_230 = arith.constant 0 : index
    %502 = vector.load %arg8[%c0_229, %c0_230] : memref<32x1xf32, #tpu.memory_space<vmem>>, vector<32x1xf32>
    %503 = vector.broadcast %502 : vector<32x1xf32> to vector<32x128xf32>
    %504 = arith.addf %501, %503 : vector<32x128xf32>
    %cst_231 = arith.constant 0.000000e+00 : f32
    %505 = vector.broadcast %cst_231 : f32 to vector<32x128xf32>
    %506 = arith.maximumf %504, %505 : vector<32x128xf32>
    %507 = arith.truncf %506 : vector<32x128xf32> to vector<32x128xbf16>
    %c0_232 = arith.constant 0 : index
    %c0_233 = arith.constant 0 : index
    %508 = vector.load %arg9[%c0_232, %c0_233] : memref<1x32xbf16, #tpu.memory_space<vmem>>, vector<1x32xbf16>
    %cst_234 = arith.constant dense<0.000000e+00> : vector<1x128xf32>
    %509 = tpu.matmul %508, %507, %cst_234 {dimension_numbers = #tpu.dot_dimension_numbers<[1], [0], [0], [1], [0, 0, 1, 1], [], []>} : vector<1x32xbf16>, vector<32x128xbf16>, vector<1x128xf32> -> vector<1x128xf32>
    %c0_235 = arith.constant 0 : index
    %c0_236 = arith.constant 0 : index
    %510 = vector.load %arg10[%c0_235, %c0_236] : memref<1x1xf32, #tpu.memory_space<vmem>>, vector<1x1xf32>
    %511 = vector.broadcast %510 : vector<1x1xf32> to vector<1x128xf32>
    %512 = arith.addf %509, %511 : vector<1x128xf32>
    %c0_237 = arith.constant 0 : index
    %c0_238 = arith.constant 0 : index
    %513 = vector.load %arg11[%c0_237, %c0_238] : memref<1x128xf32, #tpu.memory_space<vmem>>, vector<1x128xf32>
    tpu.vector_store %arg11[%c0_237, %c0_238], %512 {strides = array<i32>} : memref<1x128xf32, #tpu.memory_space<vmem>>, vector<1x128xf32>,
    return
  }
  func.func @transform_0(%arg0: i32) -> (i32, i32, i32) {
    %c0_i32 = arith.constant 0 : i32
    %c0_i32_0 = arith.constant 0 : i32
    %c0_i32_1 = arith.constant 0 : i32
    return %c0_i32, %c0_i32_0, %arg0 : i32, i32, i32
  }
  func.func @transform_1(%arg0: i32) -> (i32, i32, i32) {
    %c0_i32 = arith.constant 0 : i32
    %c0_i32_0 = arith.constant 0 : i32
    %c0_i32_1 = arith.constant 0 : i32
    return %c0_i32, %c0_i32_0, %arg0 : i32, i32, i32
  }
  func.func @transform_2(%arg0: i32) -> (i32, i32) {
    %c0_i32 = arith.constant 0 : i32
    %c0_i32_0 = arith.constant 0 : i32
    return %c0_i32, %arg0 : i32, i32
  }
  func.func @transform_3(%arg0: i32) -> (i32, i32, i32) {
    %c0_i32 = arith.constant 0 : i32
    %c0_i32_0 = arith.constant 0 : i32
    %c0_i32_1 = arith.constant 0 : i32
    %c0_i32_2 = arith.constant 0 : i32
    return %c0_i32, %c0_i32_0, %c0_i32_1 : i32, i32, i32
  }
  func.func @transform_4(%arg0: i32) -> (i32, i32, i32) {
    %c0_i32 = arith.constant 0 : i32
    %c0_i32_0 = arith.constant 0 : i32
    %c0_i32_1 = arith.constant 0 : i32
    %c0_i32_2 = arith.constant 0 : i32
    return %c0_i32, %c0_i32_0, %c0_i32_1 : i32, i32, i32
  }
  func.func @transform_5(%arg0: i32) -> (i32, i32, i32) {
    %c0_i32 = arith.constant 0 : i32
    %c0_i32_0 = arith.constant 0 : i32
    %c0_i32_1 = arith.constant 0 : i32
    %c0_i32_2 = arith.constant 0 : i32
    return %c0_i32, %c0_i32_0, %c0_i32_1 : i32, i32, i32
  }
  func.func @transform_6(%arg0: i32) -> (i32, i32) {
    %c0_i32 = arith.constant 0 : i32
    %c0_i32_0 = arith.constant 0 : i32
    %c0_i32_1 = arith.constant 0 : i32
    return %c0_i32, %c0_i32_0 : i32, i32
  }
  func.func @transform_7(%arg0: i32) -> (i32, i32) {
    %c0_i32 = arith.constant 0 : i32
    %c0_i32_0 = arith.constant 0 : i32
    %c0_i32_1 = arith.constant 0 : i32
    return %c0_i32, %c0_i32_0 : i32, i32
  }
  func.func @transform_8(%arg0: i32) -> (i32, i32) {
    %c0_i32 = arith.constant 0 : i32
    %c0_i32_0 = arith.constant 0 : i32
    %c0_i32_1 = arith.constant 0 : i32
    return %c0_i32, %c0_i32_0 : i32, i32
  }
  func.func @transform_9(%arg0: i32) -> (i32, i32) {
    %c0_i32 = arith.constant 0 : i32
    %c0_i32_0 = arith.constant 0 : i32
    %c0_i32_1 = arith.constant 0 : i32
    return %c0_i32, %c0_i32_0 : i32, i32
  }
  func.func @transform_10(%arg0: i32) -> (i32, i32) {
    %c0_i32 = arith.constant 0 : i32
    %c0_i32_0 = arith.constant 0 : i32
    return %c0_i32, %arg0 : i32, i32
  }
}

</mosaic_0001>

<llo_original>
// kernel: tpu_custom_call.1
$region0: #{tpu_custom_call.1}
  #allocation0 [shape = 'u32[]', space=smem, size = 0x4, offset = 0x4, fixed_abs, tag = 'smem constant byte address 0x4 - core index']
  #allocation1 [shape = 'u32[144,128]{1,0:T(1,128)}', space=vmem, size = 0x12000, scoped, tag = 'internal scratch']
  #allocation2 [shape = 'f32[8,32,128]{2,1,0:T(8,128)}', space=vmem, size = 0x20000, scoped, tag = 'scratch operand']
  #allocation3 [shape = 'f32[8,32,128]{2,1,0:T(8,128)}', space=vmem, size = 0x20000, scoped, tag = 'scratch operand']
  #allocation4 [shape = 'f32[8,32,128]{2,1,0:T(8,128)}', space=vmem, size = 0x20000, scoped, tag = 'scratch operand']
  #allocation5 [shape = 'f32[1,1]{1,0:T(1,128)S(1)}', space=vmem, size = 0x200, scoped, tag = 'scoped memory for tpu_custom_call.1']
  %s0 = inlined_call_operand.vmem [shape: bf16[8,32,128], index: 0, kind: input, shape index: {}]
  %s1 = inlined_call_operand.hbm [shape: bf16[7,32,128], index: 1, kind: input, shape index: {}]
  %s2 = inlined_call_operand.vmem [shape: f32[8,128], index: 2, kind: input, shape index: {}]
  %s3 = inlined_call_operand.vmem [shape: bf16[2,32,32], index: 3, kind: input, shape index: {}]
  %s4 = inlined_call_operand.vmem [shape: f32[2,32,1], index: 4, kind: input, shape index: {}]
  %s5 = inlined_call_operand.vmem [shape: bf16[2,96,32], index: 5, kind: input, shape index: {}]
  %s6 = inlined_call_operand.vmem [shape: bf16[32,64], index: 6, kind: input, shape index: {}]
  %s7 = inlined_call_operand.vmem [shape: f32[32,1], index: 7, kind: input, shape index: {}]
  %s8 = inlined_call_operand.vmem [shape: bf16[1,32], index: 8, kind: input, shape index: {}]
  %s9 = inlined_call_operand.<no memory space> [shape: f32[1,1], index: 9, kind: input, shape index: {}]
  %s10 = inlined_call_operand.hbm [shape: f32[1,128], index: 10, kind: output, shape index: {}]
  %s11 = sld [smem:[#allocation0]]
  $region54: #{tpu_custom_call.1} parent=0
    _
  %s13 = ssub.s32 1, %s11
  %s14 = scalar_select 0, %s13, %s11
  %v15 = vstv %s9
  %16 = vst [vmem:[#allocation5] sm:$0x1] %v15
  $region1: #{tpu_custom_call.1} parent=0
    #allocation6 [shape = 'u8[57344]{0}', space=vmem, size = 0xe000, scoped, tag = 'input window, operand 1, single buffered']
    #allocation7 [shape = 's32[1]{0}', space=sflag, size = 0x4, scoped, tag = 'scoped memory for tpu_custom_call.1']
    #allocation8 [shape = 's32[1]{0}', space=sflag, size = 0x4, scoped, tag = 'scoped memory for tpu_custom_call.1']
    #allocation9 [shape = 'u8[512]{0}', space=vmem, size = 0x400, scoped, tag = 'output window, operand 0, single buffered']
    %17 = vsyncpa [#allocation7], 0
    %18 = vsyncpa [#allocation8], 0
    // Predicated region
    $region2: #{tpu_custom_call.1} parent=1 // pred_check
      _
    $region3: #{tpu_custom_call.1} parent=1 // pred_check_branch
      %20 = sbr.rel (0) target = $region5
    $region4: #{tpu_custom_call.1} parent=1 // pred_region
      _
    $region5: #{tpu_custom_call.1} parent=1 // pred_fallthru
      _
    // Predicated region
    $region6: #{tpu_custom_call.1} parent=1 // pred_check
      _
    $region7: #{tpu_custom_call.1} parent=1 // pred_check_branch
      %22 = sbr.rel (0) target = $region9
    $region8: #{tpu_custom_call.1} parent=1 // pred_region
      %s24 = ssub.s32 1792, 1792
      %25 = vsyncadd [#allocation7], %s24
      %s26 = sshll.u32 [#allocation6], 4
      %s27 = int_to_ptr.vmem [resolvable:$true] %s26
      %32 = dma.hbm_to_vmem [thread:$0]  %s1, 1792, %s27, [#allocation7], 64, 64, 4
    $region9: #{tpu_custom_call.1} parent=1 // pred_fallthru
      _
    // Predicated region
    $region10: #{tpu_custom_call.1} parent=1 // pred_check
      _
    $region11: #{tpu_custom_call.1} parent=1 // pred_check_branch
      %34 = sbr.rel (0) target = $region13
    $region12: #{tpu_custom_call.1} parent=1 // pred_region
      _
    $region13: #{tpu_custom_call.1} parent=1 // pred_fallthru
      _
    // Predicated region
    $region14: #{tpu_custom_call.1} parent=1 // pred_check
      _
    $region15: #{tpu_custom_call.1} parent=1 // pred_check_branch
      %36 = sbr.rel (0) target = $region17
    $region16: #{tpu_custom_call.1} parent=1 // pred_region
      _
    $region17: #{tpu_custom_call.1} parent=1 // pred_fallthru
      _
    // Predicated region
    $region18: #{tpu_custom_call.1} parent=1 // pred_check
      _
    $region19: #{tpu_custom_call.1} parent=1 // pred_check_branch
      %38 = sbr.rel (0) target = $region21
    $region20: #{tpu_custom_call.1} parent=1 // pred_region
      _
    $region21: #{tpu_custom_call.1} parent=1 // pred_fallthru
      _
    // Predicated region
    $region22: #{tpu_custom_call.1} parent=1 // pred_check
      _
    $region23: #{tpu_custom_call.1} parent=1 // pred_check_branch
      %40 = sbr.rel (0) target = $region25
    $region24: #{tpu_custom_call.1} parent=1 // pred_region
      _
    $region25: #{tpu_custom_call.1} parent=1 // pred_fallthru
      _
    // Predicated region
    $region26: #{tpu_custom_call.1} parent=1 // pred_check
      _
    $region27: #{tpu_custom_call.1} parent=1 // pred_check_branch
      %42 = sbr.rel (0) target = $region29
    $region28: #{tpu_custom_call.1} parent=1 // pred_region
      _
    $region29: #{tpu_custom_call.1} parent=1 // pred_fallthru
      _
    // Predicated region
    $region30: #{tpu_custom_call.1} parent=1 // pred_check
      _
    $region31: #{tpu_custom_call.1} parent=1 // pred_check_branch
      %44 = sbr.rel (0) target = $region33
    $region32: #{tpu_custom_call.1} parent=1 // pred_region
      _
    $region33: #{tpu_custom_call.1} parent=1 // pred_fallthru
      _
    // Predicated region
    $region34: #{tpu_custom_call.1} parent=1 // pred_check
      _
    $region35: #{tpu_custom_call.1} parent=1 // pred_check_branch
      %46 = sbr.rel (0) target = $region37
    $region36: #{tpu_custom_call.1} parent=1 // pred_region
      _
    $region37: #{tpu_custom_call.1} parent=1 // pred_fallthru
      _
    // Predicated region
    $region38: #{tpu_custom_call.1} parent=1 // pred_check
      _
    $region39: #{tpu_custom_call.1} parent=1 // pred_check_branch
      %48 = sbr.rel (0) target = $region41
    $region40: #{tpu_custom_call.1} parent=1 // pred_region
      _
    $region41: #{tpu_custom_call.1} parent=1 // pred_fallthru
      _
    // Predicated region
    $region42: #{tpu_custom_call.1} parent=1 // pred_check
      _
    $region43: #{tpu_custom_call.1} parent=1 // pred_check_branch
      %50 = sbr.rel (0) target = $region45
    $region44: #{tpu_custom_call.1} parent=1 // pred_region
      %51 = dma.done [#allocation7], 1792
    $region45: #{tpu_custom_call.1} parent=1 // pred_fallthru
      _
    %v53 = vld [vmem:[%s3] sm:$0xf]
    %v54 = vld [vmem:[%s3 + $0x4] sm:$0xf]
    %v55 = vld [vmem:[%s3 + $0x8] sm:$0xf]
    %v56 = vld [vmem:[%s3 + $0xc] sm:$0xf]
    %s57 = scalar_lea.vmem %s3, 16
    %v58 = vld [vmem:[%s57] sm:$0xf]
    %v59 = vld [vmem:[%s57 + $0x4] sm:$0xf]
    %v60 = vld [vmem:[%s57 + $0x8] sm:$0xf]
    %v61 = vld [vmem:[%s57 + $0xc] sm:$0xf]
    %v62 = vld [vmem:[%s4] sm:$0xff]
    %v63 = vld [vmem:[%s4 + $0x8] sm:$0xff]
    %v64 = vld [vmem:[%s4 + $0x10] sm:$0xff]
    %v65 = vld [vmem:[%s4 + $0x18] sm:$0xff]
    %s66 = scalar_lea.vmem %s4, 32
    %v67 = vld [vmem:[%s66] sm:$0xff]
    %v68 = vld [vmem:[%s66 + $0x8] sm:$0xff]
    %v69 = vld [vmem:[%s66 + $0x10] sm:$0xff]
    %v70 = vld [vmem:[%s66 + $0x18] sm:$0xff]
    %v71 = vld [vmem:[%s5] sm:$0xf]
    %v72 = vld [vmem:[%s5 + $0x4] sm:$0xf]
    %v73 = vld [vmem:[%s5 + $0x8] sm:$0xf]
    %v74 = vld [vmem:[%s5 + $0xc] sm:$0xf]
    %v75 = vld [vmem:[%s5 + $0x10] sm:$0xf]
    %v76 = vld [vmem:[%s5 + $0x14] sm:$0xf]
    %v77 = vld [vmem:[%s5 + $0x18] sm:$0xf]
    %v78 = vld [vmem:[%s5 + $0x1c] sm:$0xf]
    %v79 = vld [vmem:[%s5 + $0x20] sm:$0xf]
    %v80 = vld [vmem:[%s5 + $0x24] sm:$0xf]
    %v81 = vld [vmem:[%s5 + $0x28] sm:$0xf]
    %v82 = vld [vmem:[%s5 + $0x2c] sm:$0xf]
    %s83 = scalar_lea.vmem %s5, 48
    %v84 = vld [vmem:[%s83] sm:$0xf]
    %v85 = vld [vmem:[%s83 + $0x4] sm:$0xf]
    %v86 = vld [vmem:[%s83 + $0x8] sm:$0xf]
    %v87 = vld [vmem:[%s83 + $0xc] sm:$0xf]
    %v88 = vld [vmem:[%s83 + $0x10] sm:$0xf]
    %v89 = vld [vmem:[%s83 + $0x14] sm:$0xf]
    %v90 = vld [vmem:[%s83 + $0x18] sm:$0xf]
    %v91 = vld [vmem:[%s83 + $0x1c] sm:$0xf]
    %v92 = vld [vmem:[%s83 + $0x20] sm:$0xf]
    %v93 = vld [vmem:[%s83 + $0x24] sm:$0xf]
    %v94 = vld [vmem:[%s83 + $0x28] sm:$0xf]
    %v95 = vld [vmem:[%s83 + $0x2c] sm:$0xf]
    %v96 = vld [vmem:[%s0] sm:$0xf]
    %v97 = vld [vmem:[%s0 + $0x4] sm:$0xf]
    %v98 = vld [vmem:[%s0 + $0x8] sm:$0xf]
    %v99 = vld [vmem:[%s0 + $0xc] sm:$0xf]
    %101 = vset.pattern.permute.xlu0 0
    %102 = vperm.xlu0 %101, %v62
    %v103 = vpop.permute.xlu0 %102
    %106 = vset.pattern.permute.xlu0 0
    %107 = vperm.xlu0 %106, %v63
    %v108 = vpop.permute.xlu0 %107
    %111 = vset.pattern.permute.xlu0 0
    %112 = vperm.xlu0 %111, %v64
    %v113 = vpop.permute.xlu0 %112
    %116 = vset.pattern.permute.xlu0 0
    %117 = vperm.xlu0 %116, %v65
    %v118 = vpop.permute.xlu0 %117
    %v124 = vunpack.c.l.b16 %v53
    %v125 = vunpack.c.l.b16 %v54
    %v126 = vunpack.c.l.b16 %v55
    %v127 = vunpack.c.l.b16 %v56
    %v128 = vpack.c.b16 %v125, %v124
    %v129 = vpack.c.b16 %v127, %v126
    %v134 = vunpack.c.l.b16 %v96
    %v135 = vunpack.c.l.b16 %v97
    %v136 = vunpack.c.l.b16 %v98
    %v137 = vunpack.c.l.b16 %v99
    %v138 = vpack.c.b16 %v135, %v134
    %v139 = vpack.c.b16 %v137, %v136
    %vm142 = vcmask 261120
    %v144 = vsel %vm142, %v128, 0
    %v147 = vsel %vm142, %v129, 0
    %149 = vmatprep.subr.bf16.mxu0 0
    %150 = vmatpush1.bf16.msra.mxu0 %v138
    %151 = vmatprep.subr.bf16.mxu0 0
    %152 = vmatpush1.bf16.msra.mxu0 %v139
    %153 = vmatprep.subr.bf16.mxu0 0
    %154 = vmatpush1.bf16.msra.mxu0 0
    %155 = vmatprep.subr.bf16.mxu0 0
    %156 = vmatpush1.bf16.msra.mxu0 0
    %157 = vmatprep.subr.bf16.mxu0 0
    %158 = vmatpush1.bf16.msra.mxu0 0
    %159 = vmatprep.subr.bf16.mxu0 0
    %160 = vmatpush1.bf16.msra.mxu0 0
    %161 = vmatprep.subr.bf16.mxu0 0
    %162 = vmatpush1.bf16.msra.mxu0 0
    %163 = vmatprep.subr.bf16.mxu0 0
    %164 = vmatpush1.bf16.msra.mxu0 0
    %165 = vmatprep.subr.bf16.mxu0 0
    %166 = vmatpush1.bf16.msra.mxu0 0
    %167 = vmatprep.subr.bf16.mxu0 0
    %168 = vmatpush1.bf16.msra.mxu0 0
    %169 = vmatprep.subr.bf16.mxu0 0
    %170 = vmatpush1.bf16.msra.mxu0 0
    %171 = vmatprep.subr.bf16.mxu0 0
    %172 = vmatpush1.bf16.msra.mxu0 0
    %173 = vmatprep.subr.bf16.mxu0 0
    %174 = vmatpush1.bf16.msra.mxu0 0
    %175 = vmatprep.subr.bf16.mxu0 0
    %176 = vmatpush1.bf16.msra.mxu0 0
    %177 = vmatprep.subr.bf16.mxu0 0
    %178 = vmatpush1.bf16.msra.mxu0 0
    %179 = vmatprep.subr.bf16.mxu0 0
    %180 = vmatpush1.bf16.msra.mxu0 0
    %181 = vmatprep.mubr.bf16.mxu0 0
    %182 = vmatmul.mubr.bf16.gmra.mrb[0].mxu0 %v144
    %v183 = vpop.f32.mrb[0].mxu0
    %v184 = vadd.f32 %v103, %v183
    %v185 = vpop.f32.mrb[0].mxu0
    %v186 = vpop.f32.mrb[0].mxu0
    %v187 = vadd.f32 %v108, %v186
    %v188 = vpop.f32.mrb[0].mxu0
    %189 = vmatprep.mubr.bf16.mxu0 0
    %190 = vmatmul.mubr.bf16.gmra.mrb[0].mxu0 %v147
    %v191 = vpop.f32.mrb[0].mxu0
    %v192 = vadd.f32 %v113, %v191
    %v193 = vpop.f32.mrb[0].mxu0
    %v194 = vpop.f32.mrb[0].mxu0
    %v195 = vadd.f32 %v118, %v194
    %v196 = vpop.f32.mrb[0].mxu0
    %197 = vdwg.mxu0
    %v198 = vmax.f32 %v184, 0.0
    %v199 = vmax.f32 %v187, 0.0
    %v200 = vmax.f32 %v192, 0.0
    %v201 = vmax.f32 %v195, 0.0
    %v202 = vpack.c.bf16 %v199, %v198
    %v203 = vpack.c.bf16 %v201, %v200
    %v216 = vunpack.c.l.b16 %v71
    %v217 = vunpack.c.l.b16 %v72
    %v218 = vunpack.c.l.b16 %v73
    %v219 = vunpack.c.l.b16 %v74
    %v220 = vunpack.c.l.b16 %v75
    %v221 = vunpack.c.l.b16 %v76
    %v222 = vunpack.c.l.b16 %v77
    %v223 = vunpack.c.l.b16 %v78
    %v224 = vunpack.c.l.b16 %v79
    %v225 = vunpack.c.l.b16 %v80
    %v226 = vunpack.c.l.b16 %v81
    %v227 = vunpack.c.l.b16 %v82
    %v228 = vpack.c.b16 %v217, %v216
    %v229 = vpack.c.b16 %v219, %v218
    %v230 = vpack.c.b16 %v221, %v220
    %v231 = vpack.c.b16 %v223, %v222
    %v232 = vpack.c.b16 %v225, %v224
    %v233 = vpack.c.b16 %v227, %v226
    %v235 = vsel %vm142, %v228, 0
    %v238 = vsel %vm142, %v229, 0
    %v241 = vsel %vm142, %v230, 0
    %v244 = vsel %vm142, %v231, 0
    %v247 = vsel %vm142, %v232, 0
    %v250 = vsel %vm142, %v233, 0
    %252 = vmatprep.subr.bf16.mxu0 0
    %253 = vmatpush1.bf16.msra.mxu0 %v202
    %254 = vmatprep.subr.bf16.mxu0 0
    %255 = vmatpush1.bf16.msra.mxu0 %v203
    %256 = vmatprep.subr.bf16.mxu0 0
    %257 = vmatpush1.bf16.msra.mxu0 0
    %258 = vmatprep.subr.bf16.mxu0 0
    %259 = vmatpush1.bf16.msra.mxu0 0
    %260 = vmatprep.subr.bf16.mxu0 0
    %261 = vmatpush1.bf16.msra.mxu0 0
    %262 = vmatprep.subr.bf16.mxu0 0
    %263 = vmatpush1.bf16.msra.mxu0 0
    %264 = vmatprep.subr.bf16.mxu0 0
    %265 = vmatpush1.bf16.msra.mxu0 0
    %266 = vmatprep.subr.bf16.mxu0 0
    %267 = vmatpush1.bf16.msra.mxu0 0
    %268 = vmatprep.subr.bf16.mxu0 0
    %269 = vmatpush1.bf16.msra.mxu0 0
    %270 = vmatprep.subr.bf16.mxu0 0
    %271 = vmatpush1.bf16.msra.mxu0 0
    %272 = vmatprep.subr.bf16.mxu0 0
    %273 = vmatpush1.bf16.msra.mxu0 0
    %274 = vmatprep.subr.bf16.mxu0 0
    %275 = vmatpush1.bf16.msra.mxu0 0
    %276 = vmatprep.subr.bf16.mxu0 0
    %277 = vmatpush1.bf16.msra.mxu0 0
    %278 = vmatprep.subr.bf16.mxu0 0
    %279 = vmatpush1.bf16.msra.mxu0 0
    %280 = vmatprep.subr.bf16.mxu0 0
    %281 = vmatpush1.bf16.msra.mxu0 0
    %282 = vmatprep.subr.bf16.mxu0 0
    %283 = vmatpush1.bf16.msra.mxu0 0
    %284 = vmatprep.mubr.bf16.mxu0 0
    %285 = vmatmul.mubr.bf16.gmra.mrb[0].mxu0 %v235
    %v286 = vpop.f32.mrb[0].mxu0
    %v287 = vadd.f32 0.0, %v286
    %v288 = vpop.f32.mrb[0].mxu0
    %v289 = vpop.f32.mrb[0].mxu0
    %v290 = vadd.f32 0.0, %v289
    %v291 = vpop.f32.mrb[0].mxu0
    %292 = vmatprep.mubr.bf16.mxu0 0
    %293 = vmatmul.mubr.bf16.gmra.mrb[0].mxu0 %v238
    %v294 = vpop.f32.mrb[0].mxu0
    %v295 = vadd.f32 0.0, %v294
    %v296 = vpop.f32.mrb[0].mxu0
    %v297 = vpop.f32.mrb[0].mxu0
    %v298 = vadd.f32 0.0, %v297
    %v299 = vpop.f32.mrb[0].mxu0
    %300 = vmatprep.mubr.bf16.mxu0 0
    %301 = vmatmul.mubr.bf16.gmra.mrb[0].mxu0 %v241
    %v302 = vpop.f32.mrb[0].mxu0
    %v303 = vadd.f32 0.0, %v302
    %v304 = vpop.f32.mrb[0].mxu0
    %v305 = vpop.f32.mrb[0].mxu0
    %v306 = vadd.f32 0.0, %v305
    %v307 = vpop.f32.mrb[0].mxu0
    %308 = vmatprep.mubr.bf16.mxu0 0
    %309 = vmatmul.mubr.bf16.gmra.mrb[0].mxu0 %v244
    %v310 = vpop.f32.mrb[0].mxu0
    %v311 = vadd.f32 0.0, %v310
    %v312 = vpop.f32.mrb[0].mxu0
    %v313 = vpop.f32.mrb[0].mxu0
    %v314 = vadd.f32 0.0, %v313
    %v315 = vpop.f32.mrb[0].mxu0
    %316 = vmatprep.mubr.bf16.mxu0 0
    %317 = vmatmul.mubr.bf16.gmra.mrb[0].mxu0 %v247
    %v318 = vpop.f32.mrb[0].mxu0
    %v319 = vadd.f32 0.0, %v318
    %v320 = vpop.f32.mrb[0].mxu0
    %v321 = vpop.f32.mrb[0].mxu0
    %v322 = vadd.f32 0.0, %v321
    %v323 = vpop.f32.mrb[0].mxu0
    %324 = vmatprep.mubr.bf16.mxu0 0
    %325 = vmatmul.mubr.bf16.gmra.mrb[0].mxu0 %v250
    %v326 = vpop.f32.mrb[0].mxu0
    %v327 = vadd.f32 0.0, %v326
    %v328 = vpop.f32.mrb[0].mxu0
    %v329 = vpop.f32.mrb[0].mxu0
    %v330 = vadd.f32 0.0, %v329
    %v331 = vpop.f32.mrb[0].mxu0
    %332 = vdwg.mxu0
    %333 = vst [vmem:[#allocation2] sm:$0xff] %v287
    %334 = vst [vmem:[#allocation2 + $0x8] sm:$0xff] %v290
    %335 = vst [vmem:[#allocation2 + $0x10] sm:$0xff] %v295
    %336 = vst [vmem:[#allocation2 + $0x18] sm:$0xff] %v298
    %337 = vst [vmem:[#allocation3] sm:$0xff] %v303
    %338 = vst [vmem:[#allocation3 + $0x8] sm:$0xff] %v306
    %339 = vst [vmem:[#allocation3 + $0x10] sm:$0xff] %v311
    %340 = vst [vmem:[#allocation3 + $0x18] sm:$0xff] %v314
    %341 = vst [vmem:[#allocation4] sm:$0xff] %v319
    %342 = vst [vmem:[#allocation4 + $0x8] sm:$0xff] %v322
    %343 = vst [vmem:[#allocation4 + $0x10] sm:$0xff] %v327
    %344 = vst [vmem:[#allocation4 + $0x18] sm:$0xff] %v330
    %s345 = scalar_lea.vmem %s0, 16
    %v346 = vld [vmem:[%s345] sm:$0xf]
    %v347 = vld [vmem:[%s345 + $0x4] sm:$0xf]
    %v348 = vld [vmem:[%s345 + $0x8] sm:$0xf]
    %v349 = vld [vmem:[%s345 + $0xc] sm:$0xf]
    %v354 = vunpack.c.l.b16 %v346
    %v355 = vunpack.c.l.b16 %v347
    %v356 = vunpack.c.l.b16 %v348
    %v357 = vunpack.c.l.b16 %v349
    %v358 = vpack.c.b16 %v355, %v354
    %v359 = vpack.c.b16 %v357, %v356
    %362 = vmatprep.subr.bf16.mxu0 0
    %363 = vmatpush1.bf16.msra.mxu0 %v358
    %364 = vmatprep.subr.bf16.mxu0 0
    %365 = vmatpush1.bf16.msra.mxu0 %v359
    %366 = vmatprep.subr.bf16.mxu0 0
    %367 = vmatpush1.bf16.msra.mxu0 0
    %368 = vmatprep.subr.bf16.mxu0 0
    %369 = vmatpush1.bf16.msra.mxu0 0
    %370 = vmatprep.subr.bf16.mxu0 0
    %371 = vmatpush1.bf16.msra.mxu0 0
    %372 = vmatprep.subr.bf16.mxu0 0
    %373 = vmatpush1.bf16.msra.mxu0 0
    %374 = vmatprep.subr.bf16.mxu0 0
    %375 = vmatpush1.bf16.msra.mxu0 0
    %376 = vmatprep.subr.bf16.mxu0 0
    %377 = vmatpush1.bf16.msra.mxu0 0
    %378 = vmatprep.subr.bf16.mxu0 0
    %379 = vmatpush1.bf16.msra.mxu0 0
    %380 = vmatprep.subr.bf16.mxu0 0
    %381 = vmatpush1.bf16.msra.mxu0 0
    %382 = vmatprep.subr.bf16.mxu0 0
    %383 = vmatpush1.bf16.msra.mxu0 0
    %384 = vmatprep.subr.bf16.mxu0 0
    %385 = vmatpush1.bf16.msra.mxu0 0
    %386 = vmatprep.subr.bf16.mxu0 0
    %387 = vmatpush1.bf16.msra.mxu0 0
    %388 = vmatprep.subr.bf16.mxu0 0
    %389 = vmatpush1.bf16.msra.mxu0 0
    %390 = vmatprep.subr.bf16.mxu0 0
    %391 = vmatpush1.bf16.msra.mxu0 0
    %392 = vmatprep.subr.bf16.mxu0 0
    %393 = vmatpush1.bf16.msra.mxu0 0
    %394 = vmatprep.mubr.bf16.mxu0 0
    %395 = vmatmul.mubr.bf16.gmra.mrb[0].mxu0 %v144
    %v396 = vpop.f32.mrb[0].mxu0
    %v397 = vadd.f32 %v103, %v396
    %v398 = vpop.f32.mrb[0].mxu0
    %v399 = vpop.f32.mrb[0].mxu0
    %v400 = vadd.f32 %v108, %v399
    %v401 = vpop.f32.mrb[0].mxu0
    %402 = vmatprep.mubr.bf16.mxu0 0
    %403 = vmatmul.mubr.bf16.gmra.mrb[0].mxu0 %v147
    %v404 = vpop.f32.mrb[0].mxu0
    %v405 = vadd.f32 %v113, %v404
    %v406 = vpop.f32.mrb[0].mxu0
    %v407 = vpop.f32.mrb[0].mxu0
    %v408 = vadd.f32 %v118, %v407
    %v409 = vpop.f32.mrb[0].mxu0
    %410 = vdwg.mxu0
    %v411 = vmax.f32 %v397, 0.0
    %v412 = vmax.f32 %v400, 0.0
    %v413 = vmax.f32 %v405, 0.0
    %v414 = vmax.f32 %v408, 0.0
    %v415 = vpack.c.bf16 %v412, %v411
    %v416 = vpack.c.bf16 %v414, %v413
    %417 = vmatprep.subr.bf16.mxu0 0
    %418 = vmatpush1.bf16.msra.mxu0 %v415
    %419 = vmatprep.subr.bf16.mxu0 0
    %420 = vmatpush1.bf16.msra.mxu0 %v416
    %421 = vmatprep.subr.bf16.mxu0 0
    %422 = vmatpush1.bf16.msra.mxu0 0
    %423 = vmatprep.subr.bf16.mxu0 0
    %424 = vmatpush1.bf16.msra.mxu0 0
    %425 = vmatprep.subr.bf16.mxu0 0
    %426 = vmatpush1.bf16.msra.mxu0 0
    %427 = vmatprep.subr.bf16.mxu0 0
    %428 = vmatpush1.bf16.msra.mxu0 0
    %429 = vmatprep.subr.bf16.mxu0 0
    %430 = vmatpush1.bf16.msra.mxu0 0
    %431 = vmatprep.subr.bf16.mxu0 0
    %432 = vmatpush1.bf16.msra.mxu0 0
    %433 = vmatprep.subr.bf16.mxu0 0
    %434 = vmatpush1.bf16.msra.mxu0 0
    %435 = vmatprep.subr.bf16.mxu0 0
    %436 = vmatpush1.bf16.msra.mxu0 0
    %437 = vmatprep.subr.bf16.mxu0 0
    %438 = vmatpush1.bf16.msra.mxu0 0
    %439 = vmatprep.subr.bf16.mxu0 0
    %440 = vmatpush1.bf16.msra.mxu0 0
    %441 = vmatprep.subr.bf16.mxu0 0
    %442 = vmatpush1.bf16.msra.mxu0 0
    %443 = vmatprep.subr.bf16.mxu0 0
    %444 = vmatpush1.bf16.msra.mxu0 0
    %445 = vmatprep.subr.bf16.mxu0 0
    %446 = vmatpush1.bf16.msra.mxu0 0
    %447 = vmatprep.subr.bf16.mxu0 0
    %448 = vmatpush1.bf16.msra.mxu0 0
    %449 = vmatprep.mubr.bf16.mxu0 0
    %450 = vmatmul.mubr.bf16.gmra.mrb[0].mxu0 %v235
    %v451 = vpop.f32.mrb[0].mxu0
    %v452 = vadd.f32 0.0, %v451
    %v453 = vpop.f32.mrb[0].mxu0
    %v454 = vpop.f32.mrb[0].mxu0
    %v455 = vadd.f32 0.0, %v454
    %v456 = vpop.f32.mrb[0].mxu0
    %457 = vmatprep.mubr.bf16.mxu0 0
    %458 = vmatmul.mubr.bf16.gmra.mrb[0].mxu0 %v238
    %v459 = vpop.f32.mrb[0].mxu0
    %v460 = vadd.f32 0.0, %v459
    %v461 = vpop.f32.mrb[0].mxu0
    %v462 = vpop.f32.mrb[0].mxu0
    %v463 = vadd.f32 0.0, %v462
    %v464 = vpop.f32.mrb[0].mxu0
    %465 = vmatprep.mubr.bf16.mxu0 0
    %466 = vmatmul.mubr.bf16.gmra.mrb[0].mxu0 %v241
    %v467 = vpop.f32.mrb[0].mxu0
    %v468 = vadd.f32 0.0, %v467
    %v469 = vpop.f32.mrb[0].mxu0
    %v470 = vpop.f32.mrb[0].mxu0
    %v471 = vadd.f32 0.0, %v470
    %v472 = vpop.f32.mrb[0].mxu0
    %473 = vmatprep.mubr.bf16.mxu0 0
    %474 = vmatmul.mubr.bf16.gmra.mrb[0].mxu0 %v244
    %v475 = vpop.f32.mrb[0].mxu0
    %v476 = vadd.f32 0.0, %v475
    %v477 = vpop.f32.mrb[0].mxu0
    %v478 = vpop.f32.mrb[0].mxu0
    %v479 = vadd.f32 0.0, %v478
    %v480 = vpop.f32.mrb[0].mxu0
    %481 = vmatprep.mubr.bf16.mxu0 0
    %482 = vmatmul.mubr.bf16.gmra.mrb[0].mxu0 %v247
    %v483 = vpop.f32.mrb[0].mxu0
    %v484 = vadd.f32 0.0, %v483
    %v485 = vpop.f32.mrb[0].mxu0
    %v486 = vpop.f32.mrb[0].mxu0
    %v487 = vadd.f32 0.0, %v486
    %v488 = vpop.f32.mrb[0].mxu0
    %489 = vmatprep.mubr.bf16.mxu0 0
    %490 = vmatmul.mubr.bf16.gmra.mrb[0].mxu0 %v250
    %v491 = vpop.f32.mrb[0].mxu0
    %v492 = vadd.f32 0.0, %v491
    %v493 = vpop.f32.mrb[0].mxu0
    %v494 = vpop.f32.mrb[0].mxu0
    %v495 = vadd.f32 0.0, %v494
    %v496 = vpop.f32.mrb[0].mxu0
    %497 = vdwg.mxu0
    %s498 = scalar_lea.vmem [#allocation2], 32
    %499 = vst [vmem:[%s498] sm:$0xff] %v452
    %500 = vst [vmem:[%s498 + $0x8] sm:$0xff] %v455
    %501 = vst [vmem:[%s498 + $0x10] sm:$0xff] %v460
    %502 = vst [vmem:[%s498 + $0x18] sm:$0xff] %v463
    %s503 = scalar_lea.vmem [#allocation3], 32
    %504 = vst [vmem:[%s503] sm:$0xff] %v468
    %505 = vst [vmem:[%s503 + $0x8] sm:$0xff] %v471
    %506 = vst [vmem:[%s503 + $0x10] sm:$0xff] %v476
    %507 = vst [vmem:[%s503 + $0x18] sm:$0xff] %v479
    %s508 = scalar_lea.vmem [#allocation4], 32
    %509 = vst [vmem:[%s508] sm:$0xff] %v484
    %510 = vst [vmem:[%s508 + $0x8] sm:$0xff] %v487
    %511 = vst [vmem:[%s508 + $0x10] sm:$0xff] %v492
    %512 = vst [vmem:[%s508 + $0x18] sm:$0xff] %v495
    %s513 = scalar_lea.vmem %s0, 32
    %v514 = vld [vmem:[%s513] sm:$0xf]
    %v515 = vld [vmem:[%s513 + $0x4] sm:$0xf]
    %v516 = vld [vmem:[%s513 + $0x8] sm:$0xf]
    %v517 = vld [vmem:[%s513 + $0xc] sm:$0xf]
    %v522 = vunpack.c.l.b16 %v514
    %v523 = vunpack.c.l.b16 %v515
    %v524 = vunpack.c.l.b16 %v516
    %v525 = vunpack.c.l.b16 %v517
    %v526 = vpack.c.b16 %v523, %v522
    %v527 = vpack.c.b16 %v525, %v524
    %530 = vmatprep.subr.bf16.mxu0 0
    %531 = vmatpush1.bf16.msra.mxu0 %v526
    %532 = vmatprep.subr.bf16.mxu0 0
    %533 = vmatpush1.bf16.msra.mxu0 %v527
    %534 = vmatprep.subr.bf16.mxu0 0
    %535 = vmatpush1.bf16.msra.mxu0 0
    %536 = vmatprep.subr.bf16.mxu0 0
    %537 = vmatpush1.bf16.msra.mxu0 0
    %538 = vmatprep.subr.bf16.mxu0 0
    %539 = vmatpush1.bf16.msra.mxu0 0
    %540 = vmatprep.subr.bf16.mxu0 0
    %541 = vmatpush1.bf16.msra.mxu0 0
    %542 = vmatprep.subr.bf16.mxu0 0
    %543 = vmatpush1.bf16.msra.mxu0 0
    %544 = vmatprep.subr.bf16.mxu0 0
    %545 = vmatpush1.bf16.msra.mxu0 0
    %546 = vmatprep.subr.bf16.mxu0 0
    %547 = vmatpush1.bf16.msra.mxu0 0
    %548 = vmatprep.subr.bf16.mxu0 0
    %549 = vmatpush1.bf16.msra.mxu0 0
    %550 = vmatprep.subr.bf16.mxu0 0
    %551 = vmatpush1.bf16.msra.mxu0 0
    %552 = vmatprep.subr.bf16.mxu0 0
    %553 = vmatpush1.bf16.msra.mxu0 0
    %554 = vmatprep.subr.bf16.mxu0 0
    %555 = vmatpush1.bf16.msra.mxu0 0
    %556 = vmatprep.subr.bf16.mxu0 0
    %557 = vmatpush1.bf16.msra.mxu0 0
    %558 = vmatprep.subr.bf16.mxu0 0
    %559 = vmatpush1.bf16.msra.mxu0 0
    %560 = vmatprep.subr.bf16.mxu0 0
    %561 = vmatpush1.bf16.msra.mxu0 0
    %562 = vmatprep.mubr.bf16.mxu0 0
    %563 = vmatmul.mubr.bf16.gmra.mrb[0].mxu0 %v144
    %v564 = vpop.f32.mrb[0].mxu0
    %v565 = vadd.f32 %v103, %v564
    %v566 = vpop.f32.mrb[0].mxu0
    %v567 = vpop.f32.mrb[0].mxu0
    %v568 = vadd.f32 %v108, %v567
    %v569 = vpop.f32.mrb[0].mxu0
    %570 = vmatprep.mubr.bf16.mxu0 0
    %571 = vmatmul.mubr.bf16.gmra.mrb[0].mxu0 %v147
    %v572 = vpop.f32.mrb[0].mxu0
    %v573 = vadd.f32 %v113, %v572
    %v574 = vpop.f32.mrb[0].mxu0
    %v575 = vpop.f32.mrb[0].mxu0
    %v576 = vadd.f32 %v118, %v575
    %v577 = vpop.f32.mrb[0].mxu0
    %578 = vdwg.mxu0
    %v579 = vmax.f32 %v565, 0.0
    %v580 = vmax.f32 %v568, 0.0
    %v581 = vmax.f32 %v573, 0.0
    %v582 = vmax.f32 %v576, 0.0
    %v583 = vpack.c.bf16 %v580, %v579
    %v584 = vpack.c.bf16 %v582, %v581
    %585 = vmatprep.subr.bf16.mxu0 0
    %586 = vmatpush1.bf16.msra.mxu0 %v583
    %587 = vmatprep.subr.bf16.mxu0 0
    %588 = vmatpush1.bf16.msra.mxu0 %v584
    %589 = vmatprep.subr.bf16.mxu0 0
    %590 = vmatpush1.bf16.msra.mxu0 0
    %591 = vmatprep.subr.bf16.mxu0 0
    %592 = vmatpush1.bf16.msra.mxu0 0
    %593 = vmatprep.subr.bf16.mxu0 0
    %594 = vmatpush1.bf16.msra.mxu0 0
    %595 = vmatprep.subr.bf16.mxu0 0
    %596 = vmatpush1.bf16.msra.mxu0 0
    %597 = vmatprep.subr.bf16.mxu0 0
    %598 = vmatpush1.bf16.msra.mxu0 0
    %599 = vmatprep.subr.bf16.mxu0 0
    %600 = vmatpush1.bf16.msra.mxu0 0
    %601 = vmatprep.subr.bf16.mxu0 0
    %602 = vmatpush1.bf16.msra.mxu0 0
    %603 = vmatprep.subr.bf16.mxu0 0
    %604 = vmatpush1.bf16.msra.mxu0 0
    %605 = vmatprep.subr.bf16.mxu0 0
    %606 = vmatpush1.bf16.msra.mxu0 0
    %607 = vmatprep.subr.bf16.mxu0 0
    %608 = vmatpush1.bf16.msra.mxu0 0
    %609 = vmatprep.subr.bf16.mxu0 0
    %610 = vmatpush1.bf16.msra.mxu0 0
    %611 = vmatprep.subr.bf16.mxu0 0
    %612 = vmatpush1.bf16.msra.mxu0 0
    %613 = vmatprep.subr.bf16.mxu0 0
    %614 = vmatpush1.bf16.msra.mxu0 0
    %615 = vmatprep.subr.bf16.mxu0 0
    %616 = vmatpush1.bf16.msra.mxu0 0
    %617 = vmatprep.mubr.bf16.mxu0 0
    %618 = vmatmul.mubr.bf16.gmra.mrb[0].mxu0 %v235
    %v619 = vpop.f32.mrb[0].mxu0
    %v620 = vadd.f32 0.0, %v619
    %v621 = vpop.f32.mrb[0].mxu0
    %v622 = vpop.f32.mrb[0].mxu0
    %v623 = vadd.f32 0.0, %v622
    %v624 = vpop.f32.mrb[0].mxu0
    %625 = vmatprep.mubr.bf16.mxu0 0
    %626 = vmatmul.mubr.bf16.gmra.mrb[0].mxu0 %v238
    %v627 = vpop.f32.mrb[0].mxu0
    %v628 = vadd.f32 0.0, %v627
    %v629 = vpop.f32.mrb[0].mxu0
    %v630 = vpop.f32.mrb[0].mxu0
    %v631 = vadd.f32 0.0, %v630
    %v632 = vpop.f32.mrb[0].mxu0
    %633 = vmatprep.mubr.bf16.mxu0 0
    %634 = vmatmul.mubr.bf16.gmra.mrb[0].mxu0 %v241
    %v635 = vpop.f32.mrb[0].mxu0
    %v636 = vadd.f32 0.0, %v635
    %v637 = vpop.f32.mrb[0].mxu0
    %v638 = vpop.f32.mrb[0].mxu0
    %v639 = vadd.f32 0.0, %v638
    %v640 = vpop.f32.mrb[0].mxu0
    %641 = vmatprep.mubr.bf16.mxu0 0
    %642 = vmatmul.mubr.bf16.gmra.mrb[0].mxu0 %v244
    %v643 = vpop.f32.mrb[0].mxu0
    %v644 = vadd.f32 0.0, %v643
    %v645 = vpop.f32.mrb[0].mxu0
    %v646 = vpop.f32.mrb[0].mxu0
    %v647 = vadd.f32 0.0, %v646
    %v648 = vpop.f32.mrb[0].mxu0
    %649 = vmatprep.mubr.bf16.mxu0 0
    %650 = vmatmul.mubr.bf16.gmra.mrb[0].mxu0 %v247
    %v651 = vpop.f32.mrb[0].mxu0
    %v652 = vadd.f32 0.0, %v651
    %v653 = vpop.f32.mrb[0].mxu0
    %v654 = vpop.f32.mrb[0].mxu0
    %v655 = vadd.f32 0.0, %v654
    %v656 = vpop.f32.mrb[0].mxu0
    %657 = vmatprep.mubr.bf16.mxu0 0
    %658 = vmatmul.mubr.bf16.gmra.mrb[0].mxu0 %v250
    %v659 = vpop.f32.mrb[0].mxu0
    %v660 = vadd.f32 0.0, %v659
    %v661 = vpop.f32.mrb[0].mxu0
    %v662 = vpop.f32.mrb[0].mxu0
    %v663 = vadd.f32 0.0, %v662
    %v664 = vpop.f32.mrb[0].mxu0
    %665 = vdwg.mxu0
    %s666 = scalar_lea.vmem [#allocation2], 64
    %667 = vst [vmem:[%s666] sm:$0xff] %v620
    %668 = vst [vmem:[%s666 + $0x8] sm:$0xff] %v623
    %669 = vst [vmem:[%s666 + $0x10] sm:$0xff] %v628
    %670 = vst [vmem:[%s666 + $0x18] sm:$0xff] %v631
    %s671 = scalar_lea.vmem [#allocation3], 64
    %672 = vst [vmem:[%s671] sm:$0xff] %v636
    %673 = vst [vmem:[%s671 + $0x8] sm:$0xff] %v639
    %674 = vst [vmem:[%s671 + $0x10] sm:$0xff] %v644
    %675 = vst [vmem:[%s671 + $0x18] sm:$0xff] %v647
    %s676 = scalar_lea.vmem [#allocation4], 64
    %677 = vst [vmem:[%s676] sm:$0xff] %v652
    %678 = vst [vmem:[%s676 + $0x8] sm:$0xff] %v655
    %679 = vst [vmem:[%s676 + $0x10] sm:$0xff] %v660
    %680 = vst [vmem:[%s676 + $0x18] sm:$0xff] %v663
    %s681 = scalar_lea.vmem %s0, 48
    %v682 = vld [vmem:[%s681] sm:$0xf]
    %v683 = vld [vmem:[%s681 + $0x4] sm:$0xf]
    %v684 = vld [vmem:[%s681 + $0x8] sm:$0xf]
    %v685 = vld [vmem:[%s681 + $0xc] sm:$0xf]
    %v690 = vunpack.c.l.b16 %v682
    %v691 = vunpack.c.l.b16 %v683
    %v692 = vunpack.c.l.b16 %v684
    %v693 = vunpack.c.l.b16 %v685
    %v694 = vpack.c.b16 %v691, %v690
    %v695 = vpack.c.b16 %v693, %v692
    %698 = vmatprep.subr.bf16.mxu0 0
    %699 = vmatpush1.bf16.msra.mxu0 %v694
    %700 = vmatprep.subr.bf16.mxu0 0
    %701 = vmatpush1.bf16.msra.mxu0 %v695
    %702 = vmatprep.subr.bf16.mxu0 0
    %703 = vmatpush1.bf16.msra.mxu0 0
    %704 = vmatprep.subr.bf16.mxu0 0
    %705 = vmatpush1.bf16.msra.mxu0 0
    %706 = vmatprep.subr.bf16.mxu0 0
    %707 = vmatpush1.bf16.msra.mxu0 0
    %708 = vmatprep.subr.bf16.mxu0 0
    %709 = vmatpush1.bf16.msra.mxu0 0
    %710 = vmatprep.subr.bf16.mxu0 0
    %711 = vmatpush1.bf16.msra.mxu0 0
    %712 = vmatprep.subr.bf16.mxu0 0
    %713 = vmatpush1.bf16.msra.mxu0 0
    %714 = vmatprep.subr.bf16.mxu0 0
    %715 = vmatpush1.bf16.msra.mxu0 0
    %716 = vmatprep.subr.bf16.mxu0 0
    %717 = vmatpush1.bf16.msra.mxu0 0
    %718 = vmatprep.subr.bf16.mxu0 0
    %719 = vmatpush1.bf16.msra.mxu0 0
    %720 = vmatprep.subr.bf16.mxu0 0
    %721 = vmatpush1.bf16.msra.mxu0 0
    %722 = vmatprep.subr.bf16.mxu0 0
    %723 = vmatpush1.bf16.msra.mxu0 0
    %724 = vmatprep.subr.bf16.mxu0 0
    %725 = vmatpush1.bf16.msra.mxu0 0
    %726 = vmatprep.subr.bf16.mxu0 0
    %727 = vmatpush1.bf16.msra.mxu0 0
    %728 = vmatprep.subr.bf16.mxu0 0
    %729 = vmatpush1.bf16.msra.mxu0 0
    %730 = vmatprep.mubr.bf16.mxu0 0
    %731 = vmatmul.mubr.bf16.gmra.mrb[0].mxu0 %v144
    %v732 = vpop.f32.mrb[0].mxu0
    %v733 = vadd.f32 %v103, %v732
    %v734 = vpop.f32.mrb[0].mxu0
    %v735 = vpop.f32.mrb[0].mxu0
    %v736 = vadd.f32 %v108, %v735
    %v737 = vpop.f32.mrb[0].mxu0
    %738 = vmatprep.mubr.bf16.mxu0 0
    %739 = vmatmul.mubr.bf16.gmra.mrb[0].mxu0 %v147
    %v740 = vpop.f32.mrb[0].mxu0
    %v741 = vadd.f32 %v113, %v740
    %v742 = vpop.f32.mrb[0].mxu0
    %v743 = vpop.f32.mrb[0].mxu0
    %v744 = vadd.f32 %v118, %v743
    %v745 = vpop.f32.mrb[0].mxu0
    %746 = vdwg.mxu0
    %v747 = vmax.f32 %v733, 0.0
    %v748 = vmax.f32 %v736, 0.0
    %v749 = vmax.f32 %v741, 0.0
    %v750 = vmax.f32 %v744, 0.0
    %v751 = vpack.c.bf16 %v748, %v747
    %v752 = vpack.c.bf16 %v750, %v749
    %753 = vmatprep.subr.bf16.mxu0 0
    %754 = vmatpush1.bf16.msra.mxu0 %v751
    %755 = vmatprep.subr.bf16.mxu0 0
    %756 = vmatpush1.bf16.msra.mxu0 %v752
    %757 = vmatprep.subr.bf16.mxu0 0
    %758 = vmatpush1.bf16.msra.mxu0 0
    %759 = vmatprep.subr.bf16.mxu0 0
    %760 = vmatpush1.bf16.msra.mxu0 0
    %761 = vmatprep.subr.bf16.mxu0 0
    %762 = vmatpush1.bf16.msra.mxu0 0
    %763 = vmatprep.subr.bf16.mxu0 0
    %764 = vmatpush1.bf16.msra.mxu0 0
    %765 = vmatprep.subr.bf16.mxu0 0
    %766 = vmatpush1.bf16.msra.mxu0 0
    %767 = vmatprep.subr.bf16.mxu0 0
    %768 = vmatpush1.bf16.msra.mxu0 0
    %769 = vmatprep.subr.bf16.mxu0 0
    %770 = vmatpush1.bf16.msra.mxu0 0
    %771 = vmatprep.subr.bf16.mxu0 0
    %772 = vmatpush1.bf16.msra.mxu0 0
    %773 = vmatprep.subr.bf16.mxu0 0
    %774 = vmatpush1.bf16.msra.mxu0 0
    %775 = vmatprep.subr.bf16.mxu0 0
    %776 = vmatpush1.bf16.msra.mxu0 0
    %777 = vmatprep.subr.bf16.mxu0 0
    %778 = vmatpush1.bf16.msra.mxu0 0
    %779 = vmatprep.subr.bf16.mxu0 0
    %780 = vmatpush1.bf16.msra.mxu0 0
    %781 = vmatprep.subr.bf16.mxu0 0
    %782 = vmatpush1.bf16.msra.mxu0 0
    %783 = vmatprep.subr.bf16.mxu0 0
    %784 = vmatpush1.bf16.msra.mxu0 0
    %785 = vmatprep.mubr.bf16.mxu0 0
    %786 = vmatmul.mubr.bf16.gmra.mrb[0].mxu0 %v235
    %v787 = vpop.f32.mrb[0].mxu0
    %v788 = vadd.f32 0.0, %v787
    %v789 = vpop.f32.mrb[0].mxu0
    %v790 = vpop.f32.mrb[0].mxu0
    %v791 = vadd.f32 0.0, %v790
    %v792 = vpop.f32.mrb[0].mxu0
    %793 = vmatprep.mubr.bf16.mxu0 0
    %794 = vmatmul.mubr.bf16.gmra.mrb[0].mxu0 %v238
    %v795 = vpop.f32.mrb[0].mxu0
    %v796 = vadd.f32 0.0, %v795
    %v797 = vpop.f32.mrb[0].mxu0
    %v798 = vpop.f32.mrb[0].mxu0
    %v799 = vadd.f32 0.0, %v798
    %v800 = vpop.f32.mrb[0].mxu0
    %801 = vmatprep.mubr.bf16.mxu0 0
    %802 = vmatmul.mubr.bf16.gmra.mrb[0].mxu0 %v241
    %v803 = vpop.f32.mrb[0].mxu0
    %v804 = vadd.f32 0.0, %v803
    %v805 = vpop.f32.mrb[0].mxu0
    %v806 = vpop.f32.mrb[0].mxu0
    %v807 = vadd.f32 0.0, %v806
    %v808 = vpop.f32.mrb[0].mxu0
    %809 = vmatprep.mubr.bf16.mxu0 0
    %810 = vmatmul.mubr.bf16.gmra.mrb[0].mxu0 %v244
    %v811 = vpop.f32.mrb[0].mxu0
    %v812 = vadd.f32 0.0, %v811
    %v813 = vpop.f32.mrb[0].mxu0
    %v814 = vpop.f32.mrb[0].mxu0
    %v815 = vadd.f32 0.0, %v814
    %v816 = vpop.f32.mrb[0].mxu0
    %817 = vmatprep.mubr.bf16.mxu0 0
    %818 = vmatmul.mubr.bf16.gmra.mrb[0].mxu0 %v247
    %v819 = vpop.f32.mrb[0].mxu0
    %v820 = vadd.f32 0.0, %v819
    %v821 = vpop.f32.mrb[0].mxu0
    %v822 = vpop.f32.mrb[0].mxu0
    %v823 = vadd.f32 0.0, %v822
    %v824 = vpop.f32.mrb[0].mxu0
    %825 = vmatprep.mubr.bf16.mxu0 0
    %826 = vmatmul.mubr.bf16.gmra.mrb[0].mxu0 %v250
    %v827 = vpop.f32.mrb[0].mxu0
    %v828 = vadd.f32 0.0, %v827
    %v829 = vpop.f32.mrb[0].mxu0
    %v830 = vpop.f32.mrb[0].mxu0
    %v831 = vadd.f32 0.0, %v830
    %v832 = vpop.f32.mrb[0].mxu0
    %833 = vdwg.mxu0
    %s834 = scalar_lea.vmem [#allocation2], 96
    %835 = vst [vmem:[%s834] sm:$0xff] %v788
    %836 = vst [vmem:[%s834 + $0x8] sm:$0xff] %v791
    %837 = vst [vmem:[%s834 + $0x10] sm:$0xff] %v796
    %838 = vst [vmem:[%s834 + $0x18] sm:$0xff] %v799
    %s839 = scalar_lea.vmem [#allocation3], 96
    %840 = vst [vmem:[%s839] sm:$0xff] %v804
    %841 = vst [vmem:[%s839 + $0x8] sm:$0xff] %v807
    %842 = vst [vmem:[%s839 + $0x10] sm:$0xff] %v812
    %843 = vst [vmem:[%s839 + $0x18] sm:$0xff] %v815
    %s844 = scalar_lea.vmem [#allocation4], 96
    %845 = vst [vmem:[%s844] sm:$0xff] %v820
    %846 = vst [vmem:[%s844 + $0x8] sm:$0xff] %v823
    %847 = vst [vmem:[%s844 + $0x10] sm:$0xff] %v828
    %848 = vst [vmem:[%s844 + $0x18] sm:$0xff] %v831
    %s849 = scalar_lea.vmem %s0, 64
    %v850 = vld [vmem:[%s849] sm:$0xf]
    %v851 = vld [vmem:[%s849 + $0x4] sm:$0xf]
    %v852 = vld [vmem:[%s849 + $0x8] sm:$0xf]
    %v853 = vld [vmem:[%s849 + $0xc] sm:$0xf]
    %v858 = vunpack.c.l.b16 %v850
    %v859 = vunpack.c.l.b16 %v851
    %v860 = vunpack.c.l.b16 %v852
    %v861 = vunpack.c.l.b16 %v853
    %v862 = vpack.c.b16 %v859, %v858
    %v863 = vpack.c.b16 %v861, %v860
    %866 = vmatprep.subr.bf16.mxu0 0
    %867 = vmatpush1.bf16.msra.mxu0 %v862
    %868 = vmatprep.subr.bf16.mxu0 0
    %869 = vmatpush1.bf16.msra.mxu0 %v863
    %870 = vmatprep.subr.bf16.mxu0 0
    %871 = vmatpush1.bf16.msra.mxu0 0
    %872 = vmatprep.subr.bf16.mxu0 0
    %873 = vmatpush1.bf16.msra.mxu0 0
    %874 = vmatprep.subr.bf16.mxu0 0
    %875 = vmatpush1.bf16.msra.mxu0 0
    %876 = vmatprep.subr.bf16.mxu0 0
    %877 = vmatpush1.bf16.msra.mxu0 0
    %878 = vmatprep.subr.bf16.mxu0 0
    %879 = vmatpush1.bf16.msra.mxu0 0
    %880 = vmatprep.subr.bf16.mxu0 0
    %881 = vmatpush1.bf16.msra.mxu0 0
    %882 = vmatprep.subr.bf16.mxu0 0
    %883 = vmatpush1.bf16.msra.mxu0 0
    %884 = vmatprep.subr.bf16.mxu0 0
    %885 = vmatpush1.bf16.msra.mxu0 0
    %886 = vmatprep.subr.bf16.mxu0 0
    %887 = vmatpush1.bf16.msra.mxu0 0
    %888 = vmatprep.subr.bf16.mxu0 0
    %889 = vmatpush1.bf16.msra.mxu0 0
    %890 = vmatprep.subr.bf16.mxu0 0
    %891 = vmatpush1.bf16.msra.mxu0 0
    %892 = vmatprep.subr.bf16.mxu0 0
    %893 = vmatpush1.bf16.msra.mxu0 0
    %894 = vmatprep.subr.bf16.mxu0 0
    %895 = vmatpush1.bf16.msra.mxu0 0
    %896 = vmatprep.subr.bf16.mxu0 0
    %897 = vmatpush1.bf16.msra.mxu0 0
    %898 = vmatprep.mubr.bf16.mxu0 0
    %899 = vmatmul.mubr.bf16.gmra.mrb[0].mxu0 %v144
    %v900 = vpop.f32.mrb[0].mxu0
    %v901 = vadd.f32 %v103, %v900
    %v902 = vpop.f32.mrb[0].mxu0
    %v903 = vpop.f32.mrb[0].mxu0
    %v904 = vadd.f32 %v108, %v903
    %v905 = vpop.f32.mrb[0].mxu0
    %906 = vmatprep.mubr.bf16.mxu0 0
    %907 = vmatmul.mubr.bf16.gmra.mrb[0].mxu0 %v147
    %v908 = vpop.f32.mrb[0].mxu0
    %v909 = vadd.f32 %v113, %v908
    %v910 = vpop.f32.mrb[0].mxu0
    %v911 = vpop.f32.mrb[0].mxu0
    %v912 = vadd.f32 %v118, %v911
    %v913 = vpop.f32.mrb[0].mxu0
    %914 = vdwg.mxu0
    %v915 = vmax.f32 %v901, 0.0
    %v916 = vmax.f32 %v904, 0.0
    %v917 = vmax.f32 %v909, 0.0
    %v918 = vmax.f32 %v912, 0.0
    %v919 = vpack.c.bf16 %v916, %v915
    %v920 = vpack.c.bf16 %v918, %v917
    %921 = vmatprep.subr.bf16.mxu0 0
    %922 = vmatpush1.bf16.msra.mxu0 %v919
    %923 = vmatprep.subr.bf16.mxu0 0
    %924 = vmatpush1.bf16.msra.mxu0 %v920
    %925 = vmatprep.subr.bf16.mxu0 0
    %926 = vmatpush1.bf16.msra.mxu0 0
    %927 = vmatprep.subr.bf16.mxu0 0
    %928 = vmatpush1.bf16.msra.mxu0 0
    %929 = vmatprep.subr.bf16.mxu0 0
    %930 = vmatpush1.bf16.msra.mxu0 0
    %931 = vmatprep.subr.bf16.mxu0 0
    %932 = vmatpush1.bf16.msra.mxu0 0
    %933 = vmatprep.subr.bf16.mxu0 0
    %934 = vmatpush1.bf16.msra.mxu0 0
    %935 = vmatprep.subr.bf16.mxu0 0
    %936 = vmatpush1.bf16.msra.mxu0 0
    %937 = vmatprep.subr.bf16.mxu0 0
    %938 = vmatpush1.bf16.msra.mxu0 0
    %939 = vmatprep.subr.bf16.mxu0 0
    %940 = vmatpush1.bf16.msra.mxu0 0
    %941 = vmatprep.subr.bf16.mxu0 0
    %942 = vmatpush1.bf16.msra.mxu0 0
    %943 = vmatprep.subr.bf16.mxu0 0
    %944 = vmatpush1.bf16.msra.mxu0 0
    %945 = vmatprep.subr.bf16.mxu0 0
    %946 = vmatpush1.bf16.msra.mxu0 0
    %947 = vmatprep.subr.bf16.mxu0 0
    %948 = vmatpush1.bf16.msra.mxu0 0
    %949 = vmatprep.subr.bf16.mxu0 0
    %950 = vmatpush1.bf16.msra.mxu0 0
    %951 = vmatprep.subr.bf16.mxu0 0
    %952 = vmatpush1.bf16.msra.mxu0 0
    %953 = vmatprep.mubr.bf16.mxu0 0
    %954 = vmatmul.mubr.bf16.gmra.mrb[0].mxu0 %v235
    %v955 = vpop.f32.mrb[0].mxu0
    %v956 = vadd.f32 0.0, %v955
    %v957 = vpop.f32.mrb[0].mxu0
    %v958 = vpop.f32.mrb[0].mxu0
    %v959 = vadd.f32 0.0, %v958
    %v960 = vpop.f32.mrb[0].mxu0
    %961 = vmatprep.mubr.bf16.mxu0 0
    %962 = vmatmul.mubr.bf16.gmra.mrb[0].mxu0 %v238
    %v963 = vpop.f32.mrb[0].mxu0
    %v964 = vadd.f32 0.0, %v963
    %v965 = vpop.f32.mrb[0].mxu0
    %v966 = vpop.f32.mrb[0].mxu0
    %v967 = vadd.f32 0.0, %v966
    %v968 = vpop.f32.mrb[0].mxu0
    %969 = vmatprep.mubr.bf16.mxu0 0
    %970 = vmatmul.mubr.bf16.gmra.mrb[0].mxu0 %v241
    %v971 = vpop.f32.mrb[0].mxu0
    %v972 = vadd.f32 0.0, %v971
    %v973 = vpop.f32.mrb[0].mxu0
    %v974 = vpop.f32.mrb[0].mxu0
    %v975 = vadd.f32 0.0, %v974
    %v976 = vpop.f32.mrb[0].mxu0
    %977 = vmatprep.mubr.bf16.mxu0 0
    %978 = vmatmul.mubr.bf16.gmra.mrb[0].mxu0 %v244
    %v979 = vpop.f32.mrb[0].mxu0
    %v980 = vadd.f32 0.0, %v979
    %v981 = vpop.f32.mrb[0].mxu0
    %v982 = vpop.f32.mrb[0].mxu0
    %v983 = vadd.f32 0.0, %v982
    %v984 = vpop.f32.mrb[0].mxu0
    %985 = vmatprep.mubr.bf16.mxu0 0
    %986 = vmatmul.mubr.bf16.gmra.mrb[0].mxu0 %v247
    %v987 = vpop.f32.mrb[0].mxu0
    %v988 = vadd.f32 0.0, %v987
    %v989 = vpop.f32.mrb[0].mxu0
    %v990 = vpop.f32.mrb[0].mxu0
    %v991 = vadd.f32 0.0, %v990
    %v992 = vpop.f32.mrb[0].mxu0
    %993 = vmatprep.mubr.bf16.mxu0 0
    %994 = vmatmul.mubr.bf16.gmra.mrb[0].mxu0 %v250
    %v995 = vpop.f32.mrb[0].mxu0
    %v996 = vadd.f32 0.0, %v995
    %v997 = vpop.f32.mrb[0].mxu0
    %v998 = vpop.f32.mrb[0].mxu0
    %v999 = vadd.f32 0.0, %v998
    %v1000 = vpop.f32.mrb[0].mxu0
    %1001 = vdwg.mxu0
    %s1002 = scalar_lea.vmem [#allocation2], 128
    %1003 = vst [vmem:[%s1002] sm:$0xff] %v956
    %1004 = vst [vmem:[%s1002 + $0x8] sm:$0xff] %v959
    %1005 = vst [vmem:[%s1002 + $0x10] sm:$0xff] %v964
    %1006 = vst [vmem:[%s1002 + $0x18] sm:$0xff] %v967
    %s1007 = scalar_lea.vmem [#allocation3], 128
    %1008 = vst [vmem:[%s1007] sm:$0xff] %v972
    %1009 = vst [vmem:[%s1007 + $0x8] sm:$0xff] %v975
    %1010 = vst [vmem:[%s1007 + $0x10] sm:$0xff] %v980
    %1011 = vst [vmem:[%s1007 + $0x18] sm:$0xff] %v983
    %s1012 = scalar_lea.vmem [#allocation4], 128
    %1013 = vst [vmem:[%s1012] sm:$0xff] %v988
    %1014 = vst [vmem:[%s1012 + $0x8] sm:$0xff] %v991
    %1015 = vst [vmem:[%s1012 + $0x10] sm:$0xff] %v996
    %1016 = vst [vmem:[%s1012 + $0x18] sm:$0xff] %v999
    %s1017 = scalar_lea.vmem %s0, 80
    %v1018 = vld [vmem:[%s1017] sm:$0xf]
    %v1019 = vld [vmem:[%s1017 + $0x4] sm:$0xf]
    %v1020 = vld [vmem:[%s1017 + $0x8] sm:$0xf]
    %v1021 = vld [vmem:[%s1017 + $0xc] sm:$0xf]
    %v1026 = vunpack.c.l.b16 %v1018
    %v1027 = vunpack.c.l.b16 %v1019
    %v1028 = vunpack.c.l.b16 %v1020
    %v1029 = vunpack.c.l.b16 %v1021
    %v1030 = vpack.c.b16 %v1027, %v1026
    %v1031 = vpack.c.b16 %v1029, %v1028
    %1034 = vmatprep.subr.bf16.mxu0 0
    %1035 = vmatpush1.bf16.msra.mxu0 %v1030
    %1036 = vmatprep.subr.bf16.mxu0 0
    %1037 = vmatpush1.bf16.msra.mxu0 %v1031
    %1038 = vmatprep.subr.bf16.mxu0 0
    %1039 = vmatpush1.bf16.msra.mxu0 0
    %1040 = vmatprep.subr.bf16.mxu0 0
    %1041 = vmatpush1.bf16.msra.mxu0 0
    %1042 = vmatprep.subr.bf16.mxu0 0
    %1043 = vmatpush1.bf16.msra.mxu0 0
    %1044 = vmatprep.subr.bf16.mxu0 0
    %1045 = vmatpush1.bf16.msra.mxu0 0
    %1046 = vmatprep.subr.bf16.mxu0 0
    %1047 = vmatpush1.bf16.msra.mxu0 0
    %1048 = vmatprep.subr.bf16.mxu0 0
    %1049 = vmatpush1.bf16.msra.mxu0 0
    %1050 = vmatprep.subr.bf16.mxu0 0
    %1051 = vmatpush1.bf16.msra.mxu0 0
    %1052 = vmatprep.subr.bf16.mxu0 0
    %1053 = vmatpush1.bf16.msra.mxu0 0
    %1054 = vmatprep.subr.bf16.mxu0 0
    %1055 = vmatpush1.bf16.msra.mxu0 0
    %1056 = vmatprep.subr.bf16.mxu0 0
    %1057 = vmatpush1.bf16.msra.mxu0 0
    %1058 = vmatprep.subr.bf16.mxu0 0
    %1059 = vmatpush1.bf16.msra.mxu0 0
    %1060 = vmatprep.subr.bf16.mxu0 0
    %1061 = vmatpush1.bf16.msra.mxu0 0
    %1062 = vmatprep.subr.bf16.mxu0 0
    %1063 = vmatpush1.bf16.msra.mxu0 0
    %1064 = vmatprep.subr.bf16.mxu0 0
    %1065 = vmatpush1.bf16.msra.mxu0 0
    %1066 = vmatprep.mubr.bf16.mxu0 0
    %1067 = vmatmul.mubr.bf16.gmra.mrb[0].mxu0 %v144
    %v1068 = vpop.f32.mrb[0].mxu0
    %v1069 = vadd.f32 %v103, %v1068
    %v1070 = vpop.f32.mrb[0].mxu0
    %v1071 = vpop.f32.mrb[0].mxu0
    %v1072 = vadd.f32 %v108, %v1071
    %v1073 = vpop.f32.mrb[0].mxu0
    %1074 = vmatprep.mubr.bf16.mxu0 0
    %1075 = vmatmul.mubr.bf16.gmra.mrb[0].mxu0 %v147
    %v1076 = vpop.f32.mrb[0].mxu0
    %v1077 = vadd.f32 %v113, %v1076
    %v1078 = vpop.f32.mrb[0].mxu0
    %v1079 = vpop.f32.mrb[0].mxu0
    %v1080 = vadd.f32 %v118, %v1079
    %v1081 = vpop.f32.mrb[0].mxu0
    %1082 = vdwg.mxu0
    %v1083 = vmax.f32 %v1069, 0.0
    %v1084 = vmax.f32 %v1072, 0.0
    %v1085 = vmax.f32 %v1077, 0.0
    %v1086 = vmax.f32 %v1080, 0.0
    %v1087 = vpack.c.bf16 %v1084, %v1083
    %v1088 = vpack.c.bf16 %v1086, %v1085
    %1089 = vmatprep.subr.bf16.mxu0 0
    %1090 = vmatpush1.bf16.msra.mxu0 %v1087
    %1091 = vmatprep.subr.bf16.mxu0 0
    %1092 = vmatpush1.bf16.msra.mxu0 %v1088
    %1093 = vmatprep.subr.bf16.mxu0 0
    %1094 = vmatpush1.bf16.msra.mxu0 0
    %1095 = vmatprep.subr.bf16.mxu0 0
    %1096 = vmatpush1.bf16.msra.mxu0 0
    %1097 = vmatprep.subr.bf16.mxu0 0
    %1098 = vmatpush1.bf16.msra.mxu0 0
    %1099 = vmatprep.subr.bf16.mxu0 0
    %1100 = vmatpush1.bf16.msra.mxu0 0
    %1101 = vmatprep.subr.bf16.mxu0 0
    %1102 = vmatpush1.bf16.msra.mxu0 0
    %1103 = vmatprep.subr.bf16.mxu0 0
    %1104 = vmatpush1.bf16.msra.mxu0 0
    %1105 = vmatprep.subr.bf16.mxu0 0
    %1106 = vmatpush1.bf16.msra.mxu0 0
    %1107 = vmatprep.subr.bf16.mxu0 0
    %1108 = vmatpush1.bf16.msra.mxu0 0
    %1109 = vmatprep.subr.bf16.mxu0 0
    %1110 = vmatpush1.bf16.msra.mxu0 0
    %1111 = vmatprep.subr.bf16.mxu0 0
    %1112 = vmatpush1.bf16.msra.mxu0 0
    %1113 = vmatprep.subr.bf16.mxu0 0
    %1114 = vmatpush1.bf16.msra.mxu0 0
    %1115 = vmatprep.subr.bf16.mxu0 0
    %1116 = vmatpush1.bf16.msra.mxu0 0
    %1117 = vmatprep.subr.bf16.mxu0 0
    %1118 = vmatpush1.bf16.msra.mxu0 0
    %1119 = vmatprep.subr.bf16.mxu0 0
    %1120 = vmatpush1.bf16.msra.mxu0 0
    %1121 = vmatprep.mubr.bf16.mxu0 0
    %1122 = vmatmul.mubr.bf16.gmra.mrb[0].mxu0 %v235
    %v1123 = vpop.f32.mrb[0].mxu0
    %v1124 = vadd.f32 0.0, %v1123
    %v1125 = vpop.f32.mrb[0].mxu0
    %v1126 = vpop.f32.mrb[0].mxu0
    %v1127 = vadd.f32 0.0, %v1126
    %v1128 = vpop.f32.mrb[0].mxu0
    %1129 = vmatprep.mubr.bf16.mxu0 0
    %1130 = vmatmul.mubr.bf16.gmra.mrb[0].mxu0 %v238
    %v1131 = vpop.f32.mrb[0].mxu0
    %v1132 = vadd.f32 0.0, %v1131
    %v1133 = vpop.f32.mrb[0].mxu0
    %v1134 = vpop.f32.mrb[0].mxu0
    %v1135 = vadd.f32 0.0, %v1134
    %v1136 = vpop.f32.mrb[0].mxu0
    %1137 = vmatprep.mubr.bf16.mxu0 0
    %1138 = vmatmul.mubr.bf16.gmra.mrb[0].mxu0 %v241
    %v1139 = vpop.f32.mrb[0].mxu0
    %v1140 = vadd.f32 0.0, %v1139
    %v1141 = vpop.f32.mrb[0].mxu0
    %v1142 = vpop.f32.mrb[0].mxu0
    %v1143 = vadd.f32 0.0, %v1142
    %v1144 = vpop.f32.mrb[0].mxu0
    %1145 = vmatprep.mubr.bf16.mxu0 0
    %1146 = vmatmul.mubr.bf16.gmra.mrb[0].mxu0 %v244
    %v1147 = vpop.f32.mrb[0].mxu0
    %v1148 = vadd.f32 0.0, %v1147
    %v1149 = vpop.f32.mrb[0].mxu0
    %v1150 = vpop.f32.mrb[0].mxu0
    %v1151 = vadd.f32 0.0, %v1150
    %v1152 = vpop.f32.mrb[0].mxu0
    %1153 = vmatprep.mubr.bf16.mxu0 0
    %1154 = vmatmul.mubr.bf16.gmra.mrb[0].mxu0 %v247
    %v1155 = vpop.f32.mrb[0].mxu0
    %v1156 = vadd.f32 0.0, %v1155
    %v1157 = vpop.f32.mrb[0].mxu0
    %v1158 = vpop.f32.mrb[0].mxu0
    %v1159 = vadd.f32 0.0, %v1158
    %v1160 = vpop.f32.mrb[0].mxu0
    %1161 = vmatprep.mubr.bf16.mxu0 0
    %1162 = vmatmul.mubr.bf16.gmra.mrb[0].mxu0 %v250
    %v1163 = vpop.f32.mrb[0].mxu0
    %v1164 = vadd.f32 0.0, %v1163
    %v1165 = vpop.f32.mrb[0].mxu0
    %v1166 = vpop.f32.mrb[0].mxu0
    %v1167 = vadd.f32 0.0, %v1166
    %v1168 = vpop.f32.mrb[0].mxu0
    %1169 = vdwg.mxu0
    %s1170 = scalar_lea.vmem [#allocation2], 160
    %1171 = vst [vmem:[%s1170] sm:$0xff] %v1124
    %1172 = vst [vmem:[%s1170 + $0x8] sm:$0xff] %v1127
    %1173 = vst [vmem:[%s1170 + $0x10] sm:$0xff] %v1132
    %1174 = vst [vmem:[%s1170 + $0x18] sm:$0xff] %v1135
    %s1175 = scalar_lea.vmem [#allocation3], 160
    %1176 = vst [vmem:[%s1175] sm:$0xff] %v1140
    %1177 = vst [vmem:[%s1175 + $0x8] sm:$0xff] %v1143
    %1178 = vst [vmem:[%s1175 + $0x10] sm:$0xff] %v1148
    %1179 = vst [vmem:[%s1175 + $0x18] sm:$0xff] %v1151
    %s1180 = scalar_lea.vmem [#allocation4], 160
    %1181 = vst [vmem:[%s1180] sm:$0xff] %v1156
    %1182 = vst [vmem:[%s1180 + $0x8] sm:$0xff] %v1159
    %1183 = vst [vmem:[%s1180 + $0x10] sm:$0xff] %v1164
    %1184 = vst [vmem:[%s1180 + $0x18] sm:$0xff] %v1167
    %s1185 = scalar_lea.vmem %s0, 96
    %v1186 = vld [vmem:[%s1185] sm:$0xf]
    %v1187 = vld [vmem:[%s1185 + $0x4] sm:$0xf]
    %v1188 = vld [vmem:[%s1185 + $0x8] sm:$0xf]
    %v1189 = vld [vmem:[%s1185 + $0xc] sm:$0xf]
    %v1194 = vunpack.c.l.b16 %v1186
    %v1195 = vunpack.c.l.b16 %v1187
    %v1196 = vunpack.c.l.b16 %v1188
    %v1197 = vunpack.c.l.b16 %v1189
    %v1198 = vpack.c.b16 %v1195, %v1194
    %v1199 = vpack.c.b16 %v1197, %v1196
    %1202 = vmatprep.subr.bf16.mxu0 0
    %1203 = vmatpush1.bf16.msra.mxu0 %v1198
    %1204 = vmatprep.subr.bf16.mxu0 0
    %1205 = vmatpush1.bf16.msra.mxu0 %v1199
    %1206 = vmatprep.subr.bf16.mxu0 0
    %1207 = vmatpush1.bf16.msra.mxu0 0
    %1208 = vmatprep.subr.bf16.mxu0 0
    %1209 = vmatpush1.bf16.msra.mxu0 0
    %1210 = vmatprep.subr.bf16.mxu0 0
    %1211 = vmatpush1.bf16.msra.mxu0 0
    %1212 = vmatprep.subr.bf16.mxu0 0
    %1213 = vmatpush1.bf16.msra.mxu0 0
    %1214 = vmatprep.subr.bf16.mxu0 0
    %1215 = vmatpush1.bf16.msra.mxu0 0
    %1216 = vmatprep.subr.bf16.mxu0 0
    %1217 = vmatpush1.bf16.msra.mxu0 0
    %1218 = vmatprep.subr.bf16.mxu0 0
    %1219 = vmatpush1.bf16.msra.mxu0 0
    %1220 = vmatprep.subr.bf16.mxu0 0
    %1221 = vmatpush1.bf16.msra.mxu0 0
    %1222 = vmatprep.subr.bf16.mxu0 0
    %1223 = vmatpush1.bf16.msra.mxu0 0
    %1224 = vmatprep.subr.bf16.mxu0 0
    %1225 = vmatpush1.bf16.msra.mxu0 0
    %1226 = vmatprep.subr.bf16.mxu0 0
    %1227 = vmatpush1.bf16.msra.mxu0 0
    %1228 = vmatprep.subr.bf16.mxu0 0
    %1229 = vmatpush1.bf16.msra.mxu0 0
    %1230 = vmatprep.subr.bf16.mxu0 0
    %1231 = vmatpush1.bf16.msra.mxu0 0
    %1232 = vmatprep.subr.bf16.mxu0 0
    %1233 = vmatpush1.bf16.msra.mxu0 0
    %1234 = vmatprep.mubr.bf16.mxu0 0
    %1235 = vmatmul.mubr.bf16.gmra.mrb[0].mxu0 %v144
    %v1236 = vpop.f32.mrb[0].mxu0
    %v1237 = vadd.f32 %v103, %v1236
    %v1238 = vpop.f32.mrb[0].mxu0
    %v1239 = vpop.f32.mrb[0].mxu0
    %v1240 = vadd.f32 %v108, %v1239
    %v1241 = vpop.f32.mrb[0].mxu0
    %1242 = vmatprep.mubr.bf16.mxu0 0
    %1243 = vmatmul.mubr.bf16.gmra.mrb[0].mxu0 %v147
    %v1244 = vpop.f32.mrb[0].mxu0
    %v1245 = vadd.f32 %v113, %v1244
    %v1246 = vpop.f32.mrb[0].mxu0
    %v1247 = vpop.f32.mrb[0].mxu0
    %v1248 = vadd.f32 %v118, %v1247
    %v1249 = vpop.f32.mrb[0].mxu0
    %1250 = vdwg.mxu0
    %v1251 = vmax.f32 %v1237, 0.0
    %v1252 = vmax.f32 %v1240, 0.0
    %v1253 = vmax.f32 %v1245, 0.0
    %v1254 = vmax.f32 %v1248, 0.0
    %v1255 = vpack.c.bf16 %v1252, %v1251
    %v1256 = vpack.c.bf16 %v1254, %v1253
    %1257 = vmatprep.subr.bf16.mxu0 0
    %1258 = vmatpush1.bf16.msra.mxu0 %v1255
    %1259 = vmatprep.subr.bf16.mxu0 0
    %1260 = vmatpush1.bf16.msra.mxu0 %v1256
    %1261 = vmatprep.subr.bf16.mxu0 0
    %1262 = vmatpush1.bf16.msra.mxu0 0
    %1263 = vmatprep.subr.bf16.mxu0 0
    %1264 = vmatpush1.bf16.msra.mxu0 0
    %1265 = vmatprep.subr.bf16.mxu0 0
    %1266 = vmatpush1.bf16.msra.mxu0 0
    %1267 = vmatprep.subr.bf16.mxu0 0
    %1268 = vmatpush1.bf16.msra.mxu0 0
    %1269 = vmatprep.subr.bf16.mxu0 0
    %1270 = vmatpush1.bf16.msra.mxu0 0
    %1271 = vmatprep.subr.bf16.mxu0 0
    %1272 = vmatpush1.bf16.msra.mxu0 0
    %1273 = vmatprep.subr.bf16.mxu0 0
    %1274 = vmatpush1.bf16.msra.mxu0 0
    %1275 = vmatprep.subr.bf16.mxu0 0
    %1276 = vmatpush1.bf16.msra.mxu0 0
    %1277 = vmatprep.subr.bf16.mxu0 0
    %1278 = vmatpush1.bf16.msra.mxu0 0
    %1279 = vmatprep.subr.bf16.mxu0 0
    %1280 = vmatpush1.bf16.msra.mxu0 0
    %1281 = vmatprep.subr.bf16.mxu0 0
    %1282 = vmatpush1.bf16.msra.mxu0 0
    %1283 = vmatprep.subr.bf16.mxu0 0
    %1284 = vmatpush1.bf16.msra.mxu0 0
    %1285 = vmatprep.subr.bf16.mxu0 0
    %1286 = vmatpush1.bf16.msra.mxu0 0
    %1287 = vmatprep.subr.bf16.mxu0 0
    %1288 = vmatpush1.bf16.msra.mxu0 0
    %1289 = vmatprep.mubr.bf16.mxu0 0
    %1290 = vmatmul.mubr.bf16.gmra.mrb[0].mxu0 %v235
    %v1291 = vpop.f32.mrb[0].mxu0
    %v1292 = vadd.f32 0.0, %v1291
    %v1293 = vpop.f32.mrb[0].mxu0
    %v1294 = vpop.f32.mrb[0].mxu0
    %v1295 = vadd.f32 0.0, %v1294
    %v1296 = vpop.f32.mrb[0].mxu0
    %1297 = vmatprep.mubr.bf16.mxu0 0
    %1298 = vmatmul.mubr.bf16.gmra.mrb[0].mxu0 %v238
    %v1299 = vpop.f32.mrb[0].mxu0
    %v1300 = vadd.f32 0.0, %v1299
    %v1301 = vpop.f32.mrb[0].mxu0
    %v1302 = vpop.f32.mrb[0].mxu0
    %v1303 = vadd.f32 0.0, %v1302
    %v1304 = vpop.f32.mrb[0].mxu0
    %1305 = vmatprep.mubr.bf16.mxu0 0
    %1306 = vmatmul.mubr.bf16.gmra.mrb[0].mxu0 %v241
    %v1307 = vpop.f32.mrb[0].mxu0
    %v1308 = vadd.f32 0.0, %v1307
    %v1309 = vpop.f32.mrb[0].mxu0
    %v1310 = vpop.f32.mrb[0].mxu0
    %v1311 = vadd.f32 0.0, %v1310
    %v1312 = vpop.f32.mrb[0].mxu0
    %1313 = vmatprep.mubr.bf16.mxu0 0
    %1314 = vmatmul.mubr.bf16.gmra.mrb[0].mxu0 %v244
    %v1315 = vpop.f32.mrb[0].mxu0
    %v1316 = vadd.f32 0.0, %v1315
    %v1317 = vpop.f32.mrb[0].mxu0
    %v1318 = vpop.f32.mrb[0].mxu0
    %v1319 = vadd.f32 0.0, %v1318
    %v1320 = vpop.f32.mrb[0].mxu0
    %1321 = vmatprep.mubr.bf16.mxu0 0
    %1322 = vmatmul.mubr.bf16.gmra.mrb[0].mxu0 %v247
    %v1323 = vpop.f32.mrb[0].mxu0
    %v1324 = vadd.f32 0.0, %v1323
    %v1325 = vpop.f32.mrb[0].mxu0
    %v1326 = vpop.f32.mrb[0].mxu0
    %v1327 = vadd.f32 0.0, %v1326
    %v1328 = vpop.f32.mrb[0].mxu0
    %1329 = vmatprep.mubr.bf16.mxu0 0
    %1330 = vmatmul.mubr.bf16.gmra.mrb[0].mxu0 %v250
    %v1331 = vpop.f32.mrb[0].mxu0
    %v1332 = vadd.f32 0.0, %v1331
    %v1333 = vpop.f32.mrb[0].mxu0
    %v1334 = vpop.f32.mrb[0].mxu0
    %v1335 = vadd.f32 0.0, %v1334
    %v1336 = vpop.f32.mrb[0].mxu0
    %1337 = vdwg.mxu0
    %s1338 = scalar_lea.vmem [#allocation2], 192
    %1339 = vst [vmem:[%s1338] sm:$0xff] %v1292
    %1340 = vst [vmem:[%s1338 + $0x8] sm:$0xff] %v1295
    %1341 = vst [vmem:[%s1338 + $0x10] sm:$0xff] %v1300
    %1342 = vst [vmem:[%s1338 + $0x18] sm:$0xff] %v1303
    %s1343 = scalar_lea.vmem [#allocation3], 192
    %1344 = vst [vmem:[%s1343] sm:$0xff] %v1308
    %1345 = vst [vmem:[%s1343 + $0x8] sm:$0xff] %v1311
    %1346 = vst [vmem:[%s1343 + $0x10] sm:$0xff] %v1316
    %1347 = vst [vmem:[%s1343 + $0x18] sm:$0xff] %v1319
    %s1348 = scalar_lea.vmem [#allocation4], 192
    %1349 = vst [vmem:[%s1348] sm:$0xff] %v1324
    %1350 = vst [vmem:[%s1348 + $0x8] sm:$0xff] %v1327
    %1351 = vst [vmem:[%s1348 + $0x10] sm:$0xff] %v1332
    %1352 = vst [vmem:[%s1348 + $0x18] sm:$0xff] %v1335
    %s1353 = scalar_lea.vmem %s0, 112
    %v1354 = vld [vmem:[%s1353] sm:$0xf]
    %v1355 = vld [vmem:[%s1353 + $0x4] sm:$0xf]
    %v1356 = vld [vmem:[%s1353 + $0x8] sm:$0xf]
    %v1357 = vld [vmem:[%s1353 + $0xc] sm:$0xf]
    %v1362 = vunpack.c.l.b16 %v1354
    %v1363 = vunpack.c.l.b16 %v1355
    %v1364 = vunpack.c.l.b16 %v1356
    %v1365 = vunpack.c.l.b16 %v1357
    %v1366 = vpack.c.b16 %v1363, %v1362
    %v1367 = vpack.c.b16 %v1365, %v1364
    %1370 = vmatprep.subr.bf16.mxu0 0
    %1371 = vmatpush1.bf16.msra.mxu0 %v1366
    %1372 = vmatprep.subr.bf16.mxu0 0
    %1373 = vmatpush1.bf16.msra.mxu0 %v1367
    %1374 = vmatprep.subr.bf16.mxu0 0
    %1375 = vmatpush1.bf16.msra.mxu0 0
    %1376 = vmatprep.subr.bf16.mxu0 0
    %1377 = vmatpush1.bf16.msra.mxu0 0
    %1378 = vmatprep.subr.bf16.mxu0 0
    %1379 = vmatpush1.bf16.msra.mxu0 0
    %1380 = vmatprep.subr.bf16.mxu0 0
    %1381 = vmatpush1.bf16.msra.mxu0 0
    %1382 = vmatprep.subr.bf16.mxu0 0
    %1383 = vmatpush1.bf16.msra.mxu0 0
    %1384 = vmatprep.subr.bf16.mxu0 0
    %1385 = vmatpush1.bf16.msra.mxu0 0
    %1386 = vmatprep.subr.bf16.mxu0 0
    %1387 = vmatpush1.bf16.msra.mxu0 0
    %1388 = vmatprep.subr.bf16.mxu0 0
    %1389 = vmatpush1.bf16.msra.mxu0 0
    %1390 = vmatprep.subr.bf16.mxu0 0
    %1391 = vmatpush1.bf16.msra.mxu0 0
    %1392 = vmatprep.subr.bf16.mxu0 0
    %1393 = vmatpush1.bf16.msra.mxu0 0
    %1394 = vmatprep.subr.bf16.mxu0 0
    %1395 = vmatpush1.bf16.msra.mxu0 0
    %1396 = vmatprep.subr.bf16.mxu0 0
    %1397 = vmatpush1.bf16.msra.mxu0 0
    %1398 = vmatprep.subr.bf16.mxu0 0
    %1399 = vmatpush1.bf16.msra.mxu0 0
    %1400 = vmatprep.subr.bf16.mxu0 0
    %1401 = vmatpush1.bf16.msra.mxu0 0
    %1402 = vmatprep.mubr.bf16.mxu0 0
    %1403 = vmatmul.mubr.bf16.gmra.mrb[0].mxu0 %v144
    %v1404 = vpop.f32.mrb[0].mxu0
    %v1405 = vadd.f32 %v103, %v1404
    %v1406 = vpop.f32.mrb[0].mxu0
    %v1407 = vpop.f32.mrb[0].mxu0
    %v1408 = vadd.f32 %v108, %v1407
    %v1409 = vpop.f32.mrb[0].mxu0
    %1410 = vmatprep.mubr.bf16.mxu0 0
    %1411 = vmatmul.mubr.bf16.gmra.mrb[0].mxu0 %v147
    %v1412 = vpop.f32.mrb[0].mxu0
    %v1413 = vadd.f32 %v113, %v1412
    %v1414 = vpop.f32.mrb[0].mxu0
    %v1415 = vpop.f32.mrb[0].mxu0
    %v1416 = vadd.f32 %v118, %v1415
    %v1417 = vpop.f32.mrb[0].mxu0
    %1418 = vdwg.mxu0
    %v1419 = vmax.f32 %v1405, 0.0
    %v1420 = vmax.f32 %v1408, 0.0
    %v1421 = vmax.f32 %v1413, 0.0
    %v1422 = vmax.f32 %v1416, 0.0
    %v1423 = vpack.c.bf16 %v1420, %v1419
    %v1424 = vpack.c.bf16 %v1422, %v1421
    %1425 = vmatprep.subr.bf16.mxu0 0
    %1426 = vmatpush1.bf16.msra.mxu0 %v1423
    %1427 = vmatprep.subr.bf16.mxu0 0
    %1428 = vmatpush1.bf16.msra.mxu0 %v1424
    %1429 = vmatprep.subr.bf16.mxu0 0
    %1430 = vmatpush1.bf16.msra.mxu0 0
    %1431 = vmatprep.subr.bf16.mxu0 0
    %1432 = vmatpush1.bf16.msra.mxu0 0
    %1433 = vmatprep.subr.bf16.mxu0 0
    %1434 = vmatpush1.bf16.msra.mxu0 0
    %1435 = vmatprep.subr.bf16.mxu0 0
    %1436 = vmatpush1.bf16.msra.mxu0 0
    %1437 = vmatprep.subr.bf16.mxu0 0
    %1438 = vmatpush1.bf16.msra.mxu0 0
    %1439 = vmatprep.subr.bf16.mxu0 0
    %1440 = vmatpush1.bf16.msra.mxu0 0
    %1441 = vmatprep.subr.bf16.mxu0 0
    %1442 = vmatpush1.bf16.msra.mxu0 0
    %1443 = vmatprep.subr.bf16.mxu0 0
    %1444 = vmatpush1.bf16.msra.mxu0 0
    %1445 = vmatprep.subr.bf16.mxu0 0
    %1446 = vmatpush1.bf16.msra.mxu0 0
    %1447 = vmatprep.subr.bf16.mxu0 0
    %1448 = vmatpush1.bf16.msra.mxu0 0
    %1449 = vmatprep.subr.bf16.mxu0 0
    %1450 = vmatpush1.bf16.msra.mxu0 0
    %1451 = vmatprep.subr.bf16.mxu0 0
    %1452 = vmatpush1.bf16.msra.mxu0 0
    %1453 = vmatprep.subr.bf16.mxu0 0
    %1454 = vmatpush1.bf16.msra.mxu0 0
    %1455 = vmatprep.subr.bf16.mxu0 0
    %1456 = vmatpush1.bf16.msra.mxu0 0
    %1457 = vmatprep.mubr.bf16.mxu0 0
    %1458 = vmatmul.mubr.bf16.gmra.mrb[0].mxu0 %v235
    %v1459 = vpop.f32.mrb[0].mxu0
    %v1460 = vadd.f32 0.0, %v1459
    %v1461 = vpop.f32.mrb[0].mxu0
    %v1462 = vpop.f32.mrb[0].mxu0
    %v1463 = vadd.f32 0.0, %v1462
    %v1464 = vpop.f32.mrb[0].mxu0
    %1465 = vmatprep.mubr.bf16.mxu0 0
    %1466 = vmatmul.mubr.bf16.gmra.mrb[0].mxu0 %v238
    %v1467 = vpop.f32.mrb[0].mxu0
    %v1468 = vadd.f32 0.0, %v1467
    %v1469 = vpop.f32.mrb[0].mxu0
    %v1470 = vpop.f32.mrb[0].mxu0
    %v1471 = vadd.f32 0.0, %v1470
    %v1472 = vpop.f32.mrb[0].mxu0
    %1473 = vmatprep.mubr.bf16.mxu0 0
    %1474 = vmatmul.mubr.bf16.gmra.mrb[0].mxu0 %v241
    %v1475 = vpop.f32.mrb[0].mxu0
    %v1476 = vadd.f32 0.0, %v1475
    %v1477 = vpop.f32.mrb[0].mxu0
    %v1478 = vpop.f32.mrb[0].mxu0
    %v1479 = vadd.f32 0.0, %v1478
    %v1480 = vpop.f32.mrb[0].mxu0
    %1481 = vmatprep.mubr.bf16.mxu0 0
    %1482 = vmatmul.mubr.bf16.gmra.mrb[0].mxu0 %v244
    %v1483 = vpop.f32.mrb[0].mxu0
    %v1484 = vadd.f32 0.0, %v1483
    %v1485 = vpop.f32.mrb[0].mxu0
    %v1486 = vpop.f32.mrb[0].mxu0
    %v1487 = vadd.f32 0.0, %v1486
    %v1488 = vpop.f32.mrb[0].mxu0
    %1489 = vmatprep.mubr.bf16.mxu0 0
    %1490 = vmatmul.mubr.bf16.gmra.mrb[0].mxu0 %v247
    %v1491 = vpop.f32.mrb[0].mxu0
    %v1492 = vadd.f32 0.0, %v1491
    %v1493 = vpop.f32.mrb[0].mxu0
    %v1494 = vpop.f32.mrb[0].mxu0
    %v1495 = vadd.f32 0.0, %v1494
    %v1496 = vpop.f32.mrb[0].mxu0
    %1497 = vmatprep.mubr.bf16.mxu0 0
    %1498 = vmatmul.mubr.bf16.gmra.mrb[0].mxu0 %v250
    %v1499 = vpop.f32.mrb[0].mxu0
    %v1500 = vadd.f32 0.0, %v1499
    %v1501 = vpop.f32.mrb[0].mxu0
    %v1502 = vpop.f32.mrb[0].mxu0
    %v1503 = vadd.f32 0.0, %v1502
    %v1504 = vpop.f32.mrb[0].mxu0
    %1505 = vdwg.mxu0
    %s1506 = scalar_lea.vmem [#allocation2], 224
    %1507 = vst [vmem:[%s1506] sm:$0xff] %v1460
    %1508 = vst [vmem:[%s1506 + $0x8] sm:$0xff] %v1463
    %1509 = vst [vmem:[%s1506 + $0x10] sm:$0xff] %v1468
    %1510 = vst [vmem:[%s1506 + $0x18] sm:$0xff] %v1471
    %s1511 = scalar_lea.vmem [#allocation3], 224
    %1512 = vst [vmem:[%s1511] sm:$0xff] %v1476
    %1513 = vst [vmem:[%s1511 + $0x8] sm:$0xff] %v1479
    %1514 = vst [vmem:[%s1511 + $0x10] sm:$0xff] %v1484
    %1515 = vst [vmem:[%s1511 + $0x18] sm:$0xff] %v1487
    %s1516 = scalar_lea.vmem [#allocation4], 224
    %1517 = vst [vmem:[%s1516] sm:$0xff] %v1492
    %1518 = vst [vmem:[%s1516 + $0x8] sm:$0xff] %v1495
    %1519 = vst [vmem:[%s1516 + $0x10] sm:$0xff] %v1500
    %1520 = vst [vmem:[%s1516 + $0x18] sm:$0xff] %v1503
    %v1521 = vld [vmem:[#allocation6] sm:$0xf]
    %v1522 = vld [vmem:[#allocation6 + $0x4] sm:$0xf]
    %v1523 = vld [vmem:[#allocation6 + $0x8] sm:$0xf]
    %v1524 = vld [vmem:[#allocation6 + $0xc] sm:$0xf]
    %1526 = vset.pattern.permute.xlu0 0
    %1527 = vperm.xlu0 %1526, %v67
    %v1528 = vpop.permute.xlu0 %1527
    %1531 = vset.pattern.permute.xlu0 0
    %1532 = vperm.xlu0 %1531, %v68
    %v1533 = vpop.permute.xlu0 %1532
    %1536 = vset.pattern.permute.xlu0 0
    %1537 = vperm.xlu0 %1536, %v69
    %v1538 = vpop.permute.xlu0 %1537
    %1541 = vset.pattern.permute.xlu0 0
    %1542 = vperm.xlu0 %1541, %v70
    %v1543 = vpop.permute.xlu0 %1542
    %v1549 = vunpack.c.l.b16 %v58
    %v1550 = vunpack.c.l.b16 %v59
    %v1551 = vunpack.c.l.b16 %v60
    %v1552 = vunpack.c.l.b16 %v61
    %v1553 = vpack.c.b16 %v1550, %v1549
    %v1554 = vpack.c.b16 %v1552, %v1551
    %v1559 = vunpack.c.l.b16 %v1521
    %v1560 = vunpack.c.l.b16 %v1522
    %v1561 = vunpack.c.l.b16 %v1523
    %v1562 = vunpack.c.l.b16 %v1524
    %v1563 = vpack.c.b16 %v1560, %v1559
    %v1564 = vpack.c.b16 %v1562, %v1561
    %v1568 = vsel %vm142, %v1553, 0
    %v1571 = vsel %vm142, %v1554, 0
    %1573 = vmatprep.subr.bf16.mxu0 0
    %1574 = vmatpush1.bf16.msra.mxu0 %v1563
    %1575 = vmatprep.subr.bf16.mxu0 0
    %1576 = vmatpush1.bf16.msra.mxu0 %v1564
    %1577 = vmatprep.subr.bf16.mxu0 0
    %1578 = vmatpush1.bf16.msra.mxu0 0
    %1579 = vmatprep.subr.bf16.mxu0 0
    %1580 = vmatpush1.bf16.msra.mxu0 0
    %1581 = vmatprep.subr.bf16.mxu0 0
    %1582 = vmatpush1.bf16.msra.mxu0 0
    %1583 = vmatprep.subr.bf16.mxu0 0
    %1584 = vmatpush1.bf16.msra.mxu0 0
    %1585 = vmatprep.subr.bf16.mxu0 0
    %1586 = vmatpush1.bf16.msra.mxu0 0
    %1587 = vmatprep.subr.bf16.mxu0 0
    %1588 = vmatpush1.bf16.msra.mxu0 0
    %1589 = vmatprep.subr.bf16.mxu0 0
    %1590 = vmatpush1.bf16.msra.mxu0 0
    %1591 = vmatprep.subr.bf16.mxu0 0
    %1592 = vmatpush1.bf16.msra.mxu0 0
    %1593 = vmatprep.subr.bf16.mxu0 0
    %1594 = vmatpush1.bf16.msra.mxu0 0
    %1595 = vmatprep.subr.bf16.mxu0 0
    %1596 = vmatpush1.bf16.msra.mxu0 0
    %1597 = vmatprep.subr.bf16.mxu0 0
    %1598 = vmatpush1.bf16.msra.mxu0 0
    %1599 = vmatprep.subr.bf16.mxu0 0
    %1600 = vmatpush1.bf16.msra.mxu0 0
    %1601 = vmatprep.subr.bf16.mxu0 0
    %1602 = vmatpush1.bf16.msra.mxu0 0
    %1603 = vmatprep.subr.bf16.mxu0 0
    %1604 = vmatpush1.bf16.msra.mxu0 0
    %1605 = vmatprep.mubr.bf16.mxu0 0
    %1606 = vmatmul.mubr.bf16.gmra.mrb[0].mxu0 %v1568
    %v1607 = vpop.f32.mrb[0].mxu0
    %v1608 = vadd.f32 %v1528, %v1607
    %v1609 = vpop.f32.mrb[0].mxu0
    %v1610 = vpop.f32.mrb[0].mxu0
    %v1611 = vadd.f32 %v1533, %v1610
    %v1612 = vpop.f32.mrb[0].mxu0
    %1613 = vmatprep.mubr.bf16.mxu0 0
    %1614 = vmatmul.mubr.bf16.gmra.mrb[0].mxu0 %v1571
    %v1615 = vpop.f32.mrb[0].mxu0
    %v1616 = vadd.f32 %v1538, %v1615
    %v1617 = vpop.f32.mrb[0].mxu0
    %v1618 = vpop.f32.mrb[0].mxu0
    %v1619 = vadd.f32 %v1543, %v1618
    %v1620 = vpop.f32.mrb[0].mxu0
    %1621 = vdwg.mxu0
    %v1622 = vmax.f32 %v1608, 0.0
    %v1623 = vmax.f32 %v1611, 0.0
    %v1624 = vmax.f32 %v1616, 0.0
    %v1625 = vmax.f32 %v1619, 0.0
    %v1626 = vpack.c.bf16 %v1623, %v1622
    %v1627 = vpack.c.bf16 %v1625, %v1624
    %v1640 = vunpack.c.l.b16 %v84
    %v1641 = vunpack.c.l.b16 %v85
    %v1642 = vunpack.c.l.b16 %v86
    %v1643 = vunpack.c.l.b16 %v87
    %v1644 = vunpack.c.l.b16 %v88
    %v1645 = vunpack.c.l.b16 %v89
    %v1646 = vunpack.c.l.b16 %v90
    %v1647 = vunpack.c.l.b16 %v91
    %v1648 = vunpack.c.l.b16 %v92
    %v1649 = vunpack.c.l.b16 %v93
    %v1650 = vunpack.c.l.b16 %v94
    %v1651 = vunpack.c.l.b16 %v95
    %v1652 = vpack.c.b16 %v1641, %v1640
    %v1653 = vpack.c.b16 %v1643, %v1642
    %v1654 = vpack.c.b16 %v1645, %v1644
    %v1655 = vpack.c.b16 %v1647, %v1646
    %v1656 = vpack.c.b16 %v1649, %v1648
    %v1657 = vpack.c.b16 %v1651, %v1650
    %v1659 = vsel %vm142, %v1652, 0
    %v1662 = vsel %vm142, %v1653, 0
    %v1665 = vsel %vm142, %v1654, 0
    %v1668 = vsel %vm142, %v1655, 0
    %v1671 = vsel %vm142, %v1656, 0
    %v1674 = vsel %vm142, %v1657, 0
    %1676 = vmatprep.subr.bf16.mxu0 0
    %1677 = vmatpush1.bf16.msra.mxu0 %v1626
    %1678 = vmatprep.subr.bf16.mxu0 0
    %1679 = vmatpush1.bf16.msra.mxu0 %v1627
    %1680 = vmatprep.subr.bf16.mxu0 0
    %1681 = vmatpush1.bf16.msra.mxu0 0
    %1682 = vmatprep.subr.bf16.mxu0 0
    %1683 = vmatpush1.bf16.msra.mxu0 0
    %1684 = vmatprep.subr.bf16.mxu0 0
    %1685 = vmatpush1.bf16.msra.mxu0 0
    %1686 = vmatprep.subr.bf16.mxu0 0
    %1687 = vmatpush1.bf16.msra.mxu0 0
    %1688 = vmatprep.subr.bf16.mxu0 0
    %1689 = vmatpush1.bf16.msra.mxu0 0
    %1690 = vmatprep.subr.bf16.mxu0 0
    %1691 = vmatpush1.bf16.msra.mxu0 0
    %1692 = vmatprep.subr.bf16.mxu0 0
    %1693 = vmatpush1.bf16.msra.mxu0 0
    %1694 = vmatprep.subr.bf16.mxu0 0
    %1695 = vmatpush1.bf16.msra.mxu0 0
    %1696 = vmatprep.subr.bf16.mxu0 0
    %1697 = vmatpush1.bf16.msra.mxu0 0
    %1698 = vmatprep.subr.bf16.mxu0 0
    %1699 = vmatpush1.bf16.msra.mxu0 0
    %1700 = vmatprep.subr.bf16.mxu0 0
    %1701 = vmatpush1.bf16.msra.mxu0 0
    %1702 = vmatprep.subr.bf16.mxu0 0
    %1703 = vmatpush1.bf16.msra.mxu0 0
    %1704 = vmatprep.subr.bf16.mxu0 0
    %1705 = vmatpush1.bf16.msra.mxu0 0
    %1706 = vmatprep.subr.bf16.mxu0 0
    %1707 = vmatpush1.bf16.msra.mxu0 0
    %1708 = vmatprep.mubr.bf16.mxu0 0
    %1709 = vmatmul.mubr.bf16.gmra.mrb[0].mxu0 %v1659
    %v1710 = vpop.f32.mrb[0].mxu0
    %v1711 = vadd.f32 0.0, %v1710
    %v1712 = vpop.f32.mrb[0].mxu0
    %v1713 = vpop.f32.mrb[0].mxu0
    %v1714 = vadd.f32 0.0, %v1713
    %v1715 = vpop.f32.mrb[0].mxu0
    %1716 = vmatprep.mubr.bf16.mxu0 0
    %1717 = vmatmul.mubr.bf16.gmra.mrb[0].mxu0 %v1662
    %v1718 = vpop.f32.mrb[0].mxu0
    %v1719 = vadd.f32 0.0, %v1718
    %v1720 = vpop.f32.mrb[0].mxu0
    %v1721 = vpop.f32.mrb[0].mxu0
    %v1722 = vadd.f32 0.0, %v1721
    %v1723 = vpop.f32.mrb[0].mxu0
    %1724 = vmatprep.mubr.bf16.mxu0 0
    %1725 = vmatmul.mubr.bf16.gmra.mrb[0].mxu0 %v1665
    %v1726 = vpop.f32.mrb[0].mxu0
    %v1727 = vadd.f32 0.0, %v1726
    %v1728 = vpop.f32.mrb[0].mxu0
    %v1729 = vpop.f32.mrb[0].mxu0
    %v1730 = vadd.f32 0.0, %v1729
    %v1731 = vpop.f32.mrb[0].mxu0
    %1732 = vmatprep.mubr.bf16.mxu0 0
    %1733 = vmatmul.mubr.bf16.gmra.mrb[0].mxu0 %v1668
    %v1734 = vpop.f32.mrb[0].mxu0
    %v1735 = vadd.f32 0.0, %v1734
    %v1736 = vpop.f32.mrb[0].mxu0
    %v1737 = vpop.f32.mrb[0].mxu0
    %v1738 = vadd.f32 0.0, %v1737
    %v1739 = vpop.f32.mrb[0].mxu0
    %1740 = vmatprep.mubr.bf16.mxu0 0
    %1741 = vmatmul.mubr.bf16.gmra.mrb[0].mxu0 %v1671
    %v1742 = vpop.f32.mrb[0].mxu0
    %v1743 = vadd.f32 0.0, %v1742
    %v1744 = vpop.f32.mrb[0].mxu0
    %v1745 = vpop.f32.mrb[0].mxu0
    %v1746 = vadd.f32 0.0, %v1745
    %v1747 = vpop.f32.mrb[0].mxu0
    %1748 = vmatprep.mubr.bf16.mxu0 0
    %1749 = vmatmul.mubr.bf16.gmra.mrb[0].mxu0 %v1674
    %v1750 = vpop.f32.mrb[0].mxu0
    %v1751 = vadd.f32 0.0, %v1750
    %v1752 = vpop.f32.mrb[0].mxu0
    %v1753 = vpop.f32.mrb[0].mxu0
    %v1754 = vadd.f32 0.0, %v1753
    %v1755 = vpop.f32.mrb[0].mxu0
    %1756 = vdwg.mxu0
    %s1757 = scalar_lea.vmem [#allocation6], 16
    %v1758 = vld [vmem:[%s1757] sm:$0xf]
    %v1759 = vld [vmem:[%s1757 + $0x4] sm:$0xf]
    %v1760 = vld [vmem:[%s1757 + $0x8] sm:$0xf]
    %v1761 = vld [vmem:[%s1757 + $0xc] sm:$0xf]
    %v1766 = vunpack.c.l.b16 %v1758
    %v1767 = vunpack.c.l.b16 %v1759
    %v1768 = vunpack.c.l.b16 %v1760
    %v1769 = vunpack.c.l.b16 %v1761
    %v1770 = vpack.c.b16 %v1767, %v1766
    %v1771 = vpack.c.b16 %v1769, %v1768
    %1774 = vmatprep.subr.bf16.mxu0 0
    %1775 = vmatpush1.bf16.msra.mxu0 %v1770
    %1776 = vmatprep.subr.bf16.mxu0 0
    %1777 = vmatpush1.bf16.msra.mxu0 %v1771
    %1778 = vmatprep.subr.bf16.mxu0 0
    %1779 = vmatpush1.bf16.msra.mxu0 0
    %1780 = vmatprep.subr.bf16.mxu0 0
    %1781 = vmatpush1.bf16.msra.mxu0 0
    %1782 = vmatprep.subr.bf16.mxu0 0
    %1783 = vmatpush1.bf16.msra.mxu0 0
    %1784 = vmatprep.subr.bf16.mxu0 0
    %1785 = vmatpush1.bf16.msra.mxu0 0
    %1786 = vmatprep.subr.bf16.mxu0 0
    %1787 = vmatpush1.bf16.msra.mxu0 0
    %1788 = vmatprep.subr.bf16.mxu0 0
    %1789 = vmatpush1.bf16.msra.mxu0 0
    %1790 = vmatprep.subr.bf16.mxu0 0
    %1791 = vmatpush1.bf16.msra.mxu0 0
    %1792 = vmatprep.subr.bf16.mxu0 0
    %1793 = vmatpush1.bf16.msra.mxu0 0
    %1794 = vmatprep.subr.bf16.mxu0 0
    %1795 = vmatpush1.bf16.msra.mxu0 0
    %1796 = vmatprep.subr.bf16.mxu0 0
    %1797 = vmatpush1.bf16.msra.mxu0 0
    %1798 = vmatprep.subr.bf16.mxu0 0
    %1799 = vmatpush1.bf16.msra.mxu0 0
    %1800 = vmatprep.subr.bf16.mxu0 0
    %1801 = vmatpush1.bf16.msra.mxu0 0
    %1802 = vmatprep.subr.bf16.mxu0 0
    %1803 = vmatpush1.bf16.msra.mxu0 0
    %1804 = vmatprep.subr.bf16.mxu0 0
    %1805 = vmatpush1.bf16.msra.mxu0 0
    %1806 = vmatprep.mubr.bf16.mxu0 0
    %1807 = vmatmul.mubr.bf16.gmra.mrb[0].mxu0 %v1568
    %v1808 = vpop.f32.mrb[0].mxu0
    %v1809 = vadd.f32 %v1528, %v1808
    %v1810 = vpop.f32.mrb[0].mxu0
    %v1811 = vpop.f32.mrb[0].mxu0
    %v1812 = vadd.f32 %v1533, %v1811
    %v1813 = vpop.f32.mrb[0].mxu0
    %1814 = vmatprep.mubr.bf16.mxu0 0
    %1815 = vmatmul.mubr.bf16.gmra.mrb[0].mxu0 %v1571
    %v1816 = vpop.f32.mrb[0].mxu0
    %v1817 = vadd.f32 %v1538, %v1816
    %v1818 = vpop.f32.mrb[0].mxu0
    %v1819 = vpop.f32.mrb[0].mxu0
    %v1820 = vadd.f32 %v1543, %v1819
    %v1821 = vpop.f32.mrb[0].mxu0
    %1822 = vdwg.mxu0
    %v1823 = vmax.f32 %v1809, 0.0
    %v1824 = vmax.f32 %v1812, 0.0
    %v1825 = vmax.f32 %v1817, 0.0
    %v1826 = vmax.f32 %v1820, 0.0
    %v1827 = vpack.c.bf16 %v1824, %v1823
    %v1828 = vpack.c.bf16 %v1826, %v1825
    %1829 = vmatprep.subr.bf16.mxu0 0
    %1830 = vmatpush1.bf16.msra.mxu0 %v1827
    %1831 = vmatprep.subr.bf16.mxu0 0
    %1832 = vmatpush1.bf16.msra.mxu0 %v1828
    %1833 = vmatprep.subr.bf16.mxu0 0
    %1834 = vmatpush1.bf16.msra.mxu0 0
    %1835 = vmatprep.subr.bf16.mxu0 0
    %1836 = vmatpush1.bf16.msra.mxu0 0
    %1837 = vmatprep.subr.bf16.mxu0 0
    %1838 = vmatpush1.bf16.msra.mxu0 0
    %1839 = vmatprep.subr.bf16.mxu0 0
    %1840 = vmatpush1.bf16.msra.mxu0 0
    %1841 = vmatprep.subr.bf16.mxu0 0
    %1842 = vmatpush1.bf16.msra.mxu0 0
    %1843 = vmatprep.subr.bf16.mxu0 0
    %1844 = vmatpush1.bf16.msra.mxu0 0
    %1845 = vmatprep.subr.bf16.mxu0 0
    %1846 = vmatpush1.bf16.msra.mxu0 0
    %1847 = vmatprep.subr.bf16.mxu0 0
    %1848 = vmatpush1.bf16.msra.mxu0 0
    %1849 = vmatprep.subr.bf16.mxu0 0
    %1850 = vmatpush1.bf16.msra.mxu0 0
    %1851 = vmatprep.subr.bf16.mxu0 0
    %1852 = vmatpush1.bf16.msra.mxu0 0
    %1853 = vmatprep.subr.bf16.mxu0 0
    %1854 = vmatpush1.bf16.msra.mxu0 0
    %1855 = vmatprep.subr.bf16.mxu0 0
    %1856 = vmatpush1.bf16.msra.mxu0 0
    %1857 = vmatprep.subr.bf16.mxu0 0
    %1858 = vmatpush1.bf16.msra.mxu0 0
    %1859 = vmatprep.subr.bf16.mxu0 0
    %1860 = vmatpush1.bf16.msra.mxu0 0
    %1861 = vmatprep.mubr.bf16.mxu0 0
    %1862 = vmatmul.mubr.bf16.gmra.mrb[0].mxu0 %v1659
    %v1863 = vpop.f32.mrb[0].mxu0
    %v1864 = vadd.f32 0.0, %v1863
    %v1865 = vpop.f32.mrb[0].mxu0
    %v1866 = vpop.f32.mrb[0].mxu0
    %v1867 = vadd.f32 0.0, %v1866
    %v1868 = vpop.f32.mrb[0].mxu0
    %1869 = vmatprep.mubr.bf16.mxu0 0
    %1870 = vmatmul.mubr.bf16.gmra.mrb[0].mxu0 %v1662
    %v1871 = vpop.f32.mrb[0].mxu0
    %v1872 = vadd.f32 0.0, %v1871
    %v1873 = vpop.f32.mrb[0].mxu0
    %v1874 = vpop.f32.mrb[0].mxu0
    %v1875 = vadd.f32 0.0, %v1874
    %v1876 = vpop.f32.mrb[0].mxu0
    %1877 = vmatprep.mubr.bf16.mxu0 0
    %1878 = vmatmul.mubr.bf16.gmra.mrb[0].mxu0 %v1665
    %v1879 = vpop.f32.mrb[0].mxu0
    %v1880 = vadd.f32 0.0, %v1879
    %v1881 = vpop.f32.mrb[0].mxu0
    %v1882 = vpop.f32.mrb[0].mxu0
    %v1883 = vadd.f32 0.0, %v1882
    %v1884 = vpop.f32.mrb[0].mxu0
    %1885 = vmatprep.mubr.bf16.mxu0 0
    %1886 = vmatmul.mubr.bf16.gmra.mrb[0].mxu0 %v1668
    %v1887 = vpop.f32.mrb[0].mxu0
    %v1888 = vadd.f32 0.0, %v1887
    %v1889 = vpop.f32.mrb[0].mxu0
    %v1890 = vpop.f32.mrb[0].mxu0
    %v1891 = vadd.f32 0.0, %v1890
    %v1892 = vpop.f32.mrb[0].mxu0
    %1893 = vmatprep.mubr.bf16.mxu0 0
    %1894 = vmatmul.mubr.bf16.gmra.mrb[0].mxu0 %v1671
    %v1895 = vpop.f32.mrb[0].mxu0
    %v1896 = vadd.f32 0.0, %v1895
    %v1897 = vpop.f32.mrb[0].mxu0
    %v1898 = vpop.f32.mrb[0].mxu0
    %v1899 = vadd.f32 0.0, %v1898
    %v1900 = vpop.f32.mrb[0].mxu0
    %1901 = vmatprep.mubr.bf16.mxu0 0
    %1902 = vmatmul.mubr.bf16.gmra.mrb[0].mxu0 %v1674
    %v1903 = vpop.f32.mrb[0].mxu0
    %v1904 = vadd.f32 0.0, %v1903
    %v1905 = vpop.f32.mrb[0].mxu0
    %v1906 = vpop.f32.mrb[0].mxu0
    %v1907 = vadd.f32 0.0, %v1906
    %v1908 = vpop.f32.mrb[0].mxu0
    %1909 = vdwg.mxu0
    %s1910 = scalar_lea.vmem [#allocation6], 32
    %v1911 = vld [vmem:[%s1910] sm:$0xf]
    %v1912 = vld [vmem:[%s1910 + $0x4] sm:$0xf]
    %v1913 = vld [vmem:[%s1910 + $0x8] sm:$0xf]
    %v1914 = vld [vmem:[%s1910 + $0xc] sm:$0xf]
    %v1919 = vunpack.c.l.b16 %v1911
    %v1920 = vunpack.c.l.b16 %v1912
    %v1921 = vunpack.c.l.b16 %v1913
    %v1922 = vunpack.c.l.b16 %v1914
    %v1923 = vpack.c.b16 %v1920, %v1919
    %v1924 = vpack.c.b16 %v1922, %v1921
    %1927 = vmatprep.subr.bf16.mxu0 0
    %1928 = vmatpush1.bf16.msra.mxu0 %v1923
    %1929 = vmatprep.subr.bf16.mxu0 0
    %1930 = vmatpush1.bf16.msra.mxu0 %v1924
    %1931 = vmatprep.subr.bf16.mxu0 0
    %1932 = vmatpush1.bf16.msra.mxu0 0
    %1933 = vmatprep.subr.bf16.mxu0 0
    %1934 = vmatpush1.bf16.msra.mxu0 0
    %1935 = vmatprep.subr.bf16.mxu0 0
    %1936 = vmatpush1.bf16.msra.mxu0 0
    %1937 = vmatprep.subr.bf16.mxu0 0
    %1938 = vmatpush1.bf16.msra.mxu0 0
    %1939 = vmatprep.subr.bf16.mxu0 0
    %1940 = vmatpush1.bf16.msra.mxu0 0
    %1941 = vmatprep.subr.bf16.mxu0 0
    %1942 = vmatpush1.bf16.msra.mxu0 0
    %1943 = vmatprep.subr.bf16.mxu0 0
    %1944 = vmatpush1.bf16.msra.mxu0 0
    %1945 = vmatprep.subr.bf16.mxu0 0
    %1946 = vmatpush1.bf16.msra.mxu0 0
    %1947 = vmatprep.subr.bf16.mxu0 0
    %1948 = vmatpush1.bf16.msra.mxu0 0
    %1949 = vmatprep.subr.bf16.mxu0 0
    %1950 = vmatpush1.bf16.msra.mxu0 0
    %1951 = vmatprep.subr.bf16.mxu0 0
    %1952 = vmatpush1.bf16.msra.mxu0 0
    %1953 = vmatprep.subr.bf16.mxu0 0
    %1954 = vmatpush1.bf16.msra.mxu0 0
    %1955 = vmatprep.subr.bf16.mxu0 0
    %1956 = vmatpush1.bf16.msra.mxu0 0
    %1957 = vmatprep.subr.bf16.mxu0 0
    %1958 = vmatpush1.bf16.msra.mxu0 0
    %1959 = vmatprep.mubr.bf16.mxu0 0
    %1960 = vmatmul.mubr.bf16.gmra.mrb[0].mxu0 %v1568
    %v1961 = vpop.f32.mrb[0].mxu0
    %v1962 = vadd.f32 %v1528, %v1961
    %v1963 = vpop.f32.mrb[0].mxu0
    %v1964 = vpop.f32.mrb[0].mxu0
    %v1965 = vadd.f32 %v1533, %v1964
    %v1966 = vpop.f32.mrb[0].mxu0
    %1967 = vmatprep.mubr.bf16.mxu0 0
    %1968 = vmatmul.mubr.bf16.gmra.mrb[0].mxu0 %v1571
    %v1969 = vpop.f32.mrb[0].mxu0
    %v1970 = vadd.f32 %v1538, %v1969
    %v1971 = vpop.f32.mrb[0].mxu0
    %v1972 = vpop.f32.mrb[0].mxu0
    %v1973 = vadd.f32 %v1543, %v1972
    %v1974 = vpop.f32.mrb[0].mxu0
    %1975 = vdwg.mxu0
    %v1976 = vmax.f32 %v1962, 0.0
    %v1977 = vmax.f32 %v1965, 0.0
    %v1978 = vmax.f32 %v1970, 0.0
    %v1979 = vmax.f32 %v1973, 0.0
    %v1980 = vpack.c.bf16 %v1977, %v1976
    %v1981 = vpack.c.bf16 %v1979, %v1978
    %1982 = vmatprep.subr.bf16.mxu0 0
    %1983 = vmatpush1.bf16.msra.mxu0 %v1980
    %1984 = vmatprep.subr.bf16.mxu0 0
    %1985 = vmatpush1.bf16.msra.mxu0 %v1981
    %1986 = vmatprep.subr.bf16.mxu0 0
    %1987 = vmatpush1.bf16.msra.mxu0 0
    %1988 = vmatprep.subr.bf16.mxu0 0
    %1989 = vmatpush1.bf16.msra.mxu0 0
    %1990 = vmatprep.subr.bf16.mxu0 0
    %1991 = vmatpush1.bf16.msra.mxu0 0
    %1992 = vmatprep.subr.bf16.mxu0 0
    %1993 = vmatpush1.bf16.msra.mxu0 0
    %1994 = vmatprep.subr.bf16.mxu0 0
    %1995 = vmatpush1.bf16.msra.mxu0 0
    %1996 = vmatprep.subr.bf16.mxu0 0
    %1997 = vmatpush1.bf16.msra.mxu0 0
    %1998 = vmatprep.subr.bf16.mxu0 0
    %1999 = vmatpush1.bf16.msra.mxu0 0
    %2000 = vmatprep.subr.bf16.mxu0 0
    %2001 = vmatpush1.bf16.msra.mxu0 0
    %2002 = vmatprep.subr.bf16.mxu0 0
    %2003 = vmatpush1.bf16.msra.mxu0 0
    %2004 = vmatprep.subr.bf16.mxu0 0
    %2005 = vmatpush1.bf16.msra.mxu0 0
    %2006 = vmatprep.subr.bf16.mxu0 0
    %2007 = vmatpush1.bf16.msra.mxu0 0
    %2008 = vmatprep.subr.bf16.mxu0 0
    %2009 = vmatpush1.bf16.msra.mxu0 0
    %2010 = vmatprep.subr.bf16.mxu0 0
    %2011 = vmatpush1.bf16.msra.mxu0 0
    %2012 = vmatprep.subr.bf16.mxu0 0
    %2013 = vmatpush1.bf16.msra.mxu0 0
    %2014 = vmatprep.mubr.bf16.mxu0 0
    %2015 = vmatmul.mubr.bf16.gmra.mrb[0].mxu0 %v1659
    %v2016 = vpop.f32.mrb[0].mxu0
    %v2017 = vadd.f32 0.0, %v2016
    %v2018 = vpop.f32.mrb[0].mxu0
    %v2019 = vpop.f32.mrb[0].mxu0
    %v2020 = vadd.f32 0.0, %v2019
    %v2021 = vpop.f32.mrb[0].mxu0
    %2022 = vmatprep.mubr.bf16.mxu0 0
    %2023 = vmatmul.mubr.bf16.gmra.mrb[0].mxu0 %v1662
    %v2024 = vpop.f32.mrb[0].mxu0
    %v2025 = vadd.f32 0.0, %v2024
    %v2026 = vpop.f32.mrb[0].mxu0
    %v2027 = vpop.f32.mrb[0].mxu0
    %v2028 = vadd.f32 0.0, %v2027
    %v2029 = vpop.f32.mrb[0].mxu0
    %2030 = vmatprep.mubr.bf16.mxu0 0
    %2031 = vmatmul.mubr.bf16.gmra.mrb[0].mxu0 %v1665
    %v2032 = vpop.f32.mrb[0].mxu0
    %v2033 = vadd.f32 0.0, %v2032
    %v2034 = vpop.f32.mrb[0].mxu0
    %v2035 = vpop.f32.mrb[0].mxu0
    %v2036 = vadd.f32 0.0, %v2035
    %v2037 = vpop.f32.mrb[0].mxu0
    %2038 = vmatprep.mubr.bf16.mxu0 0
    %2039 = vmatmul.mubr.bf16.gmra.mrb[0].mxu0 %v1668
    %v2040 = vpop.f32.mrb[0].mxu0
    %v2041 = vadd.f32 0.0, %v2040
    %v2042 = vpop.f32.mrb[0].mxu0
    %v2043 = vpop.f32.mrb[0].mxu0
    %v2044 = vadd.f32 0.0, %v2043
    %v2045 = vpop.f32.mrb[0].mxu0
    %2046 = vmatprep.mubr.bf16.mxu0 0
    %2047 = vmatmul.mubr.bf16.gmra.mrb[0].mxu0 %v1671
    %v2048 = vpop.f32.mrb[0].mxu0
    %v2049 = vadd.f32 0.0, %v2048
    %v2050 = vpop.f32.mrb[0].mxu0
    %v2051 = vpop.f32.mrb[0].mxu0
    %v2052 = vadd.f32 0.0, %v2051
    %v2053 = vpop.f32.mrb[0].mxu0
    %2054 = vmatprep.mubr.bf16.mxu0 0
    %2055 = vmatmul.mubr.bf16.gmra.mrb[0].mxu0 %v1674
    %v2056 = vpop.f32.mrb[0].mxu0
    %v2057 = vadd.f32 0.0, %v2056
    %v2058 = vpop.f32.mrb[0].mxu0
    %v2059 = vpop.f32.mrb[0].mxu0
    %v2060 = vadd.f32 0.0, %v2059
    %v2061 = vpop.f32.mrb[0].mxu0
    %2062 = vdwg.mxu0
    %s2063 = scalar_lea.vmem [#allocation6], 48
    %v2064 = vld [vmem:[%s2063] sm:$0xf]
    %v2065 = vld [vmem:[%s2063 + $0x4] sm:$0xf]
    %v2066 = vld [vmem:[%s2063 + $0x8] sm:$0xf]
    %v2067 = vld [vmem:[%s2063 + $0xc] sm:$0xf]
    %v2072 = vunpack.c.l.b16 %v2064
    %v2073 = vunpack.c.l.b16 %v2065
    %v2074 = vunpack.c.l.b16 %v2066
    %v2075 = vunpack.c.l.b16 %v2067
    %v2076 = vpack.c.b16 %v2073, %v2072
    %v2077 = vpack.c.b16 %v2075, %v2074
    %2080 = vmatprep.subr.bf16.mxu0 0
    %2081 = vmatpush1.bf16.msra.mxu0 %v2076
    %2082 = vmatprep.subr.bf16.mxu0 0
    %2083 = vmatpush1.bf16.msra.mxu0 %v2077
    %2084 = vmatprep.subr.bf16.mxu0 0
    %2085 = vmatpush1.bf16.msra.mxu0 0
    %2086 = vmatprep.subr.bf16.mxu0 0
    %2087 = vmatpush1.bf16.msra.mxu0 0
    %2088 = vmatprep.subr.bf16.mxu0 0
    %2089 = vmatpush1.bf16.msra.mxu0 0
    %2090 = vmatprep.subr.bf16.mxu0 0
    %2091 = vmatpush1.bf16.msra.mxu0 0
    %2092 = vmatprep.subr.bf16.mxu0 0
    %2093 = vmatpush1.bf16.msra.mxu0 0
    %2094 = vmatprep.subr.bf16.mxu0 0
    %2095 = vmatpush1.bf16.msra.mxu0 0
    %2096 = vmatprep.subr.bf16.mxu0 0
    %2097 = vmatpush1.bf16.msra.mxu0 0
    %2098 = vmatprep.subr.bf16.mxu0 0
    %2099 = vmatpush1.bf16.msra.mxu0 0
    %2100 = vmatprep.subr.bf16.mxu0 0
    %2101 = vmatpush1.bf16.msra.mxu0 0
    %2102 = vmatprep.subr.bf16.mxu0 0
    %2103 = vmatpush1.bf16.msra.mxu0 0
    %2104 = vmatprep.subr.bf16.mxu0 0
    %2105 = vmatpush1.bf16.msra.mxu0 0
    %2106 = vmatprep.subr.bf16.mxu0 0
    %2107 = vmatpush1.bf16.msra.mxu0 0
    %2108 = vmatprep.subr.bf16.mxu0 0
    %2109 = vmatpush1.bf16.msra.mxu0 0
    %2110 = vmatprep.subr.bf16.mxu0 0
    %2111 = vmatpush1.bf16.msra.mxu0 0
    %2112 = vmatprep.mubr.bf16.mxu0 0
    %2113 = vmatmul.mubr.bf16.gmra.mrb[0].mxu0 %v1568
    %v2114 = vpop.f32.mrb[0].mxu0
    %v2115 = vadd.f32 %v1528, %v2114
    %v2116 = vpop.f32.mrb[0].mxu0
    %v2117 = vpop.f32.mrb[0].mxu0
    %v2118 = vadd.f32 %v1533, %v2117
    %v2119 = vpop.f32.mrb[0].mxu0
    %2120 = vmatprep.mubr.bf16.mxu0 0
    %2121 = vmatmul.mubr.bf16.gmra.mrb[0].mxu0 %v1571
    %v2122 = vpop.f32.mrb[0].mxu0
    %v2123 = vadd.f32 %v1538, %v2122
    %v2124 = vpop.f32.mrb[0].mxu0
    %v2125 = vpop.f32.mrb[0].mxu0
    %v2126 = vadd.f32 %v1543, %v2125
    %v2127 = vpop.f32.mrb[0].mxu0
    %2128 = vdwg.mxu0
    %v2129 = vmax.f32 %v2115, 0.0
    %v2130 = vmax.f32 %v2118, 0.0
    %v2131 = vmax.f32 %v2123, 0.0
    %v2132 = vmax.f32 %v2126, 0.0
    %v2133 = vpack.c.bf16 %v2130, %v2129
    %v2134 = vpack.c.bf16 %v2132, %v2131
    %2135 = vmatprep.subr.bf16.mxu0 0
    %2136 = vmatpush1.bf16.msra.mxu0 %v2133
    %2137 = vmatprep.subr.bf16.mxu0 0
    %2138 = vmatpush1.bf16.msra.mxu0 %v2134
    %2139 = vmatprep.subr.bf16.mxu0 0
    %2140 = vmatpush1.bf16.msra.mxu0 0
    %2141 = vmatprep.subr.bf16.mxu0 0
    %2142 = vmatpush1.bf16.msra.mxu0 0
    %2143 = vmatprep.subr.bf16.mxu0 0
    %2144 = vmatpush1.bf16.msra.mxu0 0
    %2145 = vmatprep.subr.bf16.mxu0 0
    %2146 = vmatpush1.bf16.msra.mxu0 0
    %2147 = vmatprep.subr.bf16.mxu0 0
    %2148 = vmatpush1.bf16.msra.mxu0 0
    %2149 = vmatprep.subr.bf16.mxu0 0
    %2150 = vmatpush1.bf16.msra.mxu0 0
    %2151 = vmatprep.subr.bf16.mxu0 0
    %2152 = vmatpush1.bf16.msra.mxu0 0
    %2153 = vmatprep.subr.bf16.mxu0 0
    %2154 = vmatpush1.bf16.msra.mxu0 0
    %2155 = vmatprep.subr.bf16.mxu0 0
    %2156 = vmatpush1.bf16.msra.mxu0 0
    %2157 = vmatprep.subr.bf16.mxu0 0
    %2158 = vmatpush1.bf16.msra.mxu0 0
    %2159 = vmatprep.subr.bf16.mxu0 0
    %2160 = vmatpush1.bf16.msra.mxu0 0
    %2161 = vmatprep.subr.bf16.mxu0 0
    %2162 = vmatpush1.bf16.msra.mxu0 0
    %2163 = vmatprep.subr.bf16.mxu0 0
    %2164 = vmatpush1.bf16.msra.mxu0 0
    %2165 = vmatprep.subr.bf16.mxu0 0
    %2166 = vmatpush1.bf16.msra.mxu0 0
    %2167 = vmatprep.mubr.bf16.mxu0 0
    %2168 = vmatmul.mubr.bf16.gmra.mrb[0].mxu0 %v1659
    %v2169 = vpop.f32.mrb[0].mxu0
    %v2170 = vadd.f32 0.0, %v2169
    %v2171 = vpop.f32.mrb[0].mxu0
    %v2172 = vpop.f32.mrb[0].mxu0
    %v2173 = vadd.f32 0.0, %v2172
    %v2174 = vpop.f32.mrb[0].mxu0
    %2175 = vmatprep.mubr.bf16.mxu0 0
    %2176 = vmatmul.mubr.bf16.gmra.mrb[0].mxu0 %v1662
    %v2177 = vpop.f32.mrb[0].mxu0
    %v2178 = vadd.f32 0.0, %v2177
    %v2179 = vpop.f32.mrb[0].mxu0
    %v2180 = vpop.f32.mrb[0].mxu0
    %v2181 = vadd.f32 0.0, %v2180
    %v2182 = vpop.f32.mrb[0].mxu0
    %2183 = vmatprep.mubr.bf16.mxu0 0
    %2184 = vmatmul.mubr.bf16.gmra.mrb[0].mxu0 %v1665
    %v2185 = vpop.f32.mrb[0].mxu0
    %v2186 = vadd.f32 0.0, %v2185
    %v2187 = vpop.f32.mrb[0].mxu0
    %v2188 = vpop.f32.mrb[0].mxu0
    %v2189 = vadd.f32 0.0, %v2188
    %v2190 = vpop.f32.mrb[0].mxu0
    %2191 = vmatprep.mubr.bf16.mxu0 0
    %2192 = vmatmul.mubr.bf16.gmra.mrb[0].mxu0 %v1668
    %v2193 = vpop.f32.mrb[0].mxu0
    %v2194 = vadd.f32 0.0, %v2193
    %v2195 = vpop.f32.mrb[0].mxu0
    %v2196 = vpop.f32.mrb[0].mxu0
    %v2197 = vadd.f32 0.0, %v2196
    %v2198 = vpop.f32.mrb[0].mxu0
    %2199 = vmatprep.mubr.bf16.mxu0 0
    %2200 = vmatmul.mubr.bf16.gmra.mrb[0].mxu0 %v1671
    %v2201 = vpop.f32.mrb[0].mxu0
    %v2202 = vadd.f32 0.0, %v2201
    %v2203 = vpop.f32.mrb[0].mxu0
    %v2204 = vpop.f32.mrb[0].mxu0
    %v2205 = vadd.f32 0.0, %v2204
    %v2206 = vpop.f32.mrb[0].mxu0
    %2207 = vmatprep.mubr.bf16.mxu0 0
    %2208 = vmatmul.mubr.bf16.gmra.mrb[0].mxu0 %v1674
    %v2209 = vpop.f32.mrb[0].mxu0
    %v2210 = vadd.f32 0.0, %v2209
    %v2211 = vpop.f32.mrb[0].mxu0
    %v2212 = vpop.f32.mrb[0].mxu0
    %v2213 = vadd.f32 0.0, %v2212
    %v2214 = vpop.f32.mrb[0].mxu0
    %2215 = vdwg.mxu0
    %s2216 = scalar_lea.vmem [#allocation6], 64
    %v2217 = vld [vmem:[%s2216] sm:$0xf]
    %v2218 = vld [vmem:[%s2216 + $0x4] sm:$0xf]
    %v2219 = vld [vmem:[%s2216 + $0x8] sm:$0xf]
    %v2220 = vld [vmem:[%s2216 + $0xc] sm:$0xf]
    %v2225 = vunpack.c.l.b16 %v2217
    %v2226 = vunpack.c.l.b16 %v2218
    %v2227 = vunpack.c.l.b16 %v2219
    %v2228 = vunpack.c.l.b16 %v2220
    %v2229 = vpack.c.b16 %v2226, %v2225
    %v2230 = vpack.c.b16 %v2228, %v2227
    %2233 = vmatprep.subr.bf16.mxu0 0
    %2234 = vmatpush1.bf16.msra.mxu0 %v2229
    %2235 = vmatprep.subr.bf16.mxu0 0
    %2236 = vmatpush1.bf16.msra.mxu0 %v2230
    %2237 = vmatprep.subr.bf16.mxu0 0
    %2238 = vmatpush1.bf16.msra.mxu0 0
    %2239 = vmatprep.subr.bf16.mxu0 0
    %2240 = vmatpush1.bf16.msra.mxu0 0
    %2241 = vmatprep.subr.bf16.mxu0 0
    %2242 = vmatpush1.bf16.msra.mxu0 0
    %2243 = vmatprep.subr.bf16.mxu0 0
    %2244 = vmatpush1.bf16.msra.mxu0 0
    %2245 = vmatprep.subr.bf16.mxu0 0
    %2246 = vmatpush1.bf16.msra.mxu0 0
    %2247 = vmatprep.subr.bf16.mxu0 0
    %2248 = vmatpush1.bf16.msra.mxu0 0
    %2249 = vmatprep.subr.bf16.mxu0 0
    %2250 = vmatpush1.bf16.msra.mxu0 0
    %2251 = vmatprep.subr.bf16.mxu0 0
    %2252 = vmatpush1.bf16.msra.mxu0 0
    %2253 = vmatprep.subr.bf16.mxu0 0
    %2254 = vmatpush1.bf16.msra.mxu0 0
    %2255 = vmatprep.subr.bf16.mxu0 0
    %2256 = vmatpush1.bf16.msra.mxu0 0
    %2257 = vmatprep.subr.bf16.mxu0 0
    %2258 = vmatpush1.bf16.msra.mxu0 0
    %2259 = vmatprep.subr.bf16.mxu0 0
    %2260 = vmatpush1.bf16.msra.mxu0 0
    %2261 = vmatprep.subr.bf16.mxu0 0
    %2262 = vmatpush1.bf16.msra.mxu0 0
    %2263 = vmatprep.subr.bf16.mxu0 0
    %2264 = vmatpush1.bf16.msra.mxu0 0
    %2265 = vmatprep.mubr.bf16.mxu0 0
    %2266 = vmatmul.mubr.bf16.gmra.mrb[0].mxu0 %v1568
    %v2267 = vpop.f32.mrb[0].mxu0
    %v2268 = vadd.f32 %v1528, %v2267
    %v2269 = vpop.f32.mrb[0].mxu0
    %v2270 = vpop.f32.mrb[0].mxu0
    %v2271 = vadd.f32 %v1533, %v2270
    %v2272 = vpop.f32.mrb[0].mxu0
    %2273 = vmatprep.mubr.bf16.mxu0 0
    %2274 = vmatmul.mubr.bf16.gmra.mrb[0].mxu0 %v1571
    %v2275 = vpop.f32.mrb[0].mxu0
    %v2276 = vadd.f32 %v1538, %v2275
    %v2277 = vpop.f32.mrb[0].mxu0
    %v2278 = vpop.f32.mrb[0].mxu0
    %v2279 = vadd.f32 %v1543, %v2278
    %v2280 = vpop.f32.mrb[0].mxu0
    %2281 = vdwg.mxu0
    %v2282 = vmax.f32 %v2268, 0.0
    %v2283 = vmax.f32 %v2271, 0.0
    %v2284 = vmax.f32 %v2276, 0.0
    %v2285 = vmax.f32 %v2279, 0.0
    %v2286 = vpack.c.bf16 %v2283, %v2282
    %v2287 = vpack.c.bf16 %v2285, %v2284
    %2288 = vmatprep.subr.bf16.mxu0 0
    %2289 = vmatpush1.bf16.msra.mxu0 %v2286
    %2290 = vmatprep.subr.bf16.mxu0 0
    %2291 = vmatpush1.bf16.msra.mxu0 %v2287
    %2292 = vmatprep.subr.bf16.mxu0 0
    %2293 = vmatpush1.bf16.msra.mxu0 0
    %2294 = vmatprep.subr.bf16.mxu0 0
    %2295 = vmatpush1.bf16.msra.mxu0 0
    %2296 = vmatprep.subr.bf16.mxu0 0
    %2297 = vmatpush1.bf16.msra.mxu0 0
    %2298 = vmatprep.subr.bf16.mxu0 0
    %2299 = vmatpush1.bf16.msra.mxu0 0
    %2300 = vmatprep.subr.bf16.mxu0 0
    %2301 = vmatpush1.bf16.msra.mxu0 0
    %2302 = vmatprep.subr.bf16.mxu0 0
    %2303 = vmatpush1.bf16.msra.mxu0 0
    %2304 = vmatprep.subr.bf16.mxu0 0
    %2305 = vmatpush1.bf16.msra.mxu0 0
    %2306 = vmatprep.subr.bf16.mxu0 0
    %2307 = vmatpush1.bf16.msra.mxu0 0
    %2308 = vmatprep.subr.bf16.mxu0 0
    %2309 = vmatpush1.bf16.msra.mxu0 0
    %2310 = vmatprep.subr.bf16.mxu0 0
    %2311 = vmatpush1.bf16.msra.mxu0 0
    %2312 = vmatprep.subr.bf16.mxu0 0
    %2313 = vmatpush1.bf16.msra.mxu0 0
    %2314 = vmatprep.subr.bf16.mxu0 0
    %2315 = vmatpush1.bf16.msra.mxu0 0
    %2316 = vmatprep.subr.bf16.mxu0 0
    %2317 = vmatpush1.bf16.msra.mxu0 0
    %2318 = vmatprep.subr.bf16.mxu0 0
    %2319 = vmatpush1.bf16.msra.mxu0 0
    %2320 = vmatprep.mubr.bf16.mxu0 0
    %2321 = vmatmul.mubr.bf16.gmra.mrb[0].mxu0 %v1659
    %v2322 = vpop.f32.mrb[0].mxu0
    %v2323 = vadd.f32 0.0, %v2322
    %v2324 = vpop.f32.mrb[0].mxu0
    %v2325 = vpop.f32.mrb[0].mxu0
    %v2326 = vadd.f32 0.0, %v2325
    %v2327 = vpop.f32.mrb[0].mxu0
    %2328 = vmatprep.mubr.bf16.mxu0 0
    %2329 = vmatmul.mubr.bf16.gmra.mrb[0].mxu0 %v1662
    %v2330 = vpop.f32.mrb[0].mxu0
    %v2331 = vadd.f32 0.0, %v2330
    %v2332 = vpop.f32.mrb[0].mxu0
    %v2333 = vpop.f32.mrb[0].mxu0
    %v2334 = vadd.f32 0.0, %v2333
    %v2335 = vpop.f32.mrb[0].mxu0
    %2336 = vmatprep.mubr.bf16.mxu0 0
    %2337 = vmatmul.mubr.bf16.gmra.mrb[0].mxu0 %v1665
    %v2338 = vpop.f32.mrb[0].mxu0
    %v2339 = vadd.f32 0.0, %v2338
    %v2340 = vpop.f32.mrb[0].mxu0
    %v2341 = vpop.f32.mrb[0].mxu0
    %v2342 = vadd.f32 0.0, %v2341
    %v2343 = vpop.f32.mrb[0].mxu0
    %2344 = vmatprep.mubr.bf16.mxu0 0
    %2345 = vmatmul.mubr.bf16.gmra.mrb[0].mxu0 %v1668
    %v2346 = vpop.f32.mrb[0].mxu0
    %v2347 = vadd.f32 0.0, %v2346
    %v2348 = vpop.f32.mrb[0].mxu0
    %v2349 = vpop.f32.mrb[0].mxu0
    %v2350 = vadd.f32 0.0, %v2349
    %v2351 = vpop.f32.mrb[0].mxu0
    %2352 = vmatprep.mubr.bf16.mxu0 0
    %2353 = vmatmul.mubr.bf16.gmra.mrb[0].mxu0 %v1671
    %v2354 = vpop.f32.mrb[0].mxu0
    %v2355 = vadd.f32 0.0, %v2354
    %v2356 = vpop.f32.mrb[0].mxu0
    %v2357 = vpop.f32.mrb[0].mxu0
    %v2358 = vadd.f32 0.0, %v2357
    %v2359 = vpop.f32.mrb[0].mxu0
    %2360 = vmatprep.mubr.bf16.mxu0 0
    %2361 = vmatmul.mubr.bf16.gmra.mrb[0].mxu0 %v1674
    %v2362 = vpop.f32.mrb[0].mxu0
    %v2363 = vadd.f32 0.0, %v2362
    %v2364 = vpop.f32.mrb[0].mxu0
    %v2365 = vpop.f32.mrb[0].mxu0
    %v2366 = vadd.f32 0.0, %v2365
    %v2367 = vpop.f32.mrb[0].mxu0
    %2368 = vdwg.mxu0
    %s2369 = scalar_lea.vmem [#allocation6], 80
    %v2370 = vld [vmem:[%s2369] sm:$0xf]
    %v2371 = vld [vmem:[%s2369 + $0x4] sm:$0xf]
    %v2372 = vld [vmem:[%s2369 + $0x8] sm:$0xf]
    %v2373 = vld [vmem:[%s2369 + $0xc] sm:$0xf]
    %v2378 = vunpack.c.l.b16 %v2370
    %v2379 = vunpack.c.l.b16 %v2371
    %v2380 = vunpack.c.l.b16 %v2372
    %v2381 = vunpack.c.l.b16 %v2373
    %v2382 = vpack.c.b16 %v2379, %v2378
    %v2383 = vpack.c.b16 %v2381, %v2380
    %2386 = vmatprep.subr.bf16.mxu0 0
    %2387 = vmatpush1.bf16.msra.mxu0 %v2382
    %2388 = vmatprep.subr.bf16.mxu0 0
    %2389 = vmatpush1.bf16.msra.mxu0 %v2383
    %2390 = vmatprep.subr.bf16.mxu0 0
    %2391 = vmatpush1.bf16.msra.mxu0 0
    %2392 = vmatprep.subr.bf16.mxu0 0
    %2393 = vmatpush1.bf16.msra.mxu0 0
    %2394 = vmatprep.subr.bf16.mxu0 0
    %2395 = vmatpush1.bf16.msra.mxu0 0
    %2396 = vmatprep.subr.bf16.mxu0 0
    %2397 = vmatpush1.bf16.msra.mxu0 0
    %2398 = vmatprep.subr.bf16.mxu0 0
    %2399 = vmatpush1.bf16.msra.mxu0 0
    %2400 = vmatprep.subr.bf16.mxu0 0
    %2401 = vmatpush1.bf16.msra.mxu0 0
    %2402 = vmatprep.subr.bf16.mxu0 0
    %2403 = vmatpush1.bf16.msra.mxu0 0
    %2404 = vmatprep.subr.bf16.mxu0 0
    %2405 = vmatpush1.bf16.msra.mxu0 0
    %2406 = vmatprep.subr.bf16.mxu0 0
    %2407 = vmatpush1.bf16.msra.mxu0 0
    %2408 = vmatprep.subr.bf16.mxu0 0
    %2409 = vmatpush1.bf16.msra.mxu0 0
    %2410 = vmatprep.subr.bf16.mxu0 0
    %2411 = vmatpush1.bf16.msra.mxu0 0
    %2412 = vmatprep.subr.bf16.mxu0 0
    %2413 = vmatpush1.bf16.msra.mxu0 0
    %2414 = vmatprep.subr.bf16.mxu0 0
    %2415 = vmatpush1.bf16.msra.mxu0 0
    %2416 = vmatprep.subr.bf16.mxu0 0
    %2417 = vmatpush1.bf16.msra.mxu0 0
    %2418 = vmatprep.mubr.bf16.mxu0 0
    %2419 = vmatmul.mubr.bf16.gmra.mrb[0].mxu0 %v1568
    %v2420 = vpop.f32.mrb[0].mxu0
    %v2421 = vadd.f32 %v1528, %v2420
    %v2422 = vpop.f32.mrb[0].mxu0
    %v2423 = vpop.f32.mrb[0].mxu0
    %v2424 = vadd.f32 %v1533, %v2423
    %v2425 = vpop.f32.mrb[0].mxu0
    %2426 = vmatprep.mubr.bf16.mxu0 0
    %2427 = vmatmul.mubr.bf16.gmra.mrb[0].mxu0 %v1571
    %v2428 = vpop.f32.mrb[0].mxu0
    %v2429 = vadd.f32 %v1538, %v2428
    %v2430 = vpop.f32.mrb[0].mxu0
    %v2431 = vpop.f32.mrb[0].mxu0
    %v2432 = vadd.f32 %v1543, %v2431
    %v2433 = vpop.f32.mrb[0].mxu0
    %2434 = vdwg.mxu0
    %v2435 = vmax.f32 %v2421, 0.0
    %v2436 = vmax.f32 %v2424, 0.0
    %v2437 = vmax.f32 %v2429, 0.0
    %v2438 = vmax.f32 %v2432, 0.0
    %v2439 = vpack.c.bf16 %v2436, %v2435
    %v2440 = vpack.c.bf16 %v2438, %v2437
    %2441 = vmatprep.subr.bf16.mxu0 0
    %2442 = vmatpush1.bf16.msra.mxu0 %v2439
    %2443 = vmatprep.subr.bf16.mxu0 0
    %2444 = vmatpush1.bf16.msra.mxu0 %v2440
    %2445 = vmatprep.subr.bf16.mxu0 0
    %2446 = vmatpush1.bf16.msra.mxu0 0
    %2447 = vmatprep.subr.bf16.mxu0 0
    %2448 = vmatpush1.bf16.msra.mxu0 0
    %2449 = vmatprep.subr.bf16.mxu0 0
    %2450 = vmatpush1.bf16.msra.mxu0 0
    %2451 = vmatprep.subr.bf16.mxu0 0
    %2452 = vmatpush1.bf16.msra.mxu0 0
    %2453 = vmatprep.subr.bf16.mxu0 0
    %2454 = vmatpush1.bf16.msra.mxu0 0
    %2455 = vmatprep.subr.bf16.mxu0 0
    %2456 = vmatpush1.bf16.msra.mxu0 0
    %2457 = vmatprep.subr.bf16.mxu0 0
    %2458 = vmatpush1.bf16.msra.mxu0 0
    %2459 = vmatprep.subr.bf16.mxu0 0
    %2460 = vmatpush1.bf16.msra.mxu0 0
    %2461 = vmatprep.subr.bf16.mxu0 0
    %2462 = vmatpush1.bf16.msra.mxu0 0
    %2463 = vmatprep.subr.bf16.mxu0 0
    %2464 = vmatpush1.bf16.msra.mxu0 0
    %2465 = vmatprep.subr.bf16.mxu0 0
    %2466 = vmatpush1.bf16.msra.mxu0 0
    %2467 = vmatprep.subr.bf16.mxu0 0
    %2468 = vmatpush1.bf16.msra.mxu0 0
    %2469 = vmatprep.subr.bf16.mxu0 0
    %2470 = vmatpush1.bf16.msra.mxu0 0
    %2471 = vmatprep.subr.bf16.mxu0 0
    %2472 = vmatpush1.bf16.msra.mxu0 0
    %2473 = vmatprep.mubr.bf16.mxu0 0
    %2474 = vmatmul.mubr.bf16.gmra.mrb[0].mxu0 %v1659
    %v2475 = vpop.f32.mrb[0].mxu0
    %v2476 = vadd.f32 0.0, %v2475
    %v2477 = vpop.f32.mrb[0].mxu0
    %v2478 = vpop.f32.mrb[0].mxu0
    %v2479 = vadd.f32 0.0, %v2478
    %v2480 = vpop.f32.mrb[0].mxu0
    %2481 = vmatprep.mubr.bf16.mxu0 0
    %2482 = vmatmul.mubr.bf16.gmra.mrb[0].mxu0 %v1662
    %v2483 = vpop.f32.mrb[0].mxu0
    %v2484 = vadd.f32 0.0, %v2483
    %v2485 = vpop.f32.mrb[0].mxu0
    %v2486 = vpop.f32.mrb[0].mxu0
    %v2487 = vadd.f32 0.0, %v2486
    %v2488 = vpop.f32.mrb[0].mxu0
    %2489 = vmatprep.mubr.bf16.mxu0 0
    %2490 = vmatmul.mubr.bf16.gmra.mrb[0].mxu0 %v1665
    %v2491 = vpop.f32.mrb[0].mxu0
    %v2492 = vadd.f32 0.0, %v2491
    %v2493 = vpop.f32.mrb[0].mxu0
    %v2494 = vpop.f32.mrb[0].mxu0
    %v2495 = vadd.f32 0.0, %v2494
    %v2496 = vpop.f32.mrb[0].mxu0
    %2497 = vmatprep.mubr.bf16.mxu0 0
    %2498 = vmatmul.mubr.bf16.gmra.mrb[0].mxu0 %v1668
    %v2499 = vpop.f32.mrb[0].mxu0
    %v2500 = vadd.f32 0.0, %v2499
    %v2501 = vpop.f32.mrb[0].mxu0
    %v2502 = vpop.f32.mrb[0].mxu0
    %v2503 = vadd.f32 0.0, %v2502
    %v2504 = vpop.f32.mrb[0].mxu0
    %2505 = vmatprep.mubr.bf16.mxu0 0
    %2506 = vmatmul.mubr.bf16.gmra.mrb[0].mxu0 %v1671
    %v2507 = vpop.f32.mrb[0].mxu0
    %v2508 = vadd.f32 0.0, %v2507
    %v2509 = vpop.f32.mrb[0].mxu0
    %v2510 = vpop.f32.mrb[0].mxu0
    %v2511 = vadd.f32 0.0, %v2510
    %v2512 = vpop.f32.mrb[0].mxu0
    %2513 = vmatprep.mubr.bf16.mxu0 0
    %2514 = vmatmul.mubr.bf16.gmra.mrb[0].mxu0 %v1674
    %v2515 = vpop.f32.mrb[0].mxu0
    %v2516 = vadd.f32 0.0, %v2515
    %v2517 = vpop.f32.mrb[0].mxu0
    %v2518 = vpop.f32.mrb[0].mxu0
    %v2519 = vadd.f32 0.0, %v2518
    %v2520 = vpop.f32.mrb[0].mxu0
    %2521 = vdwg.mxu0
    %s2522 = scalar_lea.vmem [#allocation6], 96
    %v2523 = vld [vmem:[%s2522] sm:$0xf]
    %v2524 = vld [vmem:[%s2522 + $0x4] sm:$0xf]
    %v2525 = vld [vmem:[%s2522 + $0x8] sm:$0xf]
    %v2526 = vld [vmem:[%s2522 + $0xc] sm:$0xf]
    %v2531 = vunpack.c.l.b16 %v2523
    %v2532 = vunpack.c.l.b16 %v2524
    %v2533 = vunpack.c.l.b16 %v2525
    %v2534 = vunpack.c.l.b16 %v2526
    %v2535 = vpack.c.b16 %v2532, %v2531
    %v2536 = vpack.c.b16 %v2534, %v2533
    %2539 = vmatprep.subr.bf16.mxu0 0
    %2540 = vmatpush1.bf16.msra.mxu0 %v2535
    %2541 = vmatprep.subr.bf16.mxu0 0
    %2542 = vmatpush1.bf16.msra.mxu0 %v2536
    %2543 = vmatprep.subr.bf16.mxu0 0
    %2544 = vmatpush1.bf16.msra.mxu0 0
    %2545 = vmatprep.subr.bf16.mxu0 0
    %2546 = vmatpush1.bf16.msra.mxu0 0
    %2547 = vmatprep.subr.bf16.mxu0 0
    %2548 = vmatpush1.bf16.msra.mxu0 0
    %2549 = vmatprep.subr.bf16.mxu0 0
    %2550 = vmatpush1.bf16.msra.mxu0 0
    %2551 = vmatprep.subr.bf16.mxu0 0
    %2552 = vmatpush1.bf16.msra.mxu0 0
    %2553 = vmatprep.subr.bf16.mxu0 0
    %2554 = vmatpush1.bf16.msra.mxu0 0
    %2555 = vmatprep.subr.bf16.mxu0 0
    %2556 = vmatpush1.bf16.msra.mxu0 0
    %2557 = vmatprep.subr.bf16.mxu0 0
    %2558 = vmatpush1.bf16.msra.mxu0 0
    %2559 = vmatprep.subr.bf16.mxu0 0
    %2560 = vmatpush1.bf16.msra.mxu0 0
    %2561 = vmatprep.subr.bf16.mxu0 0
    %2562 = vmatpush1.bf16.msra.mxu0 0
    %2563 = vmatprep.subr.bf16.mxu0 0
    %2564 = vmatpush1.bf16.msra.mxu0 0
    %2565 = vmatprep.subr.bf16.mxu0 0
    %2566 = vmatpush1.bf16.msra.mxu0 0
    %2567 = vmatprep.subr.bf16.mxu0 0
    %2568 = vmatpush1.bf16.msra.mxu0 0
    %2569 = vmatprep.subr.bf16.mxu0 0
    %2570 = vmatpush1.bf16.msra.mxu0 0
    %2571 = vmatprep.mubr.bf16.mxu0 0
    %2572 = vmatmul.mubr.bf16.gmra.mrb[0].mxu0 %v1568
    %v2573 = vpop.f32.mrb[0].mxu0
    %v2574 = vadd.f32 %v1528, %v2573
    %v2575 = vpop.f32.mrb[0].mxu0
    %v2576 = vpop.f32.mrb[0].mxu0
    %v2577 = vadd.f32 %v1533, %v2576
    %v2578 = vpop.f32.mrb[0].mxu0
    %2579 = vmatprep.mubr.bf16.mxu0 0
    %2580 = vmatmul.mubr.bf16.gmra.mrb[0].mxu0 %v1571
    %v2581 = vpop.f32.mrb[0].mxu0
    %v2582 = vadd.f32 %v1538, %v2581
    %v2583 = vpop.f32.mrb[0].mxu0
    %v2584 = vpop.f32.mrb[0].mxu0
    %v2585 = vadd.f32 %v1543, %v2584
    %v2586 = vpop.f32.mrb[0].mxu0
    %2587 = vdwg.mxu0
    %v2588 = vmax.f32 %v2574, 0.0
    %v2589 = vmax.f32 %v2577, 0.0
    %v2590 = vmax.f32 %v2582, 0.0
    %v2591 = vmax.f32 %v2585, 0.0
    %v2592 = vpack.c.bf16 %v2589, %v2588
    %v2593 = vpack.c.bf16 %v2591, %v2590
    %2594 = vmatprep.subr.bf16.mxu0 0
    %2595 = vmatpush1.bf16.msra.mxu0 %v2592
    %2596 = vmatprep.subr.bf16.mxu0 0
    %2597 = vmatpush1.bf16.msra.mxu0 %v2593
    %2598 = vmatprep.subr.bf16.mxu0 0
    %2599 = vmatpush1.bf16.msra.mxu0 0
    %2600 = vmatprep.subr.bf16.mxu0 0
    %2601 = vmatpush1.bf16.msra.mxu0 0
    %2602 = vmatprep.subr.bf16.mxu0 0
    %2603 = vmatpush1.bf16.msra.mxu0 0
    %2604 = vmatprep.subr.bf16.mxu0 0
    %2605 = vmatpush1.bf16.msra.mxu0 0
    %2606 = vmatprep.subr.bf16.mxu0 0
    %2607 = vmatpush1.bf16.msra.mxu0 0
    %2608 = vmatprep.subr.bf16.mxu0 0
    %2609 = vmatpush1.bf16.msra.mxu0 0
    %2610 = vmatprep.subr.bf16.mxu0 0
    %2611 = vmatpush1.bf16.msra.mxu0 0
    %2612 = vmatprep.subr.bf16.mxu0 0
    %2613 = vmatpush1.bf16.msra.mxu0 0
    %2614 = vmatprep.subr.bf16.mxu0 0
    %2615 = vmatpush1.bf16.msra.mxu0 0
    %2616 = vmatprep.subr.bf16.mxu0 0
    %2617 = vmatpush1.bf16.msra.mxu0 0
    %2618 = vmatprep.subr.bf16.mxu0 0
    %2619 = vmatpush1.bf16.msra.mxu0 0
    %2620 = vmatprep.subr.bf16.mxu0 0
    %2621 = vmatpush1.bf16.msra.mxu0 0
    %2622 = vmatprep.subr.bf16.mxu0 0
    %2623 = vmatpush1.bf16.msra.mxu0 0
    %2624 = vmatprep.subr.bf16.mxu0 0
    %2625 = vmatpush1.bf16.msra.mxu0 0
    %2626 = vmatprep.mubr.bf16.mxu0 0
    %2627 = vmatmul.mubr.bf16.gmra.mrb[0].mxu0 %v1659
    %v2628 = vpop.f32.mrb[0].mxu0
    %v2629 = vadd.f32 0.0, %v2628
    %v2630 = vpop.f32.mrb[0].mxu0
    %v2631 = vpop.f32.mrb[0].mxu0
    %v2632 = vadd.f32 0.0, %v2631
    %v2633 = vpop.f32.mrb[0].mxu0
    %2634 = vmatprep.mubr.bf16.mxu0 0
    %2635 = vmatmul.mubr.bf16.gmra.mrb[0].mxu0 %v1662
    %v2636 = vpop.f32.mrb[0].mxu0
    %v2637 = vadd.f32 0.0, %v2636
    %v2638 = vpop.f32.mrb[0].mxu0
    %v2639 = vpop.f32.mrb[0].mxu0
    %v2640 = vadd.f32 0.0, %v2639
    %v2641 = vpop.f32.mrb[0].mxu0
    %2642 = vmatprep.mubr.bf16.mxu0 0
    %2643 = vmatmul.mubr.bf16.gmra.mrb[0].mxu0 %v1665
    %v2644 = vpop.f32.mrb[0].mxu0
    %v2645 = vadd.f32 0.0, %v2644
    %v2646 = vpop.f32.mrb[0].mxu0
    %v2647 = vpop.f32.mrb[0].mxu0
    %v2648 = vadd.f32 0.0, %v2647
    %v2649 = vpop.f32.mrb[0].mxu0
    %2650 = vmatprep.mubr.bf16.mxu0 0
    %2651 = vmatmul.mubr.bf16.gmra.mrb[0].mxu0 %v1668
    %v2652 = vpop.f32.mrb[0].mxu0
    %v2653 = vadd.f32 0.0, %v2652
    %v2654 = vpop.f32.mrb[0].mxu0
    %v2655 = vpop.f32.mrb[0].mxu0
    %v2656 = vadd.f32 0.0, %v2655
    %v2657 = vpop.f32.mrb[0].mxu0
    %2658 = vmatprep.mubr.bf16.mxu0 0
    %2659 = vmatmul.mubr.bf16.gmra.mrb[0].mxu0 %v1671
    %v2660 = vpop.f32.mrb[0].mxu0
    %v2661 = vadd.f32 0.0, %v2660
    %v2662 = vpop.f32.mrb[0].mxu0
    %v2663 = vpop.f32.mrb[0].mxu0
    %v2664 = vadd.f32 0.0, %v2663
    %v2665 = vpop.f32.mrb[0].mxu0
    %2666 = vmatprep.mubr.bf16.mxu0 0
    %2667 = vmatmul.mubr.bf16.gmra.mrb[0].mxu0 %v1674
    %v2668 = vpop.f32.mrb[0].mxu0
    %v2669 = vadd.f32 0.0, %v2668
    %v2670 = vpop.f32.mrb[0].mxu0
    %v2671 = vpop.f32.mrb[0].mxu0
    %v2672 = vadd.f32 0.0, %v2671
    %v2673 = vpop.f32.mrb[0].mxu0
    %2674 = vdwg.mxu0
    %v2675 = vld [vmem:[#allocation2] sm:$0xff]
    %v2676 = vld [vmem:[#allocation2 + $0x8] sm:$0xff]
    %v2677 = vld [vmem:[#allocation2 + $0x10] sm:$0xff]
    %v2678 = vld [vmem:[#allocation2 + $0x18] sm:$0xff]
    %v2679 = vld [vmem:[#allocation2 + $0x20] sm:$0xff]
    %v2680 = vld [vmem:[#allocation2 + $0x28] sm:$0xff]
    %v2681 = vld [vmem:[#allocation2 + $0x30] sm:$0xff]
    %v2682 = vld [vmem:[#allocation2 + $0x38] sm:$0xff]
    %v2683 = vld [vmem:[#allocation2 + $0x40] sm:$0xff]
    %v2684 = vld [vmem:[#allocation2 + $0x48] sm:$0xff]
    %v2685 = vld [vmem:[#allocation2 + $0x50] sm:$0xff]
    %v2686 = vld [vmem:[#allocation2 + $0x58] sm:$0xff]
    %v2687 = vld [vmem:[#allocation2 + $0x60] sm:$0xff]
    %v2688 = vld [vmem:[#allocation2 + $0x68] sm:$0xff]
    %v2689 = vld [vmem:[#allocation2 + $0x70] sm:$0xff]
    %v2690 = vld [vmem:[#allocation2 + $0x78] sm:$0xff]
    %v2691 = vld [vmem:[#allocation2 + $0x80] sm:$0xff]
    %v2692 = vld [vmem:[#allocation2 + $0x88] sm:$0xff]
    %v2693 = vld [vmem:[#allocation2 + $0x90] sm:$0xff]
    %v2694 = vld [vmem:[#allocation2 + $0x98] sm:$0xff]
    %v2695 = vld [vmem:[#allocation2 + $0xa0] sm:$0xff]
    %v2696 = vld [vmem:[#allocation2 + $0xa8] sm:$0xff]
    %v2697 = vld [vmem:[#allocation2 + $0xb0] sm:$0xff]
    %v2698 = vld [vmem:[#allocation2 + $0xb8] sm:$0xff]
    %v2699 = vld [vmem:[#allocation2 + $0xc0] sm:$0xff]
    %v2700 = vld [vmem:[#allocation2 + $0xc8] sm:$0xff]
    %v2701 = vld [vmem:[#allocation2 + $0xd0] sm:$0xff]
    %v2702 = vld [vmem:[#allocation2 + $0xd8] sm:$0xff]
    %v2703 = vld [vmem:[#allocation2 + $0xe0] sm:$0xff]
    %v2704 = vld [vmem:[#allocation2 + $0xe8] sm:$0xff]
    %v2705 = vld [vmem:[#allocation2 + $0xf0] sm:$0xff]
    %v2706 = vld [vmem:[#allocation2 + $0xf8] sm:$0xff]
    %v2707 = vld [vmem:[#allocation3] sm:$0xff]
    %v2708 = vld [vmem:[#allocation3 + $0x8] sm:$0xff]
    %v2709 = vld [vmem:[#allocation3 + $0x10] sm:$0xff]
    %v2710 = vld [vmem:[#allocation3 + $0x18] sm:$0xff]
    %v2711 = vld [vmem:[#allocation3 + $0x20] sm:$0xff]
    %v2712 = vld [vmem:[#allocation3 + $0x28] sm:$0xff]
    %v2713 = vld [vmem:[#allocation3 + $0x30] sm:$0xff]
    %v2714 = vld [vmem:[#allocation3 + $0x38] sm:$0xff]
    %v2715 = vld [vmem:[#allocation3 + $0x40] sm:$0xff]
    %v2716 = vld [vmem:[#allocation3 + $0x48] sm:$0xff]
    %v2717 = vld [vmem:[#allocation3 + $0x50] sm:$0xff]
    %v2718 = vld [vmem:[#allocation3 + $0x58] sm:$0xff]
    %v2719 = vld [vmem:[#allocation3 + $0x60] sm:$0xff]
    %v2720 = vld [vmem:[#allocation3 + $0x68] sm:$0xff]
    %v2721 = vld [vmem:[#allocation3 + $0x70] sm:$0xff]
    %v2722 = vld [vmem:[#allocation3 + $0x78] sm:$0xff]
    %v2723 = vld [vmem:[#allocation3 + $0x80] sm:$0xff]
    %v2724 = vld [vmem:[#allocation3 + $0x88] sm:$0xff]
    %v2725 = vld [vmem:[#allocation3 + $0x90] sm:$0xff]
    %v2726 = vld [vmem:[#allocation3 + $0x98] sm:$0xff]
    %v2727 = vld [vmem:[#allocation3 + $0xa0] sm:$0xff]
    %v2728 = vld [vmem:[#allocation3 + $0xa8] sm:$0xff]
    %v2729 = vld [vmem:[#allocation3 + $0xb0] sm:$0xff]
    %v2730 = vld [vmem:[#allocation3 + $0xb8] sm:$0xff]
    %v2731 = vld [vmem:[#allocation3 + $0xc0] sm:$0xff]
    %v2732 = vld [vmem:[#allocation3 + $0xc8] sm:$0xff]
    %v2733 = vld [vmem:[#allocation3 + $0xd0] sm:$0xff]
    %v2734 = vld [vmem:[#allocation3 + $0xd8] sm:$0xff]
    %v2735 = vld [vmem:[#allocation3 + $0xe0] sm:$0xff]
    %v2736 = vld [vmem:[#allocation3 + $0xe8] sm:$0xff]
    %v2737 = vld [vmem:[#allocation3 + $0xf0] sm:$0xff]
    %v2738 = vld [vmem:[#allocation3 + $0xf8] sm:$0xff]
    %v2739 = vld [vmem:[#allocation4] sm:$0xff]
    %v2740 = vld [vmem:[#allocation4 + $0x8] sm:$0xff]
    %v2741 = vld [vmem:[#allocation4 + $0x10] sm:$0xff]
    %v2742 = vld [vmem:[#allocation4 + $0x18] sm:$0xff]
    %v2743 = vld [vmem:[#allocation4 + $0x20] sm:$0xff]
    %v2744 = vld [vmem:[#allocation4 + $0x28] sm:$0xff]
    %v2745 = vld [vmem:[#allocation4 + $0x30] sm:$0xff]
    %v2746 = vld [vmem:[#allocation4 + $0x38] sm:$0xff]
    %v2747 = vld [vmem:[#allocation4 + $0x40] sm:$0xff]
    %v2748 = vld [vmem:[#allocation4 + $0x48] sm:$0xff]
    %v2749 = vld [vmem:[#allocation4 + $0x50] sm:$0xff]
    %v2750 = vld [vmem:[#allocation4 + $0x58] sm:$0xff]
    %v2751 = vld [vmem:[#allocation4 + $0x60] sm:$0xff]
    %v2752 = vld [vmem:[#allocation4 + $0x68] sm:$0xff]
    %v2753 = vld [vmem:[#allocation4 + $0x70] sm:$0xff]
    %v2754 = vld [vmem:[#allocation4 + $0x78] sm:$0xff]
    %v2755 = vld [vmem:[#allocation4 + $0x80] sm:$0xff]
    %v2756 = vld [vmem:[#allocation4 + $0x88] sm:$0xff]
    %v2757 = vld [vmem:[#allocation4 + $0x90] sm:$0xff]
    %v2758 = vld [vmem:[#allocation4 + $0x98] sm:$0xff]
    %v2759 = vld [vmem:[#allocation4 + $0xa0] sm:$0xff]
    %v2760 = vld [vmem:[#allocation4 + $0xa8] sm:$0xff]
    %v2761 = vld [vmem:[#allocation4 + $0xb0] sm:$0xff]
    %v2762 = vld [vmem:[#allocation4 + $0xb8] sm:$0xff]
    %v2763 = vld [vmem:[#allocation4 + $0xc0] sm:$0xff]
    %v2764 = vld [vmem:[#allocation4 + $0xc8] sm:$0xff]
    %v2765 = vld [vmem:[#allocation4 + $0xd0] sm:$0xff]
    %v2766 = vld [vmem:[#allocation4 + $0xd8] sm:$0xff]
    %v2767 = vld [vmem:[#allocation4 + $0xe0] sm:$0xff]
    %v2768 = vld [vmem:[#allocation4 + $0xe8] sm:$0xff]
    %v2769 = vld [vmem:[#allocation4 + $0xf0] sm:$0xff]
    %v2770 = vld [vmem:[#allocation4 + $0xf8] sm:$0xff]
    %v2771 = vld [vmem:[%s2] sm:$0xff]
    %vm2772 = vcmp.gt.f32.partialorder %v2771, 0.0
    %v2773 = vsel %vm2772, 0.0, -1e+09
    %v2774 = vmul.f32 %v2675, %v1727
    %v2775 = vmul.f32 %v2676, %v1730
    %v2776 = vmul.f32 %v2677, %v1735
    %v2777 = vmul.f32 %v2678, %v1738
    %v2778 = vmul.f32 %v2679, %v1727
    %v2779 = vmul.f32 %v2680, %v1730
    %v2780 = vmul.f32 %v2681, %v1735
    %v2781 = vmul.f32 %v2682, %v1738
    %v2782 = vmul.f32 %v2683, %v1727
    %v2783 = vmul.f32 %v2684, %v1730
    %v2784 = vmul.f32 %v2685, %v1735
    %v2785 = vmul.f32 %v2686, %v1738
    %v2786 = vmul.f32 %v2687, %v1727
    %v2787 = vmul.f32 %v2688, %v1730
    %v2788 = vmul.f32 %v2689, %v1735
    %v2789 = vmul.f32 %v2690, %v1738
    %v2790 = vmul.f32 %v2691, %v1727
    %v2791 = vmul.f32 %v2692, %v1730
    %v2792 = vmul.f32 %v2693, %v1735
    %v2793 = vmul.f32 %v2694, %v1738
    %v2794 = vmul.f32 %v2695, %v1727
    %v2795 = vmul.f32 %v2696, %v1730
    %v2796 = vmul.f32 %v2697, %v1735
    %v2797 = vmul.f32 %v2698, %v1738
    %v2798 = vmul.f32 %v2699, %v1727
    %v2799 = vmul.f32 %v2700, %v1730
    %v2800 = vmul.f32 %v2701, %v1735
    %v2801 = vmul.f32 %v2702, %v1738
    %v2802 = vmul.f32 %v2703, %v1727
    %v2803 = vmul.f32 %v2704, %v1730
    %v2804 = vmul.f32 %v2705, %v1735
    %v2805 = vmul.f32 %v2706, %v1738
    %v2806 = vadd.f32 %v2774, %v2775
    %v2807 = vadd.f32 %v2806, %v2776
    %v2808 = vadd.f32 %v2807, %v2777
    %v2809 = vrot.slane %v2808, 4
    %v2810 = vadd.f32 %v2808, %v2809
    %v2811 = vrot.slane %v2810, 2
    %v2812 = vadd.f32 %v2810, %v2811
    %v2813 = vrot.slane %v2812, 1
    %v2814 = vadd.f32 %v2812, %v2813
    %v2815 = vadd.f32 %v2778, %v2779
    %v2816 = vadd.f32 %v2815, %v2780
    %v2817 = vadd.f32 %v2816, %v2781
    %v2818 = vrot.slane %v2817, 4
    %v2819 = vadd.f32 %v2817, %v2818
    %v2820 = vrot.slane %v2819, 2
    %v2821 = vadd.f32 %v2819, %v2820
    %v2822 = vrot.slane %v2821, 1
    %v2823 = vadd.f32 %v2821, %v2822
    %v2824 = vadd.f32 %v2782, %v2783
    %v2825 = vadd.f32 %v2824, %v2784
    %v2826 = vadd.f32 %v2825, %v2785
    %v2827 = vrot.slane %v2826, 4
    %v2828 = vadd.f32 %v2826, %v2827
    %v2829 = vrot.slane %v2828, 2
    %v2830 = vadd.f32 %v2828, %v2829
    %v2831 = vrot.slane %v2830, 1
    %v2832 = vadd.f32 %v2830, %v2831
    %v2833 = vadd.f32 %v2786, %v2787
    %v2834 = vadd.f32 %v2833, %v2788
    %v2835 = vadd.f32 %v2834, %v2789
    %v2836 = vrot.slane %v2835, 4
    %v2837 = vadd.f32 %v2835, %v2836
    %v2838 = vrot.slane %v2837, 2
    %v2839 = vadd.f32 %v2837, %v2838
    %v2840 = vrot.slane %v2839, 1
    %v2841 = vadd.f32 %v2839, %v2840
    %v2842 = vadd.f32 %v2790, %v2791
    %v2843 = vadd.f32 %v2842, %v2792
    %v2844 = vadd.f32 %v2843, %v2793
    %v2845 = vrot.slane %v2844, 4
    %v2846 = vadd.f32 %v2844, %v2845
    %v2847 = vrot.slane %v2846, 2
    %v2848 = vadd.f32 %v2846, %v2847
    %v2849 = vrot.slane %v2848, 1
    %v2850 = vadd.f32 %v2848, %v2849
    %v2851 = vadd.f32 %v2794, %v2795
    %v2852 = vadd.f32 %v2851, %v2796
    %v2853 = vadd.f32 %v2852, %v2797
    %v2854 = vrot.slane %v2853, 4
    %v2855 = vadd.f32 %v2853, %v2854
    %v2856 = vrot.slane %v2855, 2
    %v2857 = vadd.f32 %v2855, %v2856
    %v2858 = vrot.slane %v2857, 1
    %v2859 = vadd.f32 %v2857, %v2858
    %v2860 = vadd.f32 %v2798, %v2799
    %v2861 = vadd.f32 %v2860, %v2800
    %v2862 = vadd.f32 %v2861, %v2801
    %v2863 = vrot.slane %v2862, 4
    %v2864 = vadd.f32 %v2862, %v2863
    %v2865 = vrot.slane %v2864, 2
    %v2866 = vadd.f32 %v2864, %v2865
    %v2867 = vrot.slane %v2866, 1
    %v2868 = vadd.f32 %v2866, %v2867
    %v2869 = vadd.f32 %v2802, %v2803
    %v2870 = vadd.f32 %v2869, %v2804
    %v2871 = vadd.f32 %v2870, %v2805
    %v2872 = vrot.slane %v2871, 4
    %v2873 = vadd.f32 %v2871, %v2872
    %v2874 = vrot.slane %v2873, 2
    %v2875 = vadd.f32 %v2873, %v2874
    %v2876 = vrot.slane %v2875, 1
    %v2877 = vadd.f32 %v2875, %v2876
    %v2878 = vmul.f32 %v2675, %v1880
    %v2879 = vmul.f32 %v2676, %v1883
    %v2880 = vmul.f32 %v2677, %v1888
    %v2881 = vmul.f32 %v2678, %v1891
    %v2882 = vmul.f32 %v2679, %v1880
    %v2883 = vmul.f32 %v2680, %v1883
    %v2884 = vmul.f32 %v2681, %v1888
    %v2885 = vmul.f32 %v2682, %v1891
    %v2886 = vmul.f32 %v2683, %v1880
    %v2887 = vmul.f32 %v2684, %v1883
    %v2888 = vmul.f32 %v2685, %v1888
    %v2889 = vmul.f32 %v2686, %v1891
    %v2890 = vmul.f32 %v2687, %v1880
    %v2891 = vmul.f32 %v2688, %v1883
    %v2892 = vmul.f32 %v2689, %v1888
    %v2893 = vmul.f32 %v2690, %v1891
    %v2894 = vmul.f32 %v2691, %v1880
    %v2895 = vmul.f32 %v2692, %v1883
    %v2896 = vmul.f32 %v2693, %v1888
    %v2897 = vmul.f32 %v2694, %v1891
    %v2898 = vmul.f32 %v2695, %v1880
    %v2899 = vmul.f32 %v2696, %v1883
    %v2900 = vmul.f32 %v2697, %v1888
    %v2901 = vmul.f32 %v2698, %v1891
    %v2902 = vmul.f32 %v2699, %v1880
    %v2903 = vmul.f32 %v2700, %v1883
    %v2904 = vmul.f32 %v2701, %v1888
    %v2905 = vmul.f32 %v2702, %v1891
    %v2906 = vmul.f32 %v2703, %v1880
    %v2907 = vmul.f32 %v2704, %v1883
    %v2908 = vmul.f32 %v2705, %v1888
    %v2909 = vmul.f32 %v2706, %v1891
    %v2910 = vadd.f32 %v2878, %v2879
    %v2911 = vadd.f32 %v2910, %v2880
    %v2912 = vadd.f32 %v2911, %v2881
    %v2913 = vrot.slane %v2912, 4
    %v2914 = vadd.f32 %v2912, %v2913
    %v2915 = vrot.slane %v2914, 2
    %v2916 = vadd.f32 %v2914, %v2915
    %v2917 = vrot.slane %v2916, 1
    %v2918 = vadd.f32 %v2916, %v2917
    %v2919 = vadd.f32 %v2882, %v2883
    %v2920 = vadd.f32 %v2919, %v2884
    %v2921 = vadd.f32 %v2920, %v2885
    %v2922 = vrot.slane %v2921, 4
    %v2923 = vadd.f32 %v2921, %v2922
    %v2924 = vrot.slane %v2923, 2
    %v2925 = vadd.f32 %v2923, %v2924
    %v2926 = vrot.slane %v2925, 1
    %v2927 = vadd.f32 %v2925, %v2926
    %v2928 = vadd.f32 %v2886, %v2887
    %v2929 = vadd.f32 %v2928, %v2888
    %v2930 = vadd.f32 %v2929, %v2889
    %v2931 = vrot.slane %v2930, 4
    %v2932 = vadd.f32 %v2930, %v2931
    %v2933 = vrot.slane %v2932, 2
    %v2934 = vadd.f32 %v2932, %v2933
    %v2935 = vrot.slane %v2934, 1
    %v2936 = vadd.f32 %v2934, %v2935
    %v2937 = vadd.f32 %v2890, %v2891
    %v2938 = vadd.f32 %v2937, %v2892
    %v2939 = vadd.f32 %v2938, %v2893
    %v2940 = vrot.slane %v2939, 4
    %v2941 = vadd.f32 %v2939, %v2940
    %v2942 = vrot.slane %v2941, 2
    %v2943 = vadd.f32 %v2941, %v2942
    %v2944 = vrot.slane %v2943, 1
    %v2945 = vadd.f32 %v2943, %v2944
    %v2946 = vadd.f32 %v2894, %v2895
    %v2947 = vadd.f32 %v2946, %v2896
    %v2948 = vadd.f32 %v2947, %v2897
    %v2949 = vrot.slane %v2948, 4
    %v2950 = vadd.f32 %v2948, %v2949
    %v2951 = vrot.slane %v2950, 2
    %v2952 = vadd.f32 %v2950, %v2951
    %v2953 = vrot.slane %v2952, 1
    %v2954 = vadd.f32 %v2952, %v2953
    %v2955 = vadd.f32 %v2898, %v2899
    %v2956 = vadd.f32 %v2955, %v2900
    %v2957 = vadd.f32 %v2956, %v2901
    %v2958 = vrot.slane %v2957, 4
    %v2959 = vadd.f32 %v2957, %v2958
    %v2960 = vrot.slane %v2959, 2
    %v2961 = vadd.f32 %v2959, %v2960
    %v2962 = vrot.slane %v2961, 1
    %v2963 = vadd.f32 %v2961, %v2962
    %v2964 = vadd.f32 %v2902, %v2903
    %v2965 = vadd.f32 %v2964, %v2904
    %v2966 = vadd.f32 %v2965, %v2905
    %v2967 = vrot.slane %v2966, 4
    %v2968 = vadd.f32 %v2966, %v2967
    %v2969 = vrot.slane %v2968, 2
    %v2970 = vadd.f32 %v2968, %v2969
    %v2971 = vrot.slane %v2970, 1
    %v2972 = vadd.f32 %v2970, %v2971
    %v2973 = vadd.f32 %v2906, %v2907
    %v2974 = vadd.f32 %v2973, %v2908
    %v2975 = vadd.f32 %v2974, %v2909
    %v2976 = vrot.slane %v2975, 4
    %v2977 = vadd.f32 %v2975, %v2976
    %v2978 = vrot.slane %v2977, 2
    %v2979 = vadd.f32 %v2977, %v2978
    %v2980 = vrot.slane %v2979, 1
    %v2981 = vadd.f32 %v2979, %v2980
    %v2982 = vmul.f32 %v2675, %v2033
    %v2983 = vmul.f32 %v2676, %v2036
    %v2984 = vmul.f32 %v2677, %v2041
    %v2985 = vmul.f32 %v2678, %v2044
    %v2986 = vmul.f32 %v2679, %v2033
    %v2987 = vmul.f32 %v2680, %v2036
    %v2988 = vmul.f32 %v2681, %v2041
    %v2989 = vmul.f32 %v2682, %v2044
    %v2990 = vmul.f32 %v2683, %v2033
    %v2991 = vmul.f32 %v2684, %v2036
    %v2992 = vmul.f32 %v2685, %v2041
    %v2993 = vmul.f32 %v2686, %v2044
    %v2994 = vmul.f32 %v2687, %v2033
    %v2995 = vmul.f32 %v2688, %v2036
    %v2996 = vmul.f32 %v2689, %v2041
    %v2997 = vmul.f32 %v2690, %v2044
    %v2998 = vmul.f32 %v2691, %v2033
    %v2999 = vmul.f32 %v2692, %v2036
    %v3000 = vmul.f32 %v2693, %v2041
    %v3001 = vmul.f32 %v2694, %v2044
    %v3002 = vmul.f32 %v2695, %v2033
    %v3003 = vmul.f32 %v2696, %v2036
    %v3004 = vmul.f32 %v2697, %v2041
    %v3005 = vmul.f32 %v2698, %v2044
    %v3006 = vmul.f32 %v2699, %v2033
    %v3007 = vmul.f32 %v2700, %v2036
    %v3008 = vmul.f32 %v2701, %v2041
    %v3009 = vmul.f32 %v2702, %v2044
    %v3010 = vmul.f32 %v2703, %v2033
    %v3011 = vmul.f32 %v2704, %v2036
    %v3012 = vmul.f32 %v2705, %v2041
    %v3013 = vmul.f32 %v2706, %v2044
    %v3014 = vadd.f32 %v2982, %v2983
    %v3015 = vadd.f32 %v3014, %v2984
    %v3016 = vadd.f32 %v3015, %v2985
    %v3017 = vrot.slane %v3016, 4
    %v3018 = vadd.f32 %v3016, %v3017
    %v3019 = vrot.slane %v3018, 2
    %v3020 = vadd.f32 %v3018, %v3019
    %v3021 = vrot.slane %v3020, 1
    %v3022 = vadd.f32 %v3020, %v3021
    %v3023 = vadd.f32 %v2986, %v2987
    %v3024 = vadd.f32 %v3023, %v2988
    %v3025 = vadd.f32 %v3024, %v2989
    %v3026 = vrot.slane %v3025, 4
    %v3027 = vadd.f32 %v3025, %v3026
    %v3028 = vrot.slane %v3027, 2
    %v3029 = vadd.f32 %v3027, %v3028
    %v3030 = vrot.slane %v3029, 1
    %v3031 = vadd.f32 %v3029, %v3030
    %v3032 = vadd.f32 %v2990, %v2991
    %v3033 = vadd.f32 %v3032, %v2992
    %v3034 = vadd.f32 %v3033, %v2993
    %v3035 = vrot.slane %v3034, 4
    %v3036 = vadd.f32 %v3034, %v3035
    %v3037 = vrot.slane %v3036, 2
    %v3038 = vadd.f32 %v3036, %v3037
    %v3039 = vrot.slane %v3038, 1
    %v3040 = vadd.f32 %v3038, %v3039
    %v3041 = vadd.f32 %v2994, %v2995
    %v3042 = vadd.f32 %v3041, %v2996
    %v3043 = vadd.f32 %v3042, %v2997
    %v3044 = vrot.slane %v3043, 4
    %v3045 = vadd.f32 %v3043, %v3044
    %v3046 = vrot.slane %v3045, 2
    %v3047 = vadd.f32 %v3045, %v3046
    %v3048 = vrot.slane %v3047, 1
    %v3049 = vadd.f32 %v3047, %v3048
    %v3050 = vadd.f32 %v2998, %v2999
    %v3051 = vadd.f32 %v3050, %v3000
    %v3052 = vadd.f32 %v3051, %v3001
    %v3053 = vrot.slane %v3052, 4
    %v3054 = vadd.f32 %v3052, %v3053
    %v3055 = vrot.slane %v3054, 2
    %v3056 = vadd.f32 %v3054, %v3055
    %v3057 = vrot.slane %v3056, 1
    %v3058 = vadd.f32 %v3056, %v3057
    %v3059 = vadd.f32 %v3002, %v3003
    %v3060 = vadd.f32 %v3059, %v3004
    %v3061 = vadd.f32 %v3060, %v3005
    %v3062 = vrot.slane %v3061, 4
    %v3063 = vadd.f32 %v3061, %v3062
    %v3064 = vrot.slane %v3063, 2
    %v3065 = vadd.f32 %v3063, %v3064
    %v3066 = vrot.slane %v3065, 1
    %v3067 = vadd.f32 %v3065, %v3066
    %v3068 = vadd.f32 %v3006, %v3007
    %v3069 = vadd.f32 %v3068, %v3008
    %v3070 = vadd.f32 %v3069, %v3009
    %v3071 = vrot.slane %v3070, 4
    %v3072 = vadd.f32 %v3070, %v3071
    %v3073 = vrot.slane %v3072, 2
    %v3074 = vadd.f32 %v3072, %v3073
    %v3075 = vrot.slane %v3074, 1
    %v3076 = vadd.f32 %v3074, %v3075
    %v3077 = vadd.f32 %v3010, %v3011
    %v3078 = vadd.f32 %v3077, %v3012
    %v3079 = vadd.f32 %v3078, %v3013
    %v3080 = vrot.slane %v3079, 4
    %v3081 = vadd.f32 %v3079, %v3080
    %v3082 = vrot.slane %v3081, 2
    %v3083 = vadd.f32 %v3081, %v3082
    %v3084 = vrot.slane %v3083, 1
    %v3085 = vadd.f32 %v3083, %v3084
    %v3086 = vmul.f32 %v2675, %v2186
    %v3087 = vmul.f32 %v2676, %v2189
    %v3088 = vmul.f32 %v2677, %v2194
    %v3089 = vmul.f32 %v2678, %v2197
    %v3090 = vmul.f32 %v2679, %v2186
    %v3091 = vmul.f32 %v2680, %v2189
    %v3092 = vmul.f32 %v2681, %v2194
    %v3093 = vmul.f32 %v2682, %v2197
    %v3094 = vmul.f32 %v2683, %v2186
    %v3095 = vmul.f32 %v2684, %v2189
    %v3096 = vmul.f32 %v2685, %v2194
    %v3097 = vmul.f32 %v2686, %v2197
    %v3098 = vmul.f32 %v2687, %v2186
    %v3099 = vmul.f32 %v2688, %v2189
    %v3100 = vmul.f32 %v2689, %v2194
    %v3101 = vmul.f32 %v2690, %v2197
    %v3102 = vmul.f32 %v2691, %v2186
    %v3103 = vmul.f32 %v2692, %v2189
    %v3104 = vmul.f32 %v2693, %v2194
    %v3105 = vmul.f32 %v2694, %v2197
    %v3106 = vmul.f32 %v2695, %v2186
    %v3107 = vmul.f32 %v2696, %v2189
    %v3108 = vmul.f32 %v2697, %v2194
    %v3109 = vmul.f32 %v2698, %v2197
    %v3110 = vmul.f32 %v2699, %v2186
    %v3111 = vmul.f32 %v2700, %v2189
    %v3112 = vmul.f32 %v2701, %v2194
    %v3113 = vmul.f32 %v2702, %v2197
    %v3114 = vmul.f32 %v2703, %v2186
    %v3115 = vmul.f32 %v2704, %v2189
    %v3116 = vmul.f32 %v2705, %v2194
    %v3117 = vmul.f32 %v2706, %v2197
    %v3118 = vadd.f32 %v3086, %v3087
    %v3119 = vadd.f32 %v3118, %v3088
    %v3120 = vadd.f32 %v3119, %v3089
    %v3121 = vrot.slane %v3120, 4
    %v3122 = vadd.f32 %v3120, %v3121
    %v3123 = vrot.slane %v3122, 2
    %v3124 = vadd.f32 %v3122, %v3123
    %v3125 = vrot.slane %v3124, 1
    %v3126 = vadd.f32 %v3124, %v3125
    %v3127 = vadd.f32 %v3090, %v3091
    %v3128 = vadd.f32 %v3127, %v3092
    %v3129 = vadd.f32 %v3128, %v3093
    %v3130 = vrot.slane %v3129, 4
    %v3131 = vadd.f32 %v3129, %v3130
    %v3132 = vrot.slane %v3131, 2
    %v3133 = vadd.f32 %v3131, %v3132
    %v3134 = vrot.slane %v3133, 1
    %v3135 = vadd.f32 %v3133, %v3134
    %v3136 = vadd.f32 %v3094, %v3095
    %v3137 = vadd.f32 %v3136, %v3096
    %v3138 = vadd.f32 %v3137, %v3097
    %v3139 = vrot.slane %v3138, 4
    %v3140 = vadd.f32 %v3138, %v3139
    %v3141 = vrot.slane %v3140, 2
    %v3142 = vadd.f32 %v3140, %v3141
    %v3143 = vrot.slane %v3142, 1
    %v3144 = vadd.f32 %v3142, %v3143
    %v3145 = vadd.f32 %v3098, %v3099
    %v3146 = vadd.f32 %v3145, %v3100
    %v3147 = vadd.f32 %v3146, %v3101
    %v3148 = vrot.slane %v3147, 4
    %v3149 = vadd.f32 %v3147, %v3148
    %v3150 = vrot.slane %v3149, 2
    %v3151 = vadd.f32 %v3149, %v3150
    %v3152 = vrot.slane %v3151, 1
    %v3153 = vadd.f32 %v3151, %v3152
    %v3154 = vadd.f32 %v3102, %v3103
    %v3155 = vadd.f32 %v3154, %v3104
    %v3156 = vadd.f32 %v3155, %v3105
    %v3157 = vrot.slane %v3156, 4
    %v3158 = vadd.f32 %v3156, %v3157
    %v3159 = vrot.slane %v3158, 2
    %v3160 = vadd.f32 %v3158, %v3159
    %v3161 = vrot.slane %v3160, 1
    %v3162 = vadd.f32 %v3160, %v3161
    %v3163 = vadd.f32 %v3106, %v3107
    %v3164 = vadd.f32 %v3163, %v3108
    %v3165 = vadd.f32 %v3164, %v3109
    %v3166 = vrot.slane %v3165, 4
    %v3167 = vadd.f32 %v3165, %v3166
    %v3168 = vrot.slane %v3167, 2
    %v3169 = vadd.f32 %v3167, %v3168
    %v3170 = vrot.slane %v3169, 1
    %v3171 = vadd.f32 %v3169, %v3170
    %v3172 = vadd.f32 %v3110, %v3111
    %v3173 = vadd.f32 %v3172, %v3112
    %v3174 = vadd.f32 %v3173, %v3113
    %v3175 = vrot.slane %v3174, 4
    %v3176 = vadd.f32 %v3174, %v3175
    %v3177 = vrot.slane %v3176, 2
    %v3178 = vadd.f32 %v3176, %v3177
    %v3179 = vrot.slane %v3178, 1
    %v3180 = vadd.f32 %v3178, %v3179
    %v3181 = vadd.f32 %v3114, %v3115
    %v3182 = vadd.f32 %v3181, %v3116
    %v3183 = vadd.f32 %v3182, %v3117
    %v3184 = vrot.slane %v3183, 4
    %v3185 = vadd.f32 %v3183, %v3184
    %v3186 = vrot.slane %v3185, 2
    %v3187 = vadd.f32 %v3185, %v3186
    %v3188 = vrot.slane %v3187, 1
    %v3189 = vadd.f32 %v3187, %v3188
    %v3190 = vmul.f32 %v2675, %v2339
    %v3191 = vmul.f32 %v2676, %v2342
    %v3192 = vmul.f32 %v2677, %v2347
    %v3193 = vmul.f32 %v2678, %v2350
    %v3194 = vmul.f32 %v2679, %v2339
    %v3195 = vmul.f32 %v2680, %v2342
    %v3196 = vmul.f32 %v2681, %v2347
    %v3197 = vmul.f32 %v2682, %v2350
    %v3198 = vmul.f32 %v2683, %v2339
    %v3199 = vmul.f32 %v2684, %v2342
    %v3200 = vmul.f32 %v2685, %v2347
    %v3201 = vmul.f32 %v2686, %v2350
    %v3202 = vmul.f32 %v2687, %v2339
    %v3203 = vmul.f32 %v2688, %v2342
    %v3204 = vmul.f32 %v2689, %v2347
    %v3205 = vmul.f32 %v2690, %v2350
    %v3206 = vmul.f32 %v2691, %v2339
    %v3207 = vmul.f32 %v2692, %v2342
    %v3208 = vmul.f32 %v2693, %v2347
    %v3209 = vmul.f32 %v2694, %v2350
    %v3210 = vmul.f32 %v2695, %v2339
    %v3211 = vmul.f32 %v2696, %v2342
    %v3212 = vmul.f32 %v2697, %v2347
    %v3213 = vmul.f32 %v2698, %v2350
    %v3214 = vmul.f32 %v2699, %v2339
    %v3215 = vmul.f32 %v2700, %v2342
    %v3216 = vmul.f32 %v2701, %v2347
    %v3217 = vmul.f32 %v2702, %v2350
    %v3218 = vmul.f32 %v2703, %v2339
    %v3219 = vmul.f32 %v2704, %v2342
    %v3220 = vmul.f32 %v2705, %v2347
    %v3221 = vmul.f32 %v2706, %v2350
    %v3222 = vadd.f32 %v3190, %v3191
    %v3223 = vadd.f32 %v3222, %v3192
    %v3224 = vadd.f32 %v3223, %v3193
    %v3225 = vrot.slane %v3224, 4
    %v3226 = vadd.f32 %v3224, %v3225
    %v3227 = vrot.slane %v3226, 2
    %v3228 = vadd.f32 %v3226, %v3227
    %v3229 = vrot.slane %v3228, 1
    %v3230 = vadd.f32 %v3228, %v3229
    %v3231 = vadd.f32 %v3194, %v3195
    %v3232 = vadd.f32 %v3231, %v3196
    %v3233 = vadd.f32 %v3232, %v3197
    %v3234 = vrot.slane %v3233, 4
    %v3235 = vadd.f32 %v3233, %v3234
    %v3236 = vrot.slane %v3235, 2
    %v3237 = vadd.f32 %v3235, %v3236
    %v3238 = vrot.slane %v3237, 1
    %v3239 = vadd.f32 %v3237, %v3238
    %v3240 = vadd.f32 %v3198, %v3199
    %v3241 = vadd.f32 %v3240, %v3200
    %v3242 = vadd.f32 %v3241, %v3201
    %v3243 = vrot.slane %v3242, 4
    %v3244 = vadd.f32 %v3242, %v3243
    %v3245 = vrot.slane %v3244, 2
    %v3246 = vadd.f32 %v3244, %v3245
    %v3247 = vrot.slane %v3246, 1
    %v3248 = vadd.f32 %v3246, %v3247
    %v3249 = vadd.f32 %v3202, %v3203
    %v3250 = vadd.f32 %v3249, %v3204
    %v3251 = vadd.f32 %v3250, %v3205
    %v3252 = vrot.slane %v3251, 4
    %v3253 = vadd.f32 %v3251, %v3252
    %v3254 = vrot.slane %v3253, 2
    %v3255 = vadd.f32 %v3253, %v3254
    %v3256 = vrot.slane %v3255, 1
    %v3257 = vadd.f32 %v3255, %v3256
    %v3258 = vadd.f32 %v3206, %v3207
    %v3259 = vadd.f32 %v3258, %v3208
    %v3260 = vadd.f32 %v3259, %v3209
    %v3261 = vrot.slane %v3260, 4
    %v3262 = vadd.f32 %v3260, %v3261
    %v3263 = vrot.slane %v3262, 2
    %v3264 = vadd.f32 %v3262, %v3263
    %v3265 = vrot.slane %v3264, 1
    %v3266 = vadd.f32 %v3264, %v3265
    %v3267 = vadd.f32 %v3210, %v3211
    %v3268 = vadd.f32 %v3267, %v3212
    %v3269 = vadd.f32 %v3268, %v3213
    %v3270 = vrot.slane %v3269, 4
    %v3271 = vadd.f32 %v3269, %v3270
    %v3272 = vrot.slane %v3271, 2
    %v3273 = vadd.f32 %v3271, %v3272
    %v3274 = vrot.slane %v3273, 1
    %v3275 = vadd.f32 %v3273, %v3274
    %v3276 = vadd.f32 %v3214, %v3215
    %v3277 = vadd.f32 %v3276, %v3216
    %v3278 = vadd.f32 %v3277, %v3217
    %v3279 = vrot.slane %v3278, 4
    %v3280 = vadd.f32 %v3278, %v3279
    %v3281 = vrot.slane %v3280, 2
    %v3282 = vadd.f32 %v3280, %v3281
    %v3283 = vrot.slane %v3282, 1
    %v3284 = vadd.f32 %v3282, %v3283
    %v3285 = vadd.f32 %v3218, %v3219
    %v3286 = vadd.f32 %v3285, %v3220
    %v3287 = vadd.f32 %v3286, %v3221
    %v3288 = vrot.slane %v3287, 4
    %v3289 = vadd.f32 %v3287, %v3288
    %v3290 = vrot.slane %v3289, 2
    %v3291 = vadd.f32 %v3289, %v3290
    %v3292 = vrot.slane %v3291, 1
    %v3293 = vadd.f32 %v3291, %v3292
    %v3294 = vmul.f32 %v2675, %v2492
    %v3295 = vmul.f32 %v2676, %v2495
    %v3296 = vmul.f32 %v2677, %v2500
    %v3297 = vmul.f32 %v2678, %v2503
    %v3298 = vmul.f32 %v2679, %v2492
    %v3299 = vmul.f32 %v2680, %v2495
    %v3300 = vmul.f32 %v2681, %v2500
    %v3301 = vmul.f32 %v2682, %v2503
    %v3302 = vmul.f32 %v2683, %v2492
    %v3303 = vmul.f32 %v2684, %v2495
    %v3304 = vmul.f32 %v2685, %v2500
    %v3305 = vmul.f32 %v2686, %v2503
    %v3306 = vmul.f32 %v2687, %v2492
    %v3307 = vmul.f32 %v2688, %v2495
    %v3308 = vmul.f32 %v2689, %v2500
    %v3309 = vmul.f32 %v2690, %v2503
    %v3310 = vmul.f32 %v2691, %v2492
    %v3311 = vmul.f32 %v2692, %v2495
    %v3312 = vmul.f32 %v2693, %v2500
    %v3313 = vmul.f32 %v2694, %v2503
    %v3314 = vmul.f32 %v2695, %v2492
    %v3315 = vmul.f32 %v2696, %v2495
    %v3316 = vmul.f32 %v2697, %v2500
    %v3317 = vmul.f32 %v2698, %v2503
    %v3318 = vmul.f32 %v2699, %v2492
    %v3319 = vmul.f32 %v2700, %v2495
    %v3320 = vmul.f32 %v2701, %v2500
    %v3321 = vmul.f32 %v2702, %v2503
    %v3322 = vmul.f32 %v2703, %v2492
    %v3323 = vmul.f32 %v2704, %v2495
    %v3324 = vmul.f32 %v2705, %v2500
    %v3325 = vmul.f32 %v2706, %v2503
    %v3326 = vadd.f32 %v3294, %v3295
    %v3327 = vadd.f32 %v3326, %v3296
    %v3328 = vadd.f32 %v3327, %v3297
    %v3329 = vrot.slane %v3328, 4
    %v3330 = vadd.f32 %v3328, %v3329
    %v3331 = vrot.slane %v3330, 2
    %v3332 = vadd.f32 %v3330, %v3331
    %v3333 = vrot.slane %v3332, 1
    %v3334 = vadd.f32 %v3332, %v3333
    %v3335 = vadd.f32 %v3298, %v3299
    %v3336 = vadd.f32 %v3335, %v3300
    %v3337 = vadd.f32 %v3336, %v3301
    %v3338 = vrot.slane %v3337, 4
    %v3339 = vadd.f32 %v3337, %v3338
    %v3340 = vrot.slane %v3339, 2
    %v3341 = vadd.f32 %v3339, %v3340
    %v3342 = vrot.slane %v3341, 1
    %v3343 = vadd.f32 %v3341, %v3342
    %v3344 = vadd.f32 %v3302, %v3303
    %v3345 = vadd.f32 %v3344, %v3304
    %v3346 = vadd.f32 %v3345, %v3305
    %v3347 = vrot.slane %v3346, 4
    %v3348 = vadd.f32 %v3346, %v3347
    %v3349 = vrot.slane %v3348, 2
    %v3350 = vadd.f32 %v3348, %v3349
    %v3351 = vrot.slane %v3350, 1
    %v3352 = vadd.f32 %v3350, %v3351
    %v3353 = vadd.f32 %v3306, %v3307
    %v3354 = vadd.f32 %v3353, %v3308
    %v3355 = vadd.f32 %v3354, %v3309
    %v3356 = vrot.slane %v3355, 4
    %v3357 = vadd.f32 %v3355, %v3356
    %v3358 = vrot.slane %v3357, 2
    %v3359 = vadd.f32 %v3357, %v3358
    %v3360 = vrot.slane %v3359, 1
    %v3361 = vadd.f32 %v3359, %v3360
    %v3362 = vadd.f32 %v3310, %v3311
    %v3363 = vadd.f32 %v3362, %v3312
    %v3364 = vadd.f32 %v3363, %v3313
    %v3365 = vrot.slane %v3364, 4
    %v3366 = vadd.f32 %v3364, %v3365
    %v3367 = vrot.slane %v3366, 2
    %v3368 = vadd.f32 %v3366, %v3367
    %v3369 = vrot.slane %v3368, 1
    %v3370 = vadd.f32 %v3368, %v3369
    %v3371 = vadd.f32 %v3314, %v3315
    %v3372 = vadd.f32 %v3371, %v3316
    %v3373 = vadd.f32 %v3372, %v3317
    %v3374 = vrot.slane %v3373, 4
    %v3375 = vadd.f32 %v3373, %v3374
    %v3376 = vrot.slane %v3375, 2
    %v3377 = vadd.f32 %v3375, %v3376
    %v3378 = vrot.slane %v3377, 1
    %v3379 = vadd.f32 %v3377, %v3378
    %v3380 = vadd.f32 %v3318, %v3319
    %v3381 = vadd.f32 %v3380, %v3320
    %v3382 = vadd.f32 %v3381, %v3321
    %v3383 = vrot.slane %v3382, 4
    %v3384 = vadd.f32 %v3382, %v3383
    %v3385 = vrot.slane %v3384, 2
    %v3386 = vadd.f32 %v3384, %v3385
    %v3387 = vrot.slane %v3386, 1
    %v3388 = vadd.f32 %v3386, %v3387
    %v3389 = vadd.f32 %v3322, %v3323
    %v3390 = vadd.f32 %v3389, %v3324
    %v3391 = vadd.f32 %v3390, %v3325
    %v3392 = vrot.slane %v3391, 4
    %v3393 = vadd.f32 %v3391, %v3392
    %v3394 = vrot.slane %v3393, 2
    %v3395 = vadd.f32 %v3393, %v3394
    %v3396 = vrot.slane %v3395, 1
    %v3397 = vadd.f32 %v3395, %v3396
    %v3398 = vmul.f32 %v2675, %v2645
    %v3399 = vmul.f32 %v2676, %v2648
    %v3400 = vmul.f32 %v2677, %v2653
    %v3401 = vmul.f32 %v2678, %v2656
    %v3402 = vmul.f32 %v2679, %v2645
    %v3403 = vmul.f32 %v2680, %v2648
    %v3404 = vmul.f32 %v2681, %v2653
    %v3405 = vmul.f32 %v2682, %v2656
    %v3406 = vmul.f32 %v2683, %v2645
    %v3407 = vmul.f32 %v2684, %v2648
    %v3408 = vmul.f32 %v2685, %v2653
    %v3409 = vmul.f32 %v2686, %v2656
    %v3410 = vmul.f32 %v2687, %v2645
    %v3411 = vmul.f32 %v2688, %v2648
    %v3412 = vmul.f32 %v2689, %v2653
    %v3413 = vmul.f32 %v2690, %v2656
    %v3414 = vmul.f32 %v2691, %v2645
    %v3415 = vmul.f32 %v2692, %v2648
    %v3416 = vmul.f32 %v2693, %v2653
    %v3417 = vmul.f32 %v2694, %v2656
    %v3418 = vmul.f32 %v2695, %v2645
    %v3419 = vmul.f32 %v2696, %v2648
    %v3420 = vmul.f32 %v2697, %v2653
    %v3421 = vmul.f32 %v2698, %v2656
    %v3422 = vmul.f32 %v2699, %v2645
    %v3423 = vmul.f32 %v2700, %v2648
    %v3424 = vmul.f32 %v2701, %v2653
    %v3425 = vmul.f32 %v2702, %v2656
    %v3426 = vmul.f32 %v2703, %v2645
    %v3427 = vmul.f32 %v2704, %v2648
    %v3428 = vmul.f32 %v2705, %v2653
    %v3429 = vmul.f32 %v2706, %v2656
    %v3430 = vadd.f32 %v3398, %v3399
    %v3431 = vadd.f32 %v3430, %v3400
    %v3432 = vadd.f32 %v3431, %v3401
    %v3433 = vrot.slane %v3432, 4
    %v3434 = vadd.f32 %v3432, %v3433
    %v3435 = vrot.slane %v3434, 2
    %v3436 = vadd.f32 %v3434, %v3435
    %v3437 = vrot.slane %v3436, 1
    %v3438 = vadd.f32 %v3436, %v3437
    %v3439 = vadd.f32 %v3402, %v3403
    %v3440 = vadd.f32 %v3439, %v3404
    %v3441 = vadd.f32 %v3440, %v3405
    %v3442 = vrot.slane %v3441, 4
    %v3443 = vadd.f32 %v3441, %v3442
    %v3444 = vrot.slane %v3443, 2
    %v3445 = vadd.f32 %v3443, %v3444
    %v3446 = vrot.slane %v3445, 1
    %v3447 = vadd.f32 %v3445, %v3446
    %v3448 = vadd.f32 %v3406, %v3407
    %v3449 = vadd.f32 %v3448, %v3408
    %v3450 = vadd.f32 %v3449, %v3409
    %v3451 = vrot.slane %v3450, 4
    %v3452 = vadd.f32 %v3450, %v3451
    %v3453 = vrot.slane %v3452, 2
    %v3454 = vadd.f32 %v3452, %v3453
    %v3455 = vrot.slane %v3454, 1
    %v3456 = vadd.f32 %v3454, %v3455
    %v3457 = vadd.f32 %v3410, %v3411
    %v3458 = vadd.f32 %v3457, %v3412
    %v3459 = vadd.f32 %v3458, %v3413
    %v3460 = vrot.slane %v3459, 4
    %v3461 = vadd.f32 %v3459, %v3460
    %v3462 = vrot.slane %v3461, 2
    %v3463 = vadd.f32 %v3461, %v3462
    %v3464 = vrot.slane %v3463, 1
    %v3465 = vadd.f32 %v3463, %v3464
    %v3466 = vadd.f32 %v3414, %v3415
    %v3467 = vadd.f32 %v3466, %v3416
    %v3468 = vadd.f32 %v3467, %v3417
    %v3469 = vrot.slane %v3468, 4
    %v3470 = vadd.f32 %v3468, %v3469
    %v3471 = vrot.slane %v3470, 2
    %v3472 = vadd.f32 %v3470, %v3471
    %v3473 = vrot.slane %v3472, 1
    %v3474 = vadd.f32 %v3472, %v3473
    %v3475 = vadd.f32 %v3418, %v3419
    %v3476 = vadd.f32 %v3475, %v3420
    %v3477 = vadd.f32 %v3476, %v3421
    %v3478 = vrot.slane %v3477, 4
    %v3479 = vadd.f32 %v3477, %v3478
    %v3480 = vrot.slane %v3479, 2
    %v3481 = vadd.f32 %v3479, %v3480
    %v3482 = vrot.slane %v3481, 1
    %v3483 = vadd.f32 %v3481, %v3482
    %v3484 = vadd.f32 %v3422, %v3423
    %v3485 = vadd.f32 %v3484, %v3424
    %v3486 = vadd.f32 %v3485, %v3425
    %v3487 = vrot.slane %v3486, 4
    %v3488 = vadd.f32 %v3486, %v3487
    %v3489 = vrot.slane %v3488, 2
    %v3490 = vadd.f32 %v3488, %v3489
    %v3491 = vrot.slane %v3490, 1
    %v3492 = vadd.f32 %v3490, %v3491
    %v3493 = vadd.f32 %v3426, %v3427
    %v3494 = vadd.f32 %v3493, %v3428
    %v3495 = vadd.f32 %v3494, %v3429
    %v3496 = vrot.slane %v3495, 4
    %v3497 = vadd.f32 %v3495, %v3496
    %v3498 = vrot.slane %v3497, 2
    %v3499 = vadd.f32 %v3497, %v3498
    %v3500 = vrot.slane %v3499, 1
    %v3501 = vadd.f32 %v3499, %v3500
    %v3502 = vmax.f32 %v2814, %v2918
    %v3503 = vmax.f32 %v2823, %v2927
    %v3504 = vmax.f32 %v2832, %v2936
    %v3505 = vmax.f32 %v2841, %v2945
    %v3506 = vmax.f32 %v2850, %v2954
    %v3507 = vmax.f32 %v2859, %v2963
    %v3508 = vmax.f32 %v2868, %v2972
    %v3509 = vmax.f32 %v2877, %v2981
    %v3510 = vmax.f32 %v3502, %v3022
    %v3511 = vmax.f32 %v3503, %v3031
    %v3512 = vmax.f32 %v3504, %v3040
    %v3513 = vmax.f32 %v3505, %v3049
    %v3514 = vmax.f32 %v3506, %v3058
    %v3515 = vmax.f32 %v3507, %v3067
    %v3516 = vmax.f32 %v3508, %v3076
    %v3517 = vmax.f32 %v3509, %v3085
    %v3518 = vmax.f32 %v3510, %v3126
    %v3519 = vmax.f32 %v3511, %v3135
    %v3520 = vmax.f32 %v3512, %v3144
    %v3521 = vmax.f32 %v3513, %v3153
    %v3522 = vmax.f32 %v3514, %v3162
    %v3523 = vmax.f32 %v3515, %v3171
    %v3524 = vmax.f32 %v3516, %v3180
    %v3525 = vmax.f32 %v3517, %v3189
    %v3526 = vmax.f32 %v3518, %v3230
    %v3527 = vmax.f32 %v3519, %v3239
    %v3528 = vmax.f32 %v3520, %v3248
    %v3529 = vmax.f32 %v3521, %v3257
    %v3530 = vmax.f32 %v3522, %v3266
    %v3531 = vmax.f32 %v3523, %v3275
    %v3532 = vmax.f32 %v3524, %v3284
    %v3533 = vmax.f32 %v3525, %v3293
    %v3534 = vmax.f32 %v3526, %v3334
    %v3535 = vmax.f32 %v3527, %v3343
    %v3536 = vmax.f32 %v3528, %v3352
    %v3537 = vmax.f32 %v3529, %v3361
    %v3538 = vmax.f32 %v3530, %v3370
    %v3539 = vmax.f32 %v3531, %v3379
    %v3540 = vmax.f32 %v3532, %v3388
    %v3541 = vmax.f32 %v3533, %v3397
    %v3542 = vmax.f32 %v3534, %v3438
    %v3543 = vmax.f32 %v3535, %v3447
    %v3544 = vmax.f32 %v3536, %v3456
    %v3545 = vmax.f32 %v3537, %v3465
    %v3546 = vmax.f32 %v3538, %v3474
    %v3547 = vmax.f32 %v3539, %v3483
    %v3548 = vmax.f32 %v3540, %v3492
    %v3549 = vmax.f32 %v3541, %v3501
    %v3550 = vsub.f32 %v2814, %v3542
    %v3551 = vsub.f32 %v2823, %v3543
    %v3552 = vsub.f32 %v2832, %v3544
    %v3553 = vsub.f32 %v2841, %v3545
    %v3554 = vsub.f32 %v2850, %v3546
    %v3555 = vsub.f32 %v2859, %v3547
    %v3556 = vsub.f32 %v2868, %v3548
    %v3557 = vsub.f32 %v2877, %v3549
    %v3558 = vmul.f32 %v3550, 1.442695
    %v3559 = vpow.pop %v3558
    %v3560 = vmul.f32 %v3551, 1.442695
    %v3561 = vpow.pop %v3560
    %v3562 = vmul.f32 %v3552, 1.442695
    %v3563 = vpow.pop %v3562
    %v3564 = vmul.f32 %v3553, 1.442695
    %v3565 = vpow.pop %v3564
    %v3566 = vmul.f32 %v3554, 1.442695
    %v3567 = vpow.pop %v3566
    %v3568 = vmul.f32 %v3555, 1.442695
    %v3569 = vpow.pop %v3568
    %v3570 = vmul.f32 %v3556, 1.442695
    %v3571 = vpow.pop %v3570
    %v3572 = vmul.f32 %v3557, 1.442695
    %v3573 = vpow.pop %v3572
    %v3574 = vsub.f32 %v2918, %v3542
    %v3575 = vsub.f32 %v2927, %v3543
    %v3576 = vsub.f32 %v2936, %v3544
    %v3577 = vsub.f32 %v2945, %v3545
    %v3578 = vsub.f32 %v2954, %v3546
    %v3579 = vsub.f32 %v2963, %v3547
    %v3580 = vsub.f32 %v2972, %v3548
    %v3581 = vsub.f32 %v2981, %v3549
    %v3582 = vmul.f32 %v3574, 1.442695
    %v3583 = vpow.pop %v3582
    %v3584 = vmul.f32 %v3575, 1.442695
    %v3585 = vpow.pop %v3584
    %v3586 = vmul.f32 %v3576, 1.442695
    %v3587 = vpow.pop %v3586
    %v3588 = vmul.f32 %v3577, 1.442695
    %v3589 = vpow.pop %v3588
    %v3590 = vmul.f32 %v3578, 1.442695
    %v3591 = vpow.pop %v3590
    %v3592 = vmul.f32 %v3579, 1.442695
    %v3593 = vpow.pop %v3592
    %v3594 = vmul.f32 %v3580, 1.442695
    %v3595 = vpow.pop %v3594
    %v3596 = vmul.f32 %v3581, 1.442695
    %v3597 = vpow.pop %v3596
    %v3598 = vsub.f32 %v3022, %v3542
    %v3599 = vsub.f32 %v3031, %v3543
    %v3600 = vsub.f32 %v3040, %v3544
    %v3601 = vsub.f32 %v3049, %v3545
    %v3602 = vsub.f32 %v3058, %v3546
    %v3603 = vsub.f32 %v3067, %v3547
    %v3604 = vsub.f32 %v3076, %v3548
    %v3605 = vsub.f32 %v3085, %v3549
    %v3606 = vmul.f32 %v3598, 1.442695
    %v3607 = vpow.pop %v3606
    %v3608 = vmul.f32 %v3599, 1.442695
    %v3609 = vpow.pop %v3608
    %v3610 = vmul.f32 %v3600, 1.442695
    %v3611 = vpow.pop %v3610
    %v3612 = vmul.f32 %v3601, 1.442695
    %v3613 = vpow.pop %v3612
    %v3614 = vmul.f32 %v3602, 1.442695
    %v3615 = vpow.pop %v3614
    %v3616 = vmul.f32 %v3603, 1.442695
    %v3617 = vpow.pop %v3616
    %v3618 = vmul.f32 %v3604, 1.442695
    %v3619 = vpow.pop %v3618
    %v3620 = vmul.f32 %v3605, 1.442695
    %v3621 = vpow.pop %v3620
    %v3622 = vsub.f32 %v3126, %v3542
    %v3623 = vsub.f32 %v3135, %v3543
    %v3624 = vsub.f32 %v3144, %v3544
    %v3625 = vsub.f32 %v3153, %v3545
    %v3626 = vsub.f32 %v3162, %v3546
    %v3627 = vsub.f32 %v3171, %v3547
    %v3628 = vsub.f32 %v3180, %v3548
    %v3629 = vsub.f32 %v3189, %v3549
    %v3630 = vmul.f32 %v3622, 1.442695
    %v3631 = vpow.pop %v3630
    %v3632 = vmul.f32 %v3623, 1.442695
    %v3633 = vpow.pop %v3632
    %v3634 = vmul.f32 %v3624, 1.442695
    %v3635 = vpow.pop %v3634
    %v3636 = vmul.f32 %v3625, 1.442695
    %v3637 = vpow.pop %v3636
    %v3638 = vmul.f32 %v3626, 1.442695
    %v3639 = vpow.pop %v3638
    %v3640 = vmul.f32 %v3627, 1.442695
    %v3641 = vpow.pop %v3640
    %v3642 = vmul.f32 %v3628, 1.442695
    %v3643 = vpow.pop %v3642
    %v3644 = vmul.f32 %v3629, 1.442695
    %v3645 = vpow.pop %v3644
    %v3646 = vsub.f32 %v3230, %v3542
    %v3647 = vsub.f32 %v3239, %v3543
    %v3648 = vsub.f32 %v3248, %v3544
    %v3649 = vsub.f32 %v3257, %v3545
    %v3650 = vsub.f32 %v3266, %v3546
    %v3651 = vsub.f32 %v3275, %v3547
    %v3652 = vsub.f32 %v3284, %v3548
    %v3653 = vsub.f32 %v3293, %v3549
    %v3654 = vmul.f32 %v3646, 1.442695
    %v3655 = vpow.pop %v3654
    %v3656 = vmul.f32 %v3647, 1.442695
    %v3657 = vpow.pop %v3656
    %v3658 = vmul.f32 %v3648, 1.442695
    %v3659 = vpow.pop %v3658
    %v3660 = vmul.f32 %v3649, 1.442695
    %v3661 = vpow.pop %v3660
    %v3662 = vmul.f32 %v3650, 1.442695
    %v3663 = vpow.pop %v3662
    %v3664 = vmul.f32 %v3651, 1.442695
    %v3665 = vpow.pop %v3664
    %v3666 = vmul.f32 %v3652, 1.442695
    %v3667 = vpow.pop %v3666
    %v3668 = vmul.f32 %v3653, 1.442695
    %v3669 = vpow.pop %v3668
    %v3670 = vsub.f32 %v3334, %v3542
    %v3671 = vsub.f32 %v3343, %v3543
    %v3672 = vsub.f32 %v3352, %v3544
    %v3673 = vsub.f32 %v3361, %v3545
    %v3674 = vsub.f32 %v3370, %v3546
    %v3675 = vsub.f32 %v3379, %v3547
    %v3676 = vsub.f32 %v3388, %v3548
    %v3677 = vsub.f32 %v3397, %v3549
    %v3678 = vmul.f32 %v3670, 1.442695
    %v3679 = vpow.pop %v3678
    %v3680 = vmul.f32 %v3671, 1.442695
    %v3681 = vpow.pop %v3680
    %v3682 = vmul.f32 %v3672, 1.442695
    %v3683 = vpow.pop %v3682
    %v3684 = vmul.f32 %v3673, 1.442695
    %v3685 = vpow.pop %v3684
    %v3686 = vmul.f32 %v3674, 1.442695
    %v3687 = vpow.pop %v3686
    %v3688 = vmul.f32 %v3675, 1.442695
    %v3689 = vpow.pop %v3688
    %v3690 = vmul.f32 %v3676, 1.442695
    %v3691 = vpow.pop %v3690
    %v3692 = vmul.f32 %v3677, 1.442695
    %v3693 = vpow.pop %v3692
    %v3694 = vsub.f32 %v3438, %v3542
    %v3695 = vsub.f32 %v3447, %v3543
    %v3696 = vsub.f32 %v3456, %v3544
    %v3697 = vsub.f32 %v3465, %v3545
    %v3698 = vsub.f32 %v3474, %v3546
    %v3699 = vsub.f32 %v3483, %v3547
    %v3700 = vsub.f32 %v3492, %v3548
    %v3701 = vsub.f32 %v3501, %v3549
    %v3702 = vmul.f32 %v3694, 1.442695
    %v3703 = vpow.pop %v3702
    %v3704 = vmul.f32 %v3695, 1.442695
    %v3705 = vpow.pop %v3704
    %v3706 = vmul.f32 %v3696, 1.442695
    %v3707 = vpow.pop %v3706
    %v3708 = vmul.f32 %v3697, 1.442695
    %v3709 = vpow.pop %v3708
    %v3710 = vmul.f32 %v3698, 1.442695
    %v3711 = vpow.pop %v3710
    %v3712 = vmul.f32 %v3699, 1.442695
    %v3713 = vpow.pop %v3712
    %v3714 = vmul.f32 %v3700, 1.442695
    %v3715 = vpow.pop %v3714
    %v3716 = vmul.f32 %v3701, 1.442695
    %v3717 = vpow.pop %v3716
    %v3718 = vadd.f32 %v3559, %v3583
    %v3719 = vadd.f32 %v3561, %v3585
    %v3720 = vadd.f32 %v3563, %v3587
    %v3721 = vadd.f32 %v3565, %v3589
    %v3722 = vadd.f32 %v3567, %v3591
    %v3723 = vadd.f32 %v3569, %v3593
    %v3724 = vadd.f32 %v3571, %v3595
    %v3725 = vadd.f32 %v3573, %v3597
    %v3726 = vadd.f32 %v3718, %v3607
    %v3727 = vadd.f32 %v3719, %v3609
    %v3728 = vadd.f32 %v3720, %v3611
    %v3729 = vadd.f32 %v3721, %v3613
    %v3730 = vadd.f32 %v3722, %v3615
    %v3731 = vadd.f32 %v3723, %v3617
    %v3732 = vadd.f32 %v3724, %v3619
    %v3733 = vadd.f32 %v3725, %v3621
    %v3734 = vadd.f32 %v3726, %v3631
    %v3735 = vadd.f32 %v3727, %v3633
    %v3736 = vadd.f32 %v3728, %v3635
    %v3737 = vadd.f32 %v3729, %v3637
    %v3738 = vadd.f32 %v3730, %v3639
    %v3739 = vadd.f32 %v3731, %v3641
    %v3740 = vadd.f32 %v3732, %v3643
    %v3741 = vadd.f32 %v3733, %v3645
    %v3742 = vadd.f32 %v3734, %v3655
    %v3743 = vadd.f32 %v3735, %v3657
    %v3744 = vadd.f32 %v3736, %v3659
    %v3745 = vadd.f32 %v3737, %v3661
    %v3746 = vadd.f32 %v3738, %v3663
    %v3747 = vadd.f32 %v3739, %v3665
    %v3748 = vadd.f32 %v3740, %v3667
    %v3749 = vadd.f32 %v3741, %v3669
    %v3750 = vadd.f32 %v3742, %v3679
    %v3751 = vadd.f32 %v3743, %v3681
    %v3752 = vadd.f32 %v3744, %v3683
    %v3753 = vadd.f32 %v3745, %v3685
    %v3754 = vadd.f32 %v3746, %v3687
    %v3755 = vadd.f32 %v3747, %v3689
    %v3756 = vadd.f32 %v3748, %v3691
    %v3757 = vadd.f32 %v3749, %v3693
    %v3758 = vadd.f32 %v3750, %v3703
    %v3759 = vadd.f32 %v3751, %v3705
    %v3760 = vadd.f32 %v3752, %v3707
    %v3761 = vadd.f32 %v3753, %v3709
    %v3762 = vadd.f32 %v3754, %v3711
    %v3763 = vadd.f32 %v3755, %v3713
    %v3764 = vadd.f32 %v3756, %v3715
    %v3765 = vadd.f32 %v3757, %v3717
    %v3766 = vrcp.pop %v3758
    %v3767 = vrcp.pop %v3759
    %v3768 = vrcp.pop %v3760
    %v3769 = vrcp.pop %v3761
    %v3770 = vrcp.pop %v3762
    %v3771 = vrcp.pop %v3763
    %v3772 = vrcp.pop %v3764
    %v3773 = vrcp.pop %v3765
    %v3774 = vrot.slane %v2771, 4
    %v3775 = vadd.f32 %v2771, %v3774
    %v3776 = vrot.slane %v3775, 2
    %v3777 = vadd.f32 %v3775, %v3776
    %v3778 = vrot.slane %v3777, 1
    %v3779 = vadd.f32 %v3777, %v3778
    %v3780 = vmax.f32 %v3779, 1.0
    %v3781 = vrcp.pop %v3780
    %vm3790 = vcmask 1041409
    %v3791 = vsel %vm3790, %v3767, %v3766
    %vm3792 = vcmask 1042434
    %v3793 = vsel %vm3792, %v3768, %v3791
    %vm3794 = vcmask 1043459
    %v3795 = vsel %vm3794, %v3769, %v3793
    %vm3796 = vcmask 1044484
    %v3797 = vsel %vm3796, %v3770, %v3795
    %vm3798 = vcmask 1045509
    %v3799 = vsel %vm3798, %v3771, %v3797
    %vm3800 = vcmask 1046534
    %v3801 = vsel %vm3800, %v3772, %v3799
    %vm3802 = vcmask 1047559
    %v3803 = vsel %vm3802, %v3773, %v3801
    %v3805 = vmul.f32 %v2771, %v3803
    %v3814 = vsel %vm3790, %v3561, %v3559
    %v3815 = vsel %vm3792, %v3563, %v3814
    %v3816 = vsel %vm3794, %v3565, %v3815
    %v3817 = vsel %vm3796, %v3567, %v3816
    %v3818 = vsel %vm3798, %v3569, %v3817
    %v3819 = vsel %vm3800, %v3571, %v3818
    %v3820 = vsel %vm3802, %v3573, %v3819
    %v3822 = vmul.f32 %v3805, %v3820
    %v3823 = vrot.slane %v3822, 4
    %v3824 = vadd.f32 %v3822, %v3823
    %v3825 = vrot.slane %v3824, 2
    %v3826 = vadd.f32 %v3824, %v3825
    %v3827 = vrot.slane %v3826, 1
    %v3828 = vadd.f32 %v3826, %v3827
    %v3829 = vmul.f32 %v3828, %v1743
    %v3830 = vmul.f32 %v3828, %v1746
    %v3831 = vmul.f32 %v3828, %v1751
    %v3832 = vmul.f32 %v3828, %v1754
    %v3833 = vadd.f32 %v3829, 0.0
    %v3834 = vadd.f32 %v3830, 0.0
    %v3835 = vadd.f32 %v3831, 0.0
    %v3836 = vadd.f32 %v3832, 0.0
    %v3845 = vsel %vm3790, %v3585, %v3583
    %v3846 = vsel %vm3792, %v3587, %v3845
    %v3847 = vsel %vm3794, %v3589, %v3846
    %v3848 = vsel %vm3796, %v3591, %v3847
    %v3849 = vsel %vm3798, %v3593, %v3848
    %v3850 = vsel %vm3800, %v3595, %v3849
    %v3851 = vsel %vm3802, %v3597, %v3850
    %v3853 = vmul.f32 %v3805, %v3851
    %v3854 = vrot.slane %v3853, 4
    %v3855 = vadd.f32 %v3853, %v3854
    %v3856 = vrot.slane %v3855, 2
    %v3857 = vadd.f32 %v3855, %v3856
    %v3858 = vrot.slane %v3857, 1
    %v3859 = vadd.f32 %v3857, %v3858
    %v3860 = vmul.f32 %v3859, %v1896
    %v3861 = vmul.f32 %v3859, %v1899
    %v3862 = vmul.f32 %v3859, %v1904
    %v3863 = vmul.f32 %v3859, %v1907
    %v3864 = vadd.f32 %v3833, %v3860
    %v3865 = vadd.f32 %v3834, %v3861
    %v3866 = vadd.f32 %v3835, %v3862
    %v3867 = vadd.f32 %v3836, %v3863
    %v3876 = vsel %vm3790, %v3609, %v3607
    %v3877 = vsel %vm3792, %v3611, %v3876
    %v3878 = vsel %vm3794, %v3613, %v3877
    %v3879 = vsel %vm3796, %v3615, %v3878
    %v3880 = vsel %vm3798, %v3617, %v3879
    %v3881 = vsel %vm3800, %v3619, %v3880
    %v3882 = vsel %vm3802, %v3621, %v3881
    %v3884 = vmul.f32 %v3805, %v3882
    %v3885 = vrot.slane %v3884, 4
    %v3886 = vadd.f32 %v3884, %v3885
    %v3887 = vrot.slane %v3886, 2
    %v3888 = vadd.f32 %v3886, %v3887
    %v3889 = vrot.slane %v3888, 1
    %v3890 = vadd.f32 %v3888, %v3889
    %v3891 = vmul.f32 %v3890, %v2049
    %v3892 = vmul.f32 %v3890, %v2052
    %v3893 = vmul.f32 %v3890, %v2057
    %v3894 = vmul.f32 %v3890, %v2060
    %v3895 = vadd.f32 %v3864, %v3891
    %v3896 = vadd.f32 %v3865, %v3892
    %v3897 = vadd.f32 %v3866, %v3893
    %v3898 = vadd.f32 %v3867, %v3894
    %v3907 = vsel %vm3790, %v3633, %v3631
    %v3908 = vsel %vm3792, %v3635, %v3907
    %v3909 = vsel %vm3794, %v3637, %v3908
    %v3910 = vsel %vm3796, %v3639, %v3909
    %v3911 = vsel %vm3798, %v3641, %v3910
    %v3912 = vsel %vm3800, %v3643, %v3911
    %v3913 = vsel %vm3802, %v3645, %v3912
    %v3915 = vmul.f32 %v3805, %v3913
    %v3916 = vrot.slane %v3915, 4
    %v3917 = vadd.f32 %v3915, %v3916
    %v3918 = vrot.slane %v3917, 2
    %v3919 = vadd.f32 %v3917, %v3918
    %v3920 = vrot.slane %v3919, 1
    %v3921 = vadd.f32 %v3919, %v3920
    %v3922 = vmul.f32 %v3921, %v2202
    %v3923 = vmul.f32 %v3921, %v2205
    %v3924 = vmul.f32 %v3921, %v2210
    %v3925 = vmul.f32 %v3921, %v2213
    %v3926 = vadd.f32 %v3895, %v3922
    %v3927 = vadd.f32 %v3896, %v3923
    %v3928 = vadd.f32 %v3897, %v3924
    %v3929 = vadd.f32 %v3898, %v3925
    %v3938 = vsel %vm3790, %v3657, %v3655
    %v3939 = vsel %vm3792, %v3659, %v3938
    %v3940 = vsel %vm3794, %v3661, %v3939
    %v3941 = vsel %vm3796, %v3663, %v3940
    %v3942 = vsel %vm3798, %v3665, %v3941
    %v3943 = vsel %vm3800, %v3667, %v3942
    %v3944 = vsel %vm3802, %v3669, %v3943
    %v3946 = vmul.f32 %v3805, %v3944
    %v3947 = vrot.slane %v3946, 4
    %v3948 = vadd.f32 %v3946, %v3947
    %v3949 = vrot.slane %v3948, 2
    %v3950 = vadd.f32 %v3948, %v3949
    %v3951 = vrot.slane %v3950, 1
    %v3952 = vadd.f32 %v3950, %v3951
    %v3953 = vmul.f32 %v3952, %v2355
    %v3954 = vmul.f32 %v3952, %v2358
    %v3955 = vmul.f32 %v3952, %v2363
    %v3956 = vmul.f32 %v3952, %v2366
    %v3957 = vadd.f32 %v3926, %v3953
    %v3958 = vadd.f32 %v3927, %v3954
    %v3959 = vadd.f32 %v3928, %v3955
    %v3960 = vadd.f32 %v3929, %v3956
    %v3969 = vsel %vm3790, %v3681, %v3679
    %v3970 = vsel %vm3792, %v3683, %v3969
    %v3971 = vsel %vm3794, %v3685, %v3970
    %v3972 = vsel %vm3796, %v3687, %v3971
    %v3973 = vsel %vm3798, %v3689, %v3972
    %v3974 = vsel %vm3800, %v3691, %v3973
    %v3975 = vsel %vm3802, %v3693, %v3974
    %v3977 = vmul.f32 %v3805, %v3975
    %v3978 = vrot.slane %v3977, 4
    %v3979 = vadd.f32 %v3977, %v3978
    %v3980 = vrot.slane %v3979, 2
    %v3981 = vadd.f32 %v3979, %v3980
    %v3982 = vrot.slane %v3981, 1
    %v3983 = vadd.f32 %v3981, %v3982
    %v3984 = vmul.f32 %v3983, %v2508
    %v3985 = vmul.f32 %v3983, %v2511
    %v3986 = vmul.f32 %v3983, %v2516
    %v3987 = vmul.f32 %v3983, %v2519
    %v3988 = vadd.f32 %v3957, %v3984
    %v3989 = vadd.f32 %v3958, %v3985
    %v3990 = vadd.f32 %v3959, %v3986
    %v3991 = vadd.f32 %v3960, %v3987
    %v4000 = vsel %vm3790, %v3705, %v3703
    %v4001 = vsel %vm3792, %v3707, %v4000
    %v4002 = vsel %vm3794, %v3709, %v4001
    %v4003 = vsel %vm3796, %v3711, %v4002
    %v4004 = vsel %vm3798, %v3713, %v4003
    %v4005 = vsel %vm3800, %v3715, %v4004
    %v4006 = vsel %vm3802, %v3717, %v4005
    %v4008 = vmul.f32 %v3805, %v4006
    %v4009 = vrot.slane %v4008, 4
    %v4010 = vadd.f32 %v4008, %v4009
    %v4011 = vrot.slane %v4010, 2
    %v4012 = vadd.f32 %v4010, %v4011
    %v4013 = vrot.slane %v4012, 1
    %v4014 = vadd.f32 %v4012, %v4013
    %v4015 = vmul.f32 %v4014, %v2661
    %v4016 = vmul.f32 %v4014, %v2664
    %v4017 = vmul.f32 %v4014, %v2669
    %v4018 = vmul.f32 %v4014, %v2672
    %v4019 = vadd.f32 %v3988, %v4015
    %v4020 = vadd.f32 %v3989, %v4016
    %v4021 = vadd.f32 %v3990, %v4017
    %v4022 = vadd.f32 %v3991, %v4018
    %v4023 = vmul.f32 %v4019, %v3781
    %v4024 = vmul.f32 %v4020, %v3781
    %v4025 = vmul.f32 %v4021, %v3781
    %v4026 = vmul.f32 %v4022, %v3781
    %v4027 = vmul.f32 %v2707, %v1711
    %v4028 = vmul.f32 %v2708, %v1714
    %v4029 = vmul.f32 %v2709, %v1719
    %v4030 = vmul.f32 %v2710, %v1722
    %v4031 = vmul.f32 %v2711, %v1711
    %v4032 = vmul.f32 %v2712, %v1714
    %v4033 = vmul.f32 %v2713, %v1719
    %v4034 = vmul.f32 %v2714, %v1722
    %v4035 = vmul.f32 %v2715, %v1711
    %v4036 = vmul.f32 %v2716, %v1714
    %v4037 = vmul.f32 %v2717, %v1719
    %v4038 = vmul.f32 %v2718, %v1722
    %v4039 = vmul.f32 %v2719, %v1711
    %v4040 = vmul.f32 %v2720, %v1714
    %v4041 = vmul.f32 %v2721, %v1719
    %v4042 = vmul.f32 %v2722, %v1722
    %v4043 = vmul.f32 %v2723, %v1711
    %v4044 = vmul.f32 %v2724, %v1714
    %v4045 = vmul.f32 %v2725, %v1719
    %v4046 = vmul.f32 %v2726, %v1722
    %v4047 = vmul.f32 %v2727, %v1711
    %v4048 = vmul.f32 %v2728, %v1714
    %v4049 = vmul.f32 %v2729, %v1719
    %v4050 = vmul.f32 %v2730, %v1722
    %v4051 = vmul.f32 %v2731, %v1711
    %v4052 = vmul.f32 %v2732, %v1714
    %v4053 = vmul.f32 %v2733, %v1719
    %v4054 = vmul.f32 %v2734, %v1722
    %v4055 = vmul.f32 %v2735, %v1711
    %v4056 = vmul.f32 %v2736, %v1714
    %v4057 = vmul.f32 %v2737, %v1719
    %v4058 = vmul.f32 %v2738, %v1722
    %v4059 = vadd.f32 %v4027, %v4028
    %v4060 = vadd.f32 %v4059, %v4029
    %v4061 = vadd.f32 %v4060, %v4030
    %v4062 = vrot.slane %v4061, 4
    %v4063 = vadd.f32 %v4061, %v4062
    %v4064 = vrot.slane %v4063, 2
    %v4065 = vadd.f32 %v4063, %v4064
    %v4066 = vrot.slane %v4065, 1
    %v4067 = vadd.f32 %v4065, %v4066
    %v4068 = vadd.f32 %v4031, %v4032
    %v4069 = vadd.f32 %v4068, %v4033
    %v4070 = vadd.f32 %v4069, %v4034
    %v4071 = vrot.slane %v4070, 4
    %v4072 = vadd.f32 %v4070, %v4071
    %v4073 = vrot.slane %v4072, 2
    %v4074 = vadd.f32 %v4072, %v4073
    %v4075 = vrot.slane %v4074, 1
    %v4076 = vadd.f32 %v4074, %v4075
    %v4077 = vadd.f32 %v4035, %v4036
    %v4078 = vadd.f32 %v4077, %v4037
    %v4079 = vadd.f32 %v4078, %v4038
    %v4080 = vrot.slane %v4079, 4
    %v4081 = vadd.f32 %v4079, %v4080
    %v4082 = vrot.slane %v4081, 2
    %v4083 = vadd.f32 %v4081, %v4082
    %v4084 = vrot.slane %v4083, 1
    %v4085 = vadd.f32 %v4083, %v4084
    %v4086 = vadd.f32 %v4039, %v4040
    %v4087 = vadd.f32 %v4086, %v4041
    %v4088 = vadd.f32 %v4087, %v4042
    %v4089 = vrot.slane %v4088, 4
    %v4090 = vadd.f32 %v4088, %v4089
    %v4091 = vrot.slane %v4090, 2
    %v4092 = vadd.f32 %v4090, %v4091
    %v4093 = vrot.slane %v4092, 1
    %v4094 = vadd.f32 %v4092, %v4093
    %v4095 = vadd.f32 %v4043, %v4044
    %v4096 = vadd.f32 %v4095, %v4045
    %v4097 = vadd.f32 %v4096, %v4046
    %v4098 = vrot.slane %v4097, 4
    %v4099 = vadd.f32 %v4097, %v4098
    %v4100 = vrot.slane %v4099, 2
    %v4101 = vadd.f32 %v4099, %v4100
    %v4102 = vrot.slane %v4101, 1
    %v4103 = vadd.f32 %v4101, %v4102
    %v4104 = vadd.f32 %v4047, %v4048
    %v4105 = vadd.f32 %v4104, %v4049
    %v4106 = vadd.f32 %v4105, %v4050
    %v4107 = vrot.slane %v4106, 4
    %v4108 = vadd.f32 %v4106, %v4107
    %v4109 = vrot.slane %v4108, 2
    %v4110 = vadd.f32 %v4108, %v4109
    %v4111 = vrot.slane %v4110, 1
    %v4112 = vadd.f32 %v4110, %v4111
    %v4113 = vadd.f32 %v4051, %v4052
    %v4114 = vadd.f32 %v4113, %v4053
    %v4115 = vadd.f32 %v4114, %v4054
    %v4116 = vrot.slane %v4115, 4
    %v4117 = vadd.f32 %v4115, %v4116
    %v4118 = vrot.slane %v4117, 2
    %v4119 = vadd.f32 %v4117, %v4118
    %v4120 = vrot.slane %v4119, 1
    %v4121 = vadd.f32 %v4119, %v4120
    %v4122 = vadd.f32 %v4055, %v4056
    %v4123 = vadd.f32 %v4122, %v4057
    %v4124 = vadd.f32 %v4123, %v4058
    %v4125 = vrot.slane %v4124, 4
    %v4126 = vadd.f32 %v4124, %v4125
    %v4127 = vrot.slane %v4126, 2
    %v4128 = vadd.f32 %v4126, %v4127
    %v4129 = vrot.slane %v4128, 1
    %v4130 = vadd.f32 %v4128, %v4129
    %v4132 = vrot.slane %v2773, 1
    %v4133 = vrot.slane %v2773, 2
    %v4134 = vrot.slane %v2773, 3
    %v4135 = vrot.slane %v2773, 4
    %v4136 = vrot.slane %v2773, 5
    %v4137 = vrot.slane %v2773, 6
    %v4138 = vrot.slane %v2773, 7
    %v4147 = vadd.f32 %v4067, %v2773
    %v4148 = vadd.f32 %v4076, %v4132
    %v4149 = vadd.f32 %v4085, %v4133
    %v4150 = vadd.f32 %v4094, %v4134
    %v4151 = vadd.f32 %v4103, %v4135
    %v4152 = vadd.f32 %v4112, %v4136
    %v4153 = vadd.f32 %v4121, %v4137
    %v4154 = vadd.f32 %v4130, %v4138
    %vm4155 = vcmask 1040384
    %v4156 = vsel %vm4155, %v4147, -inf
    %v4157 = vsel %vm4155, %v4148, -inf
    %v4158 = vsel %vm4155, %v4149, -inf
    %v4159 = vsel %vm4155, %v4150, -inf
    %v4160 = vsel %vm4155, %v4151, -inf
    %v4161 = vmax.f32 %v4156, %v4160
    %v4162 = vsel %vm4155, %v4152, -inf
    %v4163 = vmax.f32 %v4157, %v4162
    %v4164 = vsel %vm4155, %v4153, -inf
    %v4165 = vmax.f32 %v4158, %v4164
    %v4166 = vsel %vm4155, %v4154, -inf
    %v4167 = vmax.f32 %v4159, %v4166
    %v4168 = vmax.f32 %v4161, %v4163
    %v4169 = vmax.f32 %v4165, %v4167
    %v4170 = vmax.f32 %v4168, %v4169
    %v4171 = vlaneseq
    %v4172 = vshrl.u32 %v4171, 7
    %v4173 = vsub.s32 0, %v4172
    %v4174 = vrot.slane %v4170, %v4173
    %v4175 = vsub.f32 %v4147, %v4174
    %v4176 = vsub.f32 %v4148, %v4174
    %v4177 = vsub.f32 %v4149, %v4174
    %v4178 = vsub.f32 %v4150, %v4174
    %v4179 = vsub.f32 %v4151, %v4174
    %v4180 = vsub.f32 %v4152, %v4174
    %v4181 = vsub.f32 %v4153, %v4174
    %v4182 = vsub.f32 %v4154, %v4174
    %v4183 = vmul.f32 %v4175, 1.442695
    %v4184 = vpow.pop %v4183
    %v4185 = vmul.f32 %v4176, 1.442695
    %v4186 = vpow.pop %v4185
    %v4187 = vmul.f32 %v4177, 1.442695
    %v4188 = vpow.pop %v4187
    %v4189 = vmul.f32 %v4178, 1.442695
    %v4190 = vpow.pop %v4189
    %v4191 = vmul.f32 %v4179, 1.442695
    %v4192 = vpow.pop %v4191
    %v4193 = vmul.f32 %v4180, 1.442695
    %v4194 = vpow.pop %v4193
    %v4195 = vmul.f32 %v4181, 1.442695
    %v4196 = vpow.pop %v4195
    %v4197 = vmul.f32 %v4182, 1.442695
    %v4198 = vpow.pop %v4197
    %v4207 = vrot.slane %v4186, 7
    %v4208 = vsel %vm3790, %v4207, %v4184
    %v4209 = vrot.slane %v4188, 6
    %v4210 = vsel %vm3792, %v4209, %v4208
    %v4211 = vrot.slane %v4190, 5
    %v4212 = vsel %vm3794, %v4211, %v4210
    %v4213 = vrot.slane %v4192, 4
    %v4214 = vsel %vm3796, %v4213, %v4212
    %v4215 = vrot.slane %v4194, 3
    %v4216 = vsel %vm3798, %v4215, %v4214
    %v4217 = vrot.slane %v4196, 2
    %v4218 = vsel %vm3800, %v4217, %v4216
    %v4219 = vrot.slane %v4198, 1
    %v4220 = vsel %vm3802, %v4219, %v4218
    %v4222 = vrot.slane %v4220, 4
    %v4223 = vadd.f32 %v4220, %v4222
    %v4224 = vrot.slane %v4223, 2
    %v4225 = vadd.f32 %v4223, %v4224
    %v4226 = vrot.slane %v4225, 1
    %v4227 = vadd.f32 %v4225, %v4226
    %v4228 = vrcp.pop %v4227
    %v4229 = vlaneseq
    %v4230 = vshrl.u32 %v4229, 7
    %v4231 = vsub.s32 0, %v4230
    %v4232 = vrot.slane %v4228, %v4231
    %v4233 = vmul.f32 %v4184, %v4232
    %v4234 = vmul.f32 %v4186, %v4232
    %v4235 = vmul.f32 %v4188, %v4232
    %v4236 = vmul.f32 %v4190, %v4232
    %v4237 = vmul.f32 %v4192, %v4232
    %v4238 = vmul.f32 %v4194, %v4232
    %v4239 = vmul.f32 %v4196, %v4232
    %v4240 = vmul.f32 %v4198, %v4232
    %v4241 = vadd.f32 %v4233, 0.0
    %v4242 = vadd.f32 %v4234, 0.0
    %v4243 = vadd.f32 %v4235, 0.0
    %v4244 = vadd.f32 %v4236, 0.0
    %v4245 = vadd.f32 %v4237, 0.0
    %v4246 = vadd.f32 %v4238, 0.0
    %v4247 = vadd.f32 %v4239, 0.0
    %v4248 = vadd.f32 %v4240, 0.0
    %v4249 = vmul.f32 %v2707, %v1864
    %v4250 = vmul.f32 %v2708, %v1867
    %v4251 = vmul.f32 %v2709, %v1872
    %v4252 = vmul.f32 %v2710, %v1875
    %v4253 = vmul.f32 %v2711, %v1864
    %v4254 = vmul.f32 %v2712, %v1867
    %v4255 = vmul.f32 %v2713, %v1872
    %v4256 = vmul.f32 %v2714, %v1875
    %v4257 = vmul.f32 %v2715, %v1864
    %v4258 = vmul.f32 %v2716, %v1867
    %v4259 = vmul.f32 %v2717, %v1872
    %v4260 = vmul.f32 %v2718, %v1875
    %v4261 = vmul.f32 %v2719, %v1864
    %v4262 = vmul.f32 %v2720, %v1867
    %v4263 = vmul.f32 %v2721, %v1872
    %v4264 = vmul.f32 %v2722, %v1875
    %v4265 = vmul.f32 %v2723, %v1864
    %v4266 = vmul.f32 %v2724, %v1867
    %v4267 = vmul.f32 %v2725, %v1872
    %v4268 = vmul.f32 %v2726, %v1875
    %v4269 = vmul.f32 %v2727, %v1864
    %v4270 = vmul.f32 %v2728, %v1867
    %v4271 = vmul.f32 %v2729, %v1872
    %v4272 = vmul.f32 %v2730, %v1875
    %v4273 = vmul.f32 %v2731, %v1864
    %v4274 = vmul.f32 %v2732, %v1867
    %v4275 = vmul.f32 %v2733, %v1872
    %v4276 = vmul.f32 %v2734, %v1875
    %v4277 = vmul.f32 %v2735, %v1864
    %v4278 = vmul.f32 %v2736, %v1867
    %v4279 = vmul.f32 %v2737, %v1872
    %v4280 = vmul.f32 %v2738, %v1875
    %v4281 = vadd.f32 %v4249, %v4250
    %v4282 = vadd.f32 %v4281, %v4251
    %v4283 = vadd.f32 %v4282, %v4252
    %v4284 = vrot.slane %v4283, 4
    %v4285 = vadd.f32 %v4283, %v4284
    %v4286 = vrot.slane %v4285, 2
    %v4287 = vadd.f32 %v4285, %v4286
    %v4288 = vrot.slane %v4287, 1
    %v4289 = vadd.f32 %v4287, %v4288
    %v4290 = vadd.f32 %v4253, %v4254
    %v4291 = vadd.f32 %v4290, %v4255
    %v4292 = vadd.f32 %v4291, %v4256
    %v4293 = vrot.slane %v4292, 4
    %v4294 = vadd.f32 %v4292, %v4293
    %v4295 = vrot.slane %v4294, 2
    %v4296 = vadd.f32 %v4294, %v4295
    %v4297 = vrot.slane %v4296, 1
    %v4298 = vadd.f32 %v4296, %v4297
    %v4299 = vadd.f32 %v4257, %v4258
    %v4300 = vadd.f32 %v4299, %v4259
    %v4301 = vadd.f32 %v4300, %v4260
    %v4302 = vrot.slane %v4301, 4
    %v4303 = vadd.f32 %v4301, %v4302
    %v4304 = vrot.slane %v4303, 2
    %v4305 = vadd.f32 %v4303, %v4304
    %v4306 = vrot.slane %v4305, 1
    %v4307 = vadd.f32 %v4305, %v4306
    %v4308 = vadd.f32 %v4261, %v4262
    %v4309 = vadd.f32 %v4308, %v4263
    %v4310 = vadd.f32 %v4309, %v4264
    %v4311 = vrot.slane %v4310, 4
    %v4312 = vadd.f32 %v4310, %v4311
    %v4313 = vrot.slane %v4312, 2
    %v4314 = vadd.f32 %v4312, %v4313
    %v4315 = vrot.slane %v4314, 1
    %v4316 = vadd.f32 %v4314, %v4315
    %v4317 = vadd.f32 %v4265, %v4266
    %v4318 = vadd.f32 %v4317, %v4267
    %v4319 = vadd.f32 %v4318, %v4268
    %v4320 = vrot.slane %v4319, 4
    %v4321 = vadd.f32 %v4319, %v4320
    %v4322 = vrot.slane %v4321, 2
    %v4323 = vadd.f32 %v4321, %v4322
    %v4324 = vrot.slane %v4323, 1
    %v4325 = vadd.f32 %v4323, %v4324
    %v4326 = vadd.f32 %v4269, %v4270
    %v4327 = vadd.f32 %v4326, %v4271
    %v4328 = vadd.f32 %v4327, %v4272
    %v4329 = vrot.slane %v4328, 4
    %v4330 = vadd.f32 %v4328, %v4329
    %v4331 = vrot.slane %v4330, 2
    %v4332 = vadd.f32 %v4330, %v4331
    %v4333 = vrot.slane %v4332, 1
    %v4334 = vadd.f32 %v4332, %v4333
    %v4335 = vadd.f32 %v4273, %v4274
    %v4336 = vadd.f32 %v4335, %v4275
    %v4337 = vadd.f32 %v4336, %v4276
    %v4338 = vrot.slane %v4337, 4
    %v4339 = vadd.f32 %v4337, %v4338
    %v4340 = vrot.slane %v4339, 2
    %v4341 = vadd.f32 %v4339, %v4340
    %v4342 = vrot.slane %v4341, 1
    %v4343 = vadd.f32 %v4341, %v4342
    %v4344 = vadd.f32 %v4277, %v4278
    %v4345 = vadd.f32 %v4344, %v4279
    %v4346 = vadd.f32 %v4345, %v4280
    %v4347 = vrot.slane %v4346, 4
    %v4348 = vadd.f32 %v4346, %v4347
    %v4349 = vrot.slane %v4348, 2
    %v4350 = vadd.f32 %v4348, %v4349
    %v4351 = vrot.slane %v4350, 1
    %v4352 = vadd.f32 %v4350, %v4351
    %v4353 = vadd.f32 %v4289, %v2773
    %v4354 = vadd.f32 %v4298, %v4132
    %v4355 = vadd.f32 %v4307, %v4133
    %v4356 = vadd.f32 %v4316, %v4134
    %v4357 = vadd.f32 %v4325, %v4135
    %v4358 = vadd.f32 %v4334, %v4136
    %v4359 = vadd.f32 %v4343, %v4137
    %v4360 = vadd.f32 %v4352, %v4138
    %v4361 = vsel %vm4155, %v4353, -inf
    %v4362 = vsel %vm4155, %v4354, -inf
    %v4363 = vsel %vm4155, %v4355, -inf
    %v4364 = vsel %vm4155, %v4356, -inf
    %v4365 = vsel %vm4155, %v4357, -inf
    %v4366 = vmax.f32 %v4361, %v4365
    %v4367 = vsel %vm4155, %v4358, -inf
    %v4368 = vmax.f32 %v4362, %v4367
    %v4369 = vsel %vm4155, %v4359, -inf
    %v4370 = vmax.f32 %v4363, %v4369
    %v4371 = vsel %vm4155, %v4360, -inf
    %v4372 = vmax.f32 %v4364, %v4371
    %v4373 = vmax.f32 %v4366, %v4368
    %v4374 = vmax.f32 %v4370, %v4372
    %v4375 = vmax.f32 %v4373, %v4374
    %v4376 = vlaneseq
    %v4377 = vshrl.u32 %v4376, 7
    %v4378 = vsub.s32 0, %v4377
    %v4379 = vrot.slane %v4375, %v4378
    %v4380 = vsub.f32 %v4353, %v4379
    %v4381 = vsub.f32 %v4354, %v4379
    %v4382 = vsub.f32 %v4355, %v4379
    %v4383 = vsub.f32 %v4356, %v4379
    %v4384 = vsub.f32 %v4357, %v4379
    %v4385 = vsub.f32 %v4358, %v4379
    %v4386 = vsub.f32 %v4359, %v4379
    %v4387 = vsub.f32 %v4360, %v4379
    %v4388 = vmul.f32 %v4380, 1.442695
    %v4389 = vpow.pop %v4388
    %v4390 = vmul.f32 %v4381, 1.442695
    %v4391 = vpow.pop %v4390
    %v4392 = vmul.f32 %v4382, 1.442695
    %v4393 = vpow.pop %v4392
    %v4394 = vmul.f32 %v4383, 1.442695
    %v4395 = vpow.pop %v4394
    %v4396 = vmul.f32 %v4384, 1.442695
    %v4397 = vpow.pop %v4396
    %v4398 = vmul.f32 %v4385, 1.442695
    %v4399 = vpow.pop %v4398
    %v4400 = vmul.f32 %v4386, 1.442695
    %v4401 = vpow.pop %v4400
    %v4402 = vmul.f32 %v4387, 1.442695
    %v4403 = vpow.pop %v4402
    %v4412 = vrot.slane %v4391, 7
    %v4413 = vsel %vm3790, %v4412, %v4389
    %v4414 = vrot.slane %v4393, 6
    %v4415 = vsel %vm3792, %v4414, %v4413
    %v4416 = vrot.slane %v4395, 5
    %v4417 = vsel %vm3794, %v4416, %v4415
    %v4418 = vrot.slane %v4397, 4
    %v4419 = vsel %vm3796, %v4418, %v4417
    %v4420 = vrot.slane %v4399, 3
    %v4421 = vsel %vm3798, %v4420, %v4419
    %v4422 = vrot.slane %v4401, 2
    %v4423 = vsel %vm3800, %v4422, %v4421
    %v4424 = vrot.slane %v4403, 1
    %v4425 = vsel %vm3802, %v4424, %v4423
    %v4427 = vrot.slane %v4425, 4
    %v4428 = vadd.f32 %v4425, %v4427
    %v4429 = vrot.slane %v4428, 2
    %v4430 = vadd.f32 %v4428, %v4429
    %v4431 = vrot.slane %v4430, 1
    %v4432 = vadd.f32 %v4430, %v4431
    %v4433 = vrcp.pop %v4432
    %v4434 = vlaneseq
    %v4435 = vshrl.u32 %v4434, 7
    %v4436 = vsub.s32 0, %v4435
    %v4437 = vrot.slane %v4433, %v4436
    %v4438 = vmul.f32 %v4389, %v4437
    %v4439 = vmul.f32 %v4391, %v4437
    %v4440 = vmul.f32 %v4393, %v4437
    %v4441 = vmul.f32 %v4395, %v4437
    %v4442 = vmul.f32 %v4397, %v4437
    %v4443 = vmul.f32 %v4399, %v4437
    %v4444 = vmul.f32 %v4401, %v4437
    %v4445 = vmul.f32 %v4403, %v4437
    %v4446 = vadd.f32 %v4241, %v4438
    %v4447 = vadd.f32 %v4242, %v4439
    %v4448 = vadd.f32 %v4243, %v4440
    %v4449 = vadd.f32 %v4244, %v4441
    %v4450 = vadd.f32 %v4245, %v4442
    %v4451 = vadd.f32 %v4246, %v4443
    %v4452 = vadd.f32 %v4247, %v4444
    %v4453 = vadd.f32 %v4248, %v4445
    %v4454 = vmul.f32 %v2707, %v2017
    %v4455 = vmul.f32 %v2708, %v2020
    %v4456 = vmul.f32 %v2709, %v2025
    %v4457 = vmul.f32 %v2710, %v2028
    %v4458 = vmul.f32 %v2711, %v2017
    %v4459 = vmul.f32 %v2712, %v2020
    %v4460 = vmul.f32 %v2713, %v2025
    %v4461 = vmul.f32 %v2714, %v2028
    %v4462 = vmul.f32 %v2715, %v2017
    %v4463 = vmul.f32 %v2716, %v2020
    %v4464 = vmul.f32 %v2717, %v2025
    %v4465 = vmul.f32 %v2718, %v2028
    %v4466 = vmul.f32 %v2719, %v2017
    %v4467 = vmul.f32 %v2720, %v2020
    %v4468 = vmul.f32 %v2721, %v2025
    %v4469 = vmul.f32 %v2722, %v2028
    %v4470 = vmul.f32 %v2723, %v2017
    %v4471 = vmul.f32 %v2724, %v2020
    %v4472 = vmul.f32 %v2725, %v2025
    %v4473 = vmul.f32 %v2726, %v2028
    %v4474 = vmul.f32 %v2727, %v2017
    %v4475 = vmul.f32 %v2728, %v2020
    %v4476 = vmul.f32 %v2729, %v2025
    %v4477 = vmul.f32 %v2730, %v2028
    %v4478 = vmul.f32 %v2731, %v2017
    %v4479 = vmul.f32 %v2732, %v2020
    %v4480 = vmul.f32 %v2733, %v2025
    %v4481 = vmul.f32 %v2734, %v2028
    %v4482 = vmul.f32 %v2735, %v2017
    %v4483 = vmul.f32 %v2736, %v2020
    %v4484 = vmul.f32 %v2737, %v2025
    %v4485 = vmul.f32 %v2738, %v2028
    %v4486 = vadd.f32 %v4454, %v4455
    %v4487 = vadd.f32 %v4486, %v4456
    %v4488 = vadd.f32 %v4487, %v4457
    %v4489 = vrot.slane %v4488, 4
    %v4490 = vadd.f32 %v4488, %v4489
    %v4491 = vrot.slane %v4490, 2
    %v4492 = vadd.f32 %v4490, %v4491
    %v4493 = vrot.slane %v4492, 1
    %v4494 = vadd.f32 %v4492, %v4493
    %v4495 = vadd.f32 %v4458, %v4459
    %v4496 = vadd.f32 %v4495, %v4460
    %v4497 = vadd.f32 %v4496, %v4461
    %v4498 = vrot.slane %v4497, 4
    %v4499 = vadd.f32 %v4497, %v4498
    %v4500 = vrot.slane %v4499, 2
    %v4501 = vadd.f32 %v4499, %v4500
    %v4502 = vrot.slane %v4501, 1
    %v4503 = vadd.f32 %v4501, %v4502
    %v4504 = vadd.f32 %v4462, %v4463
    %v4505 = vadd.f32 %v4504, %v4464
    %v4506 = vadd.f32 %v4505, %v4465
    %v4507 = vrot.slane %v4506, 4
    %v4508 = vadd.f32 %v4506, %v4507
    %v4509 = vrot.slane %v4508, 2
    %v4510 = vadd.f32 %v4508, %v4509
    %v4511 = vrot.slane %v4510, 1
    %v4512 = vadd.f32 %v4510, %v4511
    %v4513 = vadd.f32 %v4466, %v4467
    %v4514 = vadd.f32 %v4513, %v4468
    %v4515 = vadd.f32 %v4514, %v4469
    %v4516 = vrot.slane %v4515, 4
    %v4517 = vadd.f32 %v4515, %v4516
    %v4518 = vrot.slane %v4517, 2
    %v4519 = vadd.f32 %v4517, %v4518
    %v4520 = vrot.slane %v4519, 1
    %v4521 = vadd.f32 %v4519, %v4520
    %v4522 = vadd.f32 %v4470, %v4471
    %v4523 = vadd.f32 %v4522, %v4472
    %v4524 = vadd.f32 %v4523, %v4473
    %v4525 = vrot.slane %v4524, 4
    %v4526 = vadd.f32 %v4524, %v4525
    %v4527 = vrot.slane %v4526, 2
    %v4528 = vadd.f32 %v4526, %v4527
    %v4529 = vrot.slane %v4528, 1
    %v4530 = vadd.f32 %v4528, %v4529
    %v4531 = vadd.f32 %v4474, %v4475
    %v4532 = vadd.f32 %v4531, %v4476
    %v4533 = vadd.f32 %v4532, %v4477
    %v4534 = vrot.slane %v4533, 4
    %v4535 = vadd.f32 %v4533, %v4534
    %v4536 = vrot.slane %v4535, 2
    %v4537 = vadd.f32 %v4535, %v4536
    %v4538 = vrot.slane %v4537, 1
    %v4539 = vadd.f32 %v4537, %v4538
    %v4540 = vadd.f32 %v4478, %v4479
    %v4541 = vadd.f32 %v4540, %v4480
    %v4542 = vadd.f32 %v4541, %v4481
    %v4543 = vrot.slane %v4542, 4
    %v4544 = vadd.f32 %v4542, %v4543
    %v4545 = vrot.slane %v4544, 2
    %v4546 = vadd.f32 %v4544, %v4545
    %v4547 = vrot.slane %v4546, 1
    %v4548 = vadd.f32 %v4546, %v4547
    %v4549 = vadd.f32 %v4482, %v4483
    %v4550 = vadd.f32 %v4549, %v4484
    %v4551 = vadd.f32 %v4550, %v4485
    %v4552 = vrot.slane %v4551, 4
    %v4553 = vadd.f32 %v4551, %v4552
    %v4554 = vrot.slane %v4553, 2
    %v4555 = vadd.f32 %v4553, %v4554
    %v4556 = vrot.slane %v4555, 1
    %v4557 = vadd.f32 %v4555, %v4556
    %v4558 = vadd.f32 %v4494, %v2773
    %v4559 = vadd.f32 %v4503, %v4132
    %v4560 = vadd.f32 %v4512, %v4133
    %v4561 = vadd.f32 %v4521, %v4134
    %v4562 = vadd.f32 %v4530, %v4135
    %v4563 = vadd.f32 %v4539, %v4136
    %v4564 = vadd.f32 %v4548, %v4137
    %v4565 = vadd.f32 %v4557, %v4138
    %v4566 = vsel %vm4155, %v4558, -inf
    %v4567 = vsel %vm4155, %v4559, -inf
    %v4568 = vsel %vm4155, %v4560, -inf
    %v4569 = vsel %vm4155, %v4561, -inf
    %v4570 = vsel %vm4155, %v4562, -inf
    %v4571 = vmax.f32 %v4566, %v4570
    %v4572 = vsel %vm4155, %v4563, -inf
    %v4573 = vmax.f32 %v4567, %v4572
    %v4574 = vsel %vm4155, %v4564, -inf
    %v4575 = vmax.f32 %v4568, %v4574
    %v4576 = vsel %vm4155, %v4565, -inf
    %v4577 = vmax.f32 %v4569, %v4576
    %v4578 = vmax.f32 %v4571, %v4573
    %v4579 = vmax.f32 %v4575, %v4577
    %v4580 = vmax.f32 %v4578, %v4579
    %v4581 = vlaneseq
    %v4582 = vshrl.u32 %v4581, 7
    %v4583 = vsub.s32 0, %v4582
    %v4584 = vrot.slane %v4580, %v4583
    %v4585 = vsub.f32 %v4558, %v4584
    %v4586 = vsub.f32 %v4559, %v4584
    %v4587 = vsub.f32 %v4560, %v4584
    %v4588 = vsub.f32 %v4561, %v4584
    %v4589 = vsub.f32 %v4562, %v4584
    %v4590 = vsub.f32 %v4563, %v4584
    %v4591 = vsub.f32 %v4564, %v4584
    %v4592 = vsub.f32 %v4565, %v4584
    %v4593 = vmul.f32 %v4585, 1.442695
    %v4594 = vpow.pop %v4593
    %v4595 = vmul.f32 %v4586, 1.442695
    %v4596 = vpow.pop %v4595
    %v4597 = vmul.f32 %v4587, 1.442695
    %v4598 = vpow.pop %v4597
    %v4599 = vmul.f32 %v4588, 1.442695
    %v4600 = vpow.pop %v4599
    %v4601 = vmul.f32 %v4589, 1.442695
    %v4602 = vpow.pop %v4601
    %v4603 = vmul.f32 %v4590, 1.442695
    %v4604 = vpow.pop %v4603
    %v4605 = vmul.f32 %v4591, 1.442695
    %v4606 = vpow.pop %v4605
    %v4607 = vmul.f32 %v4592, 1.442695
    %v4608 = vpow.pop %v4607
    %v4617 = vrot.slane %v4596, 7
    %v4618 = vsel %vm3790, %v4617, %v4594
    %v4619 = vrot.slane %v4598, 6
    %v4620 = vsel %vm3792, %v4619, %v4618
    %v4621 = vrot.slane %v4600, 5
    %v4622 = vsel %vm3794, %v4621, %v4620
    %v4623 = vrot.slane %v4602, 4
    %v4624 = vsel %vm3796, %v4623, %v4622
    %v4625 = vrot.slane %v4604, 3
    %v4626 = vsel %vm3798, %v4625, %v4624
    %v4627 = vrot.slane %v4606, 2
    %v4628 = vsel %vm3800, %v4627, %v4626
    %v4629 = vrot.slane %v4608, 1
    %v4630 = vsel %vm3802, %v4629, %v4628
    %v4632 = vrot.slane %v4630, 4
    %v4633 = vadd.f32 %v4630, %v4632
    %v4634 = vrot.slane %v4633, 2
    %v4635 = vadd.f32 %v4633, %v4634
    %v4636 = vrot.slane %v4635, 1
    %v4637 = vadd.f32 %v4635, %v4636
    %v4638 = vrcp.pop %v4637
    %v4639 = vlaneseq
    %v4640 = vshrl.u32 %v4639, 7
    %v4641 = vsub.s32 0, %v4640
    %v4642 = vrot.slane %v4638, %v4641
    %v4643 = vmul.f32 %v4594, %v4642
    %v4644 = vmul.f32 %v4596, %v4642
    %v4645 = vmul.f32 %v4598, %v4642
    %v4646 = vmul.f32 %v4600, %v4642
    %v4647 = vmul.f32 %v4602, %v4642
    %v4648 = vmul.f32 %v4604, %v4642
    %v4649 = vmul.f32 %v4606, %v4642
    %v4650 = vmul.f32 %v4608, %v4642
    %v4651 = vadd.f32 %v4446, %v4643
    %v4652 = vadd.f32 %v4447, %v4644
    %v4653 = vadd.f32 %v4448, %v4645
    %v4654 = vadd.f32 %v4449, %v4646
    %v4655 = vadd.f32 %v4450, %v4647
    %v4656 = vadd.f32 %v4451, %v4648
    %v4657 = vadd.f32 %v4452, %v4649
    %v4658 = vadd.f32 %v4453, %v4650
    %v4659 = vmul.f32 %v2707, %v2170
    %v4660 = vmul.f32 %v2708, %v2173
    %v4661 = vmul.f32 %v2709, %v2178
    %v4662 = vmul.f32 %v2710, %v2181
    %v4663 = vmul.f32 %v2711, %v2170
    %v4664 = vmul.f32 %v2712, %v2173
    %v4665 = vmul.f32 %v2713, %v2178
    %v4666 = vmul.f32 %v2714, %v2181
    %v4667 = vmul.f32 %v2715, %v2170
    %v4668 = vmul.f32 %v2716, %v2173
    %v4669 = vmul.f32 %v2717, %v2178
    %v4670 = vmul.f32 %v2718, %v2181
    %v4671 = vmul.f32 %v2719, %v2170
    %v4672 = vmul.f32 %v2720, %v2173
    %v4673 = vmul.f32 %v2721, %v2178
    %v4674 = vmul.f32 %v2722, %v2181
    %v4675 = vmul.f32 %v2723, %v2170
    %v4676 = vmul.f32 %v2724, %v2173
    %v4677 = vmul.f32 %v2725, %v2178
    %v4678 = vmul.f32 %v2726, %v2181
    %v4679 = vmul.f32 %v2727, %v2170
    %v4680 = vmul.f32 %v2728, %v2173
    %v4681 = vmul.f32 %v2729, %v2178
    %v4682 = vmul.f32 %v2730, %v2181
    %v4683 = vmul.f32 %v2731, %v2170
    %v4684 = vmul.f32 %v2732, %v2173
    %v4685 = vmul.f32 %v2733, %v2178
    %v4686 = vmul.f32 %v2734, %v2181
    %v4687 = vmul.f32 %v2735, %v2170
    %v4688 = vmul.f32 %v2736, %v2173
    %v4689 = vmul.f32 %v2737, %v2178
    %v4690 = vmul.f32 %v2738, %v2181
    %v4691 = vadd.f32 %v4659, %v4660
    %v4692 = vadd.f32 %v4691, %v4661
    %v4693 = vadd.f32 %v4692, %v4662
    %v4694 = vrot.slane %v4693, 4
    %v4695 = vadd.f32 %v4693, %v4694
    %v4696 = vrot.slane %v4695, 2
    %v4697 = vadd.f32 %v4695, %v4696
    %v4698 = vrot.slane %v4697, 1
    %v4699 = vadd.f32 %v4697, %v4698
    %v4700 = vadd.f32 %v4663, %v4664
    %v4701 = vadd.f32 %v4700, %v4665
    %v4702 = vadd.f32 %v4701, %v4666
    %v4703 = vrot.slane %v4702, 4
    %v4704 = vadd.f32 %v4702, %v4703
    %v4705 = vrot.slane %v4704, 2
    %v4706 = vadd.f32 %v4704, %v4705
    %v4707 = vrot.slane %v4706, 1
    %v4708 = vadd.f32 %v4706, %v4707
    %v4709 = vadd.f32 %v4667, %v4668
    %v4710 = vadd.f32 %v4709, %v4669
    %v4711 = vadd.f32 %v4710, %v4670
    %v4712 = vrot.slane %v4711, 4
    %v4713 = vadd.f32 %v4711, %v4712
    %v4714 = vrot.slane %v4713, 2
    %v4715 = vadd.f32 %v4713, %v4714
    %v4716 = vrot.slane %v4715, 1
    %v4717 = vadd.f32 %v4715, %v4716
    %v4718 = vadd.f32 %v4671, %v4672
    %v4719 = vadd.f32 %v4718, %v4673
    %v4720 = vadd.f32 %v4719, %v4674
    %v4721 = vrot.slane %v4720, 4
    %v4722 = vadd.f32 %v4720, %v4721
    %v4723 = vrot.slane %v4722, 2
    %v4724 = vadd.f32 %v4722, %v4723
    %v4725 = vrot.slane %v4724, 1
    %v4726 = vadd.f32 %v4724, %v4725
    %v4727 = vadd.f32 %v4675, %v4676
    %v4728 = vadd.f32 %v4727, %v4677
    %v4729 = vadd.f32 %v4728, %v4678
    %v4730 = vrot.slane %v4729, 4
    %v4731 = vadd.f32 %v4729, %v4730
    %v4732 = vrot.slane %v4731, 2
    %v4733 = vadd.f32 %v4731, %v4732
    %v4734 = vrot.slane %v4733, 1
    %v4735 = vadd.f32 %v4733, %v4734
    %v4736 = vadd.f32 %v4679, %v4680
    %v4737 = vadd.f32 %v4736, %v4681
    %v4738 = vadd.f32 %v4737, %v4682
    %v4739 = vrot.slane %v4738, 4
    %v4740 = vadd.f32 %v4738, %v4739
    %v4741 = vrot.slane %v4740, 2
    %v4742 = vadd.f32 %v4740, %v4741
    %v4743 = vrot.slane %v4742, 1
    %v4744 = vadd.f32 %v4742, %v4743
    %v4745 = vadd.f32 %v4683, %v4684
    %v4746 = vadd.f32 %v4745, %v4685
    %v4747 = vadd.f32 %v4746, %v4686
    %v4748 = vrot.slane %v4747, 4
    %v4749 = vadd.f32 %v4747, %v4748
    %v4750 = vrot.slane %v4749, 2
    %v4751 = vadd.f32 %v4749, %v4750
    %v4752 = vrot.slane %v4751, 1
    %v4753 = vadd.f32 %v4751, %v4752
    %v4754 = vadd.f32 %v4687, %v4688
    %v4755 = vadd.f32 %v4754, %v4689
    %v4756 = vadd.f32 %v4755, %v4690
    %v4757 = vrot.slane %v4756, 4
    %v4758 = vadd.f32 %v4756, %v4757
    %v4759 = vrot.slane %v4758, 2
    %v4760 = vadd.f32 %v4758, %v4759
    %v4761 = vrot.slane %v4760, 1
    %v4762 = vadd.f32 %v4760, %v4761
    %v4763 = vadd.f32 %v4699, %v2773
    %v4764 = vadd.f32 %v4708, %v4132
    %v4765 = vadd.f32 %v4717, %v4133
    %v4766 = vadd.f32 %v4726, %v4134
    %v4767 = vadd.f32 %v4735, %v4135
    %v4768 = vadd.f32 %v4744, %v4136
    %v4769 = vadd.f32 %v4753, %v4137
    %v4770 = vadd.f32 %v4762, %v4138
    %v4771 = vsel %vm4155, %v4763, -inf
    %v4772 = vsel %vm4155, %v4764, -inf
    %v4773 = vsel %vm4155, %v4765, -inf
    %v4774 = vsel %vm4155, %v4766, -inf
    %v4775 = vsel %vm4155, %v4767, -inf
    %v4776 = vmax.f32 %v4771, %v4775
    %v4777 = vsel %vm4155, %v4768, -inf
    %v4778 = vmax.f32 %v4772, %v4777
    %v4779 = vsel %vm4155, %v4769, -inf
    %v4780 = vmax.f32 %v4773, %v4779
    %v4781 = vsel %vm4155, %v4770, -inf
    %v4782 = vmax.f32 %v4774, %v4781
    %v4783 = vmax.f32 %v4776, %v4778
    %v4784 = vmax.f32 %v4780, %v4782
    %v4785 = vmax.f32 %v4783, %v4784
    %v4786 = vlaneseq
    %v4787 = vshrl.u32 %v4786, 7
    %v4788 = vsub.s32 0, %v4787
    %v4789 = vrot.slane %v4785, %v4788
    %v4790 = vsub.f32 %v4763, %v4789
    %v4791 = vsub.f32 %v4764, %v4789
    %v4792 = vsub.f32 %v4765, %v4789
    %v4793 = vsub.f32 %v4766, %v4789
    %v4794 = vsub.f32 %v4767, %v4789
    %v4795 = vsub.f32 %v4768, %v4789
    %v4796 = vsub.f32 %v4769, %v4789
    %v4797 = vsub.f32 %v4770, %v4789
    %v4798 = vmul.f32 %v4790, 1.442695
    %v4799 = vpow.pop %v4798
    %v4800 = vmul.f32 %v4791, 1.442695
    %v4801 = vpow.pop %v4800
    %v4802 = vmul.f32 %v4792, 1.442695
    %v4803 = vpow.pop %v4802
    %v4804 = vmul.f32 %v4793, 1.442695
    %v4805 = vpow.pop %v4804
    %v4806 = vmul.f32 %v4794, 1.442695
    %v4807 = vpow.pop %v4806
    %v4808 = vmul.f32 %v4795, 1.442695
    %v4809 = vpow.pop %v4808
    %v4810 = vmul.f32 %v4796, 1.442695
    %v4811 = vpow.pop %v4810
    %v4812 = vmul.f32 %v4797, 1.442695
    %v4813 = vpow.pop %v4812
    %v4822 = vrot.slane %v4801, 7
    %v4823 = vsel %vm3790, %v4822, %v4799
    %v4824 = vrot.slane %v4803, 6
    %v4825 = vsel %vm3792, %v4824, %v4823
    %v4826 = vrot.slane %v4805, 5
    %v4827 = vsel %vm3794, %v4826, %v4825
    %v4828 = vrot.slane %v4807, 4
    %v4829 = vsel %vm3796, %v4828, %v4827
    %v4830 = vrot.slane %v4809, 3
    %v4831 = vsel %vm3798, %v4830, %v4829
    %v4832 = vrot.slane %v4811, 2
    %v4833 = vsel %vm3800, %v4832, %v4831
    %v4834 = vrot.slane %v4813, 1
    %v4835 = vsel %vm3802, %v4834, %v4833
    %v4837 = vrot.slane %v4835, 4
    %v4838 = vadd.f32 %v4835, %v4837
    %v4839 = vrot.slane %v4838, 2
    %v4840 = vadd.f32 %v4838, %v4839
    %v4841 = vrot.slane %v4840, 1
    %v4842 = vadd.f32 %v4840, %v4841
    %v4843 = vrcp.pop %v4842
    %v4844 = vlaneseq
    %v4845 = vshrl.u32 %v4844, 7
    %v4846 = vsub.s32 0, %v4845
    %v4847 = vrot.slane %v4843, %v4846
    %v4848 = vmul.f32 %v4799, %v4847
    %v4849 = vmul.f32 %v4801, %v4847
    %v4850 = vmul.f32 %v4803, %v4847
    %v4851 = vmul.f32 %v4805, %v4847
    %v4852 = vmul.f32 %v4807, %v4847
    %v4853 = vmul.f32 %v4809, %v4847
    %v4854 = vmul.f32 %v4811, %v4847
    %v4855 = vmul.f32 %v4813, %v4847
    %v4856 = vadd.f32 %v4651, %v4848
    %v4857 = vadd.f32 %v4652, %v4849
    %v4858 = vadd.f32 %v4653, %v4850
    %v4859 = vadd.f32 %v4654, %v4851
    %v4860 = vadd.f32 %v4655, %v4852
    %v4861 = vadd.f32 %v4656, %v4853
    %v4862 = vadd.f32 %v4657, %v4854
    %v4863 = vadd.f32 %v4658, %v4855
    %v4864 = vmul.f32 %v2707, %v2323
    %v4865 = vmul.f32 %v2708, %v2326
    %v4866 = vmul.f32 %v2709, %v2331
    %v4867 = vmul.f32 %v2710, %v2334
    %v4868 = vmul.f32 %v2711, %v2323
    %v4869 = vmul.f32 %v2712, %v2326
    %v4870 = vmul.f32 %v2713, %v2331
    %v4871 = vmul.f32 %v2714, %v2334
    %v4872 = vmul.f32 %v2715, %v2323
    %v4873 = vmul.f32 %v2716, %v2326
    %v4874 = vmul.f32 %v2717, %v2331
    %v4875 = vmul.f32 %v2718, %v2334
    %v4876 = vmul.f32 %v2719, %v2323
    %v4877 = vmul.f32 %v2720, %v2326
    %v4878 = vmul.f32 %v2721, %v2331
    %v4879 = vmul.f32 %v2722, %v2334
    %v4880 = vmul.f32 %v2723, %v2323
    %v4881 = vmul.f32 %v2724, %v2326
    %v4882 = vmul.f32 %v2725, %v2331
    %v4883 = vmul.f32 %v2726, %v2334
    %v4884 = vmul.f32 %v2727, %v2323
    %v4885 = vmul.f32 %v2728, %v2326
    %v4886 = vmul.f32 %v2729, %v2331
    %v4887 = vmul.f32 %v2730, %v2334
    %v4888 = vmul.f32 %v2731, %v2323
    %v4889 = vmul.f32 %v2732, %v2326
    %v4890 = vmul.f32 %v2733, %v2331
    %v4891 = vmul.f32 %v2734, %v2334
    %v4892 = vmul.f32 %v2735, %v2323
    %v4893 = vmul.f32 %v2736, %v2326
    %v4894 = vmul.f32 %v2737, %v2331
    %v4895 = vmul.f32 %v2738, %v2334
    %v4896 = vadd.f32 %v4864, %v4865
    %v4897 = vadd.f32 %v4896, %v4866
    %v4898 = vadd.f32 %v4897, %v4867
    %v4899 = vrot.slane %v4898, 4
    %v4900 = vadd.f32 %v4898, %v4899
    %v4901 = vrot.slane %v4900, 2
    %v4902 = vadd.f32 %v4900, %v4901
    %v4903 = vrot.slane %v4902, 1
    %v4904 = vadd.f32 %v4902, %v4903
    %v4905 = vadd.f32 %v4868, %v4869
    %v4906 = vadd.f32 %v4905, %v4870
    %v4907 = vadd.f32 %v4906, %v4871
    %v4908 = vrot.slane %v4907, 4
    %v4909 = vadd.f32 %v4907, %v4908
    %v4910 = vrot.slane %v4909, 2
    %v4911 = vadd.f32 %v4909, %v4910
    %v4912 = vrot.slane %v4911, 1
    %v4913 = vadd.f32 %v4911, %v4912
    %v4914 = vadd.f32 %v4872, %v4873
    %v4915 = vadd.f32 %v4914, %v4874
    %v4916 = vadd.f32 %v4915, %v4875
    %v4917 = vrot.slane %v4916, 4
    %v4918 = vadd.f32 %v4916, %v4917
    %v4919 = vrot.slane %v4918, 2
    %v4920 = vadd.f32 %v4918, %v4919
    %v4921 = vrot.slane %v4920, 1
    %v4922 = vadd.f32 %v4920, %v4921
    %v4923 = vadd.f32 %v4876, %v4877
    %v4924 = vadd.f32 %v4923, %v4878
    %v4925 = vadd.f32 %v4924, %v4879
    %v4926 = vrot.slane %v4925, 4
    %v4927 = vadd.f32 %v4925, %v4926
    %v4928 = vrot.slane %v4927, 2
    %v4929 = vadd.f32 %v4927, %v4928
    %v4930 = vrot.slane %v4929, 1
    %v4931 = vadd.f32 %v4929, %v4930
    %v4932 = vadd.f32 %v4880, %v4881
    %v4933 = vadd.f32 %v4932, %v4882
    %v4934 = vadd.f32 %v4933, %v4883
    %v4935 = vrot.slane %v4934, 4
    %v4936 = vadd.f32 %v4934, %v4935
    %v4937 = vrot.slane %v4936, 2
    %v4938 = vadd.f32 %v4936, %v4937
    %v4939 = vrot.slane %v4938, 1
    %v4940 = vadd.f32 %v4938, %v4939
    %v4941 = vadd.f32 %v4884, %v4885
    %v4942 = vadd.f32 %v4941, %v4886
    %v4943 = vadd.f32 %v4942, %v4887
    %v4944 = vrot.slane %v4943, 4
    %v4945 = vadd.f32 %v4943, %v4944
    %v4946 = vrot.slane %v4945, 2
    %v4947 = vadd.f32 %v4945, %v4946
    %v4948 = vrot.slane %v4947, 1
    %v4949 = vadd.f32 %v4947, %v4948
    %v4950 = vadd.f32 %v4888, %v4889
    %v4951 = vadd.f32 %v4950, %v4890
    %v4952 = vadd.f32 %v4951, %v4891
    %v4953 = vrot.slane %v4952, 4
    %v4954 = vadd.f32 %v4952, %v4953
    %v4955 = vrot.slane %v4954, 2
    %v4956 = vadd.f32 %v4954, %v4955
    %v4957 = vrot.slane %v4956, 1
    %v4958 = vadd.f32 %v4956, %v4957
    %v4959 = vadd.f32 %v4892, %v4893
    %v4960 = vadd.f32 %v4959, %v4894
    %v4961 = vadd.f32 %v4960, %v4895
    %v4962 = vrot.slane %v4961, 4
    %v4963 = vadd.f32 %v4961, %v4962
    %v4964 = vrot.slane %v4963, 2
    %v4965 = vadd.f32 %v4963, %v4964
    %v4966 = vrot.slane %v4965, 1
    %v4967 = vadd.f32 %v4965, %v4966
    %v4968 = vadd.f32 %v4904, %v2773
    %v4969 = vadd.f32 %v4913, %v4132
    %v4970 = vadd.f32 %v4922, %v4133
    %v4971 = vadd.f32 %v4931, %v4134
    %v4972 = vadd.f32 %v4940, %v4135
    %v4973 = vadd.f32 %v4949, %v4136
    %v4974 = vadd.f32 %v4958, %v4137
    %v4975 = vadd.f32 %v4967, %v4138
    %v4976 = vsel %vm4155, %v4968, -inf
    %v4977 = vsel %vm4155, %v4969, -inf
    %v4978 = vsel %vm4155, %v4970, -inf
    %v4979 = vsel %vm4155, %v4971, -inf
    %v4980 = vsel %vm4155, %v4972, -inf
    %v4981 = vmax.f32 %v4976, %v4980
    %v4982 = vsel %vm4155, %v4973, -inf
    %v4983 = vmax.f32 %v4977, %v4982
    %v4984 = vsel %vm4155, %v4974, -inf
    %v4985 = vmax.f32 %v4978, %v4984
    %v4986 = vsel %vm4155, %v4975, -inf
    %v4987 = vmax.f32 %v4979, %v4986
    %v4988 = vmax.f32 %v4981, %v4983
    %v4989 = vmax.f32 %v4985, %v4987
    %v4990 = vmax.f32 %v4988, %v4989
    %v4991 = vlaneseq
    %v4992 = vshrl.u32 %v4991, 7
    %v4993 = vsub.s32 0, %v4992
    %v4994 = vrot.slane %v4990, %v4993
    %v4995 = vsub.f32 %v4968, %v4994
    %v4996 = vsub.f32 %v4969, %v4994
    %v4997 = vsub.f32 %v4970, %v4994
    %v4998 = vsub.f32 %v4971, %v4994
    %v4999 = vsub.f32 %v4972, %v4994
    %v5000 = vsub.f32 %v4973, %v4994
    %v5001 = vsub.f32 %v4974, %v4994
    %v5002 = vsub.f32 %v4975, %v4994
    %v5003 = vmul.f32 %v4995, 1.442695
    %v5004 = vpow.pop %v5003
    %v5005 = vmul.f32 %v4996, 1.442695
    %v5006 = vpow.pop %v5005
    %v5007 = vmul.f32 %v4997, 1.442695
    %v5008 = vpow.pop %v5007
    %v5009 = vmul.f32 %v4998, 1.442695
    %v5010 = vpow.pop %v5009
    %v5011 = vmul.f32 %v4999, 1.442695
    %v5012 = vpow.pop %v5011
    %v5013 = vmul.f32 %v5000, 1.442695
    %v5014 = vpow.pop %v5013
    %v5015 = vmul.f32 %v5001, 1.442695
    %v5016 = vpow.pop %v5015
    %v5017 = vmul.f32 %v5002, 1.442695
    %v5018 = vpow.pop %v5017
    %v5027 = vrot.slane %v5006, 7
    %v5028 = vsel %vm3790, %v5027, %v5004
    %v5029 = vrot.slane %v5008, 6
    %v5030 = vsel %vm3792, %v5029, %v5028
    %v5031 = vrot.slane %v5010, 5
    %v5032 = vsel %vm3794, %v5031, %v5030
    %v5033 = vrot.slane %v5012, 4
    %v5034 = vsel %vm3796, %v5033, %v5032
    %v5035 = vrot.slane %v5014, 3
    %v5036 = vsel %vm3798, %v5035, %v5034
    %v5037 = vrot.slane %v5016, 2
    %v5038 = vsel %vm3800, %v5037, %v5036
    %v5039 = vrot.slane %v5018, 1
    %v5040 = vsel %vm3802, %v5039, %v5038
    %v5042 = vrot.slane %v5040, 4
    %v5043 = vadd.f32 %v5040, %v5042
    %v5044 = vrot.slane %v5043, 2
    %v5045 = vadd.f32 %v5043, %v5044
    %v5046 = vrot.slane %v5045, 1
    %v5047 = vadd.f32 %v5045, %v5046
    %v5048 = vrcp.pop %v5047
    %v5049 = vlaneseq
    %v5050 = vshrl.u32 %v5049, 7
    %v5051 = vsub.s32 0, %v5050
    %v5052 = vrot.slane %v5048, %v5051
    %v5053 = vmul.f32 %v5004, %v5052
    %v5054 = vmul.f32 %v5006, %v5052
    %v5055 = vmul.f32 %v5008, %v5052
    %v5056 = vmul.f32 %v5010, %v5052
    %v5057 = vmul.f32 %v5012, %v5052
    %v5058 = vmul.f32 %v5014, %v5052
    %v5059 = vmul.f32 %v5016, %v5052
    %v5060 = vmul.f32 %v5018, %v5052
    %v5061 = vadd.f32 %v4856, %v5053
    %v5062 = vadd.f32 %v4857, %v5054
    %v5063 = vadd.f32 %v4858, %v5055
    %v5064 = vadd.f32 %v4859, %v5056
    %v5065 = vadd.f32 %v4860, %v5057
    %v5066 = vadd.f32 %v4861, %v5058
    %v5067 = vadd.f32 %v4862, %v5059
    %v5068 = vadd.f32 %v4863, %v5060
    %v5069 = vmul.f32 %v2707, %v2476
    %v5070 = vmul.f32 %v2708, %v2479
    %v5071 = vmul.f32 %v2709, %v2484
    %v5072 = vmul.f32 %v2710, %v2487
    %v5073 = vmul.f32 %v2711, %v2476
    %v5074 = vmul.f32 %v2712, %v2479
    %v5075 = vmul.f32 %v2713, %v2484
    %v5076 = vmul.f32 %v2714, %v2487
    %v5077 = vmul.f32 %v2715, %v2476
    %v5078 = vmul.f32 %v2716, %v2479
    %v5079 = vmul.f32 %v2717, %v2484
    %v5080 = vmul.f32 %v2718, %v2487
    %v5081 = vmul.f32 %v2719, %v2476
    %v5082 = vmul.f32 %v2720, %v2479
    %v5083 = vmul.f32 %v2721, %v2484
    %v5084 = vmul.f32 %v2722, %v2487
    %v5085 = vmul.f32 %v2723, %v2476
    %v5086 = vmul.f32 %v2724, %v2479
    %v5087 = vmul.f32 %v2725, %v2484
    %v5088 = vmul.f32 %v2726, %v2487
    %v5089 = vmul.f32 %v2727, %v2476
    %v5090 = vmul.f32 %v2728, %v2479
    %v5091 = vmul.f32 %v2729, %v2484
    %v5092 = vmul.f32 %v2730, %v2487
    %v5093 = vmul.f32 %v2731, %v2476
    %v5094 = vmul.f32 %v2732, %v2479
    %v5095 = vmul.f32 %v2733, %v2484
    %v5096 = vmul.f32 %v2734, %v2487
    %v5097 = vmul.f32 %v2735, %v2476
    %v5098 = vmul.f32 %v2736, %v2479
    %v5099 = vmul.f32 %v2737, %v2484
    %v5100 = vmul.f32 %v2738, %v2487
    %v5101 = vadd.f32 %v5069, %v5070
    %v5102 = vadd.f32 %v5101, %v5071
    %v5103 = vadd.f32 %v5102, %v5072
    %v5104 = vrot.slane %v5103, 4
    %v5105 = vadd.f32 %v5103, %v5104
    %v5106 = vrot.slane %v5105, 2
    %v5107 = vadd.f32 %v5105, %v5106
    %v5108 = vrot.slane %v5107, 1
    %v5109 = vadd.f32 %v5107, %v5108
    %v5110 = vadd.f32 %v5073, %v5074
    %v5111 = vadd.f32 %v5110, %v5075
    %v5112 = vadd.f32 %v5111, %v5076
    %v5113 = vrot.slane %v5112, 4
    %v5114 = vadd.f32 %v5112, %v5113
    %v5115 = vrot.slane %v5114, 2
    %v5116 = vadd.f32 %v5114, %v5115
    %v5117 = vrot.slane %v5116, 1
    %v5118 = vadd.f32 %v5116, %v5117
    %v5119 = vadd.f32 %v5077, %v5078
    %v5120 = vadd.f32 %v5119, %v5079
    %v5121 = vadd.f32 %v5120, %v5080
    %v5122 = vrot.slane %v5121, 4
    %v5123 = vadd.f32 %v5121, %v5122
    %v5124 = vrot.slane %v5123, 2
    %v5125 = vadd.f32 %v5123, %v5124
    %v5126 = vrot.slane %v5125, 1
    %v5127 = vadd.f32 %v5125, %v5126
    %v5128 = vadd.f32 %v5081, %v5082
    %v5129 = vadd.f32 %v5128, %v5083
    %v5130 = vadd.f32 %v5129, %v5084
    %v5131 = vrot.slane %v5130, 4
    %v5132 = vadd.f32 %v5130, %v5131
    %v5133 = vrot.slane %v5132, 2
    %v5134 = vadd.f32 %v5132, %v5133
    %v5135 = vrot.slane %v5134, 1
    %v5136 = vadd.f32 %v5134, %v5135
    %v5137 = vadd.f32 %v5085, %v5086
    %v5138 = vadd.f32 %v5137, %v5087
    %v5139 = vadd.f32 %v5138, %v5088
    %v5140 = vrot.slane %v5139, 4
    %v5141 = vadd.f32 %v5139, %v5140
    %v5142 = vrot.slane %v5141, 2
    %v5143 = vadd.f32 %v5141, %v5142
    %v5144 = vrot.slane %v5143, 1
    %v5145 = vadd.f32 %v5143, %v5144
    %v5146 = vadd.f32 %v5089, %v5090
    %v5147 = vadd.f32 %v5146, %v5091
    %v5148 = vadd.f32 %v5147, %v5092
    %v5149 = vrot.slane %v5148, 4
    %v5150 = vadd.f32 %v5148, %v5149
    %v5151 = vrot.slane %v5150, 2
    %v5152 = vadd.f32 %v5150, %v5151
    %v5153 = vrot.slane %v5152, 1
    %v5154 = vadd.f32 %v5152, %v5153
    %v5155 = vadd.f32 %v5093, %v5094
    %v5156 = vadd.f32 %v5155, %v5095
    %v5157 = vadd.f32 %v5156, %v5096
    %v5158 = vrot.slane %v5157, 4
    %v5159 = vadd.f32 %v5157, %v5158
    %v5160 = vrot.slane %v5159, 2
    %v5161 = vadd.f32 %v5159, %v5160
    %v5162 = vrot.slane %v5161, 1
    %v5163 = vadd.f32 %v5161, %v5162
    %v5164 = vadd.f32 %v5097, %v5098
    %v5165 = vadd.f32 %v5164, %v5099
    %v5166 = vadd.f32 %v5165, %v5100
    %v5167 = vrot.slane %v5166, 4
    %v5168 = vadd.f32 %v5166, %v5167
    %v5169 = vrot.slane %v5168, 2
    %v5170 = vadd.f32 %v5168, %v5169
    %v5171 = vrot.slane %v5170, 1
    %v5172 = vadd.f32 %v5170, %v5171
    %v5173 = vadd.f32 %v5109, %v2773
    %v5174 = vadd.f32 %v5118, %v4132
    %v5175 = vadd.f32 %v5127, %v4133
    %v5176 = vadd.f32 %v5136, %v4134
    %v5177 = vadd.f32 %v5145, %v4135
    %v5178 = vadd.f32 %v5154, %v4136
    %v5179 = vadd.f32 %v5163, %v4137
    %v5180 = vadd.f32 %v5172, %v4138
    %v5181 = vsel %vm4155, %v5173, -inf
    %v5182 = vsel %vm4155, %v5174, -inf
    %v5183 = vsel %vm4155, %v5175, -inf
    %v5184 = vsel %vm4155, %v5176, -inf
    %v5185 = vsel %vm4155, %v5177, -inf
    %v5186 = vmax.f32 %v5181, %v5185
    %v5187 = vsel %vm4155, %v5178, -inf
    %v5188 = vmax.f32 %v5182, %v5187
    %v5189 = vsel %vm4155, %v5179, -inf
    %v5190 = vmax.f32 %v5183, %v5189
    %v5191 = vsel %vm4155, %v5180, -inf
    %v5192 = vmax.f32 %v5184, %v5191
    %v5193 = vmax.f32 %v5186, %v5188
    %v5194 = vmax.f32 %v5190, %v5192
    %v5195 = vmax.f32 %v5193, %v5194
    %v5196 = vlaneseq
    %v5197 = vshrl.u32 %v5196, 7
    %v5198 = vsub.s32 0, %v5197
    %v5199 = vrot.slane %v5195, %v5198
    %v5200 = vsub.f32 %v5173, %v5199
    %v5201 = vsub.f32 %v5174, %v5199
    %v5202 = vsub.f32 %v5175, %v5199
    %v5203 = vsub.f32 %v5176, %v5199
    %v5204 = vsub.f32 %v5177, %v5199
    %v5205 = vsub.f32 %v5178, %v5199
    %v5206 = vsub.f32 %v5179, %v5199
    %v5207 = vsub.f32 %v5180, %v5199
    %v5208 = vmul.f32 %v5200, 1.442695
    %v5209 = vpow.pop %v5208
    %v5210 = vmul.f32 %v5201, 1.442695
    %v5211 = vpow.pop %v5210
    %v5212 = vmul.f32 %v5202, 1.442695
    %v5213 = vpow.pop %v5212
    %v5214 = vmul.f32 %v5203, 1.442695
    %v5215 = vpow.pop %v5214
    %v5216 = vmul.f32 %v5204, 1.442695
    %v5217 = vpow.pop %v5216
    %v5218 = vmul.f32 %v5205, 1.442695
    %v5219 = vpow.pop %v5218
    %v5220 = vmul.f32 %v5206, 1.442695
    %v5221 = vpow.pop %v5220
    %v5222 = vmul.f32 %v5207, 1.442695
    %v5223 = vpow.pop %v5222
    %v5232 = vrot.slane %v5211, 7
    %v5233 = vsel %vm3790, %v5232, %v5209
    %v5234 = vrot.slane %v5213, 6
    %v5235 = vsel %vm3792, %v5234, %v5233
    %v5236 = vrot.slane %v5215, 5
    %v5237 = vsel %vm3794, %v5236, %v5235
    %v5238 = vrot.slane %v5217, 4
    %v5239 = vsel %vm3796, %v5238, %v5237
    %v5240 = vrot.slane %v5219, 3
    %v5241 = vsel %vm3798, %v5240, %v5239
    %v5242 = vrot.slane %v5221, 2
    %v5243 = vsel %vm3800, %v5242, %v5241
    %v5244 = vrot.slane %v5223, 1
    %v5245 = vsel %vm3802, %v5244, %v5243
    %v5247 = vrot.slane %v5245, 4
    %v5248 = vadd.f32 %v5245, %v5247
    %v5249 = vrot.slane %v5248, 2
    %v5250 = vadd.f32 %v5248, %v5249
    %v5251 = vrot.slane %v5250, 1
    %v5252 = vadd.f32 %v5250, %v5251
    %v5253 = vrcp.pop %v5252
    %v5254 = vlaneseq
    %v5255 = vshrl.u32 %v5254, 7
    %v5256 = vsub.s32 0, %v5255
    %v5257 = vrot.slane %v5253, %v5256
    %v5258 = vmul.f32 %v5209, %v5257
    %v5259 = vmul.f32 %v5211, %v5257
    %v5260 = vmul.f32 %v5213, %v5257
    %v5261 = vmul.f32 %v5215, %v5257
    %v5262 = vmul.f32 %v5217, %v5257
    %v5263 = vmul.f32 %v5219, %v5257
    %v5264 = vmul.f32 %v5221, %v5257
    %v5265 = vmul.f32 %v5223, %v5257
    %v5266 = vadd.f32 %v5061, %v5258
    %v5267 = vadd.f32 %v5062, %v5259
    %v5268 = vadd.f32 %v5063, %v5260
    %v5269 = vadd.f32 %v5064, %v5261
    %v5270 = vadd.f32 %v5065, %v5262
    %v5271 = vadd.f32 %v5066, %v5263
    %v5272 = vadd.f32 %v5067, %v5264
    %v5273 = vadd.f32 %v5068, %v5265
    %v5274 = vmul.f32 %v2707, %v2629
    %v5275 = vmul.f32 %v2708, %v2632
    %v5276 = vmul.f32 %v2709, %v2637
    %v5277 = vmul.f32 %v2710, %v2640
    %v5278 = vmul.f32 %v2711, %v2629
    %v5279 = vmul.f32 %v2712, %v2632
    %v5280 = vmul.f32 %v2713, %v2637
    %v5281 = vmul.f32 %v2714, %v2640
    %v5282 = vmul.f32 %v2715, %v2629
    %v5283 = vmul.f32 %v2716, %v2632
    %v5284 = vmul.f32 %v2717, %v2637
    %v5285 = vmul.f32 %v2718, %v2640
    %v5286 = vmul.f32 %v2719, %v2629
    %v5287 = vmul.f32 %v2720, %v2632
    %v5288 = vmul.f32 %v2721, %v2637
    %v5289 = vmul.f32 %v2722, %v2640
    %v5290 = vmul.f32 %v2723, %v2629
    %v5291 = vmul.f32 %v2724, %v2632
    %v5292 = vmul.f32 %v2725, %v2637
    %v5293 = vmul.f32 %v2726, %v2640
    %v5294 = vmul.f32 %v2727, %v2629
    %v5295 = vmul.f32 %v2728, %v2632
    %v5296 = vmul.f32 %v2729, %v2637
    %v5297 = vmul.f32 %v2730, %v2640
    %v5298 = vmul.f32 %v2731, %v2629
    %v5299 = vmul.f32 %v2732, %v2632
    %v5300 = vmul.f32 %v2733, %v2637
    %v5301 = vmul.f32 %v2734, %v2640
    %v5302 = vmul.f32 %v2735, %v2629
    %v5303 = vmul.f32 %v2736, %v2632
    %v5304 = vmul.f32 %v2737, %v2637
    %v5305 = vmul.f32 %v2738, %v2640
    %v5306 = vadd.f32 %v5274, %v5275
    %v5307 = vadd.f32 %v5306, %v5276
    %v5308 = vadd.f32 %v5307, %v5277
    %v5309 = vrot.slane %v5308, 4
    %v5310 = vadd.f32 %v5308, %v5309
    %v5311 = vrot.slane %v5310, 2
    %v5312 = vadd.f32 %v5310, %v5311
    %v5313 = vrot.slane %v5312, 1
    %v5314 = vadd.f32 %v5312, %v5313
    %v5315 = vadd.f32 %v5278, %v5279
    %v5316 = vadd.f32 %v5315, %v5280
    %v5317 = vadd.f32 %v5316, %v5281
    %v5318 = vrot.slane %v5317, 4
    %v5319 = vadd.f32 %v5317, %v5318
    %v5320 = vrot.slane %v5319, 2
    %v5321 = vadd.f32 %v5319, %v5320
    %v5322 = vrot.slane %v5321, 1
    %v5323 = vadd.f32 %v5321, %v5322
    %v5324 = vadd.f32 %v5282, %v5283
    %v5325 = vadd.f32 %v5324, %v5284
    %v5326 = vadd.f32 %v5325, %v5285
    %v5327 = vrot.slane %v5326, 4
    %v5328 = vadd.f32 %v5326, %v5327
    %v5329 = vrot.slane %v5328, 2
    %v5330 = vadd.f32 %v5328, %v5329
    %v5331 = vrot.slane %v5330, 1
    %v5332 = vadd.f32 %v5330, %v5331
    %v5333 = vadd.f32 %v5286, %v5287
    %v5334 = vadd.f32 %v5333, %v5288
    %v5335 = vadd.f32 %v5334, %v5289
    %v5336 = vrot.slane %v5335, 4
    %v5337 = vadd.f32 %v5335, %v5336
    %v5338 = vrot.slane %v5337, 2
    %v5339 = vadd.f32 %v5337, %v5338
    %v5340 = vrot.slane %v5339, 1
    %v5341 = vadd.f32 %v5339, %v5340
    %v5342 = vadd.f32 %v5290, %v5291
    %v5343 = vadd.f32 %v5342, %v5292
    %v5344 = vadd.f32 %v5343, %v5293
    %v5345 = vrot.slane %v5344, 4
    %v5346 = vadd.f32 %v5344, %v5345
    %v5347 = vrot.slane %v5346, 2
    %v5348 = vadd.f32 %v5346, %v5347
    %v5349 = vrot.slane %v5348, 1
    %v5350 = vadd.f32 %v5348, %v5349
    %v5351 = vadd.f32 %v5294, %v5295
    %v5352 = vadd.f32 %v5351, %v5296
    %v5353 = vadd.f32 %v5352, %v5297
    %v5354 = vrot.slane %v5353, 4
    %v5355 = vadd.f32 %v5353, %v5354
    %v5356 = vrot.slane %v5355, 2
    %v5357 = vadd.f32 %v5355, %v5356
    %v5358 = vrot.slane %v5357, 1
    %v5359 = vadd.f32 %v5357, %v5358
    %v5360 = vadd.f32 %v5298, %v5299
    %v5361 = vadd.f32 %v5360, %v5300
    %v5362 = vadd.f32 %v5361, %v5301
    %v5363 = vrot.slane %v5362, 4
    %v5364 = vadd.f32 %v5362, %v5363
    %v5365 = vrot.slane %v5364, 2
    %v5366 = vadd.f32 %v5364, %v5365
    %v5367 = vrot.slane %v5366, 1
    %v5368 = vadd.f32 %v5366, %v5367
    %v5369 = vadd.f32 %v5302, %v5303
    %v5370 = vadd.f32 %v5369, %v5304
    %v5371 = vadd.f32 %v5370, %v5305
    %v5372 = vrot.slane %v5371, 4
    %v5373 = vadd.f32 %v5371, %v5372
    %v5374 = vrot.slane %v5373, 2
    %v5375 = vadd.f32 %v5373, %v5374
    %v5376 = vrot.slane %v5375, 1
    %v5377 = vadd.f32 %v5375, %v5376
    %v5378 = vadd.f32 %v5314, %v2773
    %v5379 = vadd.f32 %v5323, %v4132
    %v5380 = vadd.f32 %v5332, %v4133
    %v5381 = vadd.f32 %v5341, %v4134
    %v5382 = vadd.f32 %v5350, %v4135
    %v5383 = vadd.f32 %v5359, %v4136
    %v5384 = vadd.f32 %v5368, %v4137
    %v5385 = vadd.f32 %v5377, %v4138
    %v5386 = vsel %vm4155, %v5378, -inf
    %v5387 = vsel %vm4155, %v5379, -inf
    %v5388 = vsel %vm4155, %v5380, -inf
    %v5389 = vsel %vm4155, %v5381, -inf
    %v5390 = vsel %vm4155, %v5382, -inf
    %v5391 = vmax.f32 %v5386, %v5390
    %v5392 = vsel %vm4155, %v5383, -inf
    %v5393 = vmax.f32 %v5387, %v5392
    %v5394 = vsel %vm4155, %v5384, -inf
    %v5395 = vmax.f32 %v5388, %v5394
    %v5396 = vsel %vm4155, %v5385, -inf
    %v5397 = vmax.f32 %v5389, %v5396
    %v5398 = vmax.f32 %v5391, %v5393
    %v5399 = vmax.f32 %v5395, %v5397
    %v5400 = vmax.f32 %v5398, %v5399
    %v5401 = vlaneseq
    %v5402 = vshrl.u32 %v5401, 7
    %v5403 = vsub.s32 0, %v5402
    %v5404 = vrot.slane %v5400, %v5403
    %v5405 = vsub.f32 %v5378, %v5404
    %v5406 = vsub.f32 %v5379, %v5404
    %v5407 = vsub.f32 %v5380, %v5404
    %v5408 = vsub.f32 %v5381, %v5404
    %v5409 = vsub.f32 %v5382, %v5404
    %v5410 = vsub.f32 %v5383, %v5404
    %v5411 = vsub.f32 %v5384, %v5404
    %v5412 = vsub.f32 %v5385, %v5404
    %v5413 = vmul.f32 %v5405, 1.442695
    %v5414 = vpow.pop %v5413
    %v5415 = vmul.f32 %v5406, 1.442695
    %v5416 = vpow.pop %v5415
    %v5417 = vmul.f32 %v5407, 1.442695
    %v5418 = vpow.pop %v5417
    %v5419 = vmul.f32 %v5408, 1.442695
    %v5420 = vpow.pop %v5419
    %v5421 = vmul.f32 %v5409, 1.442695
    %v5422 = vpow.pop %v5421
    %v5423 = vmul.f32 %v5410, 1.442695
    %v5424 = vpow.pop %v5423
    %v5425 = vmul.f32 %v5411, 1.442695
    %v5426 = vpow.pop %v5425
    %v5427 = vmul.f32 %v5412, 1.442695
    %v5428 = vpow.pop %v5427
    %v5437 = vrot.slane %v5416, 7
    %v5438 = vsel %vm3790, %v5437, %v5414
    %v5439 = vrot.slane %v5418, 6
    %v5440 = vsel %vm3792, %v5439, %v5438
    %v5441 = vrot.slane %v5420, 5
    %v5442 = vsel %vm3794, %v5441, %v5440
    %v5443 = vrot.slane %v5422, 4
    %v5444 = vsel %vm3796, %v5443, %v5442
    %v5445 = vrot.slane %v5424, 3
    %v5446 = vsel %vm3798, %v5445, %v5444
    %v5447 = vrot.slane %v5426, 2
    %v5448 = vsel %vm3800, %v5447, %v5446
    %v5449 = vrot.slane %v5428, 1
    %v5450 = vsel %vm3802, %v5449, %v5448
    %v5452 = vrot.slane %v5450, 4
    %v5453 = vadd.f32 %v5450, %v5452
    %v5454 = vrot.slane %v5453, 2
    %v5455 = vadd.f32 %v5453, %v5454
    %v5456 = vrot.slane %v5455, 1
    %v5457 = vadd.f32 %v5455, %v5456
    %v5458 = vrcp.pop %v5457
    %v5459 = vlaneseq
    %v5460 = vshrl.u32 %v5459, 7
    %v5461 = vsub.s32 0, %v5460
    %v5462 = vrot.slane %v5458, %v5461
    %v5463 = vmul.f32 %v5414, %v5462
    %v5464 = vmul.f32 %v5416, %v5462
    %v5465 = vmul.f32 %v5418, %v5462
    %v5466 = vmul.f32 %v5420, %v5462
    %v5467 = vmul.f32 %v5422, %v5462
    %v5468 = vmul.f32 %v5424, %v5462
    %v5469 = vmul.f32 %v5426, %v5462
    %v5470 = vmul.f32 %v5428, %v5462
    %v5471 = vadd.f32 %v5266, %v5463
    %v5472 = vadd.f32 %v5267, %v5464
    %v5473 = vadd.f32 %v5268, %v5465
    %v5474 = vadd.f32 %v5269, %v5466
    %v5475 = vadd.f32 %v5270, %v5467
    %v5476 = vadd.f32 %v5271, %v5468
    %v5477 = vadd.f32 %v5272, %v5469
    %v5478 = vadd.f32 %v5273, %v5470
    %v5479 = vlaneseq
    %v5480 = vshrl.u32 %v5479, 7
    %v5481 = vsub.s32 0, %v5480
    %v5482 = vrot.slane %v5471, %v5481
    %v5483 = vlaneseq
    %v5484 = vshrl.u32 %v5483, 7
    %v5485 = vsub.s32 0, %v5484
    %v5486 = vrot.slane %v5472, %v5485
    %v5487 = vlaneseq
    %v5488 = vshrl.u32 %v5487, 7
    %v5489 = vsub.s32 0, %v5488
    %v5490 = vrot.slane %v5473, %v5489
    %v5491 = vlaneseq
    %v5492 = vshrl.u32 %v5491, 7
    %v5493 = vsub.s32 0, %v5492
    %v5494 = vrot.slane %v5474, %v5493
    %v5495 = vlaneseq
    %v5496 = vshrl.u32 %v5495, 7
    %v5497 = vsub.s32 0, %v5496
    %v5498 = vrot.slane %v5475, %v5497
    %v5499 = vlaneseq
    %v5500 = vshrl.u32 %v5499, 7
    %v5501 = vsub.s32 0, %v5500
    %v5502 = vrot.slane %v5476, %v5501
    %v5503 = vlaneseq
    %v5504 = vshrl.u32 %v5503, 7
    %v5505 = vsub.s32 0, %v5504
    %v5506 = vrot.slane %v5477, %v5505
    %v5507 = vlaneseq
    %v5508 = vshrl.u32 %v5507, 7
    %v5509 = vsub.s32 0, %v5508
    %v5510 = vrot.slane %v5478, %v5509
    %v5511 = vmul.f32 %v5482, %v2739
    %v5512 = vmul.f32 %v5482, %v2740
    %v5513 = vmul.f32 %v5482, %v2741
    %v5514 = vmul.f32 %v5482, %v2742
    %v5515 = vmul.f32 %v5486, %v2743
    %v5516 = vmul.f32 %v5486, %v2744
    %v5517 = vmul.f32 %v5486, %v2745
    %v5518 = vmul.f32 %v5486, %v2746
    %v5519 = vmul.f32 %v5490, %v2747
    %v5520 = vmul.f32 %v5490, %v2748
    %v5521 = vmul.f32 %v5490, %v2749
    %v5522 = vmul.f32 %v5490, %v2750
    %v5523 = vmul.f32 %v5494, %v2751
    %v5524 = vmul.f32 %v5494, %v2752
    %v5525 = vmul.f32 %v5494, %v2753
    %v5526 = vmul.f32 %v5494, %v2754
    %v5527 = vmul.f32 %v5498, %v2755
    %v5528 = vmul.f32 %v5498, %v2756
    %v5529 = vmul.f32 %v5498, %v2757
    %v5530 = vmul.f32 %v5498, %v2758
    %v5531 = vmul.f32 %v5502, %v2759
    %v5532 = vmul.f32 %v5502, %v2760
    %v5533 = vmul.f32 %v5502, %v2761
    %v5534 = vmul.f32 %v5502, %v2762
    %v5535 = vmul.f32 %v5506, %v2763
    %v5536 = vmul.f32 %v5506, %v2764
    %v5537 = vmul.f32 %v5506, %v2765
    %v5538 = vmul.f32 %v5506, %v2766
    %v5539 = vmul.f32 %v5510, %v2767
    %v5540 = vmul.f32 %v5510, %v2768
    %v5541 = vmul.f32 %v5510, %v2769
    %v5542 = vmul.f32 %v5510, %v2770
    %v5543 = vadd.f32 %v5511, %v5515
    %v5544 = vadd.f32 %v5543, %v5519
    %v5545 = vadd.f32 %v5544, %v5523
    %v5546 = vadd.f32 %v5545, %v5527
    %v5547 = vadd.f32 %v5546, %v5531
    %v5548 = vadd.f32 %v5547, %v5535
    %v5549 = vadd.f32 %v5548, %v5539
    %v5550 = vadd.f32 %v5512, %v5516
    %v5551 = vadd.f32 %v5550, %v5520
    %v5552 = vadd.f32 %v5551, %v5524
    %v5553 = vadd.f32 %v5552, %v5528
    %v5554 = vadd.f32 %v5553, %v5532
    %v5555 = vadd.f32 %v5554, %v5536
    %v5556 = vadd.f32 %v5555, %v5540
    %v5557 = vadd.f32 %v5513, %v5517
    %v5558 = vadd.f32 %v5557, %v5521
    %v5559 = vadd.f32 %v5558, %v5525
    %v5560 = vadd.f32 %v5559, %v5529
    %v5561 = vadd.f32 %v5560, %v5533
    %v5562 = vadd.f32 %v5561, %v5537
    %v5563 = vadd.f32 %v5562, %v5541
    %v5564 = vadd.f32 %v5514, %v5518
    %v5565 = vadd.f32 %v5564, %v5522
    %v5566 = vadd.f32 %v5565, %v5526
    %v5567 = vadd.f32 %v5566, %v5530
    %v5568 = vadd.f32 %v5567, %v5534
    %v5569 = vadd.f32 %v5568, %v5538
    %v5570 = vadd.f32 %v5569, %v5542
    %v5571 = vmul.f32 %v5549, 0.14285715
    %v5572 = vmul.f32 %v5556, 0.14285715
    %v5573 = vmul.f32 %v5563, 0.14285715
    %v5574 = vmul.f32 %v5570, 0.14285715
    %v5575 = vpack.c.bf16 %v4024, %v4023
    %v5576 = vpack.c.bf16 %v4026, %v4025
    %v5577 = vpack.c.bf16 %v5572, %v5571
    %v5578 = vpack.c.bf16 %v5574, %v5573
    %v5579 = vld [vmem:[%s6] sm:$0xf]
    %v5580 = vld [vmem:[%s6 + $0x4] sm:$0xf]
    %v5581 = vld [vmem:[%s6 + $0x8] sm:$0xf]
    %v5582 = vld [vmem:[%s6 + $0xc] sm:$0xf]
    %v5583 = vld [vmem:[%s7] sm:$0xff]
    %v5584 = vld [vmem:[%s7 + $0x8] sm:$0xff]
    %v5585 = vld [vmem:[%s7 + $0x10] sm:$0xff]
    %v5586 = vld [vmem:[%s7 + $0x18] sm:$0xff]
    %5588 = vset.pattern.permute.xlu0 0
    %5589 = vperm.xlu0 %5588, %v5583
    %v5590 = vpop.permute.xlu0 %5589
    %5593 = vset.pattern.permute.xlu0 0
    %5594 = vperm.xlu0 %5593, %v5584
    %v5595 = vpop.permute.xlu0 %5594
    %5598 = vset.pattern.permute.xlu0 0
    %5599 = vperm.xlu0 %5598, %v5585
    %v5600 = vpop.permute.xlu0 %5599
    %5603 = vset.pattern.permute.xlu0 0
    %5604 = vperm.xlu0 %5603, %v5586
    %v5605 = vpop.permute.xlu0 %5604
    %v5611 = vunpack.c.l.b16 %v5579
    %v5612 = vunpack.c.l.b16 %v5580
    %v5613 = vunpack.c.l.b16 %v5581
    %v5614 = vunpack.c.l.b16 %v5582
    %v5615 = vpack.c.b16 %v5612, %v5611
    %v5616 = vpack.c.b16 %v5614, %v5613
    %vm5617 = vcmask 523264
    %v5619 = vsel %vm5617, %v5615, 0
    %v5622 = vsel %vm5617, %v5616, 0
    %5624 = vmatprep.subr.bf16.mxu0 0
    %5625 = vmatpush1.bf16.msra.mxu0 %v5575
    %5626 = vmatprep.subr.bf16.mxu0 0
    %5627 = vmatpush1.bf16.msra.mxu0 %v5576
    %5628 = vmatprep.subr.bf16.mxu0 0
    %5629 = vmatpush1.bf16.msra.mxu0 %v5577
    %5630 = vmatprep.subr.bf16.mxu0 0
    %5631 = vmatpush1.bf16.msra.mxu0 %v5578
    %5632 = vmatprep.subr.bf16.mxu0 0
    %5633 = vmatpush1.bf16.msra.mxu0 0
    %5634 = vmatprep.subr.bf16.mxu0 0
    %5635 = vmatpush1.bf16.msra.mxu0 0
    %5636 = vmatprep.subr.bf16.mxu0 0
    %5637 = vmatpush1.bf16.msra.mxu0 0
    %5638 = vmatprep.subr.bf16.mxu0 0
    %5639 = vmatpush1.bf16.msra.mxu0 0
    %5640 = vmatprep.subr.bf16.mxu0 0
    %5641 = vmatpush1.bf16.msra.mxu0 0
    %5642 = vmatprep.subr.bf16.mxu0 0
    %5643 = vmatpush1.bf16.msra.mxu0 0
    %5644 = vmatprep.subr.bf16.mxu0 0
    %5645 = vmatpush1.bf16.msra.mxu0 0
    %5646 = vmatprep.subr.bf16.mxu0 0
    %5647 = vmatpush1.bf16.msra.mxu0 0
    %5648 = vmatprep.subr.bf16.mxu0 0
    %5649 = vmatpush1.bf16.msra.mxu0 0
    %5650 = vmatprep.subr.bf16.mxu0 0
    %5651 = vmatpush1.bf16.msra.mxu0 0
    %5652 = vmatprep.subr.bf16.mxu0 0
    %5653 = vmatpush1.bf16.msra.mxu0 0
    %5654 = vmatprep.subr.bf16.mxu0 0
    %5655 = vmatpush1.bf16.msra.mxu0 0
    %5656 = vmatprep.mubr.bf16.mxu0 0
    %5657 = vmatmul.mubr.bf16.gmra.mrb[0].mxu0 %v5619
    %v5658 = vpop.f32.mrb[0].mxu0
    %v5659 = vadd.f32 %v5590, %v5658
    %v5660 = vpop.f32.mrb[0].mxu0
    %v5661 = vpop.f32.mrb[0].mxu0
    %v5662 = vadd.f32 %v5595, %v5661
    %v5663 = vpop.f32.mrb[0].mxu0
    %5664 = vmatprep.mubr.bf16.mxu0 0
    %5665 = vmatmul.mubr.bf16.gmra.mrb[0].mxu0 %v5622
    %v5666 = vpop.f32.mrb[0].mxu0
    %v5667 = vadd.f32 %v5600, %v5666
    %v5668 = vpop.f32.mrb[0].mxu0
    %v5669 = vpop.f32.mrb[0].mxu0
    %v5670 = vadd.f32 %v5605, %v5669
    %v5671 = vpop.f32.mrb[0].mxu0
    %5672 = vdwg.mxu0
    %v5673 = vmax.f32 %v5659, 0.0
    %v5674 = vmax.f32 %v5662, 0.0
    %v5675 = vmax.f32 %v5667, 0.0
    %v5676 = vmax.f32 %v5670, 0.0
    %v5677 = vpack.c.bf16 %v5674, %v5673
    %v5678 = vpack.c.bf16 %v5676, %v5675
    %v5679 = vld [vmem:[%s8] sm:$0x1]
    %v5680 = vld [vmem:[#allocation5] sm:$0x1]
    %5682 = vset.pattern.permute.xlu0 0
    %5683 = vperm.xlu0 %5682, %v5680
    %v5684 = vpop.permute.xlu0 %5683
    %v5686 = vlaneseq
    %v5687 = vshrl.u32 %v5686, 7
    %v5688 = vsub.s32 0, %v5687
    %v5689 = vrot.slane %v5684, %v5688
    %v5691 = vsel %vm142, %v5679, 0
    %5693 = vmatprep.subr.bf16.mxu0 0
    %5694 = vmatpush1.bf16.msra.mxu0 %v5677
    %5695 = vmatprep.subr.bf16.mxu0 0
    %5696 = vmatpush1.bf16.msra.mxu0 %v5678
    %5697 = vmatprep.subr.bf16.mxu0 0
    %5698 = vmatpush1.bf16.msra.mxu0 0
    %5699 = vmatprep.subr.bf16.mxu0 0
    %5700 = vmatpush1.bf16.msra.mxu0 0
    %5701 = vmatprep.subr.bf16.mxu0 0
    %5702 = vmatpush1.bf16.msra.mxu0 0
    %5703 = vmatprep.subr.bf16.mxu0 0
    %5704 = vmatpush1.bf16.msra.mxu0 0
    %5705 = vmatprep.subr.bf16.mxu0 0
    %5706 = vmatpush1.bf16.msra.mxu0 0
    %5707 = vmatprep.subr.bf16.mxu0 0
    %5708 = vmatpush1.bf16.msra.mxu0 0
    %5709 = vmatprep.subr.bf16.mxu0 0
    %5710 = vmatpush1.bf16.msra.mxu0 0
    %5711 = vmatprep.subr.bf16.mxu0 0
    %5712 = vmatpush1.bf16.msra.mxu0 0
    %5713 = vmatprep.subr.bf16.mxu0 0
    %5714 = vmatpush1.bf16.msra.mxu0 0
    %5715 = vmatprep.subr.bf16.mxu0 0
    %5716 = vmatpush1.bf16.msra.mxu0 0
    %5717 = vmatprep.subr.bf16.mxu0 0
    %5718 = vmatpush1.bf16.msra.mxu0 0
    %5719 = vmatprep.subr.bf16.mxu0 0
    %5720 = vmatpush1.bf16.msra.mxu0 0
    %5721 = vmatprep.subr.bf16.mxu0 0
    %5722 = vmatpush1.bf16.msra.mxu0 0
    %5723 = vmatprep.subr.bf16.mxu0 0
    %5724 = vmatpush1.bf16.msra.mxu0 0
    %5725 = vmatprep.mubr.bf16.mxu0 0
    %5726 = vmatmul.mubr.bf16.gmra.mrb[0].mxu0 %v5691
    %v5727 = vpop.f32.mrb[0].mxu0
    %v5728 = vadd.f32 %v5689, %v5727
    %v5729 = vpop.f32.mrb[0].mxu0
    %v5730 = vpop.f32.mrb[0].mxu0
    %v5731 = vpop.f32.mrb[0].mxu0
    %5732 = vdwg.mxu0
    %5733 = vst [vmem:[#allocation9] sm:$0x1] %v5728
    // Predicated region
    $region46: #{tpu_custom_call.1} parent=1 // pred_check
      _
    $region47: #{tpu_custom_call.1} parent=1 // pred_check_branch
      %5735 = sbr.rel (0) target = $region49
    $region48: #{tpu_custom_call.1} parent=1 // pred_region
      %s5737 = ssub.s32 16, 16
      %5738 = vsyncadd [#allocation8], %s5737
      %s5740 = sshll.u32 [#allocation9], 4
      %s5741 = int_to_ptr.vmem [resolvable:$true] %s5740
      %5743 = dma.vmem_to_hbm [thread:$0]  %s5741, 16, %s10, [#allocation8]
    $region49: #{tpu_custom_call.1} parent=1 // pred_fallthru
      _
    // Predicated region
    $region50: #{tpu_custom_call.1} parent=1 // pred_check
      _
    $region51: #{tpu_custom_call.1} parent=1 // pred_check_branch
      %5745 = sbr.rel (0) target = $region53
    $region52: #{tpu_custom_call.1} parent=1 // pred_region
      %5746 = dma.done [#allocation8], 16
    $region53: #{tpu_custom_call.1} parent=1 // pred_fallthru
      _
    %5747 = vsyncpa [#allocation7], 1
    %5748 = vsyncpa [#allocation8], 1

</llo_original>
